<compile_context>
chip_gen: v5e
topology: v5e:2x2
jax: 0.10.0
libtpu: 0.0.40
codegen_flags: <defaults>
</compile_context>

<pallas_src>
import jax
import jax.numpy as jnp
from jax.experimental import pallas as pl
from jax.experimental.pallas import tpu as pltpu

EPS = 1e-5
SLOPE = 0.2


# ---------------------------------------------------------------------------
# Fused kernel
# ---------------------------------------------------------------------------
def _make_kernel(c_dim, df_dim, spatial):
    h_in = [spatial, spatial // 2, spatial // 4, spatial // 8]  # conv inputs
    c_out = [df_dim, 2 * df_dim, 4 * df_dim, 8 * df_dim]
    h2 = [h // 2 for h in h_in]                                  # conv outputs
    lane_out = 32 * df_dim                                       # W2*Cout, all layers

    def lrelu(v):
        return jnp.where(v > 0, v, SLOPE * v)

    def conv_rows(gather, wb_ref, nh2):
        # sum of 4 row-tap matmuls; bf16 operands, f32 accumulation
        acc = jnp.zeros((nh2, lane_out), jnp.float32)
        for kh in range(4):
            g = gather(kh)                       # [nh2, (W+2)*Cin] bf16
            acc = acc + jnp.dot(g, wb_ref[kh],
                                preferred_element_type=jnp.float32)
        return acc                               # [nh2, W2*Cout] f32

    def inorm(v, cout, g_ref, b_ref, n_spatial):
        # v lanes are interleaved as w2*cout + co -> per-channel stats via a
        # 0/1 "same channel" projection matmul (cout is a power of two).
        j = jax.lax.broadcasted_iota(jnp.int32, (lane_out, lane_out), 0)
        k = jax.lax.broadcasted_iota(jnp.int32, (lane_out, lane_out), 1)
        proj = ((j & (cout - 1)) == (k & (cout - 1))).astype(jnp.float32)
        inv_n = 1.0 / float(n_spatial)
        mean = jnp.dot(jnp.sum(v, axis=0, keepdims=True), proj,
                       preferred_element_type=jnp.float32) * inv_n
        d = v - mean
        var = jnp.dot(jnp.sum(d * d, axis=0, keepdims=True), proj,
                      preferred_element_type=jnp.float32) * inv_n
        xn = d * jax.lax.rsqrt(var + EPS)
        return xn * g_ref[...] + b_ref[...]

    def store_planes(dst_ref, v, nh2):
        # write activation rows into the next layer's row-parity planes;
        # zero-padding rows / pad lanes stay zero.
        dst_ref[...] = jnp.zeros_like(dst_ref)
        width = v.shape[1]
        for h in range(nh2):
            r = h + 1                            # padded row index
            dst_ref[r % 2, pl.ds(r // 2, 1), pl.ds(0, width)] = (
                v[h:h + 1, :].astype(dst_ref.dtype))

    def kernel(xp_ref, wb1_ref, wb2_ref, wb3_ref, wb4_ref,
               g2_ref, b2_ref, g3_ref, b3_ref, g4_ref, b4_ref, w5_ref,
               h4_ref, o5_ref, s1_ref, s2_ref, s3_ref):
        # ---- layer 1: conv + leaky relu ----
        a1 = conv_rows(lambda kh: xp_ref[0, kh % 2, pl.ds(kh // 2, h2[0]), :],
                       wb1_ref, h2[0])
        a1 = lrelu(a1)
        store_planes(s1_ref, a1, h2[0])

        # ---- layer 2: conv + InstanceNorm(affine) + leaky relu ----
        a2 = conv_rows(lambda kh: s1_ref[kh % 2, pl.ds(kh // 2, h2[1]), :],
                       wb2_ref, h2[1])
        a2 = lrelu(inorm(a2, c_out[1], g2_ref, b2_ref, h2[1] * h2[1]))
        store_planes(s2_ref, a2, h2[1])

        # ---- layer 3 ----
        a3 = conv_rows(lambda kh: s2_ref[kh % 2, pl.ds(kh // 2, h2[2]), :],
                       wb3_ref, h2[2])
        a3 = lrelu(inorm(a3, c_out[2], g3_ref, b3_ref, h2[2] * h2[2]))
        store_planes(s3_ref, a3, h2[2])

        # ---- layer 4 ----
        a4 = conv_rows(lambda kh: s3_ref[kh % 2, pl.ds(kh // 2, h2[3]), :],
                       wb4_ref, h2[3])
        a4 = lrelu(inorm(a4, c_out[3], g4_ref, b4_ref, h2[3] * h2[3]))
        h4_ref[0] = a4.astype(h4_ref.dtype)      # [4, 4*8*df] interleaved

        # ---- layer 5: 4x4 valid conv on 4x4 input == full dot product ----
        prod = a4 * w5_ref[...]
        s = jnp.sum(prod, axis=1, keepdims=True)
        s = jnp.sum(s, axis=0, keepdims=True)
        o5_ref[0] = s.astype(o5_ref.dtype)

    return kernel


# ---------------------------------------------------------------------------
# Wrapper-side layout plumbing (cheap XLA ops on inputs / weights only)
# ---------------------------------------------------------------------------
def _band_weights(w4, w_in):
    """[Cout,Cin,4,4] OIHW weights -> 4 banded matrices [(w_in+2)*Cin, W2*Cout]
    that implement the stride-2 column subsampling for one row-tap each."""
    cout, cin, _, _ = w4.shape
    w2 = w_in // 2
    # slot -> padded column index (interior columns first, the 2 pad cols last)
    s_of_slot = jnp.concatenate(
        [jnp.arange(1, w_in + 1), jnp.array([0, w_in + 1])]).astype(jnp.int32)
    tgt = (2 * jnp.arange(w2, dtype=jnp.int32)[None, :, None]
           + jnp.arange(4, dtype=jnp.int32)[None, None, :])
    onehot = (s_of_slot[:, None, None] == tgt).astype(jnp.float32)   # [Wp,W2,4]
    band = jnp.einsum('swk,ochk->hscwo', onehot, w4.astype(jnp.float32))
    return band.reshape(4, (w_in + 2) * cin, w2 * cout).astype(jnp.bfloat16)


def _input_planes(x):
    """NCHW f32 input -> [N, 2, H/2+1, (W+2)*C] bf16 row-parity planes."""
    n, c, h, w = x.shape
    xp = jnp.pad(x, ((0, 0), (0, 0), (1, 1), (0, 0)))           # pad rows
    xp = xp.transpose(0, 2, 3, 1).reshape(n, h + 2, w * c)      # rows, (w,c)
    xp = jnp.pad(xp, ((0, 0), (0, 0), (0, 2 * c)))              # 2 pad cols (zeros)
    xp = xp.reshape(n, (h + 2) // 2, 2, (w + 2) * c).transpose(0, 2, 1, 3)
    return xp.astype(jnp.bfloat16)


def make_discriminator_forward(c_dim, df_dim, spatial):
    assert spatial == 64, "architecture needs 64x64 input (4x4 before layer5)"
    assert df_dim & (df_dim - 1) == 0, "df_dim must be a power of two"
    n_lane = 32 * df_dim
    h_in = [spatial, spatial // 2, spatial // 4, spatial // 8]
    c_in = [c_dim, df_dim, 2 * df_dim, 4 * df_dim]
    c_out = [df_dim, 2 * df_dim, 4 * df_dim, 8 * df_dim]
    h2 = [h // 2 for h in h_in]
    kernel = _make_kernel(c_dim, df_dim, spatial)

    def _full_spec(shape):
        return pl.BlockSpec(shape, lambda i, _z=(0,) * len(shape): _z)

    def forward(x, params):
        n = x.shape[0]
        xp = _input_planes(x)
        bands = [_band_weights(params[f"w{l + 1}"], h_in[l]) for l in range(4)]
        gb = []
        for l in (2, 3, 4):
            w2_l = h2[l - 1]
            gb.append(jnp.tile(params[f"g{l}"].astype(jnp.float32),
                               w2_l).reshape(1, n_lane))
            gb.append(jnp.tile(params[f"b{l}"].astype(jnp.float32),
                               w2_l).reshape(1, n_lane))
        w5_il = params["w5"][0].transpose(1, 2, 0).reshape(4, n_lane)
        w5_il = w5_il.astype(jnp.float32)

        in_specs = [
            pl.BlockSpec((1, 2, spatial // 2 + 1, (spatial + 2) * c_dim),
                         lambda i: (i, 0, 0, 0)),
            _full_spec((4, (h_in[0] + 2) * c_in[0], n_lane)),
            _full_spec((4, (h_in[1] + 2) * c_in[1], n_lane)),
            _full_spec((4, (h_in[2] + 2) * c_in[2], n_lane)),
            _full_spec((4, (h_in[3] + 2) * c_in[3], n_lane)),
            _full_spec((1, n_lane)), _full_spec((1, n_lane)),
            _full_spec((1, n_lane)), _full_spec((1, n_lane)),
            _full_spec((1, n_lane)), _full_spec((1, n_lane)),
            _full_spec((4, n_lane)),
        ]
        out_shape = (
            jax.ShapeDtypeStruct((n, 4, n_lane), jnp.float32),   # h4 (interleaved)
            jax.ShapeDtypeStruct((n, 1, 1), jnp.float32),        # logits
        )
        out_specs = (
            pl.BlockSpec((1, 4, n_lane), lambda i: (i, 0, 0)),
            pl.BlockSpec((1, 1, 1), lambda i: (i, 0, 0)),
        )
        scratch_shapes = [
            pltpu.VMEM((2, h_in[l] // 2 + 1, (h_in[l] + 2) * c_in[l]),
                       jnp.bfloat16)
            for l in (1, 2, 3)
        ]

        h4_il, o5 = pl.pallas_call(
            kernel,
            out_shape=out_shape,
            grid=(n,),
            in_specs=in_specs,
            out_specs=out_specs,
            scratch_shapes=scratch_shapes,
            compiler_params=pltpu.CompilerParams(
                dimension_semantics=("parallel",),
                vmem_limit_bytes=32 * 1024 * 1024),
        )(xp, *bands, *gb, w5_il)

        # un-interleave h4 back to NCHW (tiny wrapper-side layout op)
        h4 = h4_il.reshape(n, 4, 4, 8 * df_dim).transpose(0, 3, 1, 2)
        return h4, o5.reshape(n)

    return forward


# ---------------------------------------------------------------------------
# Pure-JAX reference (bf16 matmul inputs / f32 accumulation, like the kernel)
# ---------------------------------------------------------------------------
def _ref_forward(x, p):
    dn = ("NCHW", "OIHW", "NCHW")

    def conv(h, w, s, pad):
        return jax.lax.conv_general_dilated(
            h.astype(jnp.bfloat16), w.astype(jnp.bfloat16), (s, s),
            [(pad, pad), (pad, pad)], dimension_numbers=dn,
            preferred_element_type=jnp.float32)

    def inorm(h, g, b):
        m = h.mean(axis=(2, 3), keepdims=True)
        v = jnp.square(h - m).mean(axis=(2, 3), keepdims=True)
        hn = (h - m) * jax.lax.rsqrt(v + EPS)
        return hn * g[None, :, None, None] + b[None, :, None, None]

    def lrelu(h):
        return jnp.where(h > 0, h, SLOPE * h)

    h = lrelu(conv(x, p["w1"], 2, 1))
    h = lrelu(inorm(conv(h, p["w2"], 2, 1), p["g2"], p["b2"]))
    h = lrelu(inorm(conv(h, p["w3"], 2, 1), p["g3"], p["b3"]))
    h4 = lrelu(inorm(conv(h, p["w4"], 2, 1), p["g4"], p["b4"]))
    out = jax.lax.conv_general_dilated(
        h4, p["w5"], (1, 1), [(0, 0), (0, 0)], dimension_numbers=dn)
    return h4, out.reshape(-1, 1)[:, 0]


# ---------------------------------------------------------------------------
def init_params(key, c_dim, df_dim):
    ks = jax.random.split(key, 11)
    std = 0.02
    return {
        "w1": std * jax.random.normal(ks[0], (df_dim, c_dim, 4, 4), jnp.float32),
        "w2": std * jax.random.normal(ks[1], (df_dim * 2, df_dim, 4, 4), jnp.float32),
        "w3": std * jax.random.normal(ks[2], (df_dim * 4, df_dim * 2, 4, 4), jnp.float32),
        "w4": std * jax.random.normal(ks[3], (df_dim * 8, df_dim * 4, 4, 4), jnp.float32),
        "w5": std * jax.random.normal(ks[4], (1, df_dim * 8, 4, 4), jnp.float32),
        "g2": 1.0 + 0.1 * jax.random.normal(ks[5], (df_dim * 2,), jnp.float32),
        "b2": 0.1 * jax.random.normal(ks[6], (df_dim * 2,), jnp.float32),
        "g3": 1.0 + 0.1 * jax.random.normal(ks[7], (df_dim * 4,), jnp.float32),
        "b3": 0.1 * jax.random.normal(ks[8], (df_dim * 4,), jnp.float32),
        "g4": 1.0 + 0.1 * jax.random.normal(ks[9], (df_dim * 8,), jnp.float32),
        "b4": 0.1 * jax.random.normal(ks[10], (df_dim * 8,), jnp.float32),
    }


if __name__ == "__main__":
    # DCGAN geometry: 64x64 input -> 4x4 after four stride-2 convs -> 1x1.
    batch, c_dim, df_dim, spatial = 2, 3, 8, 64
    key = jax.random.PRNGKey(0)
    kx, kp = jax.random.split(key)
    x = jax.random.normal(kx, (batch, c_dim, spatial, spatial), jnp.float32)
    params = init_params(kp, c_dim, df_dim)

    fwd = jax.jit(make_discriminator_forward(c_dim, df_dim, spatial))
    h4, out = fwd(x, params)
    jax.block_until_ready((h4, out))

    assert h4.shape == (batch, df_dim * 8, 4, 4), h4.shape
    assert out.shape == (batch,), out.shape

    # tight check vs reference using the same bf16-input / f32-accum numerics
    h4_ref, out_ref = _ref_forward(x, params)
    assert jnp.allclose(h4, h4_ref, atol=2e-3, rtol=2e-3), (
        float(jnp.max(jnp.abs(h4 - h4_ref))))
    assert jnp.allclose(out, out_ref, atol=2e-3, rtol=2e-3), (
        float(jnp.max(jnp.abs(out - out_ref))))

    print("KERNEL_OK")
</pallas_src>

<mosaic_0001>
module attributes {stable_mosaic.version = 11 : i64} {
  func.func @kernel(%arg0: i32, %arg1: memref<1x2x33x198xbf16, #tpu.memory_space<vmem>>, %arg2: memref<4x198x256xbf16, #tpu.memory_space<vmem>>, %arg3: memref<4x272x256xbf16, #tpu.memory_space<vmem>>, %arg4: memref<4x288x256xbf16, #tpu.memory_space<vmem>>, %arg5: memref<4x320x256xbf16, #tpu.memory_space<vmem>>, %arg6: memref<1x256xf32, #tpu.memory_space<vmem>>, %arg7: memref<1x256xf32, #tpu.memory_space<vmem>>, %arg8: memref<1x256xf32, #tpu.memory_space<vmem>>, %arg9: memref<1x256xf32, #tpu.memory_space<vmem>>, %arg10: memref<1x256xf32, #tpu.memory_space<vmem>>, %arg11: memref<1x256xf32, #tpu.memory_space<vmem>>, %arg12: memref<4x256xf32, #tpu.memory_space<vmem>>, %arg13: memref<1x4x256xf32, #tpu.memory_space<vmem>>, %arg14: memref<1x1x1xf32, #tpu.memory_space<vmem>>, %arg15: memref<2x17x272xbf16, #tpu.memory_space<vmem>>, %arg16: memref<2x9x288xbf16, #tpu.memory_space<vmem>>, %arg17: memref<2x5x320xbf16, #tpu.memory_space<vmem>>) attributes {dimension_semantics = [#tpu.dimension_semantics<parallel>], iteration_bounds = array<i64: 2>, scalar_prefetch = 0 : i64, scratch_operands = 3 : i64, tpu.core_type = #tpu.core_type<tc>, window_params = [{transform_indices = @transform_0, window_bounds = array<i64: 1, 2, 33, 198>}, {pipeline_mode = #tpu.pipeline_mode<synchronous>, transform_indices = @transform_1, window_bounds = array<i64: 4, 198, 256>}, {pipeline_mode = #tpu.pipeline_mode<synchronous>, transform_indices = @transform_2, window_bounds = array<i64: 4, 272, 256>}, {pipeline_mode = #tpu.pipeline_mode<synchronous>, transform_indices = @transform_3, window_bounds = array<i64: 4, 288, 256>}, {pipeline_mode = #tpu.pipeline_mode<synchronous>, transform_indices = @transform_4, window_bounds = array<i64: 4, 320, 256>}, {pipeline_mode = #tpu.pipeline_mode<synchronous>, transform_indices = @transform_5, window_bounds = array<i64: 1, 256>}, {pipeline_mode = #tpu.pipeline_mode<synchronous>, transform_indices = @transform_6, window_bounds = array<i64: 1, 256>}, {pipeline_mode = #tpu.pipeline_mode<synchronous>, transform_indices = @transform_7, window_bounds = array<i64: 1, 256>}, {pipeline_mode = #tpu.pipeline_mode<synchronous>, transform_indices = @transform_8, window_bounds = array<i64: 1, 256>}, {pipeline_mode = #tpu.pipeline_mode<synchronous>, transform_indices = @transform_9, window_bounds = array<i64: 1, 256>}, {pipeline_mode = #tpu.pipeline_mode<synchronous>, transform_indices = @transform_10, window_bounds = array<i64: 1, 256>}, {pipeline_mode = #tpu.pipeline_mode<synchronous>, transform_indices = @transform_11, window_bounds = array<i64: 4, 256>}, {transform_indices = @transform_12, window_bounds = array<i64: 1, 4, 256>}, {transform_indices = @transform_13, window_bounds = array<i64: 1, 1, 1>}]} {
    %cst = arith.constant 0.000000e+00 : f32
    %0 = vector.broadcast %cst : f32 to vector<32x256xf32>
    %c0 = arith.constant 0 : index
    %c0_0 = arith.constant 0 : index
    %c0_1 = arith.constant 0 : index
    %c0_2 = arith.constant 0 : index
    %1 = vector.load %arg1[%c0, %c0_0, %c0_1, %c0_2] : memref<1x2x33x198xbf16, #tpu.memory_space<vmem>>, vector<1x1x32x198xbf16>
    %2 = vector.shape_cast %1 : vector<1x1x32x198xbf16> to vector<32x198xbf16>
    %c0_3 = arith.constant 0 : index
    %c0_4 = arith.constant 0 : index
    %c0_5 = arith.constant 0 : index
    %3 = vector.load %arg2[%c0_3, %c0_4, %c0_5] : memref<4x198x256xbf16, #tpu.memory_space<vmem>>, vector<1x198x256xbf16>
    %4 = vector.shape_cast %3 : vector<1x198x256xbf16> to vector<198x256xbf16>
    %cst_6 = arith.constant dense<0.000000e+00> : vector<32x256xf32>
    %5 = tpu.matmul %2, %4, %cst_6 {dimension_numbers = #tpu.dot_dimension_numbers<[1], [0], [0], [1], [0, 0, 1, 1], [], []>} : vector<32x198xbf16>, vector<198x256xbf16>, vector<32x256xf32> -> vector<32x256xf32>
    %6 = arith.addf %0, %5 : vector<32x256xf32>
    %c0_7 = arith.constant 0 : index
    %c1 = arith.constant 1 : index
    %c0_8 = arith.constant 0 : index
    %c0_9 = arith.constant 0 : index
    %7 = vector.load %arg1[%c0_7, %c1, %c0_8, %c0_9] : memref<1x2x33x198xbf16, #tpu.memory_space<vmem>>, vector<1x1x32x198xbf16>
    %8 = vector.shape_cast %7 : vector<1x1x32x198xbf16> to vector<32x198xbf16>
    %c1_10 = arith.constant 1 : index
    %c0_11 = arith.constant 0 : index
    %c0_12 = arith.constant 0 : index
    %9 = vector.load %arg2[%c1_10, %c0_11, %c0_12] : memref<4x198x256xbf16, #tpu.memory_space<vmem>>, vector<1x198x256xbf16>
    %10 = vector.shape_cast %9 : vector<1x198x256xbf16> to vector<198x256xbf16>
    %cst_13 = arith.constant dense<0.000000e+00> : vector<32x256xf32>
    %11 = tpu.matmul %8, %10, %cst_13 {dimension_numbers = #tpu.dot_dimension_numbers<[1], [0], [0], [1], [0, 0, 1, 1], [], []>} : vector<32x198xbf16>, vector<198x256xbf16>, vector<32x256xf32> -> vector<32x256xf32>
    %12 = arith.addf %6, %11 : vector<32x256xf32>
    %c0_14 = arith.constant 0 : index
    %c0_15 = arith.constant 0 : index
    %c1_16 = arith.constant 1 : index
    %c0_17 = arith.constant 0 : index
    %13 = vector.load %arg1[%c0_14, %c0_15, %c1_16, %c0_17] : memref<1x2x33x198xbf16, #tpu.memory_space<vmem>>, vector<1x1x32x198xbf16>
    %14 = vector.shape_cast %13 : vector<1x1x32x198xbf16> to vector<32x198xbf16>
    %c2 = arith.constant 2 : index
    %c0_18 = arith.constant 0 : index
    %c0_19 = arith.constant 0 : index
    %15 = vector.load %arg2[%c2, %c0_18, %c0_19] : memref<4x198x256xbf16, #tpu.memory_space<vmem>>, vector<1x198x256xbf16>
    %16 = vector.shape_cast %15 : vector<1x198x256xbf16> to vector<198x256xbf16>
    %cst_20 = arith.constant dense<0.000000e+00> : vector<32x256xf32>
    %17 = tpu.matmul %14, %16, %cst_20 {dimension_numbers = #tpu.dot_dimension_numbers<[1], [0], [0], [1], [0, 0, 1, 1], [], []>} : vector<32x198xbf16>, vector<198x256xbf16>, vector<32x256xf32> -> vector<32x256xf32>
    %18 = arith.addf %12, %17 : vector<32x256xf32>
    %c0_21 = arith.constant 0 : index
    %c1_22 = arith.constant 1 : index
    %c1_23 = arith.constant 1 : index
    %c0_24 = arith.constant 0 : index
    %19 = vector.load %arg1[%c0_21, %c1_22, %c1_23, %c0_24] : memref<1x2x33x198xbf16, #tpu.memory_space<vmem>>, vector<1x1x32x198xbf16>
    %20 = vector.shape_cast %19 : vector<1x1x32x198xbf16> to vector<32x198xbf16>
    %c3 = arith.constant 3 : index
    %c0_25 = arith.constant 0 : index
    %c0_26 = arith.constant 0 : index
    %21 = vector.load %arg2[%c3, %c0_25, %c0_26] : memref<4x198x256xbf16, #tpu.memory_space<vmem>>, vector<1x198x256xbf16>
    %22 = vector.shape_cast %21 : vector<1x198x256xbf16> to vector<198x256xbf16>
    %cst_27 = arith.constant dense<0.000000e+00> : vector<32x256xf32>
    %23 = tpu.matmul %20, %22, %cst_27 {dimension_numbers = #tpu.dot_dimension_numbers<[1], [0], [0], [1], [0, 0, 1, 1], [], []>} : vector<32x198xbf16>, vector<198x256xbf16>, vector<32x256xf32> -> vector<32x256xf32>
    %24 = arith.addf %18, %23 : vector<32x256xf32>
    %cst_28 = arith.constant 0.000000e+00 : f32
    %25 = vector.broadcast %cst_28 : f32 to vector<32x256xf32>
    %26 = arith.cmpf ogt, %24, %25 : vector<32x256xf32>
    %cst_29 = arith.constant 2.000000e-01 : f32
    %27 = vector.broadcast %cst_29 : f32 to vector<32x256xf32>
    %28 = arith.mulf %27, %24 : vector<32x256xf32>
    %29 = arith.select %26, %24, %28 : vector<32x256xi1>, vector<32x256xf32>
    %cst_30 = arith.constant 0.000000e+00 : bf16
    %30 = vector.broadcast %cst_30 : bf16 to vector<2x17x272xbf16>
    %c0_31 = arith.constant 0 : index
    %c0_32 = arith.constant 0 : index
    %c0_33 = arith.constant 0 : index
    %31 = vector.load %arg15[%c0_31, %c0_32, %c0_33] : memref<2x17x272xbf16, #tpu.memory_space<vmem>>, vector<2x17x272xbf16>
    tpu.vector_store %arg15[%c0_31, %c0_32, %c0_33], %30 {strides = array<i32>} : memref<2x17x272xbf16, #tpu.memory_space<vmem>>, vector<2x17x272xbf16>,
    %32 = vector.extract_strided_slice %29 {offsets = [0, 0], sizes = [1, 256], strides = [1, 1]} : vector<32x256xf32> to vector<1x256xf32>
    %33 = arith.truncf %32 : vector<1x256xf32> to vector<1x256xbf16>
    %c1_34 = arith.constant 1 : index
    %c0_35 = arith.constant 0 : index
    %c0_36 = arith.constant 0 : index
    %34 = vector.load %arg15[%c1_34, %c0_35, %c0_36] : memref<2x17x272xbf16, #tpu.memory_space<vmem>>, vector<1x1x256xbf16>
    %35 = vector.shape_cast %34 : vector<1x1x256xbf16> to vector<1x256xbf16>
    %36 = vector.shape_cast %33 : vector<1x256xbf16> to vector<1x1x256xbf16>
    tpu.vector_store %arg15[%c1_34, %c0_35, %c0_36], %36 {strides = array<i32>} : memref<2x17x272xbf16, #tpu.memory_space<vmem>>, vector<1x1x256xbf16>,
    %37 = vector.extract_strided_slice %29 {offsets = [1, 0], sizes = [1, 256], strides = [1, 1]} : vector<32x256xf32> to vector<1x256xf32>
    %38 = arith.truncf %37 : vector<1x256xf32> to vector<1x256xbf16>
    %c0_37 = arith.constant 0 : index
    %c1_38 = arith.constant 1 : index
    %c0_39 = arith.constant 0 : index
    %39 = vector.load %arg15[%c0_37, %c1_38, %c0_39] : memref<2x17x272xbf16, #tpu.memory_space<vmem>>, vector<1x1x256xbf16>
    %40 = vector.shape_cast %39 : vector<1x1x256xbf16> to vector<1x256xbf16>
    %41 = vector.shape_cast %38 : vector<1x256xbf16> to vector<1x1x256xbf16>
    tpu.vector_store %arg15[%c0_37, %c1_38, %c0_39], %41 {strides = array<i32>} : memref<2x17x272xbf16, #tpu.memory_space<vmem>>, vector<1x1x256xbf16>,
    %42 = vector.extract_strided_slice %29 {offsets = [2, 0], sizes = [1, 256], strides = [1, 1]} : vector<32x256xf32> to vector<1x256xf32>
    %43 = arith.truncf %42 : vector<1x256xf32> to vector<1x256xbf16>
    %c1_40 = arith.constant 1 : index
    %c1_41 = arith.constant 1 : index
    %c0_42 = arith.constant 0 : index
    %44 = vector.load %arg15[%c1_40, %c1_41, %c0_42] : memref<2x17x272xbf16, #tpu.memory_space<vmem>>, vector<1x1x256xbf16>
    %45 = vector.shape_cast %44 : vector<1x1x256xbf16> to vector<1x256xbf16>
    %46 = vector.shape_cast %43 : vector<1x256xbf16> to vector<1x1x256xbf16>
    tpu.vector_store %arg15[%c1_40, %c1_41, %c0_42], %46 {strides = array<i32>} : memref<2x17x272xbf16, #tpu.memory_space<vmem>>, vector<1x1x256xbf16>,
    %47 = vector.extract_strided_slice %29 {offsets = [3, 0], sizes = [1, 256], strides = [1, 1]} : vector<32x256xf32> to vector<1x256xf32>
    %48 = arith.truncf %47 : vector<1x256xf32> to vector<1x256xbf16>
    %c0_43 = arith.constant 0 : index
    %c2_44 = arith.constant 2 : index
    %c0_45 = arith.constant 0 : index
    %49 = vector.load %arg15[%c0_43, %c2_44, %c0_45] : memref<2x17x272xbf16, #tpu.memory_space<vmem>>, vector<1x1x256xbf16>
    %50 = vector.shape_cast %49 : vector<1x1x256xbf16> to vector<1x256xbf16>
    %51 = vector.shape_cast %48 : vector<1x256xbf16> to vector<1x1x256xbf16>
    tpu.vector_store %arg15[%c0_43, %c2_44, %c0_45], %51 {strides = array<i32>} : memref<2x17x272xbf16, #tpu.memory_space<vmem>>, vector<1x1x256xbf16>,
    %52 = vector.extract_strided_slice %29 {offsets = [4, 0], sizes = [1, 256], strides = [1, 1]} : vector<32x256xf32> to vector<1x256xf32>
    %53 = arith.truncf %52 : vector<1x256xf32> to vector<1x256xbf16>
    %c1_46 = arith.constant 1 : index
    %c2_47 = arith.constant 2 : index
    %c0_48 = arith.constant 0 : index
    %54 = vector.load %arg15[%c1_46, %c2_47, %c0_48] : memref<2x17x272xbf16, #tpu.memory_space<vmem>>, vector<1x1x256xbf16>
    %55 = vector.shape_cast %54 : vector<1x1x256xbf16> to vector<1x256xbf16>
    %56 = vector.shape_cast %53 : vector<1x256xbf16> to vector<1x1x256xbf16>
    tpu.vector_store %arg15[%c1_46, %c2_47, %c0_48], %56 {strides = array<i32>} : memref<2x17x272xbf16, #tpu.memory_space<vmem>>, vector<1x1x256xbf16>,
    %57 = vector.extract_strided_slice %29 {offsets = [5, 0], sizes = [1, 256], strides = [1, 1]} : vector<32x256xf32> to vector<1x256xf32>
    %58 = arith.truncf %57 : vector<1x256xf32> to vector<1x256xbf16>
    %c0_49 = arith.constant 0 : index
    %c3_50 = arith.constant 3 : index
    %c0_51 = arith.constant 0 : index
    %59 = vector.load %arg15[%c0_49, %c3_50, %c0_51] : memref<2x17x272xbf16, #tpu.memory_space<vmem>>, vector<1x1x256xbf16>
    %60 = vector.shape_cast %59 : vector<1x1x256xbf16> to vector<1x256xbf16>
    %61 = vector.shape_cast %58 : vector<1x256xbf16> to vector<1x1x256xbf16>
    tpu.vector_store %arg15[%c0_49, %c3_50, %c0_51], %61 {strides = array<i32>} : memref<2x17x272xbf16, #tpu.memory_space<vmem>>, vector<1x1x256xbf16>,
    %62 = vector.extract_strided_slice %29 {offsets = [6, 0], sizes = [1, 256], strides = [1, 1]} : vector<32x256xf32> to vector<1x256xf32>
    %63 = arith.truncf %62 : vector<1x256xf32> to vector<1x256xbf16>
    %c1_52 = arith.constant 1 : index
    %c3_53 = arith.constant 3 : index
    %c0_54 = arith.constant 0 : index
    %64 = vector.load %arg15[%c1_52, %c3_53, %c0_54] : memref<2x17x272xbf16, #tpu.memory_space<vmem>>, vector<1x1x256xbf16>
    %65 = vector.shape_cast %64 : vector<1x1x256xbf16> to vector<1x256xbf16>
    %66 = vector.shape_cast %63 : vector<1x256xbf16> to vector<1x1x256xbf16>
    tpu.vector_store %arg15[%c1_52, %c3_53, %c0_54], %66 {strides = array<i32>} : memref<2x17x272xbf16, #tpu.memory_space<vmem>>, vector<1x1x256xbf16>,
    %67 = vector.extract_strided_slice %29 {offsets = [7, 0], sizes = [1, 256], strides = [1, 1]} : vector<32x256xf32> to vector<1x256xf32>
    %68 = arith.truncf %67 : vector<1x256xf32> to vector<1x256xbf16>
    %c0_55 = arith.constant 0 : index
    %c4 = arith.constant 4 : index
    %c0_56 = arith.constant 0 : index
    %69 = vector.load %arg15[%c0_55, %c4, %c0_56] : memref<2x17x272xbf16, #tpu.memory_space<vmem>>, vector<1x1x256xbf16>
    %70 = vector.shape_cast %69 : vector<1x1x256xbf16> to vector<1x256xbf16>
    %71 = vector.shape_cast %68 : vector<1x256xbf16> to vector<1x1x256xbf16>
    tpu.vector_store %arg15[%c0_55, %c4, %c0_56], %71 {strides = array<i32>} : memref<2x17x272xbf16, #tpu.memory_space<vmem>>, vector<1x1x256xbf16>,
    %72 = vector.extract_strided_slice %29 {offsets = [8, 0], sizes = [1, 256], strides = [1, 1]} : vector<32x256xf32> to vector<1x256xf32>
    %73 = arith.truncf %72 : vector<1x256xf32> to vector<1x256xbf16>
    %c1_57 = arith.constant 1 : index
    %c4_58 = arith.constant 4 : index
    %c0_59 = arith.constant 0 : index
    %74 = vector.load %arg15[%c1_57, %c4_58, %c0_59] : memref<2x17x272xbf16, #tpu.memory_space<vmem>>, vector<1x1x256xbf16>
    %75 = vector.shape_cast %74 : vector<1x1x256xbf16> to vector<1x256xbf16>
    %76 = vector.shape_cast %73 : vector<1x256xbf16> to vector<1x1x256xbf16>
    tpu.vector_store %arg15[%c1_57, %c4_58, %c0_59], %76 {strides = array<i32>} : memref<2x17x272xbf16, #tpu.memory_space<vmem>>, vector<1x1x256xbf16>,
    %77 = vector.extract_strided_slice %29 {offsets = [9, 0], sizes = [1, 256], strides = [1, 1]} : vector<32x256xf32> to vector<1x256xf32>
    %78 = arith.truncf %77 : vector<1x256xf32> to vector<1x256xbf16>
    %c0_60 = arith.constant 0 : index
    %c5 = arith.constant 5 : index
    %c0_61 = arith.constant 0 : index
    %79 = vector.load %arg15[%c0_60, %c5, %c0_61] : memref<2x17x272xbf16, #tpu.memory_space<vmem>>, vector<1x1x256xbf16>
    %80 = vector.shape_cast %79 : vector<1x1x256xbf16> to vector<1x256xbf16>
    %81 = vector.shape_cast %78 : vector<1x256xbf16> to vector<1x1x256xbf16>
    tpu.vector_store %arg15[%c0_60, %c5, %c0_61], %81 {strides = array<i32>} : memref<2x17x272xbf16, #tpu.memory_space<vmem>>, vector<1x1x256xbf16>,
    %82 = vector.extract_strided_slice %29 {offsets = [10, 0], sizes = [1, 256], strides = [1, 1]} : vector<32x256xf32> to vector<1x256xf32>
    %83 = arith.truncf %82 : vector<1x256xf32> to vector<1x256xbf16>
    %c1_62 = arith.constant 1 : index
    %c5_63 = arith.constant 5 : index
    %c0_64 = arith.constant 0 : index
    %84 = vector.load %arg15[%c1_62, %c5_63, %c0_64] : memref<2x17x272xbf16, #tpu.memory_space<vmem>>, vector<1x1x256xbf16>
    %85 = vector.shape_cast %84 : vector<1x1x256xbf16> to vector<1x256xbf16>
    %86 = vector.shape_cast %83 : vector<1x256xbf16> to vector<1x1x256xbf16>
    tpu.vector_store %arg15[%c1_62, %c5_63, %c0_64], %86 {strides = array<i32>} : memref<2x17x272xbf16, #tpu.memory_space<vmem>>, vector<1x1x256xbf16>,
    %87 = vector.extract_strided_slice %29 {offsets = [11, 0], sizes = [1, 256], strides = [1, 1]} : vector<32x256xf32> to vector<1x256xf32>
    %88 = arith.truncf %87 : vector<1x256xf32> to vector<1x256xbf16>
    %c0_65 = arith.constant 0 : index
    %c6 = arith.constant 6 : index
    %c0_66 = arith.constant 0 : index
    %89 = vector.load %arg15[%c0_65, %c6, %c0_66] : memref<2x17x272xbf16, #tpu.memory_space<vmem>>, vector<1x1x256xbf16>
    %90 = vector.shape_cast %89 : vector<1x1x256xbf16> to vector<1x256xbf16>
    %91 = vector.shape_cast %88 : vector<1x256xbf16> to vector<1x1x256xbf16>
    tpu.vector_store %arg15[%c0_65, %c6, %c0_66], %91 {strides = array<i32>} : memref<2x17x272xbf16, #tpu.memory_space<vmem>>, vector<1x1x256xbf16>,
    %92 = vector.extract_strided_slice %29 {offsets = [12, 0], sizes = [1, 256], strides = [1, 1]} : vector<32x256xf32> to vector<1x256xf32>
    %93 = arith.truncf %92 : vector<1x256xf32> to vector<1x256xbf16>
    %c1_67 = arith.constant 1 : index
    %c6_68 = arith.constant 6 : index
    %c0_69 = arith.constant 0 : index
    %94 = vector.load %arg15[%c1_67, %c6_68, %c0_69] : memref<2x17x272xbf16, #tpu.memory_space<vmem>>, vector<1x1x256xbf16>
    %95 = vector.shape_cast %94 : vector<1x1x256xbf16> to vector<1x256xbf16>
    %96 = vector.shape_cast %93 : vector<1x256xbf16> to vector<1x1x256xbf16>
    tpu.vector_store %arg15[%c1_67, %c6_68, %c0_69], %96 {strides = array<i32>} : memref<2x17x272xbf16, #tpu.memory_space<vmem>>, vector<1x1x256xbf16>,
    %97 = vector.extract_strided_slice %29 {offsets = [13, 0], sizes = [1, 256], strides = [1, 1]} : vector<32x256xf32> to vector<1x256xf32>
    %98 = arith.truncf %97 : vector<1x256xf32> to vector<1x256xbf16>
    %c0_70 = arith.constant 0 : index
    %c7 = arith.constant 7 : index
    %c0_71 = arith.constant 0 : index
    %99 = vector.load %arg15[%c0_70, %c7, %c0_71] : memref<2x17x272xbf16, #tpu.memory_space<vmem>>, vector<1x1x256xbf16>
    %100 = vector.shape_cast %99 : vector<1x1x256xbf16> to vector<1x256xbf16>
    %101 = vector.shape_cast %98 : vector<1x256xbf16> to vector<1x1x256xbf16>
    tpu.vector_store %arg15[%c0_70, %c7, %c0_71], %101 {strides = array<i32>} : memref<2x17x272xbf16, #tpu.memory_space<vmem>>, vector<1x1x256xbf16>,
    %102 = vector.extract_strided_slice %29 {offsets = [14, 0], sizes = [1, 256], strides = [1, 1]} : vector<32x256xf32> to vector<1x256xf32>
    %103 = arith.truncf %102 : vector<1x256xf32> to vector<1x256xbf16>
    %c1_72 = arith.constant 1 : index
    %c7_73 = arith.constant 7 : index
    %c0_74 = arith.constant 0 : index
    %104 = vector.load %arg15[%c1_72, %c7_73, %c0_74] : memref<2x17x272xbf16, #tpu.memory_space<vmem>>, vector<1x1x256xbf16>
    %105 = vector.shape_cast %104 : vector<1x1x256xbf16> to vector<1x256xbf16>
    %106 = vector.shape_cast %103 : vector<1x256xbf16> to vector<1x1x256xbf16>
    tpu.vector_store %arg15[%c1_72, %c7_73, %c0_74], %106 {strides = array<i32>} : memref<2x17x272xbf16, #tpu.memory_space<vmem>>, vector<1x1x256xbf16>,
    %107 = vector.extract_strided_slice %29 {offsets = [15, 0], sizes = [1, 256], strides = [1, 1]} : vector<32x256xf32> to vector<1x256xf32>
    %108 = arith.truncf %107 : vector<1x256xf32> to vector<1x256xbf16>
    %c0_75 = arith.constant 0 : index
    %c8 = arith.constant 8 : index
    %c0_76 = arith.constant 0 : index
    %109 = vector.load %arg15[%c0_75, %c8, %c0_76] : memref<2x17x272xbf16, #tpu.memory_space<vmem>>, vector<1x1x256xbf16>
    %110 = vector.shape_cast %109 : vector<1x1x256xbf16> to vector<1x256xbf16>
    %111 = vector.shape_cast %108 : vector<1x256xbf16> to vector<1x1x256xbf16>
    tpu.vector_store %arg15[%c0_75, %c8, %c0_76], %111 {strides = array<i32>} : memref<2x17x272xbf16, #tpu.memory_space<vmem>>, vector<1x1x256xbf16>,
    %112 = vector.extract_strided_slice %29 {offsets = [16, 0], sizes = [1, 256], strides = [1, 1]} : vector<32x256xf32> to vector<1x256xf32>
    %113 = arith.truncf %112 : vector<1x256xf32> to vector<1x256xbf16>
    %c1_77 = arith.constant 1 : index
    %c8_78 = arith.constant 8 : index
    %c0_79 = arith.constant 0 : index
    %114 = vector.load %arg15[%c1_77, %c8_78, %c0_79] : memref<2x17x272xbf16, #tpu.memory_space<vmem>>, vector<1x1x256xbf16>
    %115 = vector.shape_cast %114 : vector<1x1x256xbf16> to vector<1x256xbf16>
    %116 = vector.shape_cast %113 : vector<1x256xbf16> to vector<1x1x256xbf16>
    tpu.vector_store %arg15[%c1_77, %c8_78, %c0_79], %116 {strides = array<i32>} : memref<2x17x272xbf16, #tpu.memory_space<vmem>>, vector<1x1x256xbf16>,
    %117 = vector.extract_strided_slice %29 {offsets = [17, 0], sizes = [1, 256], strides = [1, 1]} : vector<32x256xf32> to vector<1x256xf32>
    %118 = arith.truncf %117 : vector<1x256xf32> to vector<1x256xbf16>
    %c0_80 = arith.constant 0 : index
    %c9 = arith.constant 9 : index
    %c0_81 = arith.constant 0 : index
    %119 = vector.load %arg15[%c0_80, %c9, %c0_81] : memref<2x17x272xbf16, #tpu.memory_space<vmem>>, vector<1x1x256xbf16>
    %120 = vector.shape_cast %119 : vector<1x1x256xbf16> to vector<1x256xbf16>
    %121 = vector.shape_cast %118 : vector<1x256xbf16> to vector<1x1x256xbf16>
    tpu.vector_store %arg15[%c0_80, %c9, %c0_81], %121 {strides = array<i32>} : memref<2x17x272xbf16, #tpu.memory_space<vmem>>, vector<1x1x256xbf16>,
    %122 = vector.extract_strided_slice %29 {offsets = [18, 0], sizes = [1, 256], strides = [1, 1]} : vector<32x256xf32> to vector<1x256xf32>
    %123 = arith.truncf %122 : vector<1x256xf32> to vector<1x256xbf16>
    %c1_82 = arith.constant 1 : index
    %c9_83 = arith.constant 9 : index
    %c0_84 = arith.constant 0 : index
    %124 = vector.load %arg15[%c1_82, %c9_83, %c0_84] : memref<2x17x272xbf16, #tpu.memory_space<vmem>>, vector<1x1x256xbf16>
    %125 = vector.shape_cast %124 : vector<1x1x256xbf16> to vector<1x256xbf16>
    %126 = vector.shape_cast %123 : vector<1x256xbf16> to vector<1x1x256xbf16>
    tpu.vector_store %arg15[%c1_82, %c9_83, %c0_84], %126 {strides = array<i32>} : memref<2x17x272xbf16, #tpu.memory_space<vmem>>, vector<1x1x256xbf16>,
    %127 = vector.extract_strided_slice %29 {offsets = [19, 0], sizes = [1, 256], strides = [1, 1]} : vector<32x256xf32> to vector<1x256xf32>
    %128 = arith.truncf %127 : vector<1x256xf32> to vector<1x256xbf16>
    %c0_85 = arith.constant 0 : index
    %c10 = arith.constant 10 : index
    %c0_86 = arith.constant 0 : index
    %129 = vector.load %arg15[%c0_85, %c10, %c0_86] : memref<2x17x272xbf16, #tpu.memory_space<vmem>>, vector<1x1x256xbf16>
    %130 = vector.shape_cast %129 : vector<1x1x256xbf16> to vector<1x256xbf16>
    %131 = vector.shape_cast %128 : vector<1x256xbf16> to vector<1x1x256xbf16>
    tpu.vector_store %arg15[%c0_85, %c10, %c0_86], %131 {strides = array<i32>} : memref<2x17x272xbf16, #tpu.memory_space<vmem>>, vector<1x1x256xbf16>,
    %132 = vector.extract_strided_slice %29 {offsets = [20, 0], sizes = [1, 256], strides = [1, 1]} : vector<32x256xf32> to vector<1x256xf32>
    %133 = arith.truncf %132 : vector<1x256xf32> to vector<1x256xbf16>
    %c1_87 = arith.constant 1 : index
    %c10_88 = arith.constant 10 : index
    %c0_89 = arith.constant 0 : index
    %134 = vector.load %arg15[%c1_87, %c10_88, %c0_89] : memref<2x17x272xbf16, #tpu.memory_space<vmem>>, vector<1x1x256xbf16>
    %135 = vector.shape_cast %134 : vector<1x1x256xbf16> to vector<1x256xbf16>
    %136 = vector.shape_cast %133 : vector<1x256xbf16> to vector<1x1x256xbf16>
    tpu.vector_store %arg15[%c1_87, %c10_88, %c0_89], %136 {strides = array<i32>} : memref<2x17x272xbf16, #tpu.memory_space<vmem>>, vector<1x1x256xbf16>,
    %137 = vector.extract_strided_slice %29 {offsets = [21, 0], sizes = [1, 256], strides = [1, 1]} : vector<32x256xf32> to vector<1x256xf32>
    %138 = arith.truncf %137 : vector<1x256xf32> to vector<1x256xbf16>
    %c0_90 = arith.constant 0 : index
    %c11 = arith.constant 11 : index
    %c0_91 = arith.constant 0 : index
    %139 = vector.load %arg15[%c0_90, %c11, %c0_91] : memref<2x17x272xbf16, #tpu.memory_space<vmem>>, vector<1x1x256xbf16>
    %140 = vector.shape_cast %139 : vector<1x1x256xbf16> to vector<1x256xbf16>
    %141 = vector.shape_cast %138 : vector<1x256xbf16> to vector<1x1x256xbf16>
    tpu.vector_store %arg15[%c0_90, %c11, %c0_91], %141 {strides = array<i32>} : memref<2x17x272xbf16, #tpu.memory_space<vmem>>, vector<1x1x256xbf16>,
    %142 = vector.extract_strided_slice %29 {offsets = [22, 0], sizes = [1, 256], strides = [1, 1]} : vector<32x256xf32> to vector<1x256xf32>
    %143 = arith.truncf %142 : vector<1x256xf32> to vector<1x256xbf16>
    %c1_92 = arith.constant 1 : index
    %c11_93 = arith.constant 11 : index
    %c0_94 = arith.constant 0 : index
    %144 = vector.load %arg15[%c1_92, %c11_93, %c0_94] : memref<2x17x272xbf16, #tpu.memory_space<vmem>>, vector<1x1x256xbf16>
    %145 = vector.shape_cast %144 : vector<1x1x256xbf16> to vector<1x256xbf16>
    %146 = vector.shape_cast %143 : vector<1x256xbf16> to vector<1x1x256xbf16>
    tpu.vector_store %arg15[%c1_92, %c11_93, %c0_94], %146 {strides = array<i32>} : memref<2x17x272xbf16, #tpu.memory_space<vmem>>, vector<1x1x256xbf16>,
    %147 = vector.extract_strided_slice %29 {offsets = [23, 0], sizes = [1, 256], strides = [1, 1]} : vector<32x256xf32> to vector<1x256xf32>
    %148 = arith.truncf %147 : vector<1x256xf32> to vector<1x256xbf16>
    %c0_95 = arith.constant 0 : index
    %c12 = arith.constant 12 : index
    %c0_96 = arith.constant 0 : index
    %149 = vector.load %arg15[%c0_95, %c12, %c0_96] : memref<2x17x272xbf16, #tpu.memory_space<vmem>>, vector<1x1x256xbf16>
    %150 = vector.shape_cast %149 : vector<1x1x256xbf16> to vector<1x256xbf16>
    %151 = vector.shape_cast %148 : vector<1x256xbf16> to vector<1x1x256xbf16>
    tpu.vector_store %arg15[%c0_95, %c12, %c0_96], %151 {strides = array<i32>} : memref<2x17x272xbf16, #tpu.memory_space<vmem>>, vector<1x1x256xbf16>,
    %152 = vector.extract_strided_slice %29 {offsets = [24, 0], sizes = [1, 256], strides = [1, 1]} : vector<32x256xf32> to vector<1x256xf32>
    %153 = arith.truncf %152 : vector<1x256xf32> to vector<1x256xbf16>
    %c1_97 = arith.constant 1 : index
    %c12_98 = arith.constant 12 : index
    %c0_99 = arith.constant 0 : index
    %154 = vector.load %arg15[%c1_97, %c12_98, %c0_99] : memref<2x17x272xbf16, #tpu.memory_space<vmem>>, vector<1x1x256xbf16>
    %155 = vector.shape_cast %154 : vector<1x1x256xbf16> to vector<1x256xbf16>
    %156 = vector.shape_cast %153 : vector<1x256xbf16> to vector<1x1x256xbf16>
    tpu.vector_store %arg15[%c1_97, %c12_98, %c0_99], %156 {strides = array<i32>} : memref<2x17x272xbf16, #tpu.memory_space<vmem>>, vector<1x1x256xbf16>,
    %157 = vector.extract_strided_slice %29 {offsets = [25, 0], sizes = [1, 256], strides = [1, 1]} : vector<32x256xf32> to vector<1x256xf32>
    %158 = arith.truncf %157 : vector<1x256xf32> to vector<1x256xbf16>
    %c0_100 = arith.constant 0 : index
    %c13 = arith.constant 13 : index
    %c0_101 = arith.constant 0 : index
    %159 = vector.load %arg15[%c0_100, %c13, %c0_101] : memref<2x17x272xbf16, #tpu.memory_space<vmem>>, vector<1x1x256xbf16>
    %160 = vector.shape_cast %159 : vector<1x1x256xbf16> to vector<1x256xbf16>
    %161 = vector.shape_cast %158 : vector<1x256xbf16> to vector<1x1x256xbf16>
    tpu.vector_store %arg15[%c0_100, %c13, %c0_101], %161 {strides = array<i32>} : memref<2x17x272xbf16, #tpu.memory_space<vmem>>, vector<1x1x256xbf16>,
    %162 = vector.extract_strided_slice %29 {offsets = [26, 0], sizes = [1, 256], strides = [1, 1]} : vector<32x256xf32> to vector<1x256xf32>
    %163 = arith.truncf %162 : vector<1x256xf32> to vector<1x256xbf16>
    %c1_102 = arith.constant 1 : index
    %c13_103 = arith.constant 13 : index
    %c0_104 = arith.constant 0 : index
    %164 = vector.load %arg15[%c1_102, %c13_103, %c0_104] : memref<2x17x272xbf16, #tpu.memory_space<vmem>>, vector<1x1x256xbf16>
    %165 = vector.shape_cast %164 : vector<1x1x256xbf16> to vector<1x256xbf16>
    %166 = vector.shape_cast %163 : vector<1x256xbf16> to vector<1x1x256xbf16>
    tpu.vector_store %arg15[%c1_102, %c13_103, %c0_104], %166 {strides = array<i32>} : memref<2x17x272xbf16, #tpu.memory_space<vmem>>, vector<1x1x256xbf16>,
    %167 = vector.extract_strided_slice %29 {offsets = [27, 0], sizes = [1, 256], strides = [1, 1]} : vector<32x256xf32> to vector<1x256xf32>
    %168 = arith.truncf %167 : vector<1x256xf32> to vector<1x256xbf16>
    %c0_105 = arith.constant 0 : index
    %c14 = arith.constant 14 : index
    %c0_106 = arith.constant 0 : index
    %169 = vector.load %arg15[%c0_105, %c14, %c0_106] : memref<2x17x272xbf16, #tpu.memory_space<vmem>>, vector<1x1x256xbf16>
    %170 = vector.shape_cast %169 : vector<1x1x256xbf16> to vector<1x256xbf16>
    %171 = vector.shape_cast %168 : vector<1x256xbf16> to vector<1x1x256xbf16>
    tpu.vector_store %arg15[%c0_105, %c14, %c0_106], %171 {strides = array<i32>} : memref<2x17x272xbf16, #tpu.memory_space<vmem>>, vector<1x1x256xbf16>,
    %172 = vector.extract_strided_slice %29 {offsets = [28, 0], sizes = [1, 256], strides = [1, 1]} : vector<32x256xf32> to vector<1x256xf32>
    %173 = arith.truncf %172 : vector<1x256xf32> to vector<1x256xbf16>
    %c1_107 = arith.constant 1 : index
    %c14_108 = arith.constant 14 : index
    %c0_109 = arith.constant 0 : index
    %174 = vector.load %arg15[%c1_107, %c14_108, %c0_109] : memref<2x17x272xbf16, #tpu.memory_space<vmem>>, vector<1x1x256xbf16>
    %175 = vector.shape_cast %174 : vector<1x1x256xbf16> to vector<1x256xbf16>
    %176 = vector.shape_cast %173 : vector<1x256xbf16> to vector<1x1x256xbf16>
    tpu.vector_store %arg15[%c1_107, %c14_108, %c0_109], %176 {strides = array<i32>} : memref<2x17x272xbf16, #tpu.memory_space<vmem>>, vector<1x1x256xbf16>,
    %177 = vector.extract_strided_slice %29 {offsets = [29, 0], sizes = [1, 256], strides = [1, 1]} : vector<32x256xf32> to vector<1x256xf32>
    %178 = arith.truncf %177 : vector<1x256xf32> to vector<1x256xbf16>
    %c0_110 = arith.constant 0 : index
    %c15 = arith.constant 15 : index
    %c0_111 = arith.constant 0 : index
    %179 = vector.load %arg15[%c0_110, %c15, %c0_111] : memref<2x17x272xbf16, #tpu.memory_space<vmem>>, vector<1x1x256xbf16>
    %180 = vector.shape_cast %179 : vector<1x1x256xbf16> to vector<1x256xbf16>
    %181 = vector.shape_cast %178 : vector<1x256xbf16> to vector<1x1x256xbf16>
    tpu.vector_store %arg15[%c0_110, %c15, %c0_111], %181 {strides = array<i32>} : memref<2x17x272xbf16, #tpu.memory_space<vmem>>, vector<1x1x256xbf16>,
    %182 = vector.extract_strided_slice %29 {offsets = [30, 0], sizes = [1, 256], strides = [1, 1]} : vector<32x256xf32> to vector<1x256xf32>
    %183 = arith.truncf %182 : vector<1x256xf32> to vector<1x256xbf16>
    %c1_112 = arith.constant 1 : index
    %c15_113 = arith.constant 15 : index
    %c0_114 = arith.constant 0 : index
    %184 = vector.load %arg15[%c1_112, %c15_113, %c0_114] : memref<2x17x272xbf16, #tpu.memory_space<vmem>>, vector<1x1x256xbf16>
    %185 = vector.shape_cast %184 : vector<1x1x256xbf16> to vector<1x256xbf16>
    %186 = vector.shape_cast %183 : vector<1x256xbf16> to vector<1x1x256xbf16>
    tpu.vector_store %arg15[%c1_112, %c15_113, %c0_114], %186 {strides = array<i32>} : memref<2x17x272xbf16, #tpu.memory_space<vmem>>, vector<1x1x256xbf16>,
    %187 = vector.extract_strided_slice %29 {offsets = [31, 0], sizes = [1, 256], strides = [1, 1]} : vector<32x256xf32> to vector<1x256xf32>
    %188 = arith.truncf %187 : vector<1x256xf32> to vector<1x256xbf16>
    %c0_115 = arith.constant 0 : index
    %c16 = arith.constant 16 : index
    %c0_116 = arith.constant 0 : index
    %189 = vector.load %arg15[%c0_115, %c16, %c0_116] : memref<2x17x272xbf16, #tpu.memory_space<vmem>>, vector<1x1x256xbf16>
    %190 = vector.shape_cast %189 : vector<1x1x256xbf16> to vector<1x256xbf16>
    %191 = vector.shape_cast %188 : vector<1x256xbf16> to vector<1x1x256xbf16>
    tpu.vector_store %arg15[%c0_115, %c16, %c0_116], %191 {strides = array<i32>} : memref<2x17x272xbf16, #tpu.memory_space<vmem>>, vector<1x1x256xbf16>,
    %cst_117 = arith.constant 0.000000e+00 : f32
    %192 = vector.broadcast %cst_117 : f32 to vector<16x256xf32>
    %c0_118 = arith.constant 0 : index
    %c0_119 = arith.constant 0 : index
    %c0_120 = arith.constant 0 : index
    %193 = vector.load %arg15[%c0_118, %c0_119, %c0_120] : memref<2x17x272xbf16, #tpu.memory_space<vmem>>, vector<1x16x272xbf16>
    %194 = vector.shape_cast %193 : vector<1x16x272xbf16> to vector<16x272xbf16>
    %c0_121 = arith.constant 0 : index
    %c0_122 = arith.constant 0 : index
    %c0_123 = arith.constant 0 : index
    %195 = vector.load %arg3[%c0_121, %c0_122, %c0_123] : memref<4x272x256xbf16, #tpu.memory_space<vmem>>, vector<1x272x256xbf16>
    %196 = vector.shape_cast %195 : vector<1x272x256xbf16> to vector<272x256xbf16>
    %cst_124 = arith.constant dense<0.000000e+00> : vector<16x256xf32>
    %197 = tpu.matmul %194, %196, %cst_124 {dimension_numbers = #tpu.dot_dimension_numbers<[1], [0], [0], [1], [0, 0, 1, 1], [], []>} : vector<16x272xbf16>, vector<272x256xbf16>, vector<16x256xf32> -> vector<16x256xf32>
    %198 = arith.addf %192, %197 : vector<16x256xf32>
    %c1_125 = arith.constant 1 : index
    %c0_126 = arith.constant 0 : index
    %c0_127 = arith.constant 0 : index
    %199 = vector.load %arg15[%c1_125, %c0_126, %c0_127] : memref<2x17x272xbf16, #tpu.memory_space<vmem>>, vector<1x16x272xbf16>
    %200 = vector.shape_cast %199 : vector<1x16x272xbf16> to vector<16x272xbf16>
    %c1_128 = arith.constant 1 : index
    %c0_129 = arith.constant 0 : index
    %c0_130 = arith.constant 0 : index
    %201 = vector.load %arg3[%c1_128, %c0_129, %c0_130] : memref<4x272x256xbf16, #tpu.memory_space<vmem>>, vector<1x272x256xbf16>
    %202 = vector.shape_cast %201 : vector<1x272x256xbf16> to vector<272x256xbf16>
    %cst_131 = arith.constant dense<0.000000e+00> : vector<16x256xf32>
    %203 = tpu.matmul %200, %202, %cst_131 {dimension_numbers = #tpu.dot_dimension_numbers<[1], [0], [0], [1], [0, 0, 1, 1], [], []>} : vector<16x272xbf16>, vector<272x256xbf16>, vector<16x256xf32> -> vector<16x256xf32>
    %204 = arith.addf %198, %203 : vector<16x256xf32>
    %c0_132 = arith.constant 0 : index
    %c1_133 = arith.constant 1 : index
    %c0_134 = arith.constant 0 : index
    %205 = vector.load %arg15[%c0_132, %c1_133, %c0_134] : memref<2x17x272xbf16, #tpu.memory_space<vmem>>, vector<1x16x272xbf16>
    %206 = vector.shape_cast %205 : vector<1x16x272xbf16> to vector<16x272xbf16>
    %c2_135 = arith.constant 2 : index
    %c0_136 = arith.constant 0 : index
    %c0_137 = arith.constant 0 : index
    %207 = vector.load %arg3[%c2_135, %c0_136, %c0_137] : memref<4x272x256xbf16, #tpu.memory_space<vmem>>, vector<1x272x256xbf16>
    %208 = vector.shape_cast %207 : vector<1x272x256xbf16> to vector<272x256xbf16>
    %cst_138 = arith.constant dense<0.000000e+00> : vector<16x256xf32>
    %209 = tpu.matmul %206, %208, %cst_138 {dimension_numbers = #tpu.dot_dimension_numbers<[1], [0], [0], [1], [0, 0, 1, 1], [], []>} : vector<16x272xbf16>, vector<272x256xbf16>, vector<16x256xf32> -> vector<16x256xf32>
    %210 = arith.addf %204, %209 : vector<16x256xf32>
    %c1_139 = arith.constant 1 : index
    %c1_140 = arith.constant 1 : index
    %c0_141 = arith.constant 0 : index
    %211 = vector.load %arg15[%c1_139, %c1_140, %c0_141] : memref<2x17x272xbf16, #tpu.memory_space<vmem>>, vector<1x16x272xbf16>
    %212 = vector.shape_cast %211 : vector<1x16x272xbf16> to vector<16x272xbf16>
    %c3_142 = arith.constant 3 : index
    %c0_143 = arith.constant 0 : index
    %c0_144 = arith.constant 0 : index
    %213 = vector.load %arg3[%c3_142, %c0_143, %c0_144] : memref<4x272x256xbf16, #tpu.memory_space<vmem>>, vector<1x272x256xbf16>
    %214 = vector.shape_cast %213 : vector<1x272x256xbf16> to vector<272x256xbf16>
    %cst_145 = arith.constant dense<0.000000e+00> : vector<16x256xf32>
    %215 = tpu.matmul %212, %214, %cst_145 {dimension_numbers = #tpu.dot_dimension_numbers<[1], [0], [0], [1], [0, 0, 1, 1], [], []>} : vector<16x272xbf16>, vector<272x256xbf16>, vector<16x256xf32> -> vector<16x256xf32>
    %216 = arith.addf %210, %215 : vector<16x256xf32>
    %217 = tpu.iota {dimensions = array<i32: 0>} : vector<256x256xi32>
    %218 = tpu.iota {dimensions = array<i32: 1>} : vector<256x256xi32>
    %c15_i32 = arith.constant 15 : i32
    %219 = vector.broadcast %c15_i32 : i32 to vector<256x256xi32>
    %220 = arith.andi %217, %219 : vector<256x256xi32>
    %c15_i32_146 = arith.constant 15 : i32
    %221 = vector.broadcast %c15_i32_146 : i32 to vector<256x256xi32>
    %222 = arith.andi %218, %221 : vector<256x256xi32>
    %223 = arith.cmpi eq, %220, %222 : vector<256x256xi32>
    %224 = arith.extui %223 : vector<256x256xi1> to vector<256x256xi32>
    %225 = arith.sitofp %224 : vector<256x256xi32> to vector<256x256xf32>
    %cst_147 = arith.constant dense<0.000000e+00> : vector<256xf32>
    %226 = vector.multi_reduction <add>, %216, %cst_147 [0] : vector<16x256xf32> to vector<256xf32>
    %227 = vector.shape_cast %226 : vector<256xf32> to vector<1x256xf32>
    %cst_148 = arith.constant dense<0.000000e+00> : vector<1x256xf32>
    %228 = tpu.matmul %227, %225, %cst_148 {dimension_numbers = #tpu.dot_dimension_numbers<[1], [0], [0], [1], [0, 0, 1, 1], [], []>} : vector<1x256xf32>, vector<256x256xf32>, vector<1x256xf32> -> vector<1x256xf32>
    %cst_149 = arith.constant 3.906250e-03 : f32
    %229 = vector.broadcast %cst_149 : f32 to vector<1x256xf32>
    %230 = arith.mulf %228, %229 : vector<1x256xf32>
    %231 = vector.broadcast %230 : vector<1x256xf32> to vector<16x256xf32>
    %232 = arith.subf %216, %231 : vector<16x256xf32>
    %233 = arith.mulf %232, %232 : vector<16x256xf32>
    %cst_150 = arith.constant dense<0.000000e+00> : vector<256xf32>
    %234 = vector.multi_reduction <add>, %233, %cst_150 [0] : vector<16x256xf32> to vector<256xf32>
    %235 = vector.shape_cast %234 : vector<256xf32> to vector<1x256xf32>
    %cst_151 = arith.constant dense<0.000000e+00> : vector<1x256xf32>
    %236 = tpu.matmul %235, %225, %cst_151 {dimension_numbers = #tpu.dot_dimension_numbers<[1], [0], [0], [1], [0, 0, 1, 1], [], []>} : vector<1x256xf32>, vector<256x256xf32>, vector<1x256xf32> -> vector<1x256xf32>
    %cst_152 = arith.constant 3.906250e-03 : f32
    %237 = vector.broadcast %cst_152 : f32 to vector<1x256xf32>
    %238 = arith.mulf %236, %237 : vector<1x256xf32>
    %cst_153 = arith.constant 9.99999974E-6 : f32
    %239 = vector.broadcast %cst_153 : f32 to vector<1x256xf32>
    %240 = arith.addf %238, %239 : vector<1x256xf32>
    %241 = math.rsqrt %240 : vector<1x256xf32>
    %242 = vector.broadcast %241 : vector<1x256xf32> to vector<16x256xf32>
    %243 = arith.mulf %232, %242 : vector<16x256xf32>
    %c0_154 = arith.constant 0 : index
    %c0_155 = arith.constant 0 : index
    %244 = vector.load %arg6[%c0_154, %c0_155] : memref<1x256xf32, #tpu.memory_space<vmem>>, vector<1x256xf32>
    %245 = vector.broadcast %244 : vector<1x256xf32> to vector<16x256xf32>
    %246 = arith.mulf %243, %245 : vector<16x256xf32>
    %c0_156 = arith.constant 0 : index
    %c0_157 = arith.constant 0 : index
    %247 = vector.load %arg7[%c0_156, %c0_157] : memref<1x256xf32, #tpu.memory_space<vmem>>, vector<1x256xf32>
    %248 = vector.broadcast %247 : vector<1x256xf32> to vector<16x256xf32>
    %249 = arith.addf %246, %248 : vector<16x256xf32>
    %cst_158 = arith.constant 0.000000e+00 : f32
    %250 = vector.broadcast %cst_158 : f32 to vector<16x256xf32>
    %251 = arith.cmpf ogt, %249, %250 : vector<16x256xf32>
    %cst_159 = arith.constant 2.000000e-01 : f32
    %252 = vector.broadcast %cst_159 : f32 to vector<16x256xf32>
    %253 = arith.mulf %252, %249 : vector<16x256xf32>
    %254 = arith.select %251, %249, %253 : vector<16x256xi1>, vector<16x256xf32>
    %cst_160 = arith.constant 0.000000e+00 : bf16
    %255 = vector.broadcast %cst_160 : bf16 to vector<2x9x288xbf16>
    %c0_161 = arith.constant 0 : index
    %c0_162 = arith.constant 0 : index
    %c0_163 = arith.constant 0 : index
    %256 = vector.load %arg16[%c0_161, %c0_162, %c0_163] : memref<2x9x288xbf16, #tpu.memory_space<vmem>>, vector<2x9x288xbf16>
    tpu.vector_store %arg16[%c0_161, %c0_162, %c0_163], %255 {strides = array<i32>} : memref<2x9x288xbf16, #tpu.memory_space<vmem>>, vector<2x9x288xbf16>,
    %257 = vector.extract_strided_slice %254 {offsets = [0, 0], sizes = [1, 256], strides = [1, 1]} : vector<16x256xf32> to vector<1x256xf32>
    %258 = arith.truncf %257 : vector<1x256xf32> to vector<1x256xbf16>
    %c1_164 = arith.constant 1 : index
    %c0_165 = arith.constant 0 : index
    %c0_166 = arith.constant 0 : index
    %259 = vector.load %arg16[%c1_164, %c0_165, %c0_166] : memref<2x9x288xbf16, #tpu.memory_space<vmem>>, vector<1x1x256xbf16>
    %260 = vector.shape_cast %259 : vector<1x1x256xbf16> to vector<1x256xbf16>
    %261 = vector.shape_cast %258 : vector<1x256xbf16> to vector<1x1x256xbf16>
    tpu.vector_store %arg16[%c1_164, %c0_165, %c0_166], %261 {strides = array<i32>} : memref<2x9x288xbf16, #tpu.memory_space<vmem>>, vector<1x1x256xbf16>,
    %262 = vector.extract_strided_slice %254 {offsets = [1, 0], sizes = [1, 256], strides = [1, 1]} : vector<16x256xf32> to vector<1x256xf32>
    %263 = arith.truncf %262 : vector<1x256xf32> to vector<1x256xbf16>
    %c0_167 = arith.constant 0 : index
    %c1_168 = arith.constant 1 : index
    %c0_169 = arith.constant 0 : index
    %264 = vector.load %arg16[%c0_167, %c1_168, %c0_169] : memref<2x9x288xbf16, #tpu.memory_space<vmem>>, vector<1x1x256xbf16>
    %265 = vector.shape_cast %264 : vector<1x1x256xbf16> to vector<1x256xbf16>
    %266 = vector.shape_cast %263 : vector<1x256xbf16> to vector<1x1x256xbf16>
    tpu.vector_store %arg16[%c0_167, %c1_168, %c0_169], %266 {strides = array<i32>} : memref<2x9x288xbf16, #tpu.memory_space<vmem>>, vector<1x1x256xbf16>,
    %267 = vector.extract_strided_slice %254 {offsets = [2, 0], sizes = [1, 256], strides = [1, 1]} : vector<16x256xf32> to vector<1x256xf32>
    %268 = arith.truncf %267 : vector<1x256xf32> to vector<1x256xbf16>
    %c1_170 = arith.constant 1 : index
    %c1_171 = arith.constant 1 : index
    %c0_172 = arith.constant 0 : index
    %269 = vector.load %arg16[%c1_170, %c1_171, %c0_172] : memref<2x9x288xbf16, #tpu.memory_space<vmem>>, vector<1x1x256xbf16>
    %270 = vector.shape_cast %269 : vector<1x1x256xbf16> to vector<1x256xbf16>
    %271 = vector.shape_cast %268 : vector<1x256xbf16> to vector<1x1x256xbf16>
    tpu.vector_store %arg16[%c1_170, %c1_171, %c0_172], %271 {strides = array<i32>} : memref<2x9x288xbf16, #tpu.memory_space<vmem>>, vector<1x1x256xbf16>,
    %272 = vector.extract_strided_slice %254 {offsets = [3, 0], sizes = [1, 256], strides = [1, 1]} : vector<16x256xf32> to vector<1x256xf32>
    %273 = arith.truncf %272 : vector<1x256xf32> to vector<1x256xbf16>
    %c0_173 = arith.constant 0 : index
    %c2_174 = arith.constant 2 : index
    %c0_175 = arith.constant 0 : index
    %274 = vector.load %arg16[%c0_173, %c2_174, %c0_175] : memref<2x9x288xbf16, #tpu.memory_space<vmem>>, vector<1x1x256xbf16>
    %275 = vector.shape_cast %274 : vector<1x1x256xbf16> to vector<1x256xbf16>
    %276 = vector.shape_cast %273 : vector<1x256xbf16> to vector<1x1x256xbf16>
    tpu.vector_store %arg16[%c0_173, %c2_174, %c0_175], %276 {strides = array<i32>} : memref<2x9x288xbf16, #tpu.memory_space<vmem>>, vector<1x1x256xbf16>,
    %277 = vector.extract_strided_slice %254 {offsets = [4, 0], sizes = [1, 256], strides = [1, 1]} : vector<16x256xf32> to vector<1x256xf32>
    %278 = arith.truncf %277 : vector<1x256xf32> to vector<1x256xbf16>
    %c1_176 = arith.constant 1 : index
    %c2_177 = arith.constant 2 : index
    %c0_178 = arith.constant 0 : index
    %279 = vector.load %arg16[%c1_176, %c2_177, %c0_178] : memref<2x9x288xbf16, #tpu.memory_space<vmem>>, vector<1x1x256xbf16>
    %280 = vector.shape_cast %279 : vector<1x1x256xbf16> to vector<1x256xbf16>
    %281 = vector.shape_cast %278 : vector<1x256xbf16> to vector<1x1x256xbf16>
    tpu.vector_store %arg16[%c1_176, %c2_177, %c0_178], %281 {strides = array<i32>} : memref<2x9x288xbf16, #tpu.memory_space<vmem>>, vector<1x1x256xbf16>,
    %282 = vector.extract_strided_slice %254 {offsets = [5, 0], sizes = [1, 256], strides = [1, 1]} : vector<16x256xf32> to vector<1x256xf32>
    %283 = arith.truncf %282 : vector<1x256xf32> to vector<1x256xbf16>
    %c0_179 = arith.constant 0 : index
    %c3_180 = arith.constant 3 : index
    %c0_181 = arith.constant 0 : index
    %284 = vector.load %arg16[%c0_179, %c3_180, %c0_181] : memref<2x9x288xbf16, #tpu.memory_space<vmem>>, vector<1x1x256xbf16>
    %285 = vector.shape_cast %284 : vector<1x1x256xbf16> to vector<1x256xbf16>
    %286 = vector.shape_cast %283 : vector<1x256xbf16> to vector<1x1x256xbf16>
    tpu.vector_store %arg16[%c0_179, %c3_180, %c0_181], %286 {strides = array<i32>} : memref<2x9x288xbf16, #tpu.memory_space<vmem>>, vector<1x1x256xbf16>,
    %287 = vector.extract_strided_slice %254 {offsets = [6, 0], sizes = [1, 256], strides = [1, 1]} : vector<16x256xf32> to vector<1x256xf32>
    %288 = arith.truncf %287 : vector<1x256xf32> to vector<1x256xbf16>
    %c1_182 = arith.constant 1 : index
    %c3_183 = arith.constant 3 : index
    %c0_184 = arith.constant 0 : index
    %289 = vector.load %arg16[%c1_182, %c3_183, %c0_184] : memref<2x9x288xbf16, #tpu.memory_space<vmem>>, vector<1x1x256xbf16>
    %290 = vector.shape_cast %289 : vector<1x1x256xbf16> to vector<1x256xbf16>
    %291 = vector.shape_cast %288 : vector<1x256xbf16> to vector<1x1x256xbf16>
    tpu.vector_store %arg16[%c1_182, %c3_183, %c0_184], %291 {strides = array<i32>} : memref<2x9x288xbf16, #tpu.memory_space<vmem>>, vector<1x1x256xbf16>,
    %292 = vector.extract_strided_slice %254 {offsets = [7, 0], sizes = [1, 256], strides = [1, 1]} : vector<16x256xf32> to vector<1x256xf32>
    %293 = arith.truncf %292 : vector<1x256xf32> to vector<1x256xbf16>
    %c0_185 = arith.constant 0 : index
    %c4_186 = arith.constant 4 : index
    %c0_187 = arith.constant 0 : index
    %294 = vector.load %arg16[%c0_185, %c4_186, %c0_187] : memref<2x9x288xbf16, #tpu.memory_space<vmem>>, vector<1x1x256xbf16>
    %295 = vector.shape_cast %294 : vector<1x1x256xbf16> to vector<1x256xbf16>
    %296 = vector.shape_cast %293 : vector<1x256xbf16> to vector<1x1x256xbf16>
    tpu.vector_store %arg16[%c0_185, %c4_186, %c0_187], %296 {strides = array<i32>} : memref<2x9x288xbf16, #tpu.memory_space<vmem>>, vector<1x1x256xbf16>,
    %297 = vector.extract_strided_slice %254 {offsets = [8, 0], sizes = [1, 256], strides = [1, 1]} : vector<16x256xf32> to vector<1x256xf32>
    %298 = arith.truncf %297 : vector<1x256xf32> to vector<1x256xbf16>
    %c1_188 = arith.constant 1 : index
    %c4_189 = arith.constant 4 : index
    %c0_190 = arith.constant 0 : index
    %299 = vector.load %arg16[%c1_188, %c4_189, %c0_190] : memref<2x9x288xbf16, #tpu.memory_space<vmem>>, vector<1x1x256xbf16>
    %300 = vector.shape_cast %299 : vector<1x1x256xbf16> to vector<1x256xbf16>
    %301 = vector.shape_cast %298 : vector<1x256xbf16> to vector<1x1x256xbf16>
    tpu.vector_store %arg16[%c1_188, %c4_189, %c0_190], %301 {strides = array<i32>} : memref<2x9x288xbf16, #tpu.memory_space<vmem>>, vector<1x1x256xbf16>,
    %302 = vector.extract_strided_slice %254 {offsets = [9, 0], sizes = [1, 256], strides = [1, 1]} : vector<16x256xf32> to vector<1x256xf32>
    %303 = arith.truncf %302 : vector<1x256xf32> to vector<1x256xbf16>
    %c0_191 = arith.constant 0 : index
    %c5_192 = arith.constant 5 : index
    %c0_193 = arith.constant 0 : index
    %304 = vector.load %arg16[%c0_191, %c5_192, %c0_193] : memref<2x9x288xbf16, #tpu.memory_space<vmem>>, vector<1x1x256xbf16>
    %305 = vector.shape_cast %304 : vector<1x1x256xbf16> to vector<1x256xbf16>
    %306 = vector.shape_cast %303 : vector<1x256xbf16> to vector<1x1x256xbf16>
    tpu.vector_store %arg16[%c0_191, %c5_192, %c0_193], %306 {strides = array<i32>} : memref<2x9x288xbf16, #tpu.memory_space<vmem>>, vector<1x1x256xbf16>,
    %307 = vector.extract_strided_slice %254 {offsets = [10, 0], sizes = [1, 256], strides = [1, 1]} : vector<16x256xf32> to vector<1x256xf32>
    %308 = arith.truncf %307 : vector<1x256xf32> to vector<1x256xbf16>
    %c1_194 = arith.constant 1 : index
    %c5_195 = arith.constant 5 : index
    %c0_196 = arith.constant 0 : index
    %309 = vector.load %arg16[%c1_194, %c5_195, %c0_196] : memref<2x9x288xbf16, #tpu.memory_space<vmem>>, vector<1x1x256xbf16>
    %310 = vector.shape_cast %309 : vector<1x1x256xbf16> to vector<1x256xbf16>
    %311 = vector.shape_cast %308 : vector<1x256xbf16> to vector<1x1x256xbf16>
    tpu.vector_store %arg16[%c1_194, %c5_195, %c0_196], %311 {strides = array<i32>} : memref<2x9x288xbf16, #tpu.memory_space<vmem>>, vector<1x1x256xbf16>,
    %312 = vector.extract_strided_slice %254 {offsets = [11, 0], sizes = [1, 256], strides = [1, 1]} : vector<16x256xf32> to vector<1x256xf32>
    %313 = arith.truncf %312 : vector<1x256xf32> to vector<1x256xbf16>
    %c0_197 = arith.constant 0 : index
    %c6_198 = arith.constant 6 : index
    %c0_199 = arith.constant 0 : index
    %314 = vector.load %arg16[%c0_197, %c6_198, %c0_199] : memref<2x9x288xbf16, #tpu.memory_space<vmem>>, vector<1x1x256xbf16>
    %315 = vector.shape_cast %314 : vector<1x1x256xbf16> to vector<1x256xbf16>
    %316 = vector.shape_cast %313 : vector<1x256xbf16> to vector<1x1x256xbf16>
    tpu.vector_store %arg16[%c0_197, %c6_198, %c0_199], %316 {strides = array<i32>} : memref<2x9x288xbf16, #tpu.memory_space<vmem>>, vector<1x1x256xbf16>,
    %317 = vector.extract_strided_slice %254 {offsets = [12, 0], sizes = [1, 256], strides = [1, 1]} : vector<16x256xf32> to vector<1x256xf32>
    %318 = arith.truncf %317 : vector<1x256xf32> to vector<1x256xbf16>
    %c1_200 = arith.constant 1 : index
    %c6_201 = arith.constant 6 : index
    %c0_202 = arith.constant 0 : index
    %319 = vector.load %arg16[%c1_200, %c6_201, %c0_202] : memref<2x9x288xbf16, #tpu.memory_space<vmem>>, vector<1x1x256xbf16>
    %320 = vector.shape_cast %319 : vector<1x1x256xbf16> to vector<1x256xbf16>
    %321 = vector.shape_cast %318 : vector<1x256xbf16> to vector<1x1x256xbf16>
    tpu.vector_store %arg16[%c1_200, %c6_201, %c0_202], %321 {strides = array<i32>} : memref<2x9x288xbf16, #tpu.memory_space<vmem>>, vector<1x1x256xbf16>,
    %322 = vector.extract_strided_slice %254 {offsets = [13, 0], sizes = [1, 256], strides = [1, 1]} : vector<16x256xf32> to vector<1x256xf32>
    %323 = arith.truncf %322 : vector<1x256xf32> to vector<1x256xbf16>
    %c0_203 = arith.constant 0 : index
    %c7_204 = arith.constant 7 : index
    %c0_205 = arith.constant 0 : index
    %324 = vector.load %arg16[%c0_203, %c7_204, %c0_205] : memref<2x9x288xbf16, #tpu.memory_space<vmem>>, vector<1x1x256xbf16>
    %325 = vector.shape_cast %324 : vector<1x1x256xbf16> to vector<1x256xbf16>
    %326 = vector.shape_cast %323 : vector<1x256xbf16> to vector<1x1x256xbf16>
    tpu.vector_store %arg16[%c0_203, %c7_204, %c0_205], %326 {strides = array<i32>} : memref<2x9x288xbf16, #tpu.memory_space<vmem>>, vector<1x1x256xbf16>,
    %327 = vector.extract_strided_slice %254 {offsets = [14, 0], sizes = [1, 256], strides = [1, 1]} : vector<16x256xf32> to vector<1x256xf32>
    %328 = arith.truncf %327 : vector<1x256xf32> to vector<1x256xbf16>
    %c1_206 = arith.constant 1 : index
    %c7_207 = arith.constant 7 : index
    %c0_208 = arith.constant 0 : index
    %329 = vector.load %arg16[%c1_206, %c7_207, %c0_208] : memref<2x9x288xbf16, #tpu.memory_space<vmem>>, vector<1x1x256xbf16>
    %330 = vector.shape_cast %329 : vector<1x1x256xbf16> to vector<1x256xbf16>
    %331 = vector.shape_cast %328 : vector<1x256xbf16> to vector<1x1x256xbf16>
    tpu.vector_store %arg16[%c1_206, %c7_207, %c0_208], %331 {strides = array<i32>} : memref<2x9x288xbf16, #tpu.memory_space<vmem>>, vector<1x1x256xbf16>,
    %332 = vector.extract_strided_slice %254 {offsets = [15, 0], sizes = [1, 256], strides = [1, 1]} : vector<16x256xf32> to vector<1x256xf32>
    %333 = arith.truncf %332 : vector<1x256xf32> to vector<1x256xbf16>
    %c0_209 = arith.constant 0 : index
    %c8_210 = arith.constant 8 : index
    %c0_211 = arith.constant 0 : index
    %334 = vector.load %arg16[%c0_209, %c8_210, %c0_211] : memref<2x9x288xbf16, #tpu.memory_space<vmem>>, vector<1x1x256xbf16>
    %335 = vector.shape_cast %334 : vector<1x1x256xbf16> to vector<1x256xbf16>
    %336 = vector.shape_cast %333 : vector<1x256xbf16> to vector<1x1x256xbf16>
    tpu.vector_store %arg16[%c0_209, %c8_210, %c0_211], %336 {strides = array<i32>} : memref<2x9x288xbf16, #tpu.memory_space<vmem>>, vector<1x1x256xbf16>,
    %cst_212 = arith.constant 0.000000e+00 : f32
    %337 = vector.broadcast %cst_212 : f32 to vector<8x256xf32>
    %c0_213 = arith.constant 0 : index
    %c0_214 = arith.constant 0 : index
    %c0_215 = arith.constant 0 : index
    %338 = vector.load %arg16[%c0_213, %c0_214, %c0_215] : memref<2x9x288xbf16, #tpu.memory_space<vmem>>, vector<1x8x288xbf16>
    %339 = vector.shape_cast %338 : vector<1x8x288xbf16> to vector<8x288xbf16>
    %c0_216 = arith.constant 0 : index
    %c0_217 = arith.constant 0 : index
    %c0_218 = arith.constant 0 : index
    %340 = vector.load %arg4[%c0_216, %c0_217, %c0_218] : memref<4x288x256xbf16, #tpu.memory_space<vmem>>, vector<1x288x256xbf16>
    %341 = vector.shape_cast %340 : vector<1x288x256xbf16> to vector<288x256xbf16>
    %cst_219 = arith.constant dense<0.000000e+00> : vector<8x256xf32>
    %342 = tpu.matmul %339, %341, %cst_219 {dimension_numbers = #tpu.dot_dimension_numbers<[1], [0], [0], [1], [0, 0, 1, 1], [], []>} : vector<8x288xbf16>, vector<288x256xbf16>, vector<8x256xf32> -> vector<8x256xf32>
    %343 = arith.addf %337, %342 : vector<8x256xf32>
    %c1_220 = arith.constant 1 : index
    %c0_221 = arith.constant 0 : index
    %c0_222 = arith.constant 0 : index
    %344 = vector.load %arg16[%c1_220, %c0_221, %c0_222] : memref<2x9x288xbf16, #tpu.memory_space<vmem>>, vector<1x8x288xbf16>
    %345 = vector.shape_cast %344 : vector<1x8x288xbf16> to vector<8x288xbf16>
    %c1_223 = arith.constant 1 : index
    %c0_224 = arith.constant 0 : index
    %c0_225 = arith.constant 0 : index
    %346 = vector.load %arg4[%c1_223, %c0_224, %c0_225] : memref<4x288x256xbf16, #tpu.memory_space<vmem>>, vector<1x288x256xbf16>
    %347 = vector.shape_cast %346 : vector<1x288x256xbf16> to vector<288x256xbf16>
    %cst_226 = arith.constant dense<0.000000e+00> : vector<8x256xf32>
    %348 = tpu.matmul %345, %347, %cst_226 {dimension_numbers = #tpu.dot_dimension_numbers<[1], [0], [0], [1], [0, 0, 1, 1], [], []>} : vector<8x288xbf16>, vector<288x256xbf16>, vector<8x256xf32> -> vector<8x256xf32>
    %349 = arith.addf %343, %348 : vector<8x256xf32>
    %c0_227 = arith.constant 0 : index
    %c1_228 = arith.constant 1 : index
    %c0_229 = arith.constant 0 : index
    %350 = vector.load %arg16[%c0_227, %c1_228, %c0_229] : memref<2x9x288xbf16, #tpu.memory_space<vmem>>, vector<1x8x288xbf16>
    %351 = vector.shape_cast %350 : vector<1x8x288xbf16> to vector<8x288xbf16>
    %c2_230 = arith.constant 2 : index
    %c0_231 = arith.constant 0 : index
    %c0_232 = arith.constant 0 : index
    %352 = vector.load %arg4[%c2_230, %c0_231, %c0_232] : memref<4x288x256xbf16, #tpu.memory_space<vmem>>, vector<1x288x256xbf16>
    %353 = vector.shape_cast %352 : vector<1x288x256xbf16> to vector<288x256xbf16>
    %cst_233 = arith.constant dense<0.000000e+00> : vector<8x256xf32>
    %354 = tpu.matmul %351, %353, %cst_233 {dimension_numbers = #tpu.dot_dimension_numbers<[1], [0], [0], [1], [0, 0, 1, 1], [], []>} : vector<8x288xbf16>, vector<288x256xbf16>, vector<8x256xf32> -> vector<8x256xf32>
    %355 = arith.addf %349, %354 : vector<8x256xf32>
    %c1_234 = arith.constant 1 : index
    %c1_235 = arith.constant 1 : index
    %c0_236 = arith.constant 0 : index
    %356 = vector.load %arg16[%c1_234, %c1_235, %c0_236] : memref<2x9x288xbf16, #tpu.memory_space<vmem>>, vector<1x8x288xbf16>
    %357 = vector.shape_cast %356 : vector<1x8x288xbf16> to vector<8x288xbf16>
    %c3_237 = arith.constant 3 : index
    %c0_238 = arith.constant 0 : index
    %c0_239 = arith.constant 0 : index
    %358 = vector.load %arg4[%c3_237, %c0_238, %c0_239] : memref<4x288x256xbf16, #tpu.memory_space<vmem>>, vector<1x288x256xbf16>
    %359 = vector.shape_cast %358 : vector<1x288x256xbf16> to vector<288x256xbf16>
    %cst_240 = arith.constant dense<0.000000e+00> : vector<8x256xf32>
    %360 = tpu.matmul %357, %359, %cst_240 {dimension_numbers = #tpu.dot_dimension_numbers<[1], [0], [0], [1], [0, 0, 1, 1], [], []>} : vector<8x288xbf16>, vector<288x256xbf16>, vector<8x256xf32> -> vector<8x256xf32>
    %361 = arith.addf %355, %360 : vector<8x256xf32>
    %362 = tpu.iota {dimensions = array<i32: 0>} : vector<256x256xi32>
    %363 = tpu.iota {dimensions = array<i32: 1>} : vector<256x256xi32>
    %c31_i32 = arith.constant 31 : i32
    %364 = vector.broadcast %c31_i32 : i32 to vector<256x256xi32>
    %365 = arith.andi %362, %364 : vector<256x256xi32>
    %c31_i32_241 = arith.constant 31 : i32
    %366 = vector.broadcast %c31_i32_241 : i32 to vector<256x256xi32>
    %367 = arith.andi %363, %366 : vector<256x256xi32>
    %368 = arith.cmpi eq, %365, %367 : vector<256x256xi32>
    %369 = arith.extui %368 : vector<256x256xi1> to vector<256x256xi32>
    %370 = arith.sitofp %369 : vector<256x256xi32> to vector<256x256xf32>
    %cst_242 = arith.constant dense<0.000000e+00> : vector<256xf32>
    %371 = vector.multi_reduction <add>, %361, %cst_242 [0] : vector<8x256xf32> to vector<256xf32>
    %372 = vector.shape_cast %371 : vector<256xf32> to vector<1x256xf32>
    %cst_243 = arith.constant dense<0.000000e+00> : vector<1x256xf32>
    %373 = tpu.matmul %372, %370, %cst_243 {dimension_numbers = #tpu.dot_dimension_numbers<[1], [0], [0], [1], [0, 0, 1, 1], [], []>} : vector<1x256xf32>, vector<256x256xf32>, vector<1x256xf32> -> vector<1x256xf32>
    %cst_244 = arith.constant 1.562500e-02 : f32
    %374 = vector.broadcast %cst_244 : f32 to vector<1x256xf32>
    %375 = arith.mulf %373, %374 : vector<1x256xf32>
    %376 = vector.broadcast %375 : vector<1x256xf32> to vector<8x256xf32>
    %377 = arith.subf %361, %376 : vector<8x256xf32>
    %378 = arith.mulf %377, %377 : vector<8x256xf32>
    %cst_245 = arith.constant dense<0.000000e+00> : vector<256xf32>
    %379 = vector.multi_reduction <add>, %378, %cst_245 [0] : vector<8x256xf32> to vector<256xf32>
    %380 = vector.shape_cast %379 : vector<256xf32> to vector<1x256xf32>
    %cst_246 = arith.constant dense<0.000000e+00> : vector<1x256xf32>
    %381 = tpu.matmul %380, %370, %cst_246 {dimension_numbers = #tpu.dot_dimension_numbers<[1], [0], [0], [1], [0, 0, 1, 1], [], []>} : vector<1x256xf32>, vector<256x256xf32>, vector<1x256xf32> -> vector<1x256xf32>
    %cst_247 = arith.constant 1.562500e-02 : f32
    %382 = vector.broadcast %cst_247 : f32 to vector<1x256xf32>
    %383 = arith.mulf %381, %382 : vector<1x256xf32>
    %cst_248 = arith.constant 9.99999974E-6 : f32
    %384 = vector.broadcast %cst_248 : f32 to vector<1x256xf32>
    %385 = arith.addf %383, %384 : vector<1x256xf32>
    %386 = math.rsqrt %385 : vector<1x256xf32>
    %387 = vector.broadcast %386 : vector<1x256xf32> to vector<8x256xf32>
    %388 = arith.mulf %377, %387 : vector<8x256xf32>
    %c0_249 = arith.constant 0 : index
    %c0_250 = arith.constant 0 : index
    %389 = vector.load %arg8[%c0_249, %c0_250] : memref<1x256xf32, #tpu.memory_space<vmem>>, vector<1x256xf32>
    %390 = vector.broadcast %389 : vector<1x256xf32> to vector<8x256xf32>
    %391 = arith.mulf %388, %390 : vector<8x256xf32>
    %c0_251 = arith.constant 0 : index
    %c0_252 = arith.constant 0 : index
    %392 = vector.load %arg9[%c0_251, %c0_252] : memref<1x256xf32, #tpu.memory_space<vmem>>, vector<1x256xf32>
    %393 = vector.broadcast %392 : vector<1x256xf32> to vector<8x256xf32>
    %394 = arith.addf %391, %393 : vector<8x256xf32>
    %cst_253 = arith.constant 0.000000e+00 : f32
    %395 = vector.broadcast %cst_253 : f32 to vector<8x256xf32>
    %396 = arith.cmpf ogt, %394, %395 : vector<8x256xf32>
    %cst_254 = arith.constant 2.000000e-01 : f32
    %397 = vector.broadcast %cst_254 : f32 to vector<8x256xf32>
    %398 = arith.mulf %397, %394 : vector<8x256xf32>
    %399 = arith.select %396, %394, %398 : vector<8x256xi1>, vector<8x256xf32>
    %cst_255 = arith.constant 0.000000e+00 : bf16
    %400 = vector.broadcast %cst_255 : bf16 to vector<2x5x320xbf16>
    %c0_256 = arith.constant 0 : index
    %c0_257 = arith.constant 0 : index
    %c0_258 = arith.constant 0 : index
    %401 = vector.load %arg17[%c0_256, %c0_257, %c0_258] : memref<2x5x320xbf16, #tpu.memory_space<vmem>>, vector<2x5x320xbf16>
    tpu.vector_store %arg17[%c0_256, %c0_257, %c0_258], %400 {strides = array<i32>} : memref<2x5x320xbf16, #tpu.memory_space<vmem>>, vector<2x5x320xbf16>,
    %402 = vector.extract_strided_slice %399 {offsets = [0, 0], sizes = [1, 256], strides = [1, 1]} : vector<8x256xf32> to vector<1x256xf32>
    %403 = arith.truncf %402 : vector<1x256xf32> to vector<1x256xbf16>
    %c1_259 = arith.constant 1 : index
    %c0_260 = arith.constant 0 : index
    %c0_261 = arith.constant 0 : index
    %404 = vector.load %arg17[%c1_259, %c0_260, %c0_261] : memref<2x5x320xbf16, #tpu.memory_space<vmem>>, vector<1x1x256xbf16>
    %405 = vector.shape_cast %404 : vector<1x1x256xbf16> to vector<1x256xbf16>
    %406 = vector.shape_cast %403 : vector<1x256xbf16> to vector<1x1x256xbf16>
    tpu.vector_store %arg17[%c1_259, %c0_260, %c0_261], %406 {strides = array<i32>} : memref<2x5x320xbf16, #tpu.memory_space<vmem>>, vector<1x1x256xbf16>,
    %407 = vector.extract_strided_slice %399 {offsets = [1, 0], sizes = [1, 256], strides = [1, 1]} : vector<8x256xf32> to vector<1x256xf32>
    %408 = arith.truncf %407 : vector<1x256xf32> to vector<1x256xbf16>
    %c0_262 = arith.constant 0 : index
    %c1_263 = arith.constant 1 : index
    %c0_264 = arith.constant 0 : index
    %409 = vector.load %arg17[%c0_262, %c1_263, %c0_264] : memref<2x5x320xbf16, #tpu.memory_space<vmem>>, vector<1x1x256xbf16>
    %410 = vector.shape_cast %409 : vector<1x1x256xbf16> to vector<1x256xbf16>
    %411 = vector.shape_cast %408 : vector<1x256xbf16> to vector<1x1x256xbf16>
    tpu.vector_store %arg17[%c0_262, %c1_263, %c0_264], %411 {strides = array<i32>} : memref<2x5x320xbf16, #tpu.memory_space<vmem>>, vector<1x1x256xbf16>,
    %412 = vector.extract_strided_slice %399 {offsets = [2, 0], sizes = [1, 256], strides = [1, 1]} : vector<8x256xf32> to vector<1x256xf32>
    %413 = arith.truncf %412 : vector<1x256xf32> to vector<1x256xbf16>
    %c1_265 = arith.constant 1 : index
    %c1_266 = arith.constant 1 : index
    %c0_267 = arith.constant 0 : index
    %414 = vector.load %arg17[%c1_265, %c1_266, %c0_267] : memref<2x5x320xbf16, #tpu.memory_space<vmem>>, vector<1x1x256xbf16>
    %415 = vector.shape_cast %414 : vector<1x1x256xbf16> to vector<1x256xbf16>
    %416 = vector.shape_cast %413 : vector<1x256xbf16> to vector<1x1x256xbf16>
    tpu.vector_store %arg17[%c1_265, %c1_266, %c0_267], %416 {strides = array<i32>} : memref<2x5x320xbf16, #tpu.memory_space<vmem>>, vector<1x1x256xbf16>,
    %417 = vector.extract_strided_slice %399 {offsets = [3, 0], sizes = [1, 256], strides = [1, 1]} : vector<8x256xf32> to vector<1x256xf32>
    %418 = arith.truncf %417 : vector<1x256xf32> to vector<1x256xbf16>
    %c0_268 = arith.constant 0 : index
    %c2_269 = arith.constant 2 : index
    %c0_270 = arith.constant 0 : index
    %419 = vector.load %arg17[%c0_268, %c2_269, %c0_270] : memref<2x5x320xbf16, #tpu.memory_space<vmem>>, vector<1x1x256xbf16>
    %420 = vector.shape_cast %419 : vector<1x1x256xbf16> to vector<1x256xbf16>
    %421 = vector.shape_cast %418 : vector<1x256xbf16> to vector<1x1x256xbf16>
    tpu.vector_store %arg17[%c0_268, %c2_269, %c0_270], %421 {strides = array<i32>} : memref<2x5x320xbf16, #tpu.memory_space<vmem>>, vector<1x1x256xbf16>,
    %422 = vector.extract_strided_slice %399 {offsets = [4, 0], sizes = [1, 256], strides = [1, 1]} : vector<8x256xf32> to vector<1x256xf32>
    %423 = arith.truncf %422 : vector<1x256xf32> to vector<1x256xbf16>
    %c1_271 = arith.constant 1 : index
    %c2_272 = arith.constant 2 : index
    %c0_273 = arith.constant 0 : index
    %424 = vector.load %arg17[%c1_271, %c2_272, %c0_273] : memref<2x5x320xbf16, #tpu.memory_space<vmem>>, vector<1x1x256xbf16>
    %425 = vector.shape_cast %424 : vector<1x1x256xbf16> to vector<1x256xbf16>
    %426 = vector.shape_cast %423 : vector<1x256xbf16> to vector<1x1x256xbf16>
    tpu.vector_store %arg17[%c1_271, %c2_272, %c0_273], %426 {strides = array<i32>} : memref<2x5x320xbf16, #tpu.memory_space<vmem>>, vector<1x1x256xbf16>,
    %427 = vector.extract_strided_slice %399 {offsets = [5, 0], sizes = [1, 256], strides = [1, 1]} : vector<8x256xf32> to vector<1x256xf32>
    %428 = arith.truncf %427 : vector<1x256xf32> to vector<1x256xbf16>
    %c0_274 = arith.constant 0 : index
    %c3_275 = arith.constant 3 : index
    %c0_276 = arith.constant 0 : index
    %429 = vector.load %arg17[%c0_274, %c3_275, %c0_276] : memref<2x5x320xbf16, #tpu.memory_space<vmem>>, vector<1x1x256xbf16>
    %430 = vector.shape_cast %429 : vector<1x1x256xbf16> to vector<1x256xbf16>
    %431 = vector.shape_cast %428 : vector<1x256xbf16> to vector<1x1x256xbf16>
    tpu.vector_store %arg17[%c0_274, %c3_275, %c0_276], %431 {strides = array<i32>} : memref<2x5x320xbf16, #tpu.memory_space<vmem>>, vector<1x1x256xbf16>,
    %432 = vector.extract_strided_slice %399 {offsets = [6, 0], sizes = [1, 256], strides = [1, 1]} : vector<8x256xf32> to vector<1x256xf32>
    %433 = arith.truncf %432 : vector<1x256xf32> to vector<1x256xbf16>
    %c1_277 = arith.constant 1 : index
    %c3_278 = arith.constant 3 : index
    %c0_279 = arith.constant 0 : index
    %434 = vector.load %arg17[%c1_277, %c3_278, %c0_279] : memref<2x5x320xbf16, #tpu.memory_space<vmem>>, vector<1x1x256xbf16>
    %435 = vector.shape_cast %434 : vector<1x1x256xbf16> to vector<1x256xbf16>
    %436 = vector.shape_cast %433 : vector<1x256xbf16> to vector<1x1x256xbf16>
    tpu.vector_store %arg17[%c1_277, %c3_278, %c0_279], %436 {strides = array<i32>} : memref<2x5x320xbf16, #tpu.memory_space<vmem>>, vector<1x1x256xbf16>,
    %437 = vector.extract_strided_slice %399 {offsets = [7, 0], sizes = [1, 256], strides = [1, 1]} : vector<8x256xf32> to vector<1x256xf32>
    %438 = arith.truncf %437 : vector<1x256xf32> to vector<1x256xbf16>
    %c0_280 = arith.constant 0 : index
    %c4_281 = arith.constant 4 : index
    %c0_282 = arith.constant 0 : index
    %439 = vector.load %arg17[%c0_280, %c4_281, %c0_282] : memref<2x5x320xbf16, #tpu.memory_space<vmem>>, vector<1x1x256xbf16>
    %440 = vector.shape_cast %439 : vector<1x1x256xbf16> to vector<1x256xbf16>
    %441 = vector.shape_cast %438 : vector<1x256xbf16> to vector<1x1x256xbf16>
    tpu.vector_store %arg17[%c0_280, %c4_281, %c0_282], %441 {strides = array<i32>} : memref<2x5x320xbf16, #tpu.memory_space<vmem>>, vector<1x1x256xbf16>,
    %cst_283 = arith.constant 0.000000e+00 : f32
    %442 = vector.broadcast %cst_283 : f32 to vector<4x256xf32>
    %c0_284 = arith.constant 0 : index
    %c0_285 = arith.constant 0 : index
    %c0_286 = arith.constant 0 : index
    %443 = vector.load %arg17[%c0_284, %c0_285, %c0_286] : memref<2x5x320xbf16, #tpu.memory_space<vmem>>, vector<1x4x320xbf16>
    %444 = vector.shape_cast %443 : vector<1x4x320xbf16> to vector<4x320xbf16>
    %c0_287 = arith.constant 0 : index
    %c0_288 = arith.constant 0 : index
    %c0_289 = arith.constant 0 : index
    %445 = vector.load %arg5[%c0_287, %c0_288, %c0_289] : memref<4x320x256xbf16, #tpu.memory_space<vmem>>, vector<1x320x256xbf16>
    %446 = vector.shape_cast %445 : vector<1x320x256xbf16> to vector<320x256xbf16>
    %cst_290 = arith.constant dense<0.000000e+00> : vector<4x256xf32>
    %447 = tpu.matmul %444, %446, %cst_290 {dimension_numbers = #tpu.dot_dimension_numbers<[1], [0], [0], [1], [0, 0, 1, 1], [], []>} : vector<4x320xbf16>, vector<320x256xbf16>, vector<4x256xf32> -> vector<4x256xf32>
    %448 = arith.addf %442, %447 : vector<4x256xf32>
    %c1_291 = arith.constant 1 : index
    %c0_292 = arith.constant 0 : index
    %c0_293 = arith.constant 0 : index
    %449 = vector.load %arg17[%c1_291, %c0_292, %c0_293] : memref<2x5x320xbf16, #tpu.memory_space<vmem>>, vector<1x4x320xbf16>
    %450 = vector.shape_cast %449 : vector<1x4x320xbf16> to vector<4x320xbf16>
    %c1_294 = arith.constant 1 : index
    %c0_295 = arith.constant 0 : index
    %c0_296 = arith.constant 0 : index
    %451 = vector.load %arg5[%c1_294, %c0_295, %c0_296] : memref<4x320x256xbf16, #tpu.memory_space<vmem>>, vector<1x320x256xbf16>
    %452 = vector.shape_cast %451 : vector<1x320x256xbf16> to vector<320x256xbf16>
    %cst_297 = arith.constant dense<0.000000e+00> : vector<4x256xf32>
    %453 = tpu.matmul %450, %452, %cst_297 {dimension_numbers = #tpu.dot_dimension_numbers<[1], [0], [0], [1], [0, 0, 1, 1], [], []>} : vector<4x320xbf16>, vector<320x256xbf16>, vector<4x256xf32> -> vector<4x256xf32>
    %454 = arith.addf %448, %453 : vector<4x256xf32>
    %c0_298 = arith.constant 0 : index
    %c1_299 = arith.constant 1 : index
    %c0_300 = arith.constant 0 : index
    %455 = vector.load %arg17[%c0_298, %c1_299, %c0_300] : memref<2x5x320xbf16, #tpu.memory_space<vmem>>, vector<1x4x320xbf16>
    %456 = vector.shape_cast %455 : vector<1x4x320xbf16> to vector<4x320xbf16>
    %c2_301 = arith.constant 2 : index
    %c0_302 = arith.constant 0 : index
    %c0_303 = arith.constant 0 : index
    %457 = vector.load %arg5[%c2_301, %c0_302, %c0_303] : memref<4x320x256xbf16, #tpu.memory_space<vmem>>, vector<1x320x256xbf16>
    %458 = vector.shape_cast %457 : vector<1x320x256xbf16> to vector<320x256xbf16>
    %cst_304 = arith.constant dense<0.000000e+00> : vector<4x256xf32>
    %459 = tpu.matmul %456, %458, %cst_304 {dimension_numbers = #tpu.dot_dimension_numbers<[1], [0], [0], [1], [0, 0, 1, 1], [], []>} : vector<4x320xbf16>, vector<320x256xbf16>, vector<4x256xf32> -> vector<4x256xf32>
    %460 = arith.addf %454, %459 : vector<4x256xf32>
    %c1_305 = arith.constant 1 : index
    %c1_306 = arith.constant 1 : index
    %c0_307 = arith.constant 0 : index
    %461 = vector.load %arg17[%c1_305, %c1_306, %c0_307] : memref<2x5x320xbf16, #tpu.memory_space<vmem>>, vector<1x4x320xbf16>
    %462 = vector.shape_cast %461 : vector<1x4x320xbf16> to vector<4x320xbf16>
    %c3_308 = arith.constant 3 : index
    %c0_309 = arith.constant 0 : index
    %c0_310 = arith.constant 0 : index
    %463 = vector.load %arg5[%c3_308, %c0_309, %c0_310] : memref<4x320x256xbf16, #tpu.memory_space<vmem>>, vector<1x320x256xbf16>
    %464 = vector.shape_cast %463 : vector<1x320x256xbf16> to vector<320x256xbf16>
    %cst_311 = arith.constant dense<0.000000e+00> : vector<4x256xf32>
    %465 = tpu.matmul %462, %464, %cst_311 {dimension_numbers = #tpu.dot_dimension_numbers<[1], [0], [0], [1], [0, 0, 1, 1], [], []>} : vector<4x320xbf16>, vector<320x256xbf16>, vector<4x256xf32> -> vector<4x256xf32>
    %466 = arith.addf %460, %465 : vector<4x256xf32>
    %467 = tpu.iota {dimensions = array<i32: 0>} : vector<256x256xi32>
    %468 = tpu.iota {dimensions = array<i32: 1>} : vector<256x256xi32>
    %c63_i32 = arith.constant 63 : i32
    %469 = vector.broadcast %c63_i32 : i32 to vector<256x256xi32>
    %470 = arith.andi %467, %469 : vector<256x256xi32>
    %c63_i32_312 = arith.constant 63 : i32
    %471 = vector.broadcast %c63_i32_312 : i32 to vector<256x256xi32>
    %472 = arith.andi %468, %471 : vector<256x256xi32>
    %473 = arith.cmpi eq, %470, %472 : vector<256x256xi32>
    %474 = arith.extui %473 : vector<256x256xi1> to vector<256x256xi32>
    %475 = arith.sitofp %474 : vector<256x256xi32> to vector<256x256xf32>
    %cst_313 = arith.constant dense<0.000000e+00> : vector<256xf32>
    %476 = vector.multi_reduction <add>, %466, %cst_313 [0] : vector<4x256xf32> to vector<256xf32>
    %477 = vector.shape_cast %476 : vector<256xf32> to vector<1x256xf32>
    %cst_314 = arith.constant dense<0.000000e+00> : vector<1x256xf32>
    %478 = tpu.matmul %477, %475, %cst_314 {dimension_numbers = #tpu.dot_dimension_numbers<[1], [0], [0], [1], [0, 0, 1, 1], [], []>} : vector<1x256xf32>, vector<256x256xf32>, vector<1x256xf32> -> vector<1x256xf32>
    %cst_315 = arith.constant 6.250000e-02 : f32
    %479 = vector.broadcast %cst_315 : f32 to vector<1x256xf32>
    %480 = arith.mulf %478, %479 : vector<1x256xf32>
    %481 = vector.broadcast %480 : vector<1x256xf32> to vector<4x256xf32>
    %482 = arith.subf %466, %481 : vector<4x256xf32>
    %483 = arith.mulf %482, %482 : vector<4x256xf32>
    %cst_316 = arith.constant dense<0.000000e+00> : vector<256xf32>
    %484 = vector.multi_reduction <add>, %483, %cst_316 [0] : vector<4x256xf32> to vector<256xf32>
    %485 = vector.shape_cast %484 : vector<256xf32> to vector<1x256xf32>
    %cst_317 = arith.constant dense<0.000000e+00> : vector<1x256xf32>
    %486 = tpu.matmul %485, %475, %cst_317 {dimension_numbers = #tpu.dot_dimension_numbers<[1], [0], [0], [1], [0, 0, 1, 1], [], []>} : vector<1x256xf32>, vector<256x256xf32>, vector<1x256xf32> -> vector<1x256xf32>
    %cst_318 = arith.constant 6.250000e-02 : f32
    %487 = vector.broadcast %cst_318 : f32 to vector<1x256xf32>
    %488 = arith.mulf %486, %487 : vector<1x256xf32>
    %cst_319 = arith.constant 9.99999974E-6 : f32
    %489 = vector.broadcast %cst_319 : f32 to vector<1x256xf32>
    %490 = arith.addf %488, %489 : vector<1x256xf32>
    %491 = math.rsqrt %490 : vector<1x256xf32>
    %492 = vector.broadcast %491 : vector<1x256xf32> to vector<4x256xf32>
    %493 = arith.mulf %482, %492 : vector<4x256xf32>
    %c0_320 = arith.constant 0 : index
    %c0_321 = arith.constant 0 : index
    %494 = vector.load %arg10[%c0_320, %c0_321] : memref<1x256xf32, #tpu.memory_space<vmem>>, vector<1x256xf32>
    %495 = vector.broadcast %494 : vector<1x256xf32> to vector<4x256xf32>
    %496 = arith.mulf %493, %495 : vector<4x256xf32>
    %c0_322 = arith.constant 0 : index
    %c0_323 = arith.constant 0 : index
    %497 = vector.load %arg11[%c0_322, %c0_323] : memref<1x256xf32, #tpu.memory_space<vmem>>, vector<1x256xf32>
    %498 = vector.broadcast %497 : vector<1x256xf32> to vector<4x256xf32>
    %499 = arith.addf %496, %498 : vector<4x256xf32>
    %cst_324 = arith.constant 0.000000e+00 : f32
    %500 = vector.broadcast %cst_324 : f32 to vector<4x256xf32>
    %501 = arith.cmpf ogt, %499, %500 : vector<4x256xf32>
    %cst_325 = arith.constant 2.000000e-01 : f32
    %502 = vector.broadcast %cst_325 : f32 to vector<4x256xf32>
    %503 = arith.mulf %502, %499 : vector<4x256xf32>
    %504 = arith.select %501, %499, %503 : vector<4x256xi1>, vector<4x256xf32>
    %c0_326 = arith.constant 0 : index
    %c0_327 = arith.constant 0 : index
    %c0_328 = arith.constant 0 : index
    %505 = vector.load %arg13[%c0_326, %c0_327, %c0_328] : memref<1x4x256xf32, #tpu.memory_space<vmem>>, vector<1x4x256xf32>
    %506 = vector.shape_cast %505 : vector<1x4x256xf32> to vector<4x256xf32>
    %507 = vector.shape_cast %504 : vector<4x256xf32> to vector<1x4x256xf32>
    tpu.vector_store %arg13[%c0_326, %c0_327, %c0_328], %507 {strides = array<i32>} : memref<1x4x256xf32, #tpu.memory_space<vmem>>, vector<1x4x256xf32>,
    %c0_329 = arith.constant 0 : index
    %c0_330 = arith.constant 0 : index
    %508 = vector.load %arg12[%c0_329, %c0_330] : memref<4x256xf32, #tpu.memory_space<vmem>>, vector<4x256xf32>
    %509 = arith.mulf %504, %508 : vector<4x256xf32>
    %cst_331 = arith.constant dense<0.000000e+00> : vector<4xf32>
    %510 = vector.multi_reduction <add>, %509, %cst_331 [1] : vector<4x256xf32> to vector<4xf32>
    %511 = vector.shape_cast %510 : vector<4xf32> to vector<4x1xf32>
    %cst_332 = arith.constant dense<0.000000e+00> : vector<1xf32>
    %512 = vector.multi_reduction <add>, %511, %cst_332 [0] : vector<4x1xf32> to vector<1xf32>
    %513 = vector.shape_cast %512 : vector<1xf32> to vector<1x1xf32>
    %c0_333 = arith.constant 0 : index
    %c0_334 = arith.constant 0 : index
    %c0_335 = arith.constant 0 : index
    %514 = vector.load %arg14[%c0_333, %c0_334, %c0_335] : memref<1x1x1xf32, #tpu.memory_space<vmem>>, vector<1x1x1xf32>
    %515 = vector.shape_cast %514 : vector<1x1x1xf32> to vector<1x1xf32>
    %516 = vector.shape_cast %513 : vector<1x1xf32> to vector<1x1x1xf32>
    tpu.vector_store %arg14[%c0_333, %c0_334, %c0_335], %516 {strides = array<i32>} : memref<1x1x1xf32, #tpu.memory_space<vmem>>, vector<1x1x1xf32>,
    return
  }
  func.func @transform_0(%arg0: i32) -> (i32, i32, i32, i32) {
    %c0_i32 = arith.constant 0 : i32
    %c0_i32_0 = arith.constant 0 : i32
    %c0_i32_1 = arith.constant 0 : i32
    %c0_i32_2 = arith.constant 0 : i32
    return %arg0, %c0_i32, %c0_i32_0, %c0_i32_1 : i32, i32, i32, i32
  }
  func.func @transform_1(%arg0: i32) -> (i32, i32, i32) {
    %c0_i32 = arith.constant 0 : i32
    %c0_i32_0 = arith.constant 0 : i32
    %c0_i32_1 = arith.constant 0 : i32
    %c0_i32_2 = arith.constant 0 : i32
    return %c0_i32, %c0_i32_0, %c0_i32_1 : i32, i32, i32
  }
  func.func @transform_2(%arg0: i32) -> (i32, i32, i32) {
    %c0_i32 = arith.constant 0 : i32
    %c0_i32_0 = arith.constant 0 : i32
    %c0_i32_1 = arith.constant 0 : i32
    %c0_i32_2 = arith.constant 0 : i32
    return %c0_i32, %c0_i32_0, %c0_i32_1 : i32, i32, i32
  }
  func.func @transform_3(%arg0: i32) -> (i32, i32, i32) {
    %c0_i32 = arith.constant 0 : i32
    %c0_i32_0 = arith.constant 0 : i32
    %c0_i32_1 = arith.constant 0 : i32
    %c0_i32_2 = arith.constant 0 : i32
    return %c0_i32, %c0_i32_0, %c0_i32_1 : i32, i32, i32
  }
  func.func @transform_4(%arg0: i32) -> (i32, i32, i32) {
    %c0_i32 = arith.constant 0 : i32
    %c0_i32_0 = arith.constant 0 : i32
    %c0_i32_1 = arith.constant 0 : i32
    %c0_i32_2 = arith.constant 0 : i32
    return %c0_i32, %c0_i32_0, %c0_i32_1 : i32, i32, i32
  }
  func.func @transform_5(%arg0: i32) -> (i32, i32) {
    %c0_i32 = arith.constant 0 : i32
    %c0_i32_0 = arith.constant 0 : i32
    %c0_i32_1 = arith.constant 0 : i32
    return %c0_i32, %c0_i32_0 : i32, i32
  }
  func.func @transform_6(%arg0: i32) -> (i32, i32) {
    %c0_i32 = arith.constant 0 : i32
    %c0_i32_0 = arith.constant 0 : i32
    %c0_i32_1 = arith.constant 0 : i32
    return %c0_i32, %c0_i32_0 : i32, i32
  }
  func.func @transform_7(%arg0: i32) -> (i32, i32) {
    %c0_i32 = arith.constant 0 : i32
    %c0_i32_0 = arith.constant 0 : i32
    %c0_i32_1 = arith.constant 0 : i32
    return %c0_i32, %c0_i32_0 : i32, i32
  }
  func.func @transform_8(%arg0: i32) -> (i32, i32) {
    %c0_i32 = arith.constant 0 : i32
    %c0_i32_0 = arith.constant 0 : i32
    %c0_i32_1 = arith.constant 0 : i32
    return %c0_i32, %c0_i32_0 : i32, i32
  }
  func.func @transform_9(%arg0: i32) -> (i32, i32) {
    %c0_i32 = arith.constant 0 : i32
    %c0_i32_0 = arith.constant 0 : i32
    %c0_i32_1 = arith.constant 0 : i32
    return %c0_i32, %c0_i32_0 : i32, i32
  }
  func.func @transform_10(%arg0: i32) -> (i32, i32) {
    %c0_i32 = arith.constant 0 : i32
    %c0_i32_0 = arith.constant 0 : i32
    %c0_i32_1 = arith.constant 0 : i32
    return %c0_i32, %c0_i32_0 : i32, i32
  }
  func.func @transform_11(%arg0: i32) -> (i32, i32) {
    %c0_i32 = arith.constant 0 : i32
    %c0_i32_0 = arith.constant 0 : i32
    %c0_i32_1 = arith.constant 0 : i32
    return %c0_i32, %c0_i32_0 : i32, i32
  }
  func.func @transform_12(%arg0: i32) -> (i32, i32, i32) {
    %c0_i32 = arith.constant 0 : i32
    %c0_i32_0 = arith.constant 0 : i32
    %c0_i32_1 = arith.constant 0 : i32
    return %arg0, %c0_i32, %c0_i32_0 : i32, i32, i32
  }
  func.func @transform_13(%arg0: i32) -> (i32, i32, i32) {
    %c0_i32 = arith.constant 0 : i32
    %c0_i32_0 = arith.constant 0 : i32
    %c0_i32_1 = arith.constant 0 : i32
    return %arg0, %c0_i32, %c0_i32_0 : i32, i32, i32
  }
}

</mosaic_0001>

<llo_original>
// kernel: tile.33
$region0: #{tile.33}
  #allocation0 [shape = 's32[1]{0}', space=sflag, size = 0x4, scoped, tag = 'scoped memory for tile.33']
  %s0 = inlined_call_operand.vmem [shape: f32[16], index: 0, kind: input, shape index: {}]
  %s1 = inlined_call_operand.vmem [shape: f32[16,16], index: 1, kind: output, shape index: {}]
  // Predicated region
  $region2: #{tile.33} parent=0 // pred_check
    _
  $region3: #{tile.33} parent=0 // pred_check_branch
    %3 = sbr.rel (0) target = $region5
  $region4: #{tile.33} parent=0 // pred_region
    _
  $region5: #{tile.33} parent=0 // pred_fallthru
    _
  %v4 = vld [vmem:[%s0] ss:$0 sm:$0xff]
  %5 = vst [vmem:[%s1] sm:$0xff] %v4
  %s6 = scalar_lea.vmem %s1, 8
  %7 = vst [vmem:[%s6] sm:$0xff] %v4

// kernel: tile.34
$region0: #{tile.34}
  %s0 = inlined_call_operand.vmem [shape: f32[16,16], index: 0, kind: input, shape index: {}]
  %s1 = inlined_call_operand.vmem [shape: f32[1,256], index: 1, kind: output, shape index: {}]
  $region1: #{tile.34} parent=0
    #allocation0 [shape = 'u8[8192]{0}', space=vmem, size = 0x2000, scoped, tag = 'scoped mem for output reshape']
    %s2 = smov 3
    %v3 = vld [vmem:[%s0] ss:$8 sm:%s2]
    %vm4 = vcmask 130048
    %5 = vst.msk [vmem:[#allocation0] ss:$8 sm:$0x3] %vm4, %v3
    %s6 = scalar_lea.vmem %s0, 7
    %s7 = smov 3
    %v8 = vld [vmem:[%s6] ss:$8 sm:%s7]
    %9 = vrot.lane.b32.xlu0 %v8, 112
    %v10 = vpop.permute.xlu0 %9
    %vm11 = vcmask 1048448
    %12 = vst.msk [vmem:[#allocation0] ss:$8 sm:$0x3] %vm11, %v10
    %s13 = scalar_lea.vmem %s0, 6
    %s14 = smov 3
    %v15 = vld [vmem:[%s13] ss:$8 sm:%s14]
    %16 = vrot.lane.b32.xlu0 %v15, 96
    %v17 = vpop.permute.xlu0 %16
    %vm18 = vcmask 917248
    %19 = vst.msk [vmem:[#allocation0] ss:$8 sm:$0x3] %vm18, %v17
    %s20 = scalar_lea.vmem %s0, 5
    %s21 = smov 3
    %v22 = vld [vmem:[%s20] ss:$8 sm:%s21]
    %23 = vrot.lane.b32.xlu0 %v22, 80
    %v24 = vpop.permute.xlu0 %23
    %vm25 = vcmask 786048
    %26 = vst.msk [vmem:[#allocation0] ss:$8 sm:$0x3] %vm25, %v24
    %s27 = scalar_lea.vmem %s0, 4
    %s28 = smov 3
    %v29 = vld [vmem:[%s27] ss:$8 sm:%s28]
    %30 = vrot.lane.b32.xlu0 %v29, 64
    %v31 = vpop.permute.xlu0 %30
    %vm32 = vcmask 654848
    %33 = vst.msk [vmem:[#allocation0] ss:$8 sm:$0x3] %vm32, %v31
    %s34 = scalar_lea.vmem %s0, 3
    %s35 = smov 3
    %v36 = vld [vmem:[%s34] ss:$8 sm:%s35]
    %37 = vrot.lane.b32.xlu0 %v36, 48
    %v38 = vpop.permute.xlu0 %37
    %vm39 = vcmask 523648
    %40 = vst.msk [vmem:[#allocation0] ss:$8 sm:$0x3] %vm39, %v38
    %s41 = scalar_lea.vmem %s0, 2
    %s42 = smov 3
    %v43 = vld [vmem:[%s41] ss:$8 sm:%s42]
    %44 = vrot.lane.b32.xlu0 %v43, 32
    %v45 = vpop.permute.xlu0 %44
    %vm46 = vcmask 392448
    %47 = vst.msk [vmem:[#allocation0] ss:$8 sm:$0x3] %vm46, %v45
    %s48 = scalar_lea.vmem %s0, 1
    %s49 = smov 3
    %v50 = vld [vmem:[%s48] ss:$8 sm:%s49]
    %51 = vrot.lane.b32.xlu0 %v50, 16
    %v52 = vpop.permute.xlu0 %51
    %vm53 = vcmask 261248
    %54 = vst.msk [vmem:[#allocation0] ss:$8 sm:$0x3] %vm53, %v52
    %s56 = ssub.s32 2, 1
    %v57 = vld [vmem:[#allocation0] sm:%s56]
    %s59 = ssub.s32 2, 1
    %60 = vst [vmem:[%s1] sm:%s59] %v57
    %s61 = scalar_lea.vmem [#allocation0], 8
    %v62 = vld [vmem:[%s61] sm:%s56]
    %s64 = ssub.s32 2, 1
    %s65 = scalar_lea.vmem %s1, 1
    %66 = vst [vmem:[%s65] sm:%s64] %v62

// kernel: tile.43
$region0: #{tile.43}
  #allocation0 [shape = 's32[1]{0}', space=sflag, size = 0x4, scoped, tag = 'scoped memory for tile.43']
  %s0 = inlined_call_operand.vmem [shape: f32[32], index: 0, kind: input, shape index: {}]
  %s1 = inlined_call_operand.vmem [shape: f32[8,32], index: 1, kind: output, shape index: {}]
  // Predicated region
  $region2: #{tile.43} parent=0 // pred_check
    _
  $region3: #{tile.43} parent=0 // pred_check_branch
    %3 = sbr.rel (0) target = $region5
  $region4: #{tile.43} parent=0 // pred_region
    _
  $region5: #{tile.43} parent=0 // pred_fallthru
    _
  %v4 = vld [vmem:[%s0] ss:$0 sm:$0xff]
  %5 = vst [vmem:[%s1] sm:$0xff] %v4

// kernel: tile.44
$region0: #{tile.44}
  %s0 = inlined_call_operand.vmem [shape: f32[8,32], index: 0, kind: input, shape index: {}]
  %s1 = inlined_call_operand.vmem [shape: f32[1,256], index: 1, kind: output, shape index: {}]
  $region1: #{tile.44} parent=0
    #allocation0 [shape = 'u8[8192]{0}', space=vmem, size = 0x2000, scoped, tag = 'scoped mem for output reshape']
    %s2 = smov 3
    %v3 = vld [vmem:[%s0] ss:$4 sm:%s2]
    %vm4 = vcmask 261120
    %5 = vst.msk [vmem:[#allocation0] ss:$8 sm:$0x3] %vm4, %v3
    %s6 = scalar_lea.vmem %s0, 3
    %s7 = smov 3
    %v8 = vld [vmem:[%s6] ss:$4 sm:%s7]
    %9 = vrot.lane.b32.xlu0 %v8, 96
    %v10 = vpop.permute.xlu0 %9
    %vm11 = vcmask 1048320
    %12 = vst.msk [vmem:[#allocation0] ss:$8 sm:$0x3] %vm11, %v10
    %s13 = scalar_lea.vmem %s0, 2
    %s14 = smov 3
    %v15 = vld [vmem:[%s13] ss:$4 sm:%s14]
    %16 = vrot.lane.b32.xlu0 %v15, 64
    %v17 = vpop.permute.xlu0 %16
    %vm18 = vcmask 785920
    %19 = vst.msk [vmem:[#allocation0] ss:$8 sm:$0x3] %vm18, %v17
    %s20 = scalar_lea.vmem %s0, 1
    %s21 = smov 3
    %v22 = vld [vmem:[%s20] ss:$4 sm:%s21]
    %23 = vrot.lane.b32.xlu0 %v22, 32
    %v24 = vpop.permute.xlu0 %23
    %vm25 = vcmask 523520
    %26 = vst.msk [vmem:[#allocation0] ss:$8 sm:$0x3] %vm25, %v24
    %s28 = ssub.s32 2, 1
    %v29 = vld [vmem:[#allocation0] sm:%s28]
    %s31 = ssub.s32 2, 1
    %32 = vst [vmem:[%s1] sm:%s31] %v29
    %s33 = scalar_lea.vmem [#allocation0], 8
    %v34 = vld [vmem:[%s33] sm:%s28]
    %s36 = ssub.s32 2, 1
    %s37 = scalar_lea.vmem %s1, 1
    %38 = vst [vmem:[%s37] sm:%s36] %v34

// kernel: tile.53
$region0: #{tile.53}
  #allocation0 [shape = 's32[1]{0}', space=sflag, size = 0x4, scoped, tag = 'scoped memory for tile.53']
  %s0 = inlined_call_operand.vmem [shape: f32[64], index: 0, kind: input, shape index: {}]
  %s1 = inlined_call_operand.vmem [shape: f32[4,64], index: 1, kind: output, shape index: {}]
  // Predicated region
  $region2: #{tile.53} parent=0 // pred_check
    _
  $region3: #{tile.53} parent=0 // pred_check_branch
    %3 = sbr.rel (0) target = $region5
  $region4: #{tile.53} parent=0 // pred_region
    _
  $region5: #{tile.53} parent=0 // pred_fallthru
    _
  %v4 = vld [vmem:[%s0] ss:$0 sm:$0xff]
  %5 = vst [vmem:[%s1] sm:$0xf] %v4

// kernel: tile.54
$region0: #{tile.54}
  %s0 = inlined_call_operand.vmem [shape: f32[4,64], index: 0, kind: input, shape index: {}]
  %s1 = inlined_call_operand.vmem [shape: f32[1,256], index: 1, kind: output, shape index: {}]
  $region1: #{tile.54} parent=0
    #allocation0 [shape = 'u8[8192]{0}', space=vmem, size = 0x2000, scoped, tag = 'scoped mem for output reshape']
    #allocation1 [shape = 'u8[4096]{0}', space=vmem, size = 0x1000, scoped, tag = 'scoped mem for input reshape']
    %s3 = ssub.s32 16, 1
    %v4 = vld [vmem:[%s0] sm:%s3]
    %5 = vst [vmem:[#allocation1] sm:%s3] %v4
    %s6 = smov 3
    %v7 = vld [vmem:[#allocation1] ss:$2 sm:%s6]
    %vm8 = vcmask 523264
    %9 = vst.msk [vmem:[#allocation0] ss:$8 sm:$0x3] %vm8, %v7
    %s10 = scalar_lea.vmem [#allocation1], 1
    %s11 = smov 3
    %v12 = vld [vmem:[%s10] ss:$2 sm:%s11]
    %13 = vrot.lane.b32.xlu0 %v12, 64
    %v14 = vpop.permute.xlu0 %13
    %vm15 = vcmask 1048064
    %16 = vst.msk [vmem:[#allocation0] ss:$8 sm:$0x3] %vm15, %v14
    %s18 = ssub.s32 2, 1
    %v19 = vld [vmem:[#allocation0] sm:%s18]
    %s21 = ssub.s32 2, 1
    %22 = vst [vmem:[%s1] sm:%s21] %v19
    %s23 = scalar_lea.vmem [#allocation0], 8
    %v24 = vld [vmem:[%s23] sm:%s18]
    %s26 = ssub.s32 2, 1
    %s27 = scalar_lea.vmem %s1, 1
    %28 = vst [vmem:[%s27] sm:%s26] %v24

// kernel: forward.1
$region0: #{forward.1}
  #allocation0 [shape = 'u32[]', space=smem, size = 0x4, offset = 0x4, fixed_abs, tag = 'smem constant byte address 0x4 - core index']
  #allocation1 [shape = 'u32[72,128]{1,0:T(1,128)}', space=vmem, size = 0x9000, scoped, tag = 'internal scratch']
  #allocation2 [shape = 'bf16[2,17,272]{2,1,0:T(8,128)(2,1)}', space=vmem, size = 0x9000, scoped, tag = 'scratch operand']
  #allocation3 [shape = 'bf16[2,9,288]{2,1,0:T(8,128)(2,1)}', space=vmem, size = 0x6000, scoped, tag = 'scratch operand']
  #allocation4 [shape = 'bf16[2,5,320]{2,1,0:T(8,128)(2,1)}', space=vmem, size = 0x3000, scoped, tag = 'scratch operand']
  %s0 = inlined_call_operand.vmem [shape: bf16[2,2,33,198], index: 0, kind: input, shape index: {}]
  %s1 = inlined_call_operand.vmem [shape: bf16[4,198,256], index: 1, kind: input, shape index: {}]
  %s2 = inlined_call_operand.vmem [shape: bf16[4,272,256], index: 2, kind: input, shape index: {}]
  %s3 = inlined_call_operand.vmem [shape: bf16[4,288,256], index: 3, kind: input, shape index: {}]
  %s4 = inlined_call_operand.vmem [shape: bf16[4,320,256], index: 4, kind: input, shape index: {}]
  %s5 = inlined_call_operand.vmem [shape: f32[1,256], index: 5, kind: input, shape index: {}]
  %s6 = inlined_call_operand.vmem [shape: f32[1,256], index: 6, kind: input, shape index: {}]
  %s7 = inlined_call_operand.vmem [shape: f32[1,256], index: 7, kind: input, shape index: {}]
  %s8 = inlined_call_operand.vmem [shape: f32[1,256], index: 8, kind: input, shape index: {}]
  %s9 = inlined_call_operand.vmem [shape: f32[1,256], index: 9, kind: input, shape index: {}]
  %s10 = inlined_call_operand.vmem [shape: f32[1,256], index: 10, kind: input, shape index: {}]
  %s11 = inlined_call_operand.vmem [shape: f32[4,256], index: 11, kind: input, shape index: {}]
  %s12 = inlined_call_operand.vmem [shape: f32[2,4,256], index: 12, kind: output, shape index: {0}]
  %s13 = inlined_call_operand.vmem [shape: f32[2,1,1], index: 13, kind: output, shape index: {1}]
  %14 = xla_tuple %s12, %s13
  %s15 = sld [smem:[#allocation0]]
  $region89: #{forward.1} parent=0
    _
  %s17 = ssub.s32 1, %s15
  %s18 = scalar_select 0, %s17, %s15
  loop: start=0, step=1, limit=4
  $region2: #{forward.1} parent=0 // loop_pre_header
    _
  $region3: #{forward.1} parent=0 // loop_header
    %s20 = sphi 0, %s24
    %p21 = scmp.ge.s32.totalorder %s20, 4
    %s30 = sphi 0, %s32
    %s33 = sphi 0, %s30
    %s34 = sphi 0, %s33
    %s50 = sphi 0, %s34
    %s54 = sphi 0, %s54
    %s56 = sphi 0, %s54
    %s57 = sphi 0, %s56
    %s71 = sphi 0, %s57
    %s75 = sphi 0, %s75
    %s77 = sphi 0, %s75
    %s78 = sphi 0, %s77
    %s92 = sphi 0, %s78
    %s96 = sphi 0, %s96
    %s98 = sphi 0, %s96
    %s99 = sphi 0, %s98
    %s113 = sphi 0, %s99
    %s117 = sphi 0, %s117
    %s119 = sphi 0, %s117
    %s120 = sphi 0, %s119
    %s134 = sphi 0, %s120
    %s138 = sphi 0, %s138
    %s140 = sphi 0, %s138
    %s141 = sphi 0, %s140
    %s155 = sphi 0, %s141
    %s159 = sphi 0, %s159
    %s161 = sphi 0, %s159
    %s162 = sphi 0, %s161
    %s176 = sphi 0, %s162
    %s180 = sphi 0, %s180
    %s182 = sphi 0, %s180
    %s183 = sphi 0, %s182
    %s197 = sphi 0, %s183
    %s201 = sphi 0, %s201
    %s203 = sphi 0, %s201
    %s204 = sphi 0, %s203
    %s218 = sphi 0, %s204
    %s222 = sphi 0, %s222
    %s224 = sphi 0, %s222
    %s225 = sphi 0, %s224
    %s239 = sphi 0, %s225
    %s243 = sphi 0, %s243
    %s245 = sphi 0, %s243
    %s246 = sphi 0, %s245
    %s260 = sphi 0, %s246
    %s264 = sphi 0, %s264
    %s266 = sphi 0, %s264
    %s267 = sphi 0, %s266
    %s281 = sphi 0, %s267
    %s287 = sphi 0, %s289
    %s290 = sphi 0, %s287
    %s291 = sphi 0, %s290
    %s307 = sphi 0, %s291
    %s313 = sphi 0, %s315
    %s316 = sphi 0, %s313
    %s317 = sphi 0, %s316
    %s333 = sphi 0, %s317
  $region4: #{forward.1} parent=0 // loop_header_branch
    %23 = sbr.rel (%p21) target = $region8
  $region5: #{forward.1} parent=0 // loop_body
    %s25 = ssub.s32 %s20, 1
    %s26 = ssub.s32 %s20, 2
    %s27 = sadd.s32 %s20, 1
    %s28 = ssub.s32 %s20, %s27
    %p29 = scmp.eq.s32.totalorder %s28, 0
    %s31 = sadd.s32 %s30, 1
    %s32 = scalar_select %p29, %s30, %s31
    %p35 = pneg %p29
    %p36 = scmp.eq.s32.totalorder %s20, 1
    %p37 = por %p35, %p36
    %p38 = scmp.ne.s32.totalorder %s30, %s33
    %p39 = scmp.eq.s32.totalorder %s20, 0
    %p40 = por %p38, %p39
    %p41 = scmp.ne.s32.totalorder %s30, %s33
    %p42 = scmp.eq.s32.totalorder %s25, 1
    %p43 = por %p41, %p42
    %p44 = scmp.ne.s32.totalorder %s33, %s34
    %p45 = scmp.eq.s32.totalorder %s25, 0
    %p46 = por %p44, %p45
    %p47 = scmp.ne.s32.totalorder %s33, %s34
    %p48 = scmp.eq.s32.totalorder %s26, 1
    %p49 = por %p47, %p48
    %p51 = scmp.ne.s32.totalorder %s34, %s50
    %p52 = scmp.eq.s32.totalorder %s26, 0
    %p53 = por %p51, %p52
    %s55 = sadd.s32 %s54, 1
    %p58 = scmp.eq.s32.totalorder %s20, 1
    %p59 = scmp.ne.s32.totalorder %s54, %s56
    %p60 = scmp.eq.s32.totalorder %s20, 0
    %p61 = por %p59, %p60
    %p62 = scmp.ne.s32.totalorder %s54, %s56
    %p63 = scmp.eq.s32.totalorder %s25, 1
    %p64 = por %p62, %p63
    %p65 = scmp.ne.s32.totalorder %s56, %s57
    %p66 = scmp.eq.s32.totalorder %s25, 0
    %p67 = por %p65, %p66
    %p68 = scmp.ne.s32.totalorder %s56, %s57
    %p69 = scmp.eq.s32.totalorder %s26, 1
    %p70 = por %p68, %p69
    %p72 = scmp.ne.s32.totalorder %s57, %s71
    %p73 = scmp.eq.s32.totalorder %s26, 0
    %p74 = por %p72, %p73
    %s76 = sadd.s32 %s75, 1
    %p79 = scmp.eq.s32.totalorder %s20, 1
    %p80 = scmp.ne.s32.totalorder %s75, %s77
    %p81 = scmp.eq.s32.totalorder %s20, 0
    %p82 = por %p80, %p81
    %p83 = scmp.ne.s32.totalorder %s75, %s77
    %p84 = scmp.eq.s32.totalorder %s25, 1
    %p85 = por %p83, %p84
    %p86 = scmp.ne.s32.totalorder %s77, %s78
    %p87 = scmp.eq.s32.totalorder %s25, 0
    %p88 = por %p86, %p87
    %p89 = scmp.ne.s32.totalorder %s77, %s78
    %p90 = scmp.eq.s32.totalorder %s26, 1
    %p91 = por %p89, %p90
    %p93 = scmp.ne.s32.totalorder %s78, %s92
    %p94 = scmp.eq.s32.totalorder %s26, 0
    %p95 = por %p93, %p94
    %s97 = sadd.s32 %s96, 1
    %p100 = scmp.eq.s32.totalorder %s20, 1
    %p101 = scmp.ne.s32.totalorder %s96, %s98
    %p102 = scmp.eq.s32.totalorder %s20, 0
    %p103 = por %p101, %p102
    %p104 = scmp.ne.s32.totalorder %s96, %s98
    %p105 = scmp.eq.s32.totalorder %s25, 1
    %p106 = por %p104, %p105
    %p107 = scmp.ne.s32.totalorder %s98, %s99
    %p108 = scmp.eq.s32.totalorder %s25, 0
    %p109 = por %p107, %p108
    %p110 = scmp.ne.s32.totalorder %s98, %s99
    %p111 = scmp.eq.s32.totalorder %s26, 1
    %p112 = por %p110, %p111
    %p114 = scmp.ne.s32.totalorder %s99, %s113
    %p115 = scmp.eq.s32.totalorder %s26, 0
    %p116 = por %p114, %p115
    %s118 = sadd.s32 %s117, 1
    %p121 = scmp.eq.s32.totalorder %s20, 1
    %p122 = scmp.ne.s32.totalorder %s117, %s119
    %p123 = scmp.eq.s32.totalorder %s20, 0
    %p124 = por %p122, %p123
    %p125 = scmp.ne.s32.totalorder %s117, %s119
    %p126 = scmp.eq.s32.totalorder %s25, 1
    %p127 = por %p125, %p126
    %p128 = scmp.ne.s32.totalorder %s119, %s120
    %p129 = scmp.eq.s32.totalorder %s25, 0
    %p130 = por %p128, %p129
    %p131 = scmp.ne.s32.totalorder %s119, %s120
    %p132 = scmp.eq.s32.totalorder %s26, 1
    %p133 = por %p131, %p132
    %p135 = scmp.ne.s32.totalorder %s120, %s134
    %p136 = scmp.eq.s32.totalorder %s26, 0
    %p137 = por %p135, %p136
    %s139 = sadd.s32 %s138, 1
    %p142 = scmp.eq.s32.totalorder %s20, 1
    %p143 = scmp.ne.s32.totalorder %s138, %s140
    %p144 = scmp.eq.s32.totalorder %s20, 0
    %p145 = por %p143, %p144
    %p146 = scmp.ne.s32.totalorder %s138, %s140
    %p147 = scmp.eq.s32.totalorder %s25, 1
    %p148 = por %p146, %p147
    %p149 = scmp.ne.s32.totalorder %s140, %s141
    %p150 = scmp.eq.s32.totalorder %s25, 0
    %p151 = por %p149, %p150
    %p152 = scmp.ne.s32.totalorder %s140, %s141
    %p153 = scmp.eq.s32.totalorder %s26, 1
    %p154 = por %p152, %p153
    %p156 = scmp.ne.s32.totalorder %s141, %s155
    %p157 = scmp.eq.s32.totalorder %s26, 0
    %p158 = por %p156, %p157
    %s160 = sadd.s32 %s159, 1
    %p163 = scmp.eq.s32.totalorder %s20, 1
    %p164 = scmp.ne.s32.totalorder %s159, %s161
    %p165 = scmp.eq.s32.totalorder %s20, 0
    %p166 = por %p164, %p165
    %p167 = scmp.ne.s32.totalorder %s159, %s161
    %p168 = scmp.eq.s32.totalorder %s25, 1
    %p169 = por %p167, %p168
    %p170 = scmp.ne.s32.totalorder %s161, %s162
    %p171 = scmp.eq.s32.totalorder %s25, 0
    %p172 = por %p170, %p171
    %p173 = scmp.ne.s32.totalorder %s161, %s162
    %p174 = scmp.eq.s32.totalorder %s26, 1
    %p175 = por %p173, %p174
    %p177 = scmp.ne.s32.totalorder %s162, %s176
    %p178 = scmp.eq.s32.totalorder %s26, 0
    %p179 = por %p177, %p178
    %s181 = sadd.s32 %s180, 1
    %p184 = scmp.eq.s32.totalorder %s20, 1
    %p185 = scmp.ne.s32.totalorder %s180, %s182
    %p186 = scmp.eq.s32.totalorder %s20, 0
    %p187 = por %p185, %p186
    %p188 = scmp.ne.s32.totalorder %s180, %s182
    %p189 = scmp.eq.s32.totalorder %s25, 1
    %p190 = por %p188, %p189
    %p191 = scmp.ne.s32.totalorder %s182, %s183
    %p192 = scmp.eq.s32.totalorder %s25, 0
    %p193 = por %p191, %p192
    %p194 = scmp.ne.s32.totalorder %s182, %s183
    %p195 = scmp.eq.s32.totalorder %s26, 1
    %p196 = por %p194, %p195
    %p198 = scmp.ne.s32.totalorder %s183, %s197
    %p199 = scmp.eq.s32.totalorder %s26, 0
    %p200 = por %p198, %p199
    %s202 = sadd.s32 %s201, 1
    %p205 = scmp.eq.s32.totalorder %s20, 1
    %p206 = scmp.ne.s32.totalorder %s201, %s203
    %p207 = scmp.eq.s32.totalorder %s20, 0
    %p208 = por %p206, %p207
    %p209 = scmp.ne.s32.totalorder %s201, %s203
    %p210 = scmp.eq.s32.totalorder %s25, 1
    %p211 = por %p209, %p210
    %p212 = scmp.ne.s32.totalorder %s203, %s204
    %p213 = scmp.eq.s32.totalorder %s25, 0
    %p214 = por %p212, %p213
    %p215 = scmp.ne.s32.totalorder %s203, %s204
    %p216 = scmp.eq.s32.totalorder %s26, 1
    %p217 = por %p215, %p216
    %p219 = scmp.ne.s32.totalorder %s204, %s218
    %p220 = scmp.eq.s32.totalorder %s26, 0
    %p221 = por %p219, %p220
    %s223 = sadd.s32 %s222, 1
    %p226 = scmp.eq.s32.totalorder %s20, 1
    %p227 = scmp.ne.s32.totalorder %s222, %s224
    %p228 = scmp.eq.s32.totalorder %s20, 0
    %p229 = por %p227, %p228
    %p230 = scmp.ne.s32.totalorder %s222, %s224
    %p231 = scmp.eq.s32.totalorder %s25, 1
    %p232 = por %p230, %p231
    %p233 = scmp.ne.s32.totalorder %s224, %s225
    %p234 = scmp.eq.s32.totalorder %s25, 0
    %p235 = por %p233, %p234
    %p236 = scmp.ne.s32.totalorder %s224, %s225
    %p237 = scmp.eq.s32.totalorder %s26, 1
    %p238 = por %p236, %p237
    %p240 = scmp.ne.s32.totalorder %s225, %s239
    %p241 = scmp.eq.s32.totalorder %s26, 0
    %p242 = por %p240, %p241
    %s244 = sadd.s32 %s243, 1
    %p247 = scmp.eq.s32.totalorder %s20, 1
    %p248 = scmp.ne.s32.totalorder %s243, %s245
    %p249 = scmp.eq.s32.totalorder %s20, 0
    %p250 = por %p248, %p249
    %p251 = scmp.ne.s32.totalorder %s243, %s245
    %p252 = scmp.eq.s32.totalorder %s25, 1
    %p253 = por %p251, %p252
    %p254 = scmp.ne.s32.totalorder %s245, %s246
    %p255 = scmp.eq.s32.totalorder %s25, 0
    %p256 = por %p254, %p255
    %p257 = scmp.ne.s32.totalorder %s245, %s246
    %p258 = scmp.eq.s32.totalorder %s26, 1
    %p259 = por %p257, %p258
    %p261 = scmp.ne.s32.totalorder %s246, %s260
    %p262 = scmp.eq.s32.totalorder %s26, 0
    %p263 = por %p261, %p262
    %s265 = sadd.s32 %s264, 1
    %p268 = scmp.eq.s32.totalorder %s20, 1
    %p269 = scmp.ne.s32.totalorder %s264, %s266
    %p270 = scmp.eq.s32.totalorder %s20, 0
    %p271 = por %p269, %p270
    %p272 = scmp.ne.s32.totalorder %s264, %s266
    %p273 = scmp.eq.s32.totalorder %s25, 1
    %p274 = por %p272, %p273
    %p275 = scmp.ne.s32.totalorder %s266, %s267
    %p276 = scmp.eq.s32.totalorder %s25, 0
    %p277 = por %p275, %p276
    %p278 = scmp.ne.s32.totalorder %s266, %s267
    %p279 = scmp.eq.s32.totalorder %s26, 1
    %p280 = por %p278, %p279
    %p282 = scmp.ne.s32.totalorder %s267, %s281
    %p283 = scmp.eq.s32.totalorder %s26, 0
    %p284 = por %p282, %p283
    %s285 = ssub.s32 %s20, %s27
    %p286 = scmp.eq.s32.totalorder %s285, 0
    %s288 = sadd.s32 %s287, 1
    %s289 = scalar_select %p286, %s287, %s288
    %p292 = pneg %p286
    %p293 = scmp.eq.s32.totalorder %s20, 1
    %p294 = por %p292, %p293
    %p295 = scmp.ne.s32.totalorder %s287, %s290
    %p296 = scmp.eq.s32.totalorder %s20, 0
    %p297 = por %p295, %p296
    %p298 = scmp.ne.s32.totalorder %s287, %s290
    %p299 = scmp.eq.s32.totalorder %s25, 1
    %p300 = por %p298, %p299
    %p301 = scmp.ne.s32.totalorder %s290, %s291
    %p302 = scmp.eq.s32.totalorder %s25, 0
    %p303 = por %p301, %p302
    %p304 = scmp.ne.s32.totalorder %s290, %s291
    %p305 = scmp.eq.s32.totalorder %s26, 1
    %p306 = por %p304, %p305
    %p308 = scmp.ne.s32.totalorder %s291, %s307
    %p309 = scmp.eq.s32.totalorder %s26, 0
    %p310 = por %p308, %p309
    %s311 = ssub.s32 %s20, %s27
    %p312 = scmp.eq.s32.totalorder %s311, 0
    %s314 = sadd.s32 %s313, 1
    %s315 = scalar_select %p312, %s313, %s314
    %p318 = pneg %p312
    %p319 = scmp.eq.s32.totalorder %s20, 1
    %p320 = por %p318, %p319
    %p321 = scmp.ne.s32.totalorder %s313, %s316
    %p322 = scmp.eq.s32.totalorder %s20, 0
    %p323 = por %p321, %p322
    %p324 = scmp.ne.s32.totalorder %s313, %s316
    %p325 = scmp.eq.s32.totalorder %s25, 1
    %p326 = por %p324, %p325
    %p327 = scmp.ne.s32.totalorder %s316, %s317
    %p328 = scmp.eq.s32.totalorder %s25, 0
    %p329 = por %p327, %p328
    %p330 = scmp.ne.s32.totalorder %s316, %s317
    %p331 = scmp.eq.s32.totalorder %s26, 1
    %p332 = por %p330, %p331
    %p334 = scmp.ne.s32.totalorder %s317, %s333
    %p335 = scmp.eq.s32.totalorder %s26, 0
    %p336 = por %p334, %p335
    %p337 = scmp.le.s32.totalorder 1, %s20
    %p338 = scmp.lt.s32.totalorder %s20, 3
    %p339 = pnand %p337, %p338
    %p340 = pneg %p339
    // Predicated region
    $region9: #{forward.1} parent=5 // pred_check
      _
    $region10: #{forward.1} parent=5 // pred_check_branch
      %342 = sbr.rel (%p339) target = $region12
    $region11: #{forward.1} parent=5 // pred_region
      %s343 = ssub.s32 %s20, 1
      // Predicated region
      $region13: #{forward.1} parent=11 // pred_check
        %p344 = pneg %p67
      $region14: #{forward.1} parent=11 // pred_check_branch
        %346 = sbr.rel (%p344) target = $region16
      $region15: #{forward.1} parent=11 // pred_region
        _
      $region16: #{forward.1} parent=11 // pred_fallthru
        _
      // Predicated region
      $region17: #{forward.1} parent=11 // pred_check
        %p347 = pneg %p88
      $region18: #{forward.1} parent=11 // pred_check_branch
        %349 = sbr.rel (%p347) target = $region20
      $region19: #{forward.1} parent=11 // pred_region
        _
      $region20: #{forward.1} parent=11 // pred_fallthru
        _
      // Predicated region
      $region21: #{forward.1} parent=11 // pred_check
        %p350 = pneg %p109
      $region22: #{forward.1} parent=11 // pred_check_branch
        %352 = sbr.rel (%p350) target = $region24
      $region23: #{forward.1} parent=11 // pred_region
        _
      $region24: #{forward.1} parent=11 // pred_fallthru
        _
      // Predicated region
      $region25: #{forward.1} parent=11 // pred_check
        %p353 = pneg %p130
      $region26: #{forward.1} parent=11 // pred_check_branch
        %355 = sbr.rel (%p353) target = $region28
      $region27: #{forward.1} parent=11 // pred_region
        _
      $region28: #{forward.1} parent=11 // pred_fallthru
        _
      // Predicated region
      $region29: #{forward.1} parent=11 // pred_check
        %p356 = pneg %p151
      $region30: #{forward.1} parent=11 // pred_check_branch
        %358 = sbr.rel (%p356) target = $region32
      $region31: #{forward.1} parent=11 // pred_region
        _
      $region32: #{forward.1} parent=11 // pred_fallthru
        _
      // Predicated region
      $region33: #{forward.1} parent=11 // pred_check
        %p359 = pneg %p172
      $region34: #{forward.1} parent=11 // pred_check_branch
        %361 = sbr.rel (%p359) target = $region36
      $region35: #{forward.1} parent=11 // pred_region
        _
      $region36: #{forward.1} parent=11 // pred_fallthru
        _
      // Predicated region
      $region37: #{forward.1} parent=11 // pred_check
        %p362 = pneg %p193
      $region38: #{forward.1} parent=11 // pred_check_branch
        %364 = sbr.rel (%p362) target = $region40
      $region39: #{forward.1} parent=11 // pred_region
        _
      $region40: #{forward.1} parent=11 // pred_fallthru
        _
      // Predicated region
      $region41: #{forward.1} parent=11 // pred_check
        %p365 = pneg %p214
      $region42: #{forward.1} parent=11 // pred_check_branch
        %367 = sbr.rel (%p365) target = $region44
      $region43: #{forward.1} parent=11 // pred_region
        _
      $region44: #{forward.1} parent=11 // pred_fallthru
        _
      // Predicated region
      $region45: #{forward.1} parent=11 // pred_check
        %p368 = pneg %p235
      $region46: #{forward.1} parent=11 // pred_check_branch
        %370 = sbr.rel (%p368) target = $region48
      $region47: #{forward.1} parent=11 // pred_region
        _
      $region48: #{forward.1} parent=11 // pred_fallthru
        _
      // Predicated region
      $region49: #{forward.1} parent=11 // pred_check
        %p371 = pneg %p256
      $region50: #{forward.1} parent=11 // pred_check_branch
        %373 = sbr.rel (%p371) target = $region52
      $region51: #{forward.1} parent=11 // pred_region
        _
      $region52: #{forward.1} parent=11 // pred_fallthru
        _
      // Predicated region
      $region53: #{forward.1} parent=11 // pred_check
        %p374 = pneg %p277
      $region54: #{forward.1} parent=11 // pred_check_branch
        %376 = sbr.rel (%p374) target = $region56
      $region55: #{forward.1} parent=11 // pred_region
        _
      $region56: #{forward.1} parent=11 // pred_fallthru
        _
    $region12: #{forward.1} parent=5 // pred_fallthru
      _
    %p377 = scmp.lt.s32.totalorder %s20, 2
    // Predicated region
    $region57: #{forward.1} parent=5 // pred_check
      %p378 = pneg %p377
    $region58: #{forward.1} parent=5 // pred_check_branch
      %380 = sbr.rel (%p378) target = $region60
    $region59: #{forward.1} parent=5 // pred_region
      // Predicated region
      $region61: #{forward.1} parent=59 // pred_check
        %p381 = pneg %p40
      $region62: #{forward.1} parent=59 // pred_check_branch
        %383 = sbr.rel (%p381) target = $region64
      $region63: #{forward.1} parent=59 // pred_region
        %p384 = scmp.lt.s32.totalorder %s20, 1
        %s385 = scalar_select %p384, %s20, 1
        %s386 = smul.addr %s385, 20
        %s387 = smul.addr %s386, 4
        %s388 = scalar_lea.vmem %s0, %s387
      $region64: #{forward.1} parent=59 // pred_fallthru
        _
    $region60: #{forward.1} parent=5 // pred_fallthru
      _
    %p389 = scmp.le.s32.totalorder 1, %s20
    %p390 = scmp.lt.s32.totalorder %s20, 3
    %p391 = pnand %p389, %p390
    %p392 = pneg %p391
    // Predicated region
    $region65: #{forward.1} parent=5 // pred_check
      _
    $region66: #{forward.1} parent=5 // pred_check_branch
      %394 = sbr.rel (%p391) target = $region68
    $region67: #{forward.1} parent=5 // pred_region
      %s395 = ssub.s32 %s20, 1
      %p396 = scmp.lt.s32.totalorder %s25, 1
      %s397 = scalar_select %p396, %s25, 1
      %s398 = smul.addr %s397, 20
      %s399 = smul.addr %s398, 4
      %s400 = scalar_lea.vmem %s0, %s399
      %p401 = pneg %p46
      %p402 = pneg %p43
      %p403 = pneg %p67
      %p404 = pneg %p64
      %p405 = pneg %p88
      %p406 = pneg %p85
      %p407 = pneg %p109
      %p408 = pneg %p106
      %p409 = pneg %p130
      %p410 = pneg %p127
      %p411 = pneg %p151
      %p412 = pneg %p148
      %p413 = pneg %p172
      %p414 = pneg %p169
      %p415 = pneg %p193
      %p416 = pneg %p190
      %p417 = pneg %p214
      %p418 = pneg %p211
      %p419 = pneg %p235
      %p420 = pneg %p232
      %p421 = pneg %p256
      %p422 = pneg %p253
      %p423 = pneg %p277
      %p424 = pneg %p274
      %p425 = pneg %p303
      %p426 = pneg %p300
      %p427 = scmp.lt.s32.totalorder %s25, 1
      %s428 = scalar_select %p427, %s25, 1
      %s429 = smul.addr %s428, 2
      %s430 = smul.addr %s429, 4
      %s431 = scalar_lea.vmem %s12, %s430
      %p432 = pneg %p329
      %p433 = pneg %p326
      %p434 = scmp.lt.s32.totalorder %s25, 1
      %s435 = scalar_select %p434, %s25, 1
      %s436 = scalar_lea.vmem %s13, %s435
      %p437 = scmp.lt.s32.totalorder %s25, 1
      %s438 = scalar_select %p437, %s25, 1
      %s439 = smul.addr %s438, 20
      %s440 = smul.addr %s439, 4
      %s441 = scalar_lea.vmem %s0, %s440
      %p442 = scmp.lt.s32.totalorder %s25, 1
      %s443 = scalar_select %p442, %s25, 1
      %s444 = smul.addr %s443, 2
      %s445 = smul.addr %s444, 4
      %s446 = scalar_lea.vmem %s12, %s445
      %p447 = scmp.lt.s32.totalorder %s25, 1
      %s448 = scalar_select %p447, %s25, 1
      %s449 = scalar_lea.vmem %s13, %s448
      %v451 = vld [vmem:[%s441] sm:$0xff]
      %v452 = vld [vmem:[%s441 + $0x8] sm:$0xff]
      %v453 = vld [vmem:[%s441 + $0x10] sm:$0xff]
      %v454 = vld [vmem:[%s441 + $0x18] sm:$0xff]
      %v455 = vld [vmem:[%s1] sm:$0xff]
      %v456 = vld [vmem:[%s1 + $0x8] sm:$0xff]
      %v457 = vld [vmem:[%s1 + $0x10] sm:$0xff]
      %v458 = vld [vmem:[%s1 + $0x18] sm:$0xff]
      %v459 = vld [vmem:[%s1 + $0x20] sm:$0xff]
      %v460 = vld [vmem:[%s1 + $0x28] sm:$0xff]
      %v461 = vld [vmem:[%s1 + $0x30] sm:$0xff]
      %v462 = vld [vmem:[%s1 + $0x38] sm:$0xff]
      %v463 = vld [vmem:[%s1 + $0x40] sm:$0xff]
      %v464 = vld [vmem:[%s1 + $0x48] sm:$0xff]
      %v465 = vld [vmem:[%s1 + $0x50] sm:$0xff]
      %v466 = vld [vmem:[%s1 + $0x58] sm:$0xff]
      %v467 = vld [vmem:[%s1 + $0x60] sm:$0xff]
      %v468 = vld [vmem:[%s1 + $0x68] sm:$0xff]
      %v469 = vld [vmem:[%s1 + $0x70] sm:$0xff]
      %v470 = vld [vmem:[%s1 + $0x78] sm:$0xff]
      %v471 = vld [vmem:[%s1 + $0x80] sm:$0xff]
      %v472 = vld [vmem:[%s1 + $0x88] sm:$0xff]
      %v473 = vld [vmem:[%s1 + $0x90] sm:$0xff]
      %v474 = vld [vmem:[%s1 + $0x98] sm:$0xff]
      %v475 = vld [vmem:[%s1 + $0xa0] sm:$0xff]
      %v476 = vld [vmem:[%s1 + $0xa8] sm:$0xff]
      %v477 = vld [vmem:[%s1 + $0xb0] sm:$0xff]
      %v478 = vld [vmem:[%s1 + $0xb8] sm:$0xff]
      %v479 = vld [vmem:[%s1 + $0xc0] sm:$0x77]
      %s480 = scalar_lea.vmem %s441, 40
      %v481 = vld [vmem:[%s480] sm:$0xff]
      %v482 = vld [vmem:[%s480 + $0x8] sm:$0xff]
      %v483 = vld [vmem:[%s480 + $0x10] sm:$0xff]
      %v484 = vld [vmem:[%s480 + $0x18] sm:$0xff]
      %s485 = scalar_lea.vmem %s1, 200
      %v486 = vld [vmem:[%s485] sm:$0xff]
      %v487 = vld [vmem:[%s485 + $0x8] sm:$0xff]
      %v488 = vld [vmem:[%s485 + $0x10] sm:$0xff]
      %v489 = vld [vmem:[%s485 + $0x18] sm:$0xff]
      %v490 = vld [vmem:[%s485 + $0x20] sm:$0xff]
      %v491 = vld [vmem:[%s485 + $0x28] sm:$0xff]
      %v492 = vld [vmem:[%s485 + $0x30] sm:$0xff]
      %v493 = vld [vmem:[%s485 + $0x38] sm:$0xff]
      %v494 = vld [vmem:[%s485 + $0x40] sm:$0xff]
      %v495 = vld [vmem:[%s485 + $0x48] sm:$0xff]
      %v496 = vld [vmem:[%s485 + $0x50] sm:$0xff]
      %v497 = vld [vmem:[%s485 + $0x58] sm:$0xff]
      %v498 = vld [vmem:[%s485 + $0x60] sm:$0xff]
      %v499 = vld [vmem:[%s485 + $0x68] sm:$0xff]
      %v500 = vld [vmem:[%s485 + $0x70] sm:$0xff]
      %v501 = vld [vmem:[%s485 + $0x78] sm:$0xff]
      %v502 = vld [vmem:[%s485 + $0x80] sm:$0xff]
      %v503 = vld [vmem:[%s485 + $0x88] sm:$0xff]
      %v504 = vld [vmem:[%s485 + $0x90] sm:$0xff]
      %v505 = vld [vmem:[%s485 + $0x98] sm:$0xff]
      %v506 = vld [vmem:[%s485 + $0xa0] sm:$0xff]
      %v507 = vld [vmem:[%s485 + $0xa8] sm:$0xff]
      %v508 = vld [vmem:[%s485 + $0xb0] sm:$0xff]
      %v509 = vld [vmem:[%s485 + $0xb8] sm:$0xff]
      %v510 = vld [vmem:[%s485 + $0xc0] sm:$0x77]
      %v515 = vunpack.c.l.b16 %v481
      %v516 = vunpack.c.h.b16 %v481
      %v517 = vunpack.c.l.b16 %v482
      %v518 = vunpack.c.h.b16 %v482
      %v519 = vunpack.c.l.b16 %v483
      %v520 = vunpack.c.h.b16 %v483
      %v521 = vunpack.c.l.b16 %v484
      %v522 = vunpack.c.h.b16 %v484
      %v523 = vpack.c.b16 %v517, %v515
      %v524 = vpack.c.b16 %v518, %v516
      %v525 = vpack.c.b16 %v521, %v519
      %v526 = vpack.c.b16 %v522, %v520
      %v554 = vunpack.c.l.b16 %v486
      %v555 = vunpack.c.h.b16 %v486
      %v556 = vunpack.c.l.b16 %v487
      %v557 = vunpack.c.h.b16 %v487
      %v558 = vunpack.c.l.b16 %v488
      %v559 = vunpack.c.h.b16 %v488
      %v560 = vunpack.c.l.b16 %v489
      %v561 = vunpack.c.h.b16 %v489
      %v562 = vunpack.c.l.b16 %v490
      %v563 = vunpack.c.h.b16 %v490
      %v564 = vunpack.c.l.b16 %v491
      %v565 = vunpack.c.h.b16 %v491
      %v566 = vunpack.c.l.b16 %v492
      %v567 = vunpack.c.h.b16 %v492
      %v568 = vunpack.c.l.b16 %v493
      %v569 = vunpack.c.h.b16 %v493
      %v570 = vunpack.c.l.b16 %v494
      %v571 = vunpack.c.h.b16 %v494
      %v572 = vunpack.c.l.b16 %v495
      %v573 = vunpack.c.h.b16 %v495
      %v574 = vunpack.c.l.b16 %v496
      %v575 = vunpack.c.h.b16 %v496
      %v576 = vunpack.c.l.b16 %v497
      %v577 = vunpack.c.h.b16 %v497
      %v578 = vunpack.c.l.b16 %v498
      %v579 = vunpack.c.h.b16 %v498
      %v580 = vunpack.c.l.b16 %v499
      %v581 = vunpack.c.h.b16 %v499
      %v582 = vunpack.c.l.b16 %v500
      %v583 = vunpack.c.h.b16 %v500
      %v584 = vunpack.c.l.b16 %v501
      %v585 = vunpack.c.h.b16 %v501
      %v586 = vunpack.c.l.b16 %v502
      %v587 = vunpack.c.h.b16 %v502
      %v588 = vunpack.c.l.b16 %v503
      %v589 = vunpack.c.h.b16 %v503
      %v590 = vunpack.c.l.b16 %v504
      %v591 = vunpack.c.h.b16 %v504
      %v592 = vunpack.c.l.b16 %v505
      %v593 = vunpack.c.h.b16 %v505
      %v594 = vunpack.c.l.b16 %v506
      %v595 = vunpack.c.h.b16 %v506
      %v596 = vunpack.c.l.b16 %v507
      %v597 = vunpack.c.h.b16 %v507
      %v598 = vunpack.c.l.b16 %v508
      %v599 = vunpack.c.h.b16 %v508
      %v600 = vunpack.c.l.b16 %v509
      %v601 = vunpack.c.h.b16 %v509
      %v602 = vunpack.c.l.b16 %v510
      %v603 = vunpack.c.h.b16 %v510
      %v604 = vpack.c.b16 %v556, %v554
      %v605 = vpack.c.b16 %v557, %v555
      %v606 = vpack.c.b16 %v560, %v558
      %v607 = vpack.c.b16 %v561, %v559
      %v608 = vpack.c.b16 %v564, %v562
      %v609 = vpack.c.b16 %v565, %v563
      %v610 = vpack.c.b16 %v568, %v566
      %v611 = vpack.c.b16 %v569, %v567
      %v612 = vpack.c.b16 %v572, %v570
      %v613 = vpack.c.b16 %v573, %v571
      %v614 = vpack.c.b16 %v576, %v574
      %v615 = vpack.c.b16 %v577, %v575
      %v616 = vpack.c.b16 %v580, %v578
      %v617 = vpack.c.b16 %v581, %v579
      %v618 = vpack.c.b16 %v584, %v582
      %v619 = vpack.c.b16 %v585, %v583
      %v620 = vpack.c.b16 %v588, %v586
      %v621 = vpack.c.b16 %v589, %v587
      %v622 = vpack.c.b16 %v592, %v590
      %v623 = vpack.c.b16 %v593, %v591
      %v624 = vpack.c.b16 %v596, %v594
      %v625 = vpack.c.b16 %v597, %v595
      %v626 = vpack.c.b16 %v600, %v598
      %v627 = vpack.c.b16 %v601, %v599
      %v628 = vpack.c.b16 %v602, %v602
      %v629 = vpack.c.b16 %v603, %v603
      %vm654 = vcmask 572416
      %v656 = vsel %vm654, %v524, 0
      %v659 = vsel %vm654, %v526, 0
      %vm661 = vcmask 1042432
      %v663 = vsel %vm661, %v628, 0
      %v666 = vsel %vm661, %v629, 0
      %668 = vmatpush.bf16.msra.mxu0 %v618
      %669 = vmatpush.bf16.msra.mxu0 %v616
      %670 = vmatpush.bf16.msra.mxu0 %v614
      %671 = vmatpush.bf16.msra.mxu0 %v612
      %672 = vmatpush.bf16.msra.mxu0 %v610
      %673 = vmatpush.bf16.msra.mxu0 %v608
      %674 = vmatpush.bf16.msra.mxu0 %v606
      %675 = vmatpush.bf16.msra.mxu0 %v604
      %676 = vmatmul.bf16.gmra.mxu0 %v523
      %v677 = vpop.f32.mrf.mxu0
      %v678 = vadd.f32 0.0, %v677
      %v679 = vpop.f32.mrf.mxu0
      %v680 = vadd.f32 0.0, %v679
      %681 = vmatmul.bf16.gmra.mxu0 %v525
      %v682 = vpop.f32.mrf.mxu0
      %v683 = vadd.f32 0.0, %v682
      %v684 = vpop.f32.mrf.mxu0
      %v685 = vadd.f32 0.0, %v684
      %686 = vdwg.mxu0
      %687 = vmatpush.bf16.msra.mxu0 0
      %688 = vmatpush.bf16.msra.mxu0 0
      %689 = vmatpush.bf16.msra.mxu0 0
      %690 = vmatpush.bf16.msra.mxu0 %v663
      %691 = vmatpush.bf16.msra.mxu0 %v626
      %692 = vmatpush.bf16.msra.mxu0 %v624
      %693 = vmatpush.bf16.msra.mxu0 %v622
      %694 = vmatpush.bf16.msra.mxu0 %v620
      %695 = vmatmul.bf16.gmra.mxu0 %v656
      %v696 = vpop.f32.mrf.mxu0
      %v697 = vadd.f32 %v678, %v696
      %v698 = vpop.f32.mrf.mxu0
      %v699 = vadd.f32 %v680, %v698
      %700 = vmatmul.bf16.gmra.mxu0 %v659
      %v701 = vpop.f32.mrf.mxu0
      %v702 = vadd.f32 %v683, %v701
      %v703 = vpop.f32.mrf.mxu0
      %v704 = vadd.f32 %v685, %v703
      %705 = vdwg.mxu0
      %706 = vmatpush.bf16.msra.mxu0 %v619
      %707 = vmatpush.bf16.msra.mxu0 %v617
      %708 = vmatpush.bf16.msra.mxu0 %v615
      %709 = vmatpush.bf16.msra.mxu0 %v613
      %710 = vmatpush.bf16.msra.mxu0 %v611
      %711 = vmatpush.bf16.msra.mxu0 %v609
      %712 = vmatpush.bf16.msra.mxu0 %v607
      %713 = vmatpush.bf16.msra.mxu0 %v605
      %714 = vmatmul.bf16.gmra.mxu0 %v523
      %v715 = vpop.f32.mrf.mxu0
      %v716 = vadd.f32 0.0, %v715
      %v717 = vpop.f32.mrf.mxu0
      %v718 = vadd.f32 0.0, %v717
      %719 = vmatmul.bf16.gmra.mxu0 %v525
      %v720 = vpop.f32.mrf.mxu0
      %v721 = vadd.f32 0.0, %v720
      %v722 = vpop.f32.mrf.mxu0
      %v723 = vadd.f32 0.0, %v722
      %724 = vdwg.mxu0
      %725 = vmatpush.bf16.msra.mxu0 0
      %726 = vmatpush.bf16.msra.mxu0 0
      %727 = vmatpush.bf16.msra.mxu0 0
      %728 = vmatpush.bf16.msra.mxu0 %v666
      %729 = vmatpush.bf16.msra.mxu0 %v627
      %730 = vmatpush.bf16.msra.mxu0 %v625
      %731 = vmatpush.bf16.msra.mxu0 %v623
      %732 = vmatpush.bf16.msra.mxu0 %v621
      %733 = vmatmul.bf16.gmra.mxu0 %v656
      %v734 = vpop.f32.mrf.mxu0
      %v735 = vadd.f32 %v716, %v734
      %v736 = vpop.f32.mrf.mxu0
      %v737 = vadd.f32 %v718, %v736
      %738 = vmatmul.bf16.gmra.mxu0 %v659
      %v739 = vpop.f32.mrf.mxu0
      %v740 = vadd.f32 %v721, %v739
      %v741 = vpop.f32.mrf.mxu0
      %v742 = vadd.f32 %v723, %v741
      %743 = vdwg.mxu0
      %v748 = vunpack.c.l.b16 %v451
      %v749 = vunpack.c.h.b16 %v451
      %v750 = vunpack.c.l.b16 %v452
      %v751 = vunpack.c.h.b16 %v452
      %v752 = vunpack.c.l.b16 %v453
      %v753 = vunpack.c.h.b16 %v453
      %v754 = vunpack.c.l.b16 %v454
      %v755 = vunpack.c.h.b16 %v454
      %v756 = vpack.c.b16 %v750, %v748
      %v757 = vpack.c.b16 %v751, %v749
      %v758 = vpack.c.b16 %v754, %v752
      %v759 = vpack.c.b16 %v755, %v753
      %v787 = vunpack.c.l.b16 %v455
      %v788 = vunpack.c.h.b16 %v455
      %v789 = vunpack.c.l.b16 %v456
      %v790 = vunpack.c.h.b16 %v456
      %v791 = vunpack.c.l.b16 %v457
      %v792 = vunpack.c.h.b16 %v457
      %v793 = vunpack.c.l.b16 %v458
      %v794 = vunpack.c.h.b16 %v458
      %v795 = vunpack.c.l.b16 %v459
      %v796 = vunpack.c.h.b16 %v459
      %v797 = vunpack.c.l.b16 %v460
      %v798 = vunpack.c.h.b16 %v460
      %v799 = vunpack.c.l.b16 %v461
      %v800 = vunpack.c.h.b16 %v461
      %v801 = vunpack.c.l.b16 %v462
      %v802 = vunpack.c.h.b16 %v462
      %v803 = vunpack.c.l.b16 %v463
      %v804 = vunpack.c.h.b16 %v463
      %v805 = vunpack.c.l.b16 %v464
      %v806 = vunpack.c.h.b16 %v464
      %v807 = vunpack.c.l.b16 %v465
      %v808 = vunpack.c.h.b16 %v465
      %v809 = vunpack.c.l.b16 %v466
      %v810 = vunpack.c.h.b16 %v466
      %v811 = vunpack.c.l.b16 %v467
      %v812 = vunpack.c.h.b16 %v467
      %v813 = vunpack.c.l.b16 %v468
      %v814 = vunpack.c.h.b16 %v468
      %v815 = vunpack.c.l.b16 %v469
      %v816 = vunpack.c.h.b16 %v469
      %v817 = vunpack.c.l.b16 %v470
      %v818 = vunpack.c.h.b16 %v470
      %v819 = vunpack.c.l.b16 %v471
      %v820 = vunpack.c.h.b16 %v471
      %v821 = vunpack.c.l.b16 %v472
      %v822 = vunpack.c.h.b16 %v472
      %v823 = vunpack.c.l.b16 %v473
      %v824 = vunpack.c.h.b16 %v473
      %v825 = vunpack.c.l.b16 %v474
      %v826 = vunpack.c.h.b16 %v474
      %v827 = vunpack.c.l.b16 %v475
      %v828 = vunpack.c.h.b16 %v475
      %v829 = vunpack.c.l.b16 %v476
      %v830 = vunpack.c.h.b16 %v476
      %v831 = vunpack.c.l.b16 %v477
      %v832 = vunpack.c.h.b16 %v477
      %v833 = vunpack.c.l.b16 %v478
      %v834 = vunpack.c.h.b16 %v478
      %v835 = vunpack.c.l.b16 %v479
      %v836 = vunpack.c.h.b16 %v479
      %v837 = vpack.c.b16 %v789, %v787
      %v838 = vpack.c.b16 %v790, %v788
      %v839 = vpack.c.b16 %v793, %v791
      %v840 = vpack.c.b16 %v794, %v792
      %v841 = vpack.c.b16 %v797, %v795
      %v842 = vpack.c.b16 %v798, %v796
      %v843 = vpack.c.b16 %v801, %v799
      %v844 = vpack.c.b16 %v802, %v800
      %v845 = vpack.c.b16 %v805, %v803
      %v846 = vpack.c.b16 %v806, %v804
      %v847 = vpack.c.b16 %v809, %v807
      %v848 = vpack.c.b16 %v810, %v808
      %v849 = vpack.c.b16 %v813, %v811
      %v850 = vpack.c.b16 %v814, %v812
      %v851 = vpack.c.b16 %v817, %v815
      %v852 = vpack.c.b16 %v818, %v816
      %v853 = vpack.c.b16 %v821, %v819
      %v854 = vpack.c.b16 %v822, %v820
      %v855 = vpack.c.b16 %v825, %v823
      %v856 = vpack.c.b16 %v826, %v824
      %v857 = vpack.c.b16 %v829, %v827
      %v858 = vpack.c.b16 %v830, %v828
      %v859 = vpack.c.b16 %v833, %v831
      %v860 = vpack.c.b16 %v834, %v832
      %v861 = vpack.c.b16 %v835, %v835
      %v862 = vpack.c.b16 %v836, %v836
      %v888 = vsel %vm654, %v757, 0
      %v891 = vsel %vm654, %v759, 0
      %v894 = vsel %vm661, %v861, 0
      %v897 = vsel %vm661, %v862, 0
      %899 = vmatpush.bf16.msra.mxu0 %v851
      %900 = vmatpush.bf16.msra.mxu0 %v849
      %901 = vmatpush.bf16.msra.mxu0 %v847
      %902 = vmatpush.bf16.msra.mxu0 %v845
      %903 = vmatpush.bf16.msra.mxu0 %v843
      %904 = vmatpush.bf16.msra.mxu0 %v841
      %905 = vmatpush.bf16.msra.mxu0 %v839
      %906 = vmatpush.bf16.msra.mxu0 %v837
      %907 = vmatmul.bf16.gmra.mxu0 %v756
      %v908 = vpop.f32.mrf.mxu0
      %v909 = vadd.f32 %v697, %v908
      %v910 = vpop.f32.mrf.mxu0
      %v911 = vadd.f32 %v699, %v910
      %912 = vmatmul.bf16.gmra.mxu0 %v758
      %v913 = vpop.f32.mrf.mxu0
      %v914 = vadd.f32 %v702, %v913
      %v915 = vpop.f32.mrf.mxu0
      %v916 = vadd.f32 %v704, %v915
      %917 = vdwg.mxu0
      %918 = vmatpush.bf16.msra.mxu0 0
      %919 = vmatpush.bf16.msra.mxu0 0
      %920 = vmatpush.bf16.msra.mxu0 0
      %921 = vmatpush.bf16.msra.mxu0 %v894
      %922 = vmatpush.bf16.msra.mxu0 %v859
      %923 = vmatpush.bf16.msra.mxu0 %v857
      %924 = vmatpush.bf16.msra.mxu0 %v855
      %925 = vmatpush.bf16.msra.mxu0 %v853
      %926 = vmatmul.bf16.gmra.mxu0 %v888
      %v927 = vpop.f32.mrf.mxu0
      %v928 = vadd.f32 %v909, %v927
      %v929 = vpop.f32.mrf.mxu0
      %v930 = vadd.f32 %v911, %v929
      %931 = vmatmul.bf16.gmra.mxu0 %v891
      %v932 = vpop.f32.mrf.mxu0
      %v933 = vadd.f32 %v914, %v932
      %v934 = vpop.f32.mrf.mxu0
      %v935 = vadd.f32 %v916, %v934
      %936 = vdwg.mxu0
      %937 = vmatpush.bf16.msra.mxu0 %v852
      %938 = vmatpush.bf16.msra.mxu0 %v850
      %939 = vmatpush.bf16.msra.mxu0 %v848
      %940 = vmatpush.bf16.msra.mxu0 %v846
      %941 = vmatpush.bf16.msra.mxu0 %v844
      %942 = vmatpush.bf16.msra.mxu0 %v842
      %943 = vmatpush.bf16.msra.mxu0 %v840
      %944 = vmatpush.bf16.msra.mxu0 %v838
      %945 = vmatmul.bf16.gmra.mxu0 %v756
      %v946 = vpop.f32.mrf.mxu0
      %v947 = vadd.f32 %v735, %v946
      %v948 = vpop.f32.mrf.mxu0
      %v949 = vadd.f32 %v737, %v948
      %950 = vmatmul.bf16.gmra.mxu0 %v758
      %v951 = vpop.f32.mrf.mxu0
      %v952 = vadd.f32 %v740, %v951
      %v953 = vpop.f32.mrf.mxu0
      %v954 = vadd.f32 %v742, %v953
      %955 = vdwg.mxu0
      %956 = vmatpush.bf16.msra.mxu0 0
      %957 = vmatpush.bf16.msra.mxu0 0
      %958 = vmatpush.bf16.msra.mxu0 0
      %959 = vmatpush.bf16.msra.mxu0 %v897
      %960 = vmatpush.bf16.msra.mxu0 %v860
      %961 = vmatpush.bf16.msra.mxu0 %v858
      %962 = vmatpush.bf16.msra.mxu0 %v856
      %963 = vmatpush.bf16.msra.mxu0 %v854
      %964 = vmatmul.bf16.gmra.mxu0 %v888
      %v965 = vpop.f32.mrf.mxu0
      %v966 = vadd.f32 %v947, %v965
      %v967 = vpop.f32.mrf.mxu0
      %v968 = vadd.f32 %v949, %v967
      %969 = vmatmul.bf16.gmra.mxu0 %v891
      %v970 = vpop.f32.mrf.mxu0
      %v971 = vadd.f32 %v952, %v970
      %v972 = vpop.f32.mrf.mxu0
      %v973 = vadd.f32 %v954, %v972
      %974 = vdwg.mxu0
      %v975 = vld [vmem:[%s441] sm:$0xff]
      %v976 = vld [vmem:[%s441 + $0x8] sm:$0xff]
      %v977 = vld [vmem:[%s441 + $0x10] sm:$0xff]
      %v978 = vld [vmem:[%s441 + $0x18] sm:$0xff]
      %v979 = vld [vmem:[%s441 + $0x20] sm:$0x11]
      %s980 = scalar_lea.vmem %s1, 400
      %v981 = vld [vmem:[%s980] sm:$0xff]
      %v982 = vld [vmem:[%s980 + $0x8] sm:$0xff]
      %v983 = vld [vmem:[%s980 + $0x10] sm:$0xff]
      %v984 = vld [vmem:[%s980 + $0x18] sm:$0xff]
      %v985 = vld [vmem:[%s980 + $0x20] sm:$0xff]
      %v986 = vld [vmem:[%s980 + $0x28] sm:$0xff]
      %v987 = vld [vmem:[%s980 + $0x30] sm:$0xff]
      %v988 = vld [vmem:[%s980 + $0x38] sm:$0xff]
      %v989 = vld [vmem:[%s980 + $0x40] sm:$0xff]
      %v990 = vld [vmem:[%s980 + $0x48] sm:$0xff]
      %v991 = vld [vmem:[%s980 + $0x50] sm:$0xff]
      %v992 = vld [vmem:[%s980 + $0x58] sm:$0xff]
      %v993 = vld [vmem:[%s980 + $0x60] sm:$0xff]
      %v994 = vld [vmem:[%s980 + $0x68] sm:$0xff]
      %v995 = vld [vmem:[%s980 + $0x70] sm:$0xff]
      %v996 = vld [vmem:[%s980 + $0x78] sm:$0xff]
      %v997 = vld [vmem:[%s980 + $0x80] sm:$0xff]
      %v998 = vld [vmem:[%s980 + $0x88] sm:$0xff]
      %v999 = vld [vmem:[%s980 + $0x90] sm:$0xff]
      %v1000 = vld [vmem:[%s980 + $0x98] sm:$0xff]
      %v1001 = vld [vmem:[%s980 + $0xa0] sm:$0xff]
      %v1002 = vld [vmem:[%s980 + $0xa8] sm:$0xff]
      %v1003 = vld [vmem:[%s980 + $0xb0] sm:$0xff]
      %v1004 = vld [vmem:[%s980 + $0xb8] sm:$0xff]
      %v1005 = vld [vmem:[%s980 + $0xc0] sm:$0x77]
      %v1011 = vunpack.c.l.b16 %v975
      %v1012 = vunpack.c.h.b16 %v975
      %v1013 = vunpack.c.l.b16 %v976
      %v1014 = vunpack.c.h.b16 %v976
      %v1015 = vunpack.c.l.b16 %v977
      %v1016 = vunpack.c.h.b16 %v977
      %v1017 = vunpack.c.l.b16 %v978
      %v1018 = vunpack.c.h.b16 %v978
      %v1019 = vunpack.c.l.b16 %v979
      %v1020 = vunpack.c.h.b16 %v979
      %v1021 = vpack.c.b16 %v1013, %v1011
      %v1022 = vpack.c.b16 %v1014, %v1012
      %v1023 = vpack.c.b16 %v1017, %v1015
      %v1024 = vpack.c.b16 %v1018, %v1016
      %v1025 = vpack.c.b16 %v1019, %v1019
      %v1026 = vpack.c.b16 %v1020, %v1020
      %vm1027 = vsmask.f32 7424
      %v1029 = vshrl.u32 %v1021, 16
      %v1031 = vshll.u32 %v1021, 16
      %v1033 = vrot.slane %v1031, 1
      %v1034 = vor.u32 %v1029, %v1033
      %v1036 = vshll.u32 %v1023, 16
      %v1038 = vrot.slane %v1036, 1
      %v1039 = vsel %vm1027, %v1034, %v1038
      %v1041 = vshrl.u32 %v1022, 16
      %v1043 = vshll.u32 %v1022, 16
      %v1045 = vrot.slane %v1043, 1
      %v1046 = vor.u32 %v1041, %v1045
      %v1048 = vshll.u32 %v1024, 16
      %v1050 = vrot.slane %v1048, 1
      %v1051 = vsel %vm1027, %v1046, %v1050
      %v1052 = vshrl.u32 %v1023, 16
      %v1054 = vor.u32 %v1052, %v1038
      %v1056 = vshll.u32 %v1025, 16
      %v1058 = vrot.slane %v1056, 1
      %v1059 = vsel %vm1027, %v1054, %v1058
      %v1060 = vshrl.u32 %v1024, 16
      %v1062 = vor.u32 %v1060, %v1050
      %v1064 = vshll.u32 %v1026, 16
      %v1066 = vrot.slane %v1064, 1
      %v1067 = vsel %vm1027, %v1062, %v1066
      %v1095 = vunpack.c.l.b16 %v981
      %v1096 = vunpack.c.h.b16 %v981
      %v1097 = vunpack.c.l.b16 %v982
      %v1098 = vunpack.c.h.b16 %v982
      %v1099 = vunpack.c.l.b16 %v983
      %v1100 = vunpack.c.h.b16 %v983
      %v1101 = vunpack.c.l.b16 %v984
      %v1102 = vunpack.c.h.b16 %v984
      %v1103 = vunpack.c.l.b16 %v985
      %v1104 = vunpack.c.h.b16 %v985
      %v1105 = vunpack.c.l.b16 %v986
      %v1106 = vunpack.c.h.b16 %v986
      %v1107 = vunpack.c.l.b16 %v987
      %v1108 = vunpack.c.h.b16 %v987
      %v1109 = vunpack.c.l.b16 %v988
      %v1110 = vunpack.c.h.b16 %v988
      %v1111 = vunpack.c.l.b16 %v989
      %v1112 = vunpack.c.h.b16 %v989
      %v1113 = vunpack.c.l.b16 %v990
      %v1114 = vunpack.c.h.b16 %v990
      %v1115 = vunpack.c.l.b16 %v991
      %v1116 = vunpack.c.h.b16 %v991
      %v1117 = vunpack.c.l.b16 %v992
      %v1118 = vunpack.c.h.b16 %v992
      %v1119 = vunpack.c.l.b16 %v993
      %v1120 = vunpack.c.h.b16 %v993
      %v1121 = vunpack.c.l.b16 %v994
      %v1122 = vunpack.c.h.b16 %v994
      %v1123 = vunpack.c.l.b16 %v995
      %v1124 = vunpack.c.h.b16 %v995
      %v1125 = vunpack.c.l.b16 %v996
      %v1126 = vunpack.c.h.b16 %v996
      %v1127 = vunpack.c.l.b16 %v997
      %v1128 = vunpack.c.h.b16 %v997
      %v1129 = vunpack.c.l.b16 %v998
      %v1130 = vunpack.c.h.b16 %v998
      %v1131 = vunpack.c.l.b16 %v999
      %v1132 = vunpack.c.h.b16 %v999
      %v1133 = vunpack.c.l.b16 %v1000
      %v1134 = vunpack.c.h.b16 %v1000
      %v1135 = vunpack.c.l.b16 %v1001
      %v1136 = vunpack.c.h.b16 %v1001
      %v1137 = vunpack.c.l.b16 %v1002
      %v1138 = vunpack.c.h.b16 %v1002
      %v1139 = vunpack.c.l.b16 %v1003
      %v1140 = vunpack.c.h.b16 %v1003
      %v1141 = vunpack.c.l.b16 %v1004
      %v1142 = vunpack.c.h.b16 %v1004
      %v1143 = vunpack.c.l.b16 %v1005
      %v1144 = vunpack.c.h.b16 %v1005
      %v1145 = vpack.c.b16 %v1097, %v1095
      %v1146 = vpack.c.b16 %v1098, %v1096
      %v1147 = vpack.c.b16 %v1101, %v1099
      %v1148 = vpack.c.b16 %v1102, %v1100
      %v1149 = vpack.c.b16 %v1105, %v1103
      %v1150 = vpack.c.b16 %v1106, %v1104
      %v1151 = vpack.c.b16 %v1109, %v1107
      %v1152 = vpack.c.b16 %v1110, %v1108
      %v1153 = vpack.c.b16 %v1113, %v1111
      %v1154 = vpack.c.b16 %v1114, %v1112
      %v1155 = vpack.c.b16 %v1117, %v1115
      %v1156 = vpack.c.b16 %v1118, %v1116
      %v1157 = vpack.c.b16 %v1121, %v1119
      %v1158 = vpack.c.b16 %v1122, %v1120
      %v1159 = vpack.c.b16 %v1125, %v1123
      %v1160 = vpack.c.b16 %v1126, %v1124
      %v1161 = vpack.c.b16 %v1129, %v1127
      %v1162 = vpack.c.b16 %v1130, %v1128
      %v1163 = vpack.c.b16 %v1133, %v1131
      %v1164 = vpack.c.b16 %v1134, %v1132
      %v1165 = vpack.c.b16 %v1137, %v1135
      %v1166 = vpack.c.b16 %v1138, %v1136
      %v1167 = vpack.c.b16 %v1141, %v1139
      %v1168 = vpack.c.b16 %v1142, %v1140
      %v1169 = vpack.c.b16 %v1143, %v1143
      %v1170 = vpack.c.b16 %v1144, %v1144
      %v1196 = vsel %vm654, %v1051, 0
      %v1199 = vsel %vm654, %v1067, 0
      %v1202 = vsel %vm661, %v1169, 0
      %v1205 = vsel %vm661, %v1170, 0
      %1207 = vmatpush.bf16.msra.mxu0 %v1159
      %1208 = vmatpush.bf16.msra.mxu0 %v1157
      %1209 = vmatpush.bf16.msra.mxu0 %v1155
      %1210 = vmatpush.bf16.msra.mxu0 %v1153
      %1211 = vmatpush.bf16.msra.mxu0 %v1151
      %1212 = vmatpush.bf16.msra.mxu0 %v1149
      %1213 = vmatpush.bf16.msra.mxu0 %v1147
      %1214 = vmatpush.bf16.msra.mxu0 %v1145
      %1215 = vmatmul.bf16.gmra.mxu0 %v1039
      %v1216 = vpop.f32.mrf.mxu0
      %v1217 = vadd.f32 0.0, %v1216
      %v1218 = vpop.f32.mrf.mxu0
      %v1219 = vadd.f32 0.0, %v1218
      %1220 = vmatmul.bf16.gmra.mxu0 %v1059
      %v1221 = vpop.f32.mrf.mxu0
      %v1222 = vadd.f32 0.0, %v1221
      %v1223 = vpop.f32.mrf.mxu0
      %v1224 = vadd.f32 0.0, %v1223
      %1225 = vdwg.mxu0
      %1226 = vmatpush.bf16.msra.mxu0 0
      %1227 = vmatpush.bf16.msra.mxu0 0
      %1228 = vmatpush.bf16.msra.mxu0 0
      %1229 = vmatpush.bf16.msra.mxu0 %v1202
      %1230 = vmatpush.bf16.msra.mxu0 %v1167
      %1231 = vmatpush.bf16.msra.mxu0 %v1165
      %1232 = vmatpush.bf16.msra.mxu0 %v1163
      %1233 = vmatpush.bf16.msra.mxu0 %v1161
      %1234 = vmatmul.bf16.gmra.mxu0 %v1196
      %v1235 = vpop.f32.mrf.mxu0
      %v1236 = vadd.f32 %v1217, %v1235
      %v1237 = vpop.f32.mrf.mxu0
      %v1238 = vadd.f32 %v1219, %v1237
      %1239 = vmatmul.bf16.gmra.mxu0 %v1199
      %v1240 = vpop.f32.mrf.mxu0
      %v1241 = vadd.f32 %v1222, %v1240
      %v1242 = vpop.f32.mrf.mxu0
      %v1243 = vadd.f32 %v1224, %v1242
      %1244 = vdwg.mxu0
      %1245 = vmatpush.bf16.msra.mxu0 %v1160
      %1246 = vmatpush.bf16.msra.mxu0 %v1158
      %1247 = vmatpush.bf16.msra.mxu0 %v1156
      %1248 = vmatpush.bf16.msra.mxu0 %v1154
      %1249 = vmatpush.bf16.msra.mxu0 %v1152
      %1250 = vmatpush.bf16.msra.mxu0 %v1150
      %1251 = vmatpush.bf16.msra.mxu0 %v1148
      %1252 = vmatpush.bf16.msra.mxu0 %v1146
      %1253 = vmatmul.bf16.gmra.mxu0 %v1039
      %v1254 = vpop.f32.mrf.mxu0
      %v1255 = vadd.f32 0.0, %v1254
      %v1256 = vpop.f32.mrf.mxu0
      %v1257 = vadd.f32 0.0, %v1256
      %1258 = vmatmul.bf16.gmra.mxu0 %v1059
      %v1259 = vpop.f32.mrf.mxu0
      %v1260 = vadd.f32 0.0, %v1259
      %v1261 = vpop.f32.mrf.mxu0
      %v1262 = vadd.f32 0.0, %v1261
      %1263 = vdwg.mxu0
      %1264 = vmatpush.bf16.msra.mxu0 0
      %1265 = vmatpush.bf16.msra.mxu0 0
      %1266 = vmatpush.bf16.msra.mxu0 0
      %1267 = vmatpush.bf16.msra.mxu0 %v1205
      %1268 = vmatpush.bf16.msra.mxu0 %v1168
      %1269 = vmatpush.bf16.msra.mxu0 %v1166
      %1270 = vmatpush.bf16.msra.mxu0 %v1164
      %1271 = vmatpush.bf16.msra.mxu0 %v1162
      %1272 = vmatmul.bf16.gmra.mxu0 %v1196
      %v1273 = vpop.f32.mrf.mxu0
      %v1274 = vadd.f32 %v1255, %v1273
      %v1275 = vpop.f32.mrf.mxu0
      %v1276 = vadd.f32 %v1257, %v1275
      %1277 = vmatmul.bf16.gmra.mxu0 %v1199
      %v1278 = vpop.f32.mrf.mxu0
      %v1279 = vadd.f32 %v1260, %v1278
      %v1280 = vpop.f32.mrf.mxu0
      %v1281 = vadd.f32 %v1262, %v1280
      %1282 = vdwg.mxu0
      %v1283 = vadd.f32 %v928, %v1236
      %v1284 = vadd.f32 %v966, %v1274
      %v1285 = vadd.f32 %v930, %v1238
      %v1286 = vadd.f32 %v968, %v1276
      %v1287 = vadd.f32 %v933, %v1241
      %v1288 = vadd.f32 %v971, %v1279
      %v1289 = vadd.f32 %v935, %v1243
      %v1290 = vadd.f32 %v973, %v1281
      %v1291 = vld [vmem:[%s480] sm:$0xff]
      %v1292 = vld [vmem:[%s480 + $0x8] sm:$0xff]
      %v1293 = vld [vmem:[%s480 + $0x10] sm:$0xff]
      %v1294 = vld [vmem:[%s480 + $0x18] sm:$0xff]
      %v1295 = vld [vmem:[%s480 + $0x20] sm:$0x11]
      %s1296 = scalar_lea.vmem %s1, 600
      %v1297 = vld [vmem:[%s1296] sm:$0xff]
      %v1298 = vld [vmem:[%s1296 + $0x8] sm:$0xff]
      %v1299 = vld [vmem:[%s1296 + $0x10] sm:$0xff]
      %v1300 = vld [vmem:[%s1296 + $0x18] sm:$0xff]
      %v1301 = vld [vmem:[%s1296 + $0x20] sm:$0xff]
      %v1302 = vld [vmem:[%s1296 + $0x28] sm:$0xff]
      %v1303 = vld [vmem:[%s1296 + $0x30] sm:$0xff]
      %v1304 = vld [vmem:[%s1296 + $0x38] sm:$0xff]
      %v1305 = vld [vmem:[%s1296 + $0x40] sm:$0xff]
      %v1306 = vld [vmem:[%s1296 + $0x48] sm:$0xff]
      %v1307 = vld [vmem:[%s1296 + $0x50] sm:$0xff]
      %v1308 = vld [vmem:[%s1296 + $0x58] sm:$0xff]
      %v1309 = vld [vmem:[%s1296 + $0x60] sm:$0xff]
      %v1310 = vld [vmem:[%s1296 + $0x68] sm:$0xff]
      %v1311 = vld [vmem:[%s1296 + $0x70] sm:$0xff]
      %v1312 = vld [vmem:[%s1296 + $0x78] sm:$0xff]
      %v1313 = vld [vmem:[%s1296 + $0x80] sm:$0xff]
      %v1314 = vld [vmem:[%s1296 + $0x88] sm:$0xff]
      %v1315 = vld [vmem:[%s1296 + $0x90] sm:$0xff]
      %v1316 = vld [vmem:[%s1296 + $0x98] sm:$0xff]
      %v1317 = vld [vmem:[%s1296 + $0xa0] sm:$0xff]
      %v1318 = vld [vmem:[%s1296 + $0xa8] sm:$0xff]
      %v1319 = vld [vmem:[%s1296 + $0xb0] sm:$0xff]
      %v1320 = vld [vmem:[%s1296 + $0xb8] sm:$0xff]
      %v1321 = vld [vmem:[%s1296 + $0xc0] sm:$0x77]
      %v1327 = vunpack.c.l.b16 %v1291
      %v1328 = vunpack.c.h.b16 %v1291
      %v1329 = vunpack.c.l.b16 %v1292
      %v1330 = vunpack.c.h.b16 %v1292
      %v1331 = vunpack.c.l.b16 %v1293
      %v1332 = vunpack.c.h.b16 %v1293
      %v1333 = vunpack.c.l.b16 %v1294
      %v1334 = vunpack.c.h.b16 %v1294
      %v1335 = vunpack.c.l.b16 %v1295
      %v1336 = vunpack.c.h.b16 %v1295
      %v1337 = vpack.c.b16 %v1329, %v1327
      %v1338 = vpack.c.b16 %v1330, %v1328
      %v1339 = vpack.c.b16 %v1333, %v1331
      %v1340 = vpack.c.b16 %v1334, %v1332
      %v1341 = vpack.c.b16 %v1335, %v1335
      %v1342 = vpack.c.b16 %v1336, %v1336
      %v1344 = vshrl.u32 %v1337, 16
      %v1346 = vshll.u32 %v1337, 16
      %v1348 = vrot.slane %v1346, 1
      %v1349 = vor.u32 %v1344, %v1348
      %v1351 = vshll.u32 %v1339, 16
      %v1353 = vrot.slane %v1351, 1
      %v1354 = vsel %vm1027, %v1349, %v1353
      %v1356 = vshrl.u32 %v1338, 16
      %v1358 = vshll.u32 %v1338, 16
      %v1360 = vrot.slane %v1358, 1
      %v1361 = vor.u32 %v1356, %v1360
      %v1363 = vshll.u32 %v1340, 16
      %v1365 = vrot.slane %v1363, 1
      %v1366 = vsel %vm1027, %v1361, %v1365
      %v1367 = vshrl.u32 %v1339, 16
      %v1369 = vor.u32 %v1367, %v1353
      %v1371 = vshll.u32 %v1341, 16
      %v1373 = vrot.slane %v1371, 1
      %v1374 = vsel %vm1027, %v1369, %v1373
      %v1375 = vshrl.u32 %v1340, 16
      %v1377 = vor.u32 %v1375, %v1365
      %v1379 = vshll.u32 %v1342, 16
      %v1381 = vrot.slane %v1379, 1
      %v1382 = vsel %vm1027, %v1377, %v1381
      %v1410 = vunpack.c.l.b16 %v1297
      %v1411 = vunpack.c.h.b16 %v1297
      %v1412 = vunpack.c.l.b16 %v1298
      %v1413 = vunpack.c.h.b16 %v1298
      %v1414 = vunpack.c.l.b16 %v1299
      %v1415 = vunpack.c.h.b16 %v1299
      %v1416 = vunpack.c.l.b16 %v1300
      %v1417 = vunpack.c.h.b16 %v1300
      %v1418 = vunpack.c.l.b16 %v1301
      %v1419 = vunpack.c.h.b16 %v1301
      %v1420 = vunpack.c.l.b16 %v1302
      %v1421 = vunpack.c.h.b16 %v1302
      %v1422 = vunpack.c.l.b16 %v1303
      %v1423 = vunpack.c.h.b16 %v1303
      %v1424 = vunpack.c.l.b16 %v1304
      %v1425 = vunpack.c.h.b16 %v1304
      %v1426 = vunpack.c.l.b16 %v1305
      %v1427 = vunpack.c.h.b16 %v1305
      %v1428 = vunpack.c.l.b16 %v1306
      %v1429 = vunpack.c.h.b16 %v1306
      %v1430 = vunpack.c.l.b16 %v1307
      %v1431 = vunpack.c.h.b16 %v1307
      %v1432 = vunpack.c.l.b16 %v1308
      %v1433 = vunpack.c.h.b16 %v1308
      %v1434 = vunpack.c.l.b16 %v1309
      %v1435 = vunpack.c.h.b16 %v1309
      %v1436 = vunpack.c.l.b16 %v1310
      %v1437 = vunpack.c.h.b16 %v1310
      %v1438 = vunpack.c.l.b16 %v1311
      %v1439 = vunpack.c.h.b16 %v1311
      %v1440 = vunpack.c.l.b16 %v1312
      %v1441 = vunpack.c.h.b16 %v1312
      %v1442 = vunpack.c.l.b16 %v1313
      %v1443 = vunpack.c.h.b16 %v1313
      %v1444 = vunpack.c.l.b16 %v1314
      %v1445 = vunpack.c.h.b16 %v1314
      %v1446 = vunpack.c.l.b16 %v1315
      %v1447 = vunpack.c.h.b16 %v1315
      %v1448 = vunpack.c.l.b16 %v1316
      %v1449 = vunpack.c.h.b16 %v1316
      %v1450 = vunpack.c.l.b16 %v1317
      %v1451 = vunpack.c.h.b16 %v1317
      %v1452 = vunpack.c.l.b16 %v1318
      %v1453 = vunpack.c.h.b16 %v1318
      %v1454 = vunpack.c.l.b16 %v1319
      %v1455 = vunpack.c.h.b16 %v1319
      %v1456 = vunpack.c.l.b16 %v1320
      %v1457 = vunpack.c.h.b16 %v1320
      %v1458 = vunpack.c.l.b16 %v1321
      %v1459 = vunpack.c.h.b16 %v1321
      %v1460 = vpack.c.b16 %v1412, %v1410
      %v1461 = vpack.c.b16 %v1413, %v1411
      %v1462 = vpack.c.b16 %v1416, %v1414
      %v1463 = vpack.c.b16 %v1417, %v1415
      %v1464 = vpack.c.b16 %v1420, %v1418
      %v1465 = vpack.c.b16 %v1421, %v1419
      %v1466 = vpack.c.b16 %v1424, %v1422
      %v1467 = vpack.c.b16 %v1425, %v1423
      %v1468 = vpack.c.b16 %v1428, %v1426
      %v1469 = vpack.c.b16 %v1429, %v1427
      %v1470 = vpack.c.b16 %v1432, %v1430
      %v1471 = vpack.c.b16 %v1433, %v1431
      %v1472 = vpack.c.b16 %v1436, %v1434
      %v1473 = vpack.c.b16 %v1437, %v1435
      %v1474 = vpack.c.b16 %v1440, %v1438
      %v1475 = vpack.c.b16 %v1441, %v1439
      %v1476 = vpack.c.b16 %v1444, %v1442
      %v1477 = vpack.c.b16 %v1445, %v1443
      %v1478 = vpack.c.b16 %v1448, %v1446
      %v1479 = vpack.c.b16 %v1449, %v1447
      %v1480 = vpack.c.b16 %v1452, %v1450
      %v1481 = vpack.c.b16 %v1453, %v1451
      %v1482 = vpack.c.b16 %v1456, %v1454
      %v1483 = vpack.c.b16 %v1457, %v1455
      %v1484 = vpack.c.b16 %v1458, %v1458
      %v1485 = vpack.c.b16 %v1459, %v1459
      %v1511 = vsel %vm654, %v1366, 0
      %v1514 = vsel %vm654, %v1382, 0
      %v1517 = vsel %vm661, %v1484, 0
      %v1520 = vsel %vm661, %v1485, 0
      %1522 = vmatpush.bf16.msra.mxu0 %v1474
      %1523 = vmatpush.bf16.msra.mxu0 %v1472
      %1524 = vmatpush.bf16.msra.mxu0 %v1470
      %1525 = vmatpush.bf16.msra.mxu0 %v1468
      %1526 = vmatpush.bf16.msra.mxu0 %v1466
      %1527 = vmatpush.bf16.msra.mxu0 %v1464
      %1528 = vmatpush.bf16.msra.mxu0 %v1462
      %1529 = vmatpush.bf16.msra.mxu0 %v1460
      %1530 = vmatmul.bf16.gmra.mxu0 %v1354
      %v1531 = vpop.f32.mrf.mxu0
      %v1532 = vadd.f32 0.0, %v1531
      %v1533 = vpop.f32.mrf.mxu0
      %v1534 = vadd.f32 0.0, %v1533
      %1535 = vmatmul.bf16.gmra.mxu0 %v1374
      %v1536 = vpop.f32.mrf.mxu0
      %v1537 = vadd.f32 0.0, %v1536
      %v1538 = vpop.f32.mrf.mxu0
      %v1539 = vadd.f32 0.0, %v1538
      %1540 = vdwg.mxu0
      %1541 = vmatpush.bf16.msra.mxu0 0
      %1542 = vmatpush.bf16.msra.mxu0 0
      %1543 = vmatpush.bf16.msra.mxu0 0
      %1544 = vmatpush.bf16.msra.mxu0 %v1517
      %1545 = vmatpush.bf16.msra.mxu0 %v1482
      %1546 = vmatpush.bf16.msra.mxu0 %v1480
      %1547 = vmatpush.bf16.msra.mxu0 %v1478
      %1548 = vmatpush.bf16.msra.mxu0 %v1476
      %1549 = vmatmul.bf16.gmra.mxu0 %v1511
      %v1550 = vpop.f32.mrf.mxu0
      %v1551 = vadd.f32 %v1532, %v1550
      %v1552 = vpop.f32.mrf.mxu0
      %v1553 = vadd.f32 %v1534, %v1552
      %1554 = vmatmul.bf16.gmra.mxu0 %v1514
      %v1555 = vpop.f32.mrf.mxu0
      %v1556 = vadd.f32 %v1537, %v1555
      %v1557 = vpop.f32.mrf.mxu0
      %v1558 = vadd.f32 %v1539, %v1557
      %1559 = vdwg.mxu0
      %1560 = vmatpush.bf16.msra.mxu0 %v1475
      %1561 = vmatpush.bf16.msra.mxu0 %v1473
      %1562 = vmatpush.bf16.msra.mxu0 %v1471
      %1563 = vmatpush.bf16.msra.mxu0 %v1469
      %1564 = vmatpush.bf16.msra.mxu0 %v1467
      %1565 = vmatpush.bf16.msra.mxu0 %v1465
      %1566 = vmatpush.bf16.msra.mxu0 %v1463
      %1567 = vmatpush.bf16.msra.mxu0 %v1461
      %1568 = vmatmul.bf16.gmra.mxu0 %v1354
      %v1569 = vpop.f32.mrf.mxu0
      %v1570 = vadd.f32 0.0, %v1569
      %v1571 = vpop.f32.mrf.mxu0
      %v1572 = vadd.f32 0.0, %v1571
      %1573 = vmatmul.bf16.gmra.mxu0 %v1374
      %v1574 = vpop.f32.mrf.mxu0
      %v1575 = vadd.f32 0.0, %v1574
      %v1576 = vpop.f32.mrf.mxu0
      %v1577 = vadd.f32 0.0, %v1576
      %1578 = vdwg.mxu0
      %1579 = vmatpush.bf16.msra.mxu0 0
      %1580 = vmatpush.bf16.msra.mxu0 0
      %1581 = vmatpush.bf16.msra.mxu0 0
      %1582 = vmatpush.bf16.msra.mxu0 %v1520
      %1583 = vmatpush.bf16.msra.mxu0 %v1483
      %1584 = vmatpush.bf16.msra.mxu0 %v1481
      %1585 = vmatpush.bf16.msra.mxu0 %v1479
      %1586 = vmatpush.bf16.msra.mxu0 %v1477
      %1587 = vmatmul.bf16.gmra.mxu0 %v1511
      %v1588 = vpop.f32.mrf.mxu0
      %v1589 = vadd.f32 %v1570, %v1588
      %v1590 = vpop.f32.mrf.mxu0
      %v1591 = vadd.f32 %v1572, %v1590
      %1592 = vmatmul.bf16.gmra.mxu0 %v1514
      %v1593 = vpop.f32.mrf.mxu0
      %v1594 = vadd.f32 %v1575, %v1593
      %v1595 = vpop.f32.mrf.mxu0
      %v1596 = vadd.f32 %v1577, %v1595
      %1597 = vdwg.mxu0
      %v1598 = vadd.f32 %v1283, %v1551
      %v1599 = vadd.f32 %v1284, %v1589
      %v1600 = vadd.f32 %v1285, %v1553
      %v1601 = vadd.f32 %v1286, %v1591
      %v1602 = vadd.f32 %v1287, %v1556
      %v1603 = vadd.f32 %v1288, %v1594
      %v1604 = vadd.f32 %v1289, %v1558
      %v1605 = vadd.f32 %v1290, %v1596
      %vm1606 = vcmp.gt.f32.partialorder %v1598, 0.0
      %vm1607 = vcmp.gt.f32.partialorder %v1599, 0.0
      %vm1608 = vcmp.gt.f32.partialorder %v1600, 0.0
      %vm1609 = vcmp.gt.f32.partialorder %v1601, 0.0
      %vm1610 = vcmp.gt.f32.partialorder %v1602, 0.0
      %vm1611 = vcmp.gt.f32.partialorder %v1603, 0.0
      %vm1612 = vcmp.gt.f32.partialorder %v1604, 0.0
      %vm1613 = vcmp.gt.f32.partialorder %v1605, 0.0
      %v1614 = vmul.f32 %v1598, 0.2
      %v1615 = vmul.f32 %v1599, 0.2
      %v1616 = vmul.f32 %v1600, 0.2
      %v1617 = vmul.f32 %v1601, 0.2
      %v1618 = vmul.f32 %v1602, 0.2
      %v1619 = vmul.f32 %v1603, 0.2
      %v1620 = vmul.f32 %v1604, 0.2
      %v1621 = vmul.f32 %v1605, 0.2
      %v1622 = vsel %vm1606, %v1598, %v1614
      %v1623 = vsel %vm1607, %v1599, %v1615
      %v1624 = vsel %vm1608, %v1600, %v1616
      %v1625 = vsel %vm1609, %v1601, %v1617
      %v1626 = vsel %vm1610, %v1602, %v1618
      %v1627 = vsel %vm1611, %v1603, %v1619
      %v1628 = vsel %vm1612, %v1604, %v1620
      %v1629 = vsel %vm1613, %v1605, %v1621
      %1630 = vst [vmem:[#allocation2] sm:$0xff] 0
      %vm1631 = vcmask 125952
      %1632 = vst.msk [vmem:[#allocation2 + $0x8] sm:$0xf] %vm1631, 0
      %1633 = vst [vmem:[#allocation2 + $0xc] sm:$0xff] 0
      %1634 = vst.msk [vmem:[#allocation2 + $0x14] sm:$0xf] %vm1631, 0
      %vm1635 = vcmask 1040384
      %vm1636 = vsmask.f32 256
      %vm1637 = vmand %vm1635, %vm1636
      %vm1638 = vcmask 1044484
      %vm1639 = vsmask.f32 4352
      %vm1640 = vmand %vm1638, %vm1639
      %vm1641 = vmor %vm1640, %vm1637
      %v1642 = vld [vmem:[#allocation2 + $0x18] sm:$0x11]
      %v1643 = vsel %vm1641, 0, %v1642
      %1644 = vst [vmem:[#allocation2 + $0x18] sm:$0x11] %v1643
      %vm1645 = vcmask 122880
      %vm1646 = vmand %vm1645, %vm1636
      %v1647 = vld [vmem:[#allocation2 + $0x20] sm:$0x1]
      %v1648 = vsel %vm1646, 0, %v1647
      %1649 = vst [vmem:[#allocation2 + $0x20] sm:$0x1] %v1648
      %1650 = vst [vmem:[#allocation2 + $0x24] sm:$0xff] 0
      %1651 = vst.msk [vmem:[#allocation2 + $0x2c] sm:$0xf] %vm1631, 0
      %1652 = vst [vmem:[#allocation2 + $0x30] sm:$0xff] 0
      %1653 = vst.msk [vmem:[#allocation2 + $0x38] sm:$0xf] %vm1631, 0
      %v1654 = vld [vmem:[#allocation2 + $0x3c] sm:$0x11]
      %v1655 = vsel %vm1641, 0, %v1654
      %1656 = vst [vmem:[#allocation2 + $0x3c] sm:$0x11] %v1655
      %v1657 = vld [vmem:[#allocation2 + $0x44] sm:$0x1]
      %v1658 = vsel %vm1646, 0, %v1657
      %1659 = vst [vmem:[#allocation2 + $0x44] sm:$0x1] %v1658
      %v1660 = vpack.c.bf16 %v1623, %v1622
      %s1661 = scalar_lea.vmem [#allocation2], 36
      %v1662 = vld [vmem:[%s1661] sm:$0x11]
      %v1663 = vsel %vm1641, %v1660, %v1662
      %1664 = vst [vmem:[%s1661] sm:$0x11] %v1663
      %vm1665 = vsmask.f32 7938
      %vm1666 = vmand %vm1635, %vm1665
      %vm1667 = vsmask.f32 7954
      %vm1668 = vmand %vm1638, %vm1667
      %vm1669 = vmor %vm1668, %vm1666
      %v1670 = vld [vmem:[#allocation2] sm:$0x11]
      %v1671 = vsel %vm1669, %v1660, %v1670
      %1672 = vst [vmem:[#allocation2] sm:$0x11] %v1671
      %v1674 = vshll.u32 %v1660, 16
      %v1676 = vrot.slane %v1674, 5
      %v1677 = vrot.slane %v1676, 4
      %v1679 = vld [vmem:[%s1661] sm:$0x11]
      %v1680 = vsel %vm1669, %v1677, %v1679
      %1681 = vst [vmem:[%s1661] sm:$0x11] %v1680
      %v1682 = vshrl.u32 %v1660, 16
      %v1684 = vrot.slane %v1682, 4
      %v1685 = vrot.slane %v1684, 4
      %vm1687 = vcmask 1041409
      %vm1688 = vsmask.f32 1280
      %vm1689 = vmand %vm1687, %vm1688
      %vm1690 = vcmask 1045509
      %vm1691 = vsmask.f32 5376
      %vm1692 = vmand %vm1690, %vm1691
      %vm1693 = vmor %vm1692, %vm1689
      %v1694 = vld [vmem:[#allocation2] sm:$0x22]
      %v1695 = vsel %vm1693, %v1685, %v1694
      %1696 = vst [vmem:[#allocation2] sm:$0x22] %v1695
      %v1698 = vrot.slane %v1660, 5
      %v1699 = vrot.slane %v1698, 4
      %v1701 = vld [vmem:[%s1661] sm:$0x22]
      %v1702 = vsel %vm1693, %v1699, %v1701
      %1703 = vst [vmem:[%s1661] sm:$0x22] %v1702
      %vm1704 = vsmask.f32 7942
      %vm1705 = vmand %vm1687, %vm1704
      %vm1706 = vsmask.f32 7958
      %vm1707 = vmand %vm1690, %vm1706
      %vm1708 = vmor %vm1707, %vm1705
      %v1709 = vld [vmem:[#allocation2] sm:$0x22]
      %v1710 = vsel %vm1708, %v1699, %v1709
      %1711 = vst [vmem:[#allocation2] sm:$0x22] %v1710
      %v1712 = vrot.slane %v1674, 6
      %v1713 = vrot.slane %v1712, 4
      %v1715 = vld [vmem:[%s1661] sm:$0x22]
      %v1716 = vsel %vm1708, %v1713, %v1715
      %1717 = vst [vmem:[%s1661] sm:$0x22] %v1716
      %v1718 = vrot.slane %v1682, 5
      %v1719 = vrot.slane %v1718, 4
      %vm1721 = vcmask 1042434
      %vm1722 = vsmask.f32 2304
      %vm1723 = vmand %vm1721, %vm1722
      %vm1724 = vcmask 1046534
      %vm1725 = vsmask.f32 6400
      %vm1726 = vmand %vm1724, %vm1725
      %vm1727 = vmor %vm1726, %vm1723
      %v1728 = vld [vmem:[#allocation2] sm:$0x44]
      %v1729 = vsel %vm1727, %v1719, %v1728
      %1730 = vst [vmem:[#allocation2] sm:$0x44] %v1729
      %v1731 = vpack.c.bf16 %v1625, %v1624
      %v1733 = vrot.slane %v1731, 6
      %v1735 = vld [vmem:[%s1661] sm:$0x44]
      %v1736 = vsel %vm1727, %v1733, %v1735
      %1737 = vst [vmem:[%s1661] sm:$0x44] %v1736
      %vm1738 = vsmask.f32 7946
      %vm1739 = vmand %vm1721, %vm1738
      %vm1740 = vsmask.f32 7962
      %vm1741 = vmand %vm1724, %vm1740
      %vm1742 = vmor %vm1741, %vm1739
      %v1743 = vld [vmem:[#allocation2] sm:$0x44]
      %v1744 = vsel %vm1742, %v1733, %v1743
      %1745 = vst [vmem:[#allocation2] sm:$0x44] %v1744
      %v1747 = vshll.u32 %v1731, 16
      %v1749 = vrot.slane %v1747, 7
      %v1751 = vld [vmem:[%s1661] sm:$0x44]
      %v1752 = vsel %vm1742, %v1749, %v1751
      %1753 = vst [vmem:[%s1661] sm:$0x44] %v1752
      %v1754 = vshrl.u32 %v1731, 16
      %v1756 = vrot.slane %v1754, 6
      %vm1758 = vcmask 1043459
      %vm1759 = vsmask.f32 3328
      %vm1760 = vmand %vm1758, %vm1759
      %vm1761 = vcmask 1047559
      %vm1762 = vmand %vm1761, %vm1027
      %vm1763 = vmor %vm1762, %vm1760
      %v1764 = vld [vmem:[#allocation2] sm:$0x88]
      %v1765 = vsel %vm1763, %v1756, %v1764
      %1766 = vst [vmem:[#allocation2] sm:$0x88] %v1765
      %v1767 = vrot.slane %v1731, 7
      %v1769 = vld [vmem:[%s1661] sm:$0x88]
      %v1770 = vsel %vm1763, %v1767, %v1769
      %1771 = vst [vmem:[%s1661] sm:$0x88] %v1770
      %vm1772 = vsmask.f32 7950
      %vm1773 = vmand %vm1758, %vm1772
      %vm1774 = vsmask.f32 7966
      %vm1775 = vmand %vm1761, %vm1774
      %vm1776 = vmor %vm1775, %vm1773
      %v1777 = vld [vmem:[#allocation2] sm:$0x88]
      %v1778 = vsel %vm1776, %v1767, %v1777
      %1779 = vst [vmem:[#allocation2] sm:$0x88] %v1778
      %v1781 = vld [vmem:[%s1661] sm:$0x88]
      %v1782 = vsel %vm1776, %v1747, %v1781
      %1783 = vst [vmem:[%s1661] sm:$0x88] %v1782
      %v1784 = vrot.slane %v1754, 7
      %v1785 = vrot.slane %v1784, 4
      %v1787 = vld [vmem:[#allocation2 + $0xc] sm:$0x11]
      %v1788 = vsel %vm1641, %v1785, %v1787
      %1789 = vst [vmem:[#allocation2 + $0xc] sm:$0x11] %v1788
      %v1790 = vpack.c.bf16 %v1627, %v1626
      %v1791 = vld [vmem:[%s1661 + $0xc] sm:$0x11]
      %v1792 = vsel %vm1641, %v1790, %v1791
      %1793 = vst [vmem:[%s1661 + $0xc] sm:$0x11] %v1792
      %v1794 = vld [vmem:[#allocation2 + $0xc] sm:$0x11]
      %v1795 = vsel %vm1669, %v1790, %v1794
      %1796 = vst [vmem:[#allocation2 + $0xc] sm:$0x11] %v1795
      %v1798 = vshll.u32 %v1790, 16
      %v1800 = vrot.slane %v1798, 5
      %v1801 = vrot.slane %v1800, 4
      %v1803 = vld [vmem:[%s1661 + $0xc] sm:$0x11]
      %v1804 = vsel %vm1669, %v1801, %v1803
      %1805 = vst [vmem:[%s1661 + $0xc] sm:$0x11] %v1804
      %v1806 = vshrl.u32 %v1790, 16
      %v1808 = vrot.slane %v1806, 4
      %v1809 = vrot.slane %v1808, 4
      %v1811 = vld [vmem:[#allocation2 + $0xc] sm:$0x22]
      %v1812 = vsel %vm1693, %v1809, %v1811
      %1813 = vst [vmem:[#allocation2 + $0xc] sm:$0x22] %v1812
      %v1815 = vrot.slane %v1790, 5
      %v1816 = vrot.slane %v1815, 4
      %v1818 = vld [vmem:[%s1661 + $0xc] sm:$0x22]
      %v1819 = vsel %vm1693, %v1816, %v1818
      %1820 = vst [vmem:[%s1661 + $0xc] sm:$0x22] %v1819
      %v1821 = vld [vmem:[#allocation2 + $0xc] sm:$0x22]
      %v1822 = vsel %vm1708, %v1816, %v1821
      %1823 = vst [vmem:[#allocation2 + $0xc] sm:$0x22] %v1822
      %v1824 = vrot.slane %v1798, 6
      %v1825 = vrot.slane %v1824, 4
      %v1827 = vld [vmem:[%s1661 + $0xc] sm:$0x22]
      %v1828 = vsel %vm1708, %v1825, %v1827
      %1829 = vst [vmem:[%s1661 + $0xc] sm:$0x22] %v1828
      %v1830 = vrot.slane %v1806, 5
      %v1831 = vrot.slane %v1830, 4
      %v1833 = vld [vmem:[#allocation2 + $0xc] sm:$0x44]
      %v1834 = vsel %vm1727, %v1831, %v1833
      %1835 = vst [vmem:[#allocation2 + $0xc] sm:$0x44] %v1834
      %v1836 = vpack.c.bf16 %v1629, %v1628
      %v1838 = vrot.slane %v1836, 6
      %v1840 = vld [vmem:[%s1661 + $0xc] sm:$0x44]
      %v1841 = vsel %vm1727, %v1838, %v1840
      %1842 = vst [vmem:[%s1661 + $0xc] sm:$0x44] %v1841
      %v1843 = vld [vmem:[#allocation2 + $0xc] sm:$0x44]
      %v1844 = vsel %vm1742, %v1838, %v1843
      %1845 = vst [vmem:[#allocation2 + $0xc] sm:$0x44] %v1844
      %v1847 = vshll.u32 %v1836, 16
      %v1849 = vrot.slane %v1847, 7
      %v1851 = vld [vmem:[%s1661 + $0xc] sm:$0x44]
      %v1852 = vsel %vm1742, %v1849, %v1851
      %1853 = vst [vmem:[%s1661 + $0xc] sm:$0x44] %v1852
      %v1854 = vshrl.u32 %v1836, 16
      %v1856 = vrot.slane %v1854, 6
      %v1858 = vld [vmem:[#allocation2 + $0xc] sm:$0x88]
      %v1859 = vsel %vm1763, %v1856, %v1858
      %1860 = vst [vmem:[#allocation2 + $0xc] sm:$0x88] %v1859
      %v1861 = vrot.slane %v1836, 7
      %v1863 = vld [vmem:[%s1661 + $0xc] sm:$0x88]
      %v1864 = vsel %vm1763, %v1861, %v1863
      %1865 = vst [vmem:[%s1661 + $0xc] sm:$0x88] %v1864
      %v1866 = vld [vmem:[#allocation2 + $0xc] sm:$0x88]
      %v1867 = vsel %vm1776, %v1861, %v1866
      %1868 = vst [vmem:[#allocation2 + $0xc] sm:$0x88] %v1867
      %v1870 = vld [vmem:[%s1661 + $0xc] sm:$0x88]
      %v1871 = vsel %vm1776, %v1847, %v1870
      %1872 = vst [vmem:[%s1661 + $0xc] sm:$0x88] %v1871
      %v1873 = vrot.slane %v1854, 7
      %v1874 = vrot.slane %v1873, 4
      %v1876 = vld [vmem:[#allocation2 + $0x18] sm:$0x11]
      %v1877 = vsel %vm1641, %v1874, %v1876
      %1878 = vst [vmem:[#allocation2 + $0x18] sm:$0x11] %v1877
      %v1879 = vld [vmem:[#allocation2] sm:$0xff]
      %v1880 = vld [vmem:[#allocation2 + $0x8] sm:$0xf]
      %v1881 = vld [vmem:[#allocation2 + $0xc] sm:$0xff]
      %v1882 = vld [vmem:[#allocation2 + $0x14] sm:$0xf]
      %v1883 = vld [vmem:[%s2] sm:$0xff]
      %v1884 = vld [vmem:[%s2 + $0x8] sm:$0xff]
      %v1885 = vld [vmem:[%s2 + $0x10] sm:$0xff]
      %v1886 = vld [vmem:[%s2 + $0x18] sm:$0xff]
      %v1887 = vld [vmem:[%s2 + $0x20] sm:$0xff]
      %v1888 = vld [vmem:[%s2 + $0x28] sm:$0xff]
      %v1889 = vld [vmem:[%s2 + $0x30] sm:$0xff]
      %v1890 = vld [vmem:[%s2 + $0x38] sm:$0xff]
      %v1891 = vld [vmem:[%s2 + $0x40] sm:$0xff]
      %v1892 = vld [vmem:[%s2 + $0x48] sm:$0xff]
      %v1893 = vld [vmem:[%s2 + $0x50] sm:$0xff]
      %v1894 = vld [vmem:[%s2 + $0x58] sm:$0xff]
      %v1895 = vld [vmem:[%s2 + $0x60] sm:$0xff]
      %v1896 = vld [vmem:[%s2 + $0x68] sm:$0xff]
      %v1897 = vld [vmem:[%s2 + $0x70] sm:$0xff]
      %v1898 = vld [vmem:[%s2 + $0x78] sm:$0xff]
      %v1899 = vld [vmem:[%s2 + $0x80] sm:$0xff]
      %v1900 = vld [vmem:[%s2 + $0x88] sm:$0xff]
      %v1901 = vld [vmem:[%s2 + $0x90] sm:$0xff]
      %v1902 = vld [vmem:[%s2 + $0x98] sm:$0xff]
      %v1903 = vld [vmem:[%s2 + $0xa0] sm:$0xff]
      %v1904 = vld [vmem:[%s2 + $0xa8] sm:$0xff]
      %v1905 = vld [vmem:[%s2 + $0xb0] sm:$0xff]
      %v1906 = vld [vmem:[%s2 + $0xb8] sm:$0xff]
      %v1907 = vld [vmem:[%s2 + $0xc0] sm:$0xff]
      %v1908 = vld [vmem:[%s2 + $0xc8] sm:$0xff]
      %v1909 = vld [vmem:[%s2 + $0xd0] sm:$0xff]
      %v1910 = vld [vmem:[%s2 + $0xd8] sm:$0xff]
      %v1911 = vld [vmem:[%s2 + $0xe0] sm:$0xff]
      %v1912 = vld [vmem:[%s2 + $0xe8] sm:$0xff]
      %v1913 = vld [vmem:[%s2 + $0xf0] sm:$0xff]
      %v1914 = vld [vmem:[%s2 + $0xf8] sm:$0xff]
      %v1915 = vld [vmem:[%s2 + $0x100] sm:$0xff]
      %v1916 = vld [vmem:[%s2 + $0x108] sm:$0xff]
      %v1917 = vld [vmem:[%s1661] sm:$0xff]
      %v1918 = vld [vmem:[%s1661 + $0x8] sm:$0xf]
      %v1919 = vld [vmem:[%s1661 + $0xc] sm:$0xff]
      %v1920 = vld [vmem:[%s1661 + $0x14] sm:$0xf]
      %s1921 = scalar_lea.vmem %s2, 272
      %v1922 = vld [vmem:[%s1921] sm:$0xff]
      %v1923 = vld [vmem:[%s1921 + $0x8] sm:$0xff]
      %v1924 = vld [vmem:[%s1921 + $0x10] sm:$0xff]
      %v1925 = vld [vmem:[%s1921 + $0x18] sm:$0xff]
      %v1926 = vld [vmem:[%s1921 + $0x20] sm:$0xff]
      %v1927 = vld [vmem:[%s1921 + $0x28] sm:$0xff]
      %v1928 = vld [vmem:[%s1921 + $0x30] sm:$0xff]
      %v1929 = vld [vmem:[%s1921 + $0x38] sm:$0xff]
      %v1930 = vld [vmem:[%s1921 + $0x40] sm:$0xff]
      %v1931 = vld [vmem:[%s1921 + $0x48] sm:$0xff]
      %v1932 = vld [vmem:[%s1921 + $0x50] sm:$0xff]
      %v1933 = vld [vmem:[%s1921 + $0x58] sm:$0xff]
      %v1934 = vld [vmem:[%s1921 + $0x60] sm:$0xff]
      %v1935 = vld [vmem:[%s1921 + $0x68] sm:$0xff]
      %v1936 = vld [vmem:[%s1921 + $0x70] sm:$0xff]
      %v1937 = vld [vmem:[%s1921 + $0x78] sm:$0xff]
      %v1938 = vld [vmem:[%s1921 + $0x80] sm:$0xff]
      %v1939 = vld [vmem:[%s1921 + $0x88] sm:$0xff]
      %v1940 = vld [vmem:[%s1921 + $0x90] sm:$0xff]
      %v1941 = vld [vmem:[%s1921 + $0x98] sm:$0xff]
      %v1942 = vld [vmem:[%s1921 + $0xa0] sm:$0xff]
      %v1943 = vld [vmem:[%s1921 + $0xa8] sm:$0xff]
      %v1944 = vld [vmem:[%s1921 + $0xb0] sm:$0xff]
      %v1945 = vld [vmem:[%s1921 + $0xb8] sm:$0xff]
      %v1946 = vld [vmem:[%s1921 + $0xc0] sm:$0xff]
      %v1947 = vld [vmem:[%s1921 + $0xc8] sm:$0xff]
      %v1948 = vld [vmem:[%s1921 + $0xd0] sm:$0xff]
      %v1949 = vld [vmem:[%s1921 + $0xd8] sm:$0xff]
      %v1950 = vld [vmem:[%s1921 + $0xe0] sm:$0xff]
      %v1951 = vld [vmem:[%s1921 + $0xe8] sm:$0xff]
      %v1952 = vld [vmem:[%s1921 + $0xf0] sm:$0xff]
      %v1953 = vld [vmem:[%s1921 + $0xf8] sm:$0xff]
      %v1954 = vld [vmem:[%s1921 + $0x100] sm:$0xff]
      %v1955 = vld [vmem:[%s1921 + $0x108] sm:$0xff]
      %v1960 = vunpack.c.l.b16 %v1917
      %v1961 = vunpack.c.h.b16 %v1917
      %v1962 = vunpack.c.l.b16 %v1918
      %v1963 = vunpack.c.l.b16 %v1919
      %v1964 = vunpack.c.h.b16 %v1919
      %v1965 = vunpack.c.l.b16 %v1920
      %v1966 = vpack.c.b16 %v1963, %v1960
      %v1967 = vpack.c.b16 %v1964, %v1961
      %v1968 = vpack.c.b16 %v1965, %v1962
      %v2005 = vunpack.c.l.b16 %v1922
      %v2006 = vunpack.c.h.b16 %v1922
      %v2007 = vunpack.c.l.b16 %v1923
      %v2008 = vunpack.c.h.b16 %v1923
      %v2009 = vunpack.c.l.b16 %v1924
      %v2010 = vunpack.c.h.b16 %v1924
      %v2011 = vunpack.c.l.b16 %v1925
      %v2012 = vunpack.c.h.b16 %v1925
      %v2013 = vunpack.c.l.b16 %v1926
      %v2014 = vunpack.c.h.b16 %v1926
      %v2015 = vunpack.c.l.b16 %v1927
      %v2016 = vunpack.c.h.b16 %v1927
      %v2017 = vunpack.c.l.b16 %v1928
      %v2018 = vunpack.c.h.b16 %v1928
      %v2019 = vunpack.c.l.b16 %v1929
      %v2020 = vunpack.c.h.b16 %v1929
      %v2021 = vunpack.c.l.b16 %v1930
      %v2022 = vunpack.c.h.b16 %v1930
      %v2023 = vunpack.c.l.b16 %v1931
      %v2024 = vunpack.c.h.b16 %v1931
      %v2025 = vunpack.c.l.b16 %v1932
      %v2026 = vunpack.c.h.b16 %v1932
      %v2027 = vunpack.c.l.b16 %v1933
      %v2028 = vunpack.c.h.b16 %v1933
      %v2029 = vunpack.c.l.b16 %v1934
      %v2030 = vunpack.c.h.b16 %v1934
      %v2031 = vunpack.c.l.b16 %v1935
      %v2032 = vunpack.c.h.b16 %v1935
      %v2033 = vunpack.c.l.b16 %v1936
      %v2034 = vunpack.c.h.b16 %v1936
      %v2035 = vunpack.c.l.b16 %v1937
      %v2036 = vunpack.c.h.b16 %v1937
      %v2037 = vunpack.c.l.b16 %v1938
      %v2038 = vunpack.c.h.b16 %v1938
      %v2039 = vunpack.c.l.b16 %v1939
      %v2040 = vunpack.c.h.b16 %v1939
      %v2041 = vunpack.c.l.b16 %v1940
      %v2042 = vunpack.c.h.b16 %v1940
      %v2043 = vunpack.c.l.b16 %v1941
      %v2044 = vunpack.c.h.b16 %v1941
      %v2045 = vunpack.c.l.b16 %v1942
      %v2046 = vunpack.c.h.b16 %v1942
      %v2047 = vunpack.c.l.b16 %v1943
      %v2048 = vunpack.c.h.b16 %v1943
      %v2049 = vunpack.c.l.b16 %v1944
      %v2050 = vunpack.c.h.b16 %v1944
      %v2051 = vunpack.c.l.b16 %v1945
      %v2052 = vunpack.c.h.b16 %v1945
      %v2053 = vunpack.c.l.b16 %v1946
      %v2054 = vunpack.c.h.b16 %v1946
      %v2055 = vunpack.c.l.b16 %v1947
      %v2056 = vunpack.c.h.b16 %v1947
      %v2057 = vunpack.c.l.b16 %v1948
      %v2058 = vunpack.c.h.b16 %v1948
      %v2059 = vunpack.c.l.b16 %v1949
      %v2060 = vunpack.c.h.b16 %v1949
      %v2061 = vunpack.c.l.b16 %v1950
      %v2062 = vunpack.c.h.b16 %v1950
      %v2063 = vunpack.c.l.b16 %v1951
      %v2064 = vunpack.c.h.b16 %v1951
      %v2065 = vunpack.c.l.b16 %v1952
      %v2066 = vunpack.c.h.b16 %v1952
      %v2067 = vunpack.c.l.b16 %v1953
      %v2068 = vunpack.c.h.b16 %v1953
      %v2069 = vunpack.c.l.b16 %v1954
      %v2070 = vunpack.c.h.b16 %v1954
      %v2071 = vunpack.c.l.b16 %v1955
      %v2072 = vunpack.c.h.b16 %v1955
      %v2073 = vpack.c.b16 %v2007, %v2005
      %v2074 = vpack.c.b16 %v2008, %v2006
      %v2075 = vpack.c.b16 %v2011, %v2009
      %v2076 = vpack.c.b16 %v2012, %v2010
      %v2077 = vpack.c.b16 %v2015, %v2013
      %v2078 = vpack.c.b16 %v2016, %v2014
      %v2079 = vpack.c.b16 %v2019, %v2017
      %v2080 = vpack.c.b16 %v2020, %v2018
      %v2081 = vpack.c.b16 %v2023, %v2021
      %v2082 = vpack.c.b16 %v2024, %v2022
      %v2083 = vpack.c.b16 %v2027, %v2025
      %v2084 = vpack.c.b16 %v2028, %v2026
      %v2085 = vpack.c.b16 %v2031, %v2029
      %v2086 = vpack.c.b16 %v2032, %v2030
      %v2087 = vpack.c.b16 %v2035, %v2033
      %v2088 = vpack.c.b16 %v2036, %v2034
      %v2089 = vpack.c.b16 %v2039, %v2037
      %v2090 = vpack.c.b16 %v2040, %v2038
      %v2091 = vpack.c.b16 %v2043, %v2041
      %v2092 = vpack.c.b16 %v2044, %v2042
      %v2093 = vpack.c.b16 %v2047, %v2045
      %v2094 = vpack.c.b16 %v2048, %v2046
      %v2095 = vpack.c.b16 %v2051, %v2049
      %v2096 = vpack.c.b16 %v2052, %v2050
      %v2097 = vpack.c.b16 %v2055, %v2053
      %v2098 = vpack.c.b16 %v2056, %v2054
      %v2099 = vpack.c.b16 %v2059, %v2057
      %v2100 = vpack.c.b16 %v2060, %v2058
      %v2101 = vpack.c.b16 %v2063, %v2061
      %v2102 = vpack.c.b16 %v2064, %v2062
      %v2103 = vpack.c.b16 %v2067, %v2065
      %v2104 = vpack.c.b16 %v2068, %v2066
      %v2105 = vpack.c.b16 %v2071, %v2069
      %v2106 = vpack.c.b16 %v2072, %v2070
      %vm2141 = vcmask 130048
      %v2143 = vsel %vm2141, %v1968, 0
      %2145 = vmatpush.bf16.msra.mxu0 %v2087
      %2146 = vmatpush.bf16.msra.mxu0 %v2085
      %2147 = vmatpush.bf16.msra.mxu0 %v2083
      %2148 = vmatpush.bf16.msra.mxu0 %v2081
      %2149 = vmatpush.bf16.msra.mxu0 %v2079
      %2150 = vmatpush.bf16.msra.mxu0 %v2077
      %2151 = vmatpush.bf16.msra.mxu0 %v2075
      %2152 = vmatpush.bf16.msra.mxu0 %v2073
      %2153 = vmatmul.bf16.gmra.mxu0 %v1966
      %v2154 = vpop.f32.mrf.mxu0
      %v2155 = vadd.f32 0.0, %v2154
      %v2156 = vpop.f32.mrf.mxu0
      %v2157 = vadd.f32 0.0, %v2156
      %2158 = vdwg.mxu0
      %2159 = vmatpush.bf16.msra.mxu0 %v2103
      %2160 = vmatpush.bf16.msra.mxu0 %v2101
      %2161 = vmatpush.bf16.msra.mxu0 %v2099
      %2162 = vmatpush.bf16.msra.mxu0 %v2097
      %2163 = vmatpush.bf16.msra.mxu0 %v2095
      %2164 = vmatpush.bf16.msra.mxu0 %v2093
      %2165 = vmatpush.bf16.msra.mxu0 %v2091
      %2166 = vmatpush.bf16.msra.mxu0 %v2089
      %2167 = vmatmul.bf16.gmra.mxu0 %v1967
      %v2168 = vpop.f32.mrf.mxu0
      %v2169 = vadd.f32 %v2155, %v2168
      %v2170 = vpop.f32.mrf.mxu0
      %v2171 = vadd.f32 %v2157, %v2170
      %2172 = vdwg.mxu0
      %2173 = vmatpush.bf16.msra.mxu0 0
      %2174 = vmatpush.bf16.msra.mxu0 0
      %2175 = vmatpush.bf16.msra.mxu0 0
      %2176 = vmatpush.bf16.msra.mxu0 0
      %2177 = vmatpush.bf16.msra.mxu0 0
      %2178 = vmatpush.bf16.msra.mxu0 0
      %2179 = vmatpush.bf16.msra.mxu0 0
      %2180 = vmatpush.bf16.msra.mxu0 %v2105
      %2181 = vmatmul.bf16.gmra.mxu0 %v2143
      %v2182 = vpop.f32.mrf.mxu0
      %v2183 = vadd.f32 %v2169, %v2182
      %v2184 = vpop.f32.mrf.mxu0
      %v2185 = vadd.f32 %v2171, %v2184
      %2186 = vdwg.mxu0
      %2187 = vmatpush.bf16.msra.mxu0 %v2088
      %2188 = vmatpush.bf16.msra.mxu0 %v2086
      %2189 = vmatpush.bf16.msra.mxu0 %v2084
      %2190 = vmatpush.bf16.msra.mxu0 %v2082
      %2191 = vmatpush.bf16.msra.mxu0 %v2080
      %2192 = vmatpush.bf16.msra.mxu0 %v2078
      %2193 = vmatpush.bf16.msra.mxu0 %v2076
      %2194 = vmatpush.bf16.msra.mxu0 %v2074
      %2195 = vmatmul.bf16.gmra.mxu0 %v1966
      %v2196 = vpop.f32.mrf.mxu0
      %v2197 = vadd.f32 0.0, %v2196
      %v2198 = vpop.f32.mrf.mxu0
      %v2199 = vadd.f32 0.0, %v2198
      %2200 = vdwg.mxu0
      %2201 = vmatpush.bf16.msra.mxu0 %v2104
      %2202 = vmatpush.bf16.msra.mxu0 %v2102
      %2203 = vmatpush.bf16.msra.mxu0 %v2100
      %2204 = vmatpush.bf16.msra.mxu0 %v2098
      %2205 = vmatpush.bf16.msra.mxu0 %v2096
      %2206 = vmatpush.bf16.msra.mxu0 %v2094
      %2207 = vmatpush.bf16.msra.mxu0 %v2092
      %2208 = vmatpush.bf16.msra.mxu0 %v2090
      %2209 = vmatmul.bf16.gmra.mxu0 %v1967
      %v2210 = vpop.f32.mrf.mxu0
      %v2211 = vadd.f32 %v2197, %v2210
      %v2212 = vpop.f32.mrf.mxu0
      %v2213 = vadd.f32 %v2199, %v2212
      %2214 = vdwg.mxu0
      %2215 = vmatpush.bf16.msra.mxu0 0
      %2216 = vmatpush.bf16.msra.mxu0 0
      %2217 = vmatpush.bf16.msra.mxu0 0
      %2218 = vmatpush.bf16.msra.mxu0 0
      %2219 = vmatpush.bf16.msra.mxu0 0
      %2220 = vmatpush.bf16.msra.mxu0 0
      %2221 = vmatpush.bf16.msra.mxu0 0
      %2222 = vmatpush.bf16.msra.mxu0 %v2106
      %2223 = vmatmul.bf16.gmra.mxu0 %v2143
      %v2224 = vpop.f32.mrf.mxu0
      %v2225 = vadd.f32 %v2211, %v2224
      %v2226 = vpop.f32.mrf.mxu0
      %v2227 = vadd.f32 %v2213, %v2226
      %2228 = vdwg.mxu0
      %v2233 = vunpack.c.l.b16 %v1879
      %v2234 = vunpack.c.h.b16 %v1879
      %v2235 = vunpack.c.l.b16 %v1880
      %v2236 = vunpack.c.l.b16 %v1881
      %v2237 = vunpack.c.h.b16 %v1881
      %v2238 = vunpack.c.l.b16 %v1882
      %v2239 = vpack.c.b16 %v2236, %v2233
      %v2240 = vpack.c.b16 %v2237, %v2234
      %v2241 = vpack.c.b16 %v2238, %v2235
      %v2278 = vunpack.c.l.b16 %v1883
      %v2279 = vunpack.c.h.b16 %v1883
      %v2280 = vunpack.c.l.b16 %v1884
      %v2281 = vunpack.c.h.b16 %v1884
      %v2282 = vunpack.c.l.b16 %v1885
      %v2283 = vunpack.c.h.b16 %v1885
      %v2284 = vunpack.c.l.b16 %v1886
      %v2285 = vunpack.c.h.b16 %v1886
      %v2286 = vunpack.c.l.b16 %v1887
      %v2287 = vunpack.c.h.b16 %v1887
      %v2288 = vunpack.c.l.b16 %v1888
      %v2289 = vunpack.c.h.b16 %v1888
      %v2290 = vunpack.c.l.b16 %v1889
      %v2291 = vunpack.c.h.b16 %v1889
      %v2292 = vunpack.c.l.b16 %v1890
      %v2293 = vunpack.c.h.b16 %v1890
      %v2294 = vunpack.c.l.b16 %v1891
      %v2295 = vunpack.c.h.b16 %v1891
      %v2296 = vunpack.c.l.b16 %v1892
      %v2297 = vunpack.c.h.b16 %v1892
      %v2298 = vunpack.c.l.b16 %v1893
      %v2299 = vunpack.c.h.b16 %v1893
      %v2300 = vunpack.c.l.b16 %v1894
      %v2301 = vunpack.c.h.b16 %v1894
      %v2302 = vunpack.c.l.b16 %v1895
      %v2303 = vunpack.c.h.b16 %v1895
      %v2304 = vunpack.c.l.b16 %v1896
      %v2305 = vunpack.c.h.b16 %v1896
      %v2306 = vunpack.c.l.b16 %v1897
      %v2307 = vunpack.c.h.b16 %v1897
      %v2308 = vunpack.c.l.b16 %v1898
      %v2309 = vunpack.c.h.b16 %v1898
      %v2310 = vunpack.c.l.b16 %v1899
      %v2311 = vunpack.c.h.b16 %v1899
      %v2312 = vunpack.c.l.b16 %v1900
      %v2313 = vunpack.c.h.b16 %v1900
      %v2314 = vunpack.c.l.b16 %v1901
      %v2315 = vunpack.c.h.b16 %v1901
      %v2316 = vunpack.c.l.b16 %v1902
      %v2317 = vunpack.c.h.b16 %v1902
      %v2318 = vunpack.c.l.b16 %v1903
      %v2319 = vunpack.c.h.b16 %v1903
      %v2320 = vunpack.c.l.b16 %v1904
      %v2321 = vunpack.c.h.b16 %v1904
      %v2322 = vunpack.c.l.b16 %v1905
      %v2323 = vunpack.c.h.b16 %v1905
      %v2324 = vunpack.c.l.b16 %v1906
      %v2325 = vunpack.c.h.b16 %v1906
      %v2326 = vunpack.c.l.b16 %v1907
      %v2327 = vunpack.c.h.b16 %v1907
      %v2328 = vunpack.c.l.b16 %v1908
      %v2329 = vunpack.c.h.b16 %v1908
      %v2330 = vunpack.c.l.b16 %v1909
      %v2331 = vunpack.c.h.b16 %v1909
      %v2332 = vunpack.c.l.b16 %v1910
      %v2333 = vunpack.c.h.b16 %v1910
      %v2334 = vunpack.c.l.b16 %v1911
      %v2335 = vunpack.c.h.b16 %v1911
      %v2336 = vunpack.c.l.b16 %v1912
      %v2337 = vunpack.c.h.b16 %v1912
      %v2338 = vunpack.c.l.b16 %v1913
      %v2339 = vunpack.c.h.b16 %v1913
      %v2340 = vunpack.c.l.b16 %v1914
      %v2341 = vunpack.c.h.b16 %v1914
      %v2342 = vunpack.c.l.b16 %v1915
      %v2343 = vunpack.c.h.b16 %v1915
      %v2344 = vunpack.c.l.b16 %v1916
      %v2345 = vunpack.c.h.b16 %v1916
      %v2346 = vpack.c.b16 %v2280, %v2278
      %v2347 = vpack.c.b16 %v2281, %v2279
      %v2348 = vpack.c.b16 %v2284, %v2282
      %v2349 = vpack.c.b16 %v2285, %v2283
      %v2350 = vpack.c.b16 %v2288, %v2286
      %v2351 = vpack.c.b16 %v2289, %v2287
      %v2352 = vpack.c.b16 %v2292, %v2290
      %v2353 = vpack.c.b16 %v2293, %v2291
      %v2354 = vpack.c.b16 %v2296, %v2294
      %v2355 = vpack.c.b16 %v2297, %v2295
      %v2356 = vpack.c.b16 %v2300, %v2298
      %v2357 = vpack.c.b16 %v2301, %v2299
      %v2358 = vpack.c.b16 %v2304, %v2302
      %v2359 = vpack.c.b16 %v2305, %v2303
      %v2360 = vpack.c.b16 %v2308, %v2306
      %v2361 = vpack.c.b16 %v2309, %v2307
      %v2362 = vpack.c.b16 %v2312, %v2310
      %v2363 = vpack.c.b16 %v2313, %v2311
      %v2364 = vpack.c.b16 %v2316, %v2314
      %v2365 = vpack.c.b16 %v2317, %v2315
      %v2366 = vpack.c.b16 %v2320, %v2318
      %v2367 = vpack.c.b16 %v2321, %v2319
      %v2368 = vpack.c.b16 %v2324, %v2322
      %v2369 = vpack.c.b16 %v2325, %v2323
      %v2370 = vpack.c.b16 %v2328, %v2326
      %v2371 = vpack.c.b16 %v2329, %v2327
      %v2372 = vpack.c.b16 %v2332, %v2330
      %v2373 = vpack.c.b16 %v2333, %v2331
      %v2374 = vpack.c.b16 %v2336, %v2334
      %v2375 = vpack.c.b16 %v2337, %v2335
      %v2376 = vpack.c.b16 %v2340, %v2338
      %v2377 = vpack.c.b16 %v2341, %v2339
      %v2378 = vpack.c.b16 %v2344, %v2342
      %v2379 = vpack.c.b16 %v2345, %v2343
      %v2415 = vsel %vm2141, %v2241, 0
      %2417 = vmatpush.bf16.msra.mxu0 %v2360
      %2418 = vmatpush.bf16.msra.mxu0 %v2358
      %2419 = vmatpush.bf16.msra.mxu0 %v2356
      %2420 = vmatpush.bf16.msra.mxu0 %v2354
      %2421 = vmatpush.bf16.msra.mxu0 %v2352
      %2422 = vmatpush.bf16.msra.mxu0 %v2350
      %2423 = vmatpush.bf16.msra.mxu0 %v2348
      %2424 = vmatpush.bf16.msra.mxu0 %v2346
      %2425 = vmatmul.bf16.gmra.mxu0 %v2239
      %v2426 = vpop.f32.mrf.mxu0
      %v2427 = vadd.f32 %v2183, %v2426
      %v2428 = vpop.f32.mrf.mxu0
      %v2429 = vadd.f32 %v2185, %v2428
      %2430 = vdwg.mxu0
      %2431 = vmatpush.bf16.msra.mxu0 %v2376
      %2432 = vmatpush.bf16.msra.mxu0 %v2374
      %2433 = vmatpush.bf16.msra.mxu0 %v2372
      %2434 = vmatpush.bf16.msra.mxu0 %v2370
      %2435 = vmatpush.bf16.msra.mxu0 %v2368
      %2436 = vmatpush.bf16.msra.mxu0 %v2366
      %2437 = vmatpush.bf16.msra.mxu0 %v2364
      %2438 = vmatpush.bf16.msra.mxu0 %v2362
      %2439 = vmatmul.bf16.gmra.mxu0 %v2240
      %v2440 = vpop.f32.mrf.mxu0
      %v2441 = vadd.f32 %v2427, %v2440
      %v2442 = vpop.f32.mrf.mxu0
      %v2443 = vadd.f32 %v2429, %v2442
      %2444 = vdwg.mxu0
      %2445 = vmatpush.bf16.msra.mxu0 0
      %2446 = vmatpush.bf16.msra.mxu0 0
      %2447 = vmatpush.bf16.msra.mxu0 0
      %2448 = vmatpush.bf16.msra.mxu0 0
      %2449 = vmatpush.bf16.msra.mxu0 0
      %2450 = vmatpush.bf16.msra.mxu0 0
      %2451 = vmatpush.bf16.msra.mxu0 0
      %2452 = vmatpush.bf16.msra.mxu0 %v2378
      %2453 = vmatmul.bf16.gmra.mxu0 %v2415
      %v2454 = vpop.f32.mrf.mxu0
      %v2455 = vadd.f32 %v2441, %v2454
      %v2456 = vpop.f32.mrf.mxu0
      %v2457 = vadd.f32 %v2443, %v2456
      %2458 = vdwg.mxu0
      %2459 = vmatpush.bf16.msra.mxu0 %v2361
      %2460 = vmatpush.bf16.msra.mxu0 %v2359
      %2461 = vmatpush.bf16.msra.mxu0 %v2357
      %2462 = vmatpush.bf16.msra.mxu0 %v2355
      %2463 = vmatpush.bf16.msra.mxu0 %v2353
      %2464 = vmatpush.bf16.msra.mxu0 %v2351
      %2465 = vmatpush.bf16.msra.mxu0 %v2349
      %2466 = vmatpush.bf16.msra.mxu0 %v2347
      %2467 = vmatmul.bf16.gmra.mxu0 %v2239
      %v2468 = vpop.f32.mrf.mxu0
      %v2469 = vadd.f32 %v2225, %v2468
      %v2470 = vpop.f32.mrf.mxu0
      %v2471 = vadd.f32 %v2227, %v2470
      %2472 = vdwg.mxu0
      %2473 = vmatpush.bf16.msra.mxu0 %v2377
      %2474 = vmatpush.bf16.msra.mxu0 %v2375
      %2475 = vmatpush.bf16.msra.mxu0 %v2373
      %2476 = vmatpush.bf16.msra.mxu0 %v2371
      %2477 = vmatpush.bf16.msra.mxu0 %v2369
      %2478 = vmatpush.bf16.msra.mxu0 %v2367
      %2479 = vmatpush.bf16.msra.mxu0 %v2365
      %2480 = vmatpush.bf16.msra.mxu0 %v2363
      %2481 = vmatmul.bf16.gmra.mxu0 %v2240
      %v2482 = vpop.f32.mrf.mxu0
      %v2483 = vadd.f32 %v2469, %v2482
      %v2484 = vpop.f32.mrf.mxu0
      %v2485 = vadd.f32 %v2471, %v2484
      %2486 = vdwg.mxu0
      %2487 = vmatpush.bf16.msra.mxu0 0
      %2488 = vmatpush.bf16.msra.mxu0 0
      %2489 = vmatpush.bf16.msra.mxu0 0
      %2490 = vmatpush.bf16.msra.mxu0 0
      %2491 = vmatpush.bf16.msra.mxu0 0
      %2492 = vmatpush.bf16.msra.mxu0 0
      %2493 = vmatpush.bf16.msra.mxu0 0
      %2494 = vmatpush.bf16.msra.mxu0 %v2379
      %2495 = vmatmul.bf16.gmra.mxu0 %v2415
      %v2496 = vpop.f32.mrf.mxu0
      %v2497 = vadd.f32 %v2483, %v2496
      %v2498 = vpop.f32.mrf.mxu0
      %v2499 = vadd.f32 %v2485, %v2498
      %2500 = vdwg.mxu0
      %v2501 = vld [vmem:[#allocation2] sm:$0xff]
      %v2502 = vld [vmem:[#allocation2 + $0x8] sm:$0xf]
      %v2503 = vld [vmem:[#allocation2 + $0xc] sm:$0xff]
      %v2504 = vld [vmem:[#allocation2 + $0x14] sm:$0xf]
      %v2505 = vld [vmem:[#allocation2 + $0x18] sm:$0x11]
      %v2506 = vld [vmem:[#allocation2 + $0x20] sm:$0x1]
      %s2507 = scalar_lea.vmem %s2, 544
      %v2508 = vld [vmem:[%s2507] sm:$0xff]
      %v2509 = vld [vmem:[%s2507 + $0x8] sm:$0xff]
      %v2510 = vld [vmem:[%s2507 + $0x10] sm:$0xff]
      %v2511 = vld [vmem:[%s2507 + $0x18] sm:$0xff]
      %v2512 = vld [vmem:[%s2507 + $0x20] sm:$0xff]
      %v2513 = vld [vmem:[%s2507 + $0x28] sm:$0xff]
      %v2514 = vld [vmem:[%s2507 + $0x30] sm:$0xff]
      %v2515 = vld [vmem:[%s2507 + $0x38] sm:$0xff]
      %v2516 = vld [vmem:[%s2507 + $0x40] sm:$0xff]
      %v2517 = vld [vmem:[%s2507 + $0x48] sm:$0xff]
      %v2518 = vld [vmem:[%s2507 + $0x50] sm:$0xff]
      %v2519 = vld [vmem:[%s2507 + $0x58] sm:$0xff]
      %v2520 = vld [vmem:[%s2507 + $0x60] sm:$0xff]
      %v2521 = vld [vmem:[%s2507 + $0x68] sm:$0xff]
      %v2522 = vld [vmem:[%s2507 + $0x70] sm:$0xff]
      %v2523 = vld [vmem:[%s2507 + $0x78] sm:$0xff]
      %v2524 = vld [vmem:[%s2507 + $0x80] sm:$0xff]
      %v2525 = vld [vmem:[%s2507 + $0x88] sm:$0xff]
      %v2526 = vld [vmem:[%s2507 + $0x90] sm:$0xff]
      %v2527 = vld [vmem:[%s2507 + $0x98] sm:$0xff]
      %v2528 = vld [vmem:[%s2507 + $0xa0] sm:$0xff]
      %v2529 = vld [vmem:[%s2507 + $0xa8] sm:$0xff]
      %v2530 = vld [vmem:[%s2507 + $0xb0] sm:$0xff]
      %v2531 = vld [vmem:[%s2507 + $0xb8] sm:$0xff]
      %v2532 = vld [vmem:[%s2507 + $0xc0] sm:$0xff]
      %v2533 = vld [vmem:[%s2507 + $0xc8] sm:$0xff]
      %v2534 = vld [vmem:[%s2507 + $0xd0] sm:$0xff]
      %v2535 = vld [vmem:[%s2507 + $0xd8] sm:$0xff]
      %v2536 = vld [vmem:[%s2507 + $0xe0] sm:$0xff]
      %v2537 = vld [vmem:[%s2507 + $0xe8] sm:$0xff]
      %v2538 = vld [vmem:[%s2507 + $0xf0] sm:$0xff]
      %v2539 = vld [vmem:[%s2507 + $0xf8] sm:$0xff]
      %v2540 = vld [vmem:[%s2507 + $0x100] sm:$0xff]
      %v2541 = vld [vmem:[%s2507 + $0x108] sm:$0xff]
      %v2548 = vunpack.c.l.b16 %v2501
      %v2549 = vunpack.c.h.b16 %v2501
      %v2550 = vunpack.c.l.b16 %v2502
      %v2551 = vunpack.c.l.b16 %v2503
      %v2552 = vunpack.c.h.b16 %v2503
      %v2553 = vunpack.c.l.b16 %v2504
      %v2554 = vunpack.c.l.b16 %v2505
      %v2555 = vunpack.c.h.b16 %v2505
      %v2556 = vunpack.c.l.b16 %v2506
      %v2557 = vpack.c.b16 %v2551, %v2548
      %v2558 = vpack.c.b16 %v2552, %v2549
      %v2559 = vpack.c.b16 %v2553, %v2550
      %v2560 = vpack.c.b16 %v2554, %v2554
      %v2561 = vpack.c.b16 %v2555, %v2555
      %v2562 = vpack.c.b16 %v2556, %v2556
      %v2564 = vshrl.u32 %v2557, 16
      %v2566 = vshll.u32 %v2557, 16
      %v2568 = vrot.slane %v2566, 1
      %v2569 = vor.u32 %v2564, %v2568
      %v2571 = vshll.u32 %v2560, 16
      %v2573 = vrot.slane %v2571, 1
      %v2574 = vsel %vm1027, %v2569, %v2573
      %v2576 = vshrl.u32 %v2558, 16
      %v2578 = vshll.u32 %v2558, 16
      %v2580 = vrot.slane %v2578, 1
      %v2581 = vor.u32 %v2576, %v2580
      %v2583 = vshll.u32 %v2561, 16
      %v2585 = vrot.slane %v2583, 1
      %v2586 = vsel %vm1027, %v2581, %v2585
      %v2588 = vshrl.u32 %v2559, 16
      %v2590 = vshll.u32 %v2559, 16
      %v2592 = vrot.slane %v2590, 1
      %v2593 = vor.u32 %v2588, %v2592
      %v2595 = vshll.u32 %v2562, 16
      %v2597 = vrot.slane %v2595, 1
      %v2598 = vsel %vm1027, %v2593, %v2597
      %v2635 = vunpack.c.l.b16 %v2508
      %v2636 = vunpack.c.h.b16 %v2508
      %v2637 = vunpack.c.l.b16 %v2509
      %v2638 = vunpack.c.h.b16 %v2509
      %v2639 = vunpack.c.l.b16 %v2510
      %v2640 = vunpack.c.h.b16 %v2510
      %v2641 = vunpack.c.l.b16 %v2511
      %v2642 = vunpack.c.h.b16 %v2511
      %v2643 = vunpack.c.l.b16 %v2512
      %v2644 = vunpack.c.h.b16 %v2512
      %v2645 = vunpack.c.l.b16 %v2513
      %v2646 = vunpack.c.h.b16 %v2513
      %v2647 = vunpack.c.l.b16 %v2514
      %v2648 = vunpack.c.h.b16 %v2514
      %v2649 = vunpack.c.l.b16 %v2515
      %v2650 = vunpack.c.h.b16 %v2515
      %v2651 = vunpack.c.l.b16 %v2516
      %v2652 = vunpack.c.h.b16 %v2516
      %v2653 = vunpack.c.l.b16 %v2517
      %v2654 = vunpack.c.h.b16 %v2517
      %v2655 = vunpack.c.l.b16 %v2518
      %v2656 = vunpack.c.h.b16 %v2518
      %v2657 = vunpack.c.l.b16 %v2519
      %v2658 = vunpack.c.h.b16 %v2519
      %v2659 = vunpack.c.l.b16 %v2520
      %v2660 = vunpack.c.h.b16 %v2520
      %v2661 = vunpack.c.l.b16 %v2521
      %v2662 = vunpack.c.h.b16 %v2521
      %v2663 = vunpack.c.l.b16 %v2522
      %v2664 = vunpack.c.h.b16 %v2522
      %v2665 = vunpack.c.l.b16 %v2523
      %v2666 = vunpack.c.h.b16 %v2523
      %v2667 = vunpack.c.l.b16 %v2524
      %v2668 = vunpack.c.h.b16 %v2524
      %v2669 = vunpack.c.l.b16 %v2525
      %v2670 = vunpack.c.h.b16 %v2525
      %v2671 = vunpack.c.l.b16 %v2526
      %v2672 = vunpack.c.h.b16 %v2526
      %v2673 = vunpack.c.l.b16 %v2527
      %v2674 = vunpack.c.h.b16 %v2527
      %v2675 = vunpack.c.l.b16 %v2528
      %v2676 = vunpack.c.h.b16 %v2528
      %v2677 = vunpack.c.l.b16 %v2529
      %v2678 = vunpack.c.h.b16 %v2529
      %v2679 = vunpack.c.l.b16 %v2530
      %v2680 = vunpack.c.h.b16 %v2530
      %v2681 = vunpack.c.l.b16 %v2531
      %v2682 = vunpack.c.h.b16 %v2531
      %v2683 = vunpack.c.l.b16 %v2532
      %v2684 = vunpack.c.h.b16 %v2532
      %v2685 = vunpack.c.l.b16 %v2533
      %v2686 = vunpack.c.h.b16 %v2533
      %v2687 = vunpack.c.l.b16 %v2534
      %v2688 = vunpack.c.h.b16 %v2534
      %v2689 = vunpack.c.l.b16 %v2535
      %v2690 = vunpack.c.h.b16 %v2535
      %v2691 = vunpack.c.l.b16 %v2536
      %v2692 = vunpack.c.h.b16 %v2536
      %v2693 = vunpack.c.l.b16 %v2537
      %v2694 = vunpack.c.h.b16 %v2537
      %v2695 = vunpack.c.l.b16 %v2538
      %v2696 = vunpack.c.h.b16 %v2538
      %v2697 = vunpack.c.l.b16 %v2539
      %v2698 = vunpack.c.h.b16 %v2539
      %v2699 = vunpack.c.l.b16 %v2540
      %v2700 = vunpack.c.h.b16 %v2540
      %v2701 = vunpack.c.l.b16 %v2541
      %v2702 = vunpack.c.h.b16 %v2541
      %v2703 = vpack.c.b16 %v2637, %v2635
      %v2704 = vpack.c.b16 %v2638, %v2636
      %v2705 = vpack.c.b16 %v2641, %v2639
      %v2706 = vpack.c.b16 %v2642, %v2640
      %v2707 = vpack.c.b16 %v2645, %v2643
      %v2708 = vpack.c.b16 %v2646, %v2644
      %v2709 = vpack.c.b16 %v2649, %v2647
      %v2710 = vpack.c.b16 %v2650, %v2648
      %v2711 = vpack.c.b16 %v2653, %v2651
      %v2712 = vpack.c.b16 %v2654, %v2652
      %v2713 = vpack.c.b16 %v2657, %v2655
      %v2714 = vpack.c.b16 %v2658, %v2656
      %v2715 = vpack.c.b16 %v2661, %v2659
      %v2716 = vpack.c.b16 %v2662, %v2660
      %v2717 = vpack.c.b16 %v2665, %v2663
      %v2718 = vpack.c.b16 %v2666, %v2664
      %v2719 = vpack.c.b16 %v2669, %v2667
      %v2720 = vpack.c.b16 %v2670, %v2668
      %v2721 = vpack.c.b16 %v2673, %v2671
      %v2722 = vpack.c.b16 %v2674, %v2672
      %v2723 = vpack.c.b16 %v2677, %v2675
      %v2724 = vpack.c.b16 %v2678, %v2676
      %v2725 = vpack.c.b16 %v2681, %v2679
      %v2726 = vpack.c.b16 %v2682, %v2680
      %v2727 = vpack.c.b16 %v2685, %v2683
      %v2728 = vpack.c.b16 %v2686, %v2684
      %v2729 = vpack.c.b16 %v2689, %v2687
      %v2730 = vpack.c.b16 %v2690, %v2688
      %v2731 = vpack.c.b16 %v2693, %v2691
      %v2732 = vpack.c.b16 %v2694, %v2692
      %v2733 = vpack.c.b16 %v2697, %v2695
      %v2734 = vpack.c.b16 %v2698, %v2696
      %v2735 = vpack.c.b16 %v2701, %v2699
      %v2736 = vpack.c.b16 %v2702, %v2700
      %v2772 = vsel %vm2141, %v2598, 0
      %2774 = vmatpush.bf16.msra.mxu0 %v2717
      %2775 = vmatpush.bf16.msra.mxu0 %v2715
      %2776 = vmatpush.bf16.msra.mxu0 %v2713
      %2777 = vmatpush.bf16.msra.mxu0 %v2711
      %2778 = vmatpush.bf16.msra.mxu0 %v2709
      %2779 = vmatpush.bf16.msra.mxu0 %v2707
      %2780 = vmatpush.bf16.msra.mxu0 %v2705
      %2781 = vmatpush.bf16.msra.mxu0 %v2703
      %2782 = vmatmul.bf16.gmra.mxu0 %v2574
      %v2783 = vpop.f32.mrf.mxu0
      %v2784 = vadd.f32 0.0, %v2783
      %v2785 = vpop.f32.mrf.mxu0
      %v2786 = vadd.f32 0.0, %v2785
      %2787 = vdwg.mxu0
      %2788 = vmatpush.bf16.msra.mxu0 %v2733
      %2789 = vmatpush.bf16.msra.mxu0 %v2731
      %2790 = vmatpush.bf16.msra.mxu0 %v2729
      %2791 = vmatpush.bf16.msra.mxu0 %v2727
      %2792 = vmatpush.bf16.msra.mxu0 %v2725
      %2793 = vmatpush.bf16.msra.mxu0 %v2723
      %2794 = vmatpush.bf16.msra.mxu0 %v2721
      %2795 = vmatpush.bf16.msra.mxu0 %v2719
      %2796 = vmatmul.bf16.gmra.mxu0 %v2586
      %v2797 = vpop.f32.mrf.mxu0
      %v2798 = vadd.f32 %v2784, %v2797
      %v2799 = vpop.f32.mrf.mxu0
      %v2800 = vadd.f32 %v2786, %v2799
      %2801 = vdwg.mxu0
      %2802 = vmatpush.bf16.msra.mxu0 0
      %2803 = vmatpush.bf16.msra.mxu0 0
      %2804 = vmatpush.bf16.msra.mxu0 0
      %2805 = vmatpush.bf16.msra.mxu0 0
      %2806 = vmatpush.bf16.msra.mxu0 0
      %2807 = vmatpush.bf16.msra.mxu0 0
      %2808 = vmatpush.bf16.msra.mxu0 0
      %2809 = vmatpush.bf16.msra.mxu0 %v2735
      %2810 = vmatmul.bf16.gmra.mxu0 %v2772
      %v2811 = vpop.f32.mrf.mxu0
      %v2812 = vadd.f32 %v2798, %v2811
      %v2813 = vpop.f32.mrf.mxu0
      %v2814 = vadd.f32 %v2800, %v2813
      %2815 = vdwg.mxu0
      %2816 = vmatpush.bf16.msra.mxu0 %v2718
      %2817 = vmatpush.bf16.msra.mxu0 %v2716
      %2818 = vmatpush.bf16.msra.mxu0 %v2714
      %2819 = vmatpush.bf16.msra.mxu0 %v2712
      %2820 = vmatpush.bf16.msra.mxu0 %v2710
      %2821 = vmatpush.bf16.msra.mxu0 %v2708
      %2822 = vmatpush.bf16.msra.mxu0 %v2706
      %2823 = vmatpush.bf16.msra.mxu0 %v2704
      %2824 = vmatmul.bf16.gmra.mxu0 %v2574
      %v2825 = vpop.f32.mrf.mxu0
      %v2826 = vadd.f32 0.0, %v2825
      %v2827 = vpop.f32.mrf.mxu0
      %v2828 = vadd.f32 0.0, %v2827
      %2829 = vdwg.mxu0
      %2830 = vmatpush.bf16.msra.mxu0 %v2734
      %2831 = vmatpush.bf16.msra.mxu0 %v2732
      %2832 = vmatpush.bf16.msra.mxu0 %v2730
      %2833 = vmatpush.bf16.msra.mxu0 %v2728
      %2834 = vmatpush.bf16.msra.mxu0 %v2726
      %2835 = vmatpush.bf16.msra.mxu0 %v2724
      %2836 = vmatpush.bf16.msra.mxu0 %v2722
      %2837 = vmatpush.bf16.msra.mxu0 %v2720
      %2838 = vmatmul.bf16.gmra.mxu0 %v2586
      %v2839 = vpop.f32.mrf.mxu0
      %v2840 = vadd.f32 %v2826, %v2839
      %v2841 = vpop.f32.mrf.mxu0
      %v2842 = vadd.f32 %v2828, %v2841
      %2843 = vdwg.mxu0
      %2844 = vmatpush.bf16.msra.mxu0 0
      %2845 = vmatpush.bf16.msra.mxu0 0
      %2846 = vmatpush.bf16.msra.mxu0 0
      %2847 = vmatpush.bf16.msra.mxu0 0
      %2848 = vmatpush.bf16.msra.mxu0 0
      %2849 = vmatpush.bf16.msra.mxu0 0
      %2850 = vmatpush.bf16.msra.mxu0 0
      %2851 = vmatpush.bf16.msra.mxu0 %v2736
      %2852 = vmatmul.bf16.gmra.mxu0 %v2772
      %v2853 = vpop.f32.mrf.mxu0
      %v2854 = vadd.f32 %v2840, %v2853
      %v2855 = vpop.f32.mrf.mxu0
      %v2856 = vadd.f32 %v2842, %v2855
      %2857 = vdwg.mxu0
      %v2858 = vadd.f32 %v2455, %v2812
      %v2859 = vadd.f32 %v2497, %v2854
      %v2860 = vadd.f32 %v2457, %v2814
      %v2861 = vadd.f32 %v2499, %v2856
      %v2862 = vld [vmem:[%s1661] sm:$0xff]
      %v2863 = vld [vmem:[%s1661 + $0x8] sm:$0xf]
      %v2864 = vld [vmem:[%s1661 + $0xc] sm:$0xff]
      %v2865 = vld [vmem:[%s1661 + $0x14] sm:$0xf]
      %v2866 = vld [vmem:[%s1661 + $0x18] sm:$0x11]
      %v2867 = vld [vmem:[%s1661 + $0x20] sm:$0x1]
      %s2868 = scalar_lea.vmem %s2, 816
      %v2869 = vld [vmem:[%s2868] sm:$0xff]
      %v2870 = vld [vmem:[%s2868 + $0x8] sm:$0xff]
      %v2871 = vld [vmem:[%s2868 + $0x10] sm:$0xff]
      %v2872 = vld [vmem:[%s2868 + $0x18] sm:$0xff]
      %v2873 = vld [vmem:[%s2868 + $0x20] sm:$0xff]
      %v2874 = vld [vmem:[%s2868 + $0x28] sm:$0xff]
      %v2875 = vld [vmem:[%s2868 + $0x30] sm:$0xff]
      %v2876 = vld [vmem:[%s2868 + $0x38] sm:$0xff]
      %v2877 = vld [vmem:[%s2868 + $0x40] sm:$0xff]
      %v2878 = vld [vmem:[%s2868 + $0x48] sm:$0xff]
      %v2879 = vld [vmem:[%s2868 + $0x50] sm:$0xff]
      %v2880 = vld [vmem:[%s2868 + $0x58] sm:$0xff]
      %v2881 = vld [vmem:[%s2868 + $0x60] sm:$0xff]
      %v2882 = vld [vmem:[%s2868 + $0x68] sm:$0xff]
      %v2883 = vld [vmem:[%s2868 + $0x70] sm:$0xff]
      %v2884 = vld [vmem:[%s2868 + $0x78] sm:$0xff]
      %v2885 = vld [vmem:[%s2868 + $0x80] sm:$0xff]
      %v2886 = vld [vmem:[%s2868 + $0x88] sm:$0xff]
      %v2887 = vld [vmem:[%s2868 + $0x90] sm:$0xff]
      %v2888 = vld [vmem:[%s2868 + $0x98] sm:$0xff]
      %v2889 = vld [vmem:[%s2868 + $0xa0] sm:$0xff]
      %v2890 = vld [vmem:[%s2868 + $0xa8] sm:$0xff]
      %v2891 = vld [vmem:[%s2868 + $0xb0] sm:$0xff]
      %v2892 = vld [vmem:[%s2868 + $0xb8] sm:$0xff]
      %v2893 = vld [vmem:[%s2868 + $0xc0] sm:$0xff]
      %v2894 = vld [vmem:[%s2868 + $0xc8] sm:$0xff]
      %v2895 = vld [vmem:[%s2868 + $0xd0] sm:$0xff]
      %v2896 = vld [vmem:[%s2868 + $0xd8] sm:$0xff]
      %v2897 = vld [vmem:[%s2868 + $0xe0] sm:$0xff]
      %v2898 = vld [vmem:[%s2868 + $0xe8] sm:$0xff]
      %v2899 = vld [vmem:[%s2868 + $0xf0] sm:$0xff]
      %v2900 = vld [vmem:[%s2868 + $0xf8] sm:$0xff]
      %v2901 = vld [vmem:[%s2868 + $0x100] sm:$0xff]
      %v2902 = vld [vmem:[%s2868 + $0x108] sm:$0xff]
      %v2909 = vunpack.c.l.b16 %v2862
      %v2910 = vunpack.c.h.b16 %v2862
      %v2911 = vunpack.c.l.b16 %v2863
      %v2912 = vunpack.c.l.b16 %v2864
      %v2913 = vunpack.c.h.b16 %v2864
      %v2914 = vunpack.c.l.b16 %v2865
      %v2915 = vunpack.c.l.b16 %v2866
      %v2916 = vunpack.c.h.b16 %v2866
      %v2917 = vunpack.c.l.b16 %v2867
      %v2918 = vpack.c.b16 %v2912, %v2909
      %v2919 = vpack.c.b16 %v2913, %v2910
      %v2920 = vpack.c.b16 %v2914, %v2911
      %v2921 = vpack.c.b16 %v2915, %v2915
      %v2922 = vpack.c.b16 %v2916, %v2916
      %v2923 = vpack.c.b16 %v2917, %v2917
      %v2925 = vshrl.u32 %v2918, 16
      %v2927 = vshll.u32 %v2918, 16
      %v2929 = vrot.slane %v2927, 1
      %v2930 = vor.u32 %v2925, %v2929
      %v2932 = vshll.u32 %v2921, 16
      %v2934 = vrot.slane %v2932, 1
      %v2935 = vsel %vm1027, %v2930, %v2934
      %v2937 = vshrl.u32 %v2919, 16
      %v2939 = vshll.u32 %v2919, 16
      %v2941 = vrot.slane %v2939, 1
      %v2942 = vor.u32 %v2937, %v2941
      %v2944 = vshll.u32 %v2922, 16
      %v2946 = vrot.slane %v2944, 1
      %v2947 = vsel %vm1027, %v2942, %v2946
      %v2949 = vshrl.u32 %v2920, 16
      %v2951 = vshll.u32 %v2920, 16
      %v2953 = vrot.slane %v2951, 1
      %v2954 = vor.u32 %v2949, %v2953
      %v2956 = vshll.u32 %v2923, 16
      %v2958 = vrot.slane %v2956, 1
      %v2959 = vsel %vm1027, %v2954, %v2958
      %v2996 = vunpack.c.l.b16 %v2869
      %v2997 = vunpack.c.h.b16 %v2869
      %v2998 = vunpack.c.l.b16 %v2870
      %v2999 = vunpack.c.h.b16 %v2870
      %v3000 = vunpack.c.l.b16 %v2871
      %v3001 = vunpack.c.h.b16 %v2871
      %v3002 = vunpack.c.l.b16 %v2872
      %v3003 = vunpack.c.h.b16 %v2872
      %v3004 = vunpack.c.l.b16 %v2873
      %v3005 = vunpack.c.h.b16 %v2873
      %v3006 = vunpack.c.l.b16 %v2874
      %v3007 = vunpack.c.h.b16 %v2874
      %v3008 = vunpack.c.l.b16 %v2875
      %v3009 = vunpack.c.h.b16 %v2875
      %v3010 = vunpack.c.l.b16 %v2876
      %v3011 = vunpack.c.h.b16 %v2876
      %v3012 = vunpack.c.l.b16 %v2877
      %v3013 = vunpack.c.h.b16 %v2877
      %v3014 = vunpack.c.l.b16 %v2878
      %v3015 = vunpack.c.h.b16 %v2878
      %v3016 = vunpack.c.l.b16 %v2879
      %v3017 = vunpack.c.h.b16 %v2879
      %v3018 = vunpack.c.l.b16 %v2880
      %v3019 = vunpack.c.h.b16 %v2880
      %v3020 = vunpack.c.l.b16 %v2881
      %v3021 = vunpack.c.h.b16 %v2881
      %v3022 = vunpack.c.l.b16 %v2882
      %v3023 = vunpack.c.h.b16 %v2882
      %v3024 = vunpack.c.l.b16 %v2883
      %v3025 = vunpack.c.h.b16 %v2883
      %v3026 = vunpack.c.l.b16 %v2884
      %v3027 = vunpack.c.h.b16 %v2884
      %v3028 = vunpack.c.l.b16 %v2885
      %v3029 = vunpack.c.h.b16 %v2885
      %v3030 = vunpack.c.l.b16 %v2886
      %v3031 = vunpack.c.h.b16 %v2886
      %v3032 = vunpack.c.l.b16 %v2887
      %v3033 = vunpack.c.h.b16 %v2887
      %v3034 = vunpack.c.l.b16 %v2888
      %v3035 = vunpack.c.h.b16 %v2888
      %v3036 = vunpack.c.l.b16 %v2889
      %v3037 = vunpack.c.h.b16 %v2889
      %v3038 = vunpack.c.l.b16 %v2890
      %v3039 = vunpack.c.h.b16 %v2890
      %v3040 = vunpack.c.l.b16 %v2891
      %v3041 = vunpack.c.h.b16 %v2891
      %v3042 = vunpack.c.l.b16 %v2892
      %v3043 = vunpack.c.h.b16 %v2892
      %v3044 = vunpack.c.l.b16 %v2893
      %v3045 = vunpack.c.h.b16 %v2893
      %v3046 = vunpack.c.l.b16 %v2894
      %v3047 = vunpack.c.h.b16 %v2894
      %v3048 = vunpack.c.l.b16 %v2895
      %v3049 = vunpack.c.h.b16 %v2895
      %v3050 = vunpack.c.l.b16 %v2896
      %v3051 = vunpack.c.h.b16 %v2896
      %v3052 = vunpack.c.l.b16 %v2897
      %v3053 = vunpack.c.h.b16 %v2897
      %v3054 = vunpack.c.l.b16 %v2898
      %v3055 = vunpack.c.h.b16 %v2898
      %v3056 = vunpack.c.l.b16 %v2899
      %v3057 = vunpack.c.h.b16 %v2899
      %v3058 = vunpack.c.l.b16 %v2900
      %v3059 = vunpack.c.h.b16 %v2900
      %v3060 = vunpack.c.l.b16 %v2901
      %v3061 = vunpack.c.h.b16 %v2901
      %v3062 = vunpack.c.l.b16 %v2902
      %v3063 = vunpack.c.h.b16 %v2902
      %v3064 = vpack.c.b16 %v2998, %v2996
      %v3065 = vpack.c.b16 %v2999, %v2997
      %v3066 = vpack.c.b16 %v3002, %v3000
      %v3067 = vpack.c.b16 %v3003, %v3001
      %v3068 = vpack.c.b16 %v3006, %v3004
      %v3069 = vpack.c.b16 %v3007, %v3005
      %v3070 = vpack.c.b16 %v3010, %v3008
      %v3071 = vpack.c.b16 %v3011, %v3009
      %v3072 = vpack.c.b16 %v3014, %v3012
      %v3073 = vpack.c.b16 %v3015, %v3013
      %v3074 = vpack.c.b16 %v3018, %v3016
      %v3075 = vpack.c.b16 %v3019, %v3017
      %v3076 = vpack.c.b16 %v3022, %v3020
      %v3077 = vpack.c.b16 %v3023, %v3021
      %v3078 = vpack.c.b16 %v3026, %v3024
      %v3079 = vpack.c.b16 %v3027, %v3025
      %v3080 = vpack.c.b16 %v3030, %v3028
      %v3081 = vpack.c.b16 %v3031, %v3029
      %v3082 = vpack.c.b16 %v3034, %v3032
      %v3083 = vpack.c.b16 %v3035, %v3033
      %v3084 = vpack.c.b16 %v3038, %v3036
      %v3085 = vpack.c.b16 %v3039, %v3037
      %v3086 = vpack.c.b16 %v3042, %v3040
      %v3087 = vpack.c.b16 %v3043, %v3041
      %v3088 = vpack.c.b16 %v3046, %v3044
      %v3089 = vpack.c.b16 %v3047, %v3045
      %v3090 = vpack.c.b16 %v3050, %v3048
      %v3091 = vpack.c.b16 %v3051, %v3049
      %v3092 = vpack.c.b16 %v3054, %v3052
      %v3093 = vpack.c.b16 %v3055, %v3053
      %v3094 = vpack.c.b16 %v3058, %v3056
      %v3095 = vpack.c.b16 %v3059, %v3057
      %v3096 = vpack.c.b16 %v3062, %v3060
      %v3097 = vpack.c.b16 %v3063, %v3061
      %v3133 = vsel %vm2141, %v2959, 0
      %3135 = vmatpush.bf16.msra.mxu0 %v3078
      %3136 = vmatpush.bf16.msra.mxu0 %v3076
      %3137 = vmatpush.bf16.msra.mxu0 %v3074
      %3138 = vmatpush.bf16.msra.mxu0 %v3072
      %3139 = vmatpush.bf16.msra.mxu0 %v3070
      %3140 = vmatpush.bf16.msra.mxu0 %v3068
      %3141 = vmatpush.bf16.msra.mxu0 %v3066
      %3142 = vmatpush.bf16.msra.mxu0 %v3064
      %3143 = vmatmul.bf16.gmra.mxu0 %v2935
      %v3144 = vpop.f32.mrf.mxu0
      %v3145 = vadd.f32 0.0, %v3144
      %v3146 = vpop.f32.mrf.mxu0
      %v3147 = vadd.f32 0.0, %v3146
      %3148 = vdwg.mxu0
      %3149 = vmatpush.bf16.msra.mxu0 %v3094
      %3150 = vmatpush.bf16.msra.mxu0 %v3092
      %3151 = vmatpush.bf16.msra.mxu0 %v3090
      %3152 = vmatpush.bf16.msra.mxu0 %v3088
      %3153 = vmatpush.bf16.msra.mxu0 %v3086
      %3154 = vmatpush.bf16.msra.mxu0 %v3084
      %3155 = vmatpush.bf16.msra.mxu0 %v3082
      %3156 = vmatpush.bf16.msra.mxu0 %v3080
      %3157 = vmatmul.bf16.gmra.mxu0 %v2947
      %v3158 = vpop.f32.mrf.mxu0
      %v3159 = vadd.f32 %v3145, %v3158
      %v3160 = vpop.f32.mrf.mxu0
      %v3161 = vadd.f32 %v3147, %v3160
      %3162 = vdwg.mxu0
      %3163 = vmatpush.bf16.msra.mxu0 0
      %3164 = vmatpush.bf16.msra.mxu0 0
      %3165 = vmatpush.bf16.msra.mxu0 0
      %3166 = vmatpush.bf16.msra.mxu0 0
      %3167 = vmatpush.bf16.msra.mxu0 0
      %3168 = vmatpush.bf16.msra.mxu0 0
      %3169 = vmatpush.bf16.msra.mxu0 0
      %3170 = vmatpush.bf16.msra.mxu0 %v3096
      %3171 = vmatmul.bf16.gmra.mxu0 %v3133
      %v3172 = vpop.f32.mrf.mxu0
      %v3173 = vadd.f32 %v3159, %v3172
      %v3174 = vpop.f32.mrf.mxu0
      %v3175 = vadd.f32 %v3161, %v3174
      %3176 = vdwg.mxu0
      %3177 = vmatpush.bf16.msra.mxu0 %v3079
      %3178 = vmatpush.bf16.msra.mxu0 %v3077
      %3179 = vmatpush.bf16.msra.mxu0 %v3075
      %3180 = vmatpush.bf16.msra.mxu0 %v3073
      %3181 = vmatpush.bf16.msra.mxu0 %v3071
      %3182 = vmatpush.bf16.msra.mxu0 %v3069
      %3183 = vmatpush.bf16.msra.mxu0 %v3067
      %3184 = vmatpush.bf16.msra.mxu0 %v3065
      %3185 = vmatmul.bf16.gmra.mxu0 %v2935
      %v3186 = vpop.f32.mrf.mxu0
      %v3187 = vadd.f32 0.0, %v3186
      %v3188 = vpop.f32.mrf.mxu0
      %v3189 = vadd.f32 0.0, %v3188
      %3190 = vdwg.mxu0
      %3191 = vmatpush.bf16.msra.mxu0 %v3095
      %3192 = vmatpush.bf16.msra.mxu0 %v3093
      %3193 = vmatpush.bf16.msra.mxu0 %v3091
      %3194 = vmatpush.bf16.msra.mxu0 %v3089
      %3195 = vmatpush.bf16.msra.mxu0 %v3087
      %3196 = vmatpush.bf16.msra.mxu0 %v3085
      %3197 = vmatpush.bf16.msra.mxu0 %v3083
      %3198 = vmatpush.bf16.msra.mxu0 %v3081
      %3199 = vmatmul.bf16.gmra.mxu0 %v2947
      %v3200 = vpop.f32.mrf.mxu0
      %v3201 = vadd.f32 %v3187, %v3200
      %v3202 = vpop.f32.mrf.mxu0
      %v3203 = vadd.f32 %v3189, %v3202
      %3204 = vdwg.mxu0
      %3205 = vmatpush.bf16.msra.mxu0 0
      %3206 = vmatpush.bf16.msra.mxu0 0
      %3207 = vmatpush.bf16.msra.mxu0 0
      %3208 = vmatpush.bf16.msra.mxu0 0
      %3209 = vmatpush.bf16.msra.mxu0 0
      %3210 = vmatpush.bf16.msra.mxu0 0
      %3211 = vmatpush.bf16.msra.mxu0 0
      %3212 = vmatpush.bf16.msra.mxu0 %v3097
      %3213 = vmatmul.bf16.gmra.mxu0 %v3133
      %v3214 = vpop.f32.mrf.mxu0
      %v3215 = vadd.f32 %v3201, %v3214
      %v3216 = vpop.f32.mrf.mxu0
      %v3217 = vadd.f32 %v3203, %v3216
      %3218 = vdwg.mxu0
      %v3219 = vadd.f32 %v2858, %v3173
      %v3220 = vadd.f32 %v2859, %v3215
      %v3221 = vadd.f32 %v2860, %v3175
      %v3222 = vadd.f32 %v2861, %v3217
      %v3223 = vlaneseq
      %v3224 = vshrl.u32 %v3223, 7
      %v3225 = vadd.s32 %v3224, 8
      %v3226 = vadd.s32 %v3224, 16
      %v3227 = vadd.s32 %v3224, 24
      %v3228 = vadd.s32 %v3224, 32
      %v3229 = vadd.s32 %v3224, 40
      %v3230 = vadd.s32 %v3224, 48
      %v3231 = vadd.s32 %v3224, 56
      %v3232 = vadd.s32 %v3224, 64
      %v3233 = vadd.s32 %v3224, 72
      %v3234 = vadd.s32 %v3224, 80
      %v3235 = vadd.s32 %v3224, 88
      %v3236 = vadd.s32 %v3224, 96
      %v3237 = vadd.s32 %v3224, 104
      %v3238 = vadd.s32 %v3224, 112
      %v3239 = vadd.s32 %v3224, 120
      %v3240 = vadd.s32 %v3224, 128
      %v3241 = vadd.s32 %v3224, 136
      %v3242 = vadd.s32 %v3224, 144
      %v3243 = vadd.s32 %v3224, 152
      %v3244 = vadd.s32 %v3224, 160
      %v3245 = vadd.s32 %v3224, 168
      %v3246 = vadd.s32 %v3224, 176
      %v3247 = vadd.s32 %v3224, 184
      %v3248 = vadd.s32 %v3224, 192
      %v3249 = vadd.s32 %v3224, 200
      %v3250 = vadd.s32 %v3224, 208
      %v3251 = vadd.s32 %v3224, 216
      %v3252 = vadd.s32 %v3224, 224
      %v3253 = vadd.s32 %v3224, 232
      %v3254 = vadd.s32 %v3224, 240
      %v3255 = vadd.s32 %v3224, 248
      %v3256 = vlaneseq
      %v3257 = vand.u32 %v3256, 127
      %v3258 = vadd.s32 %v3257, 128
      %v3259 = vand.u32 %v3224, 15
      %v3260 = vand.u32 %v3225, 15
      %v3261 = vand.u32 %v3226, 15
      %v3262 = vand.u32 %v3227, 15
      %v3263 = vand.u32 %v3228, 15
      %v3264 = vand.u32 %v3229, 15
      %v3265 = vand.u32 %v3230, 15
      %v3266 = vand.u32 %v3231, 15
      %v3267 = vand.u32 %v3232, 15
      %v3268 = vand.u32 %v3233, 15
      %v3269 = vand.u32 %v3234, 15
      %v3270 = vand.u32 %v3235, 15
      %v3271 = vand.u32 %v3236, 15
      %v3272 = vand.u32 %v3237, 15
      %v3273 = vand.u32 %v3238, 15
      %v3274 = vand.u32 %v3239, 15
      %v3275 = vand.u32 %v3240, 15
      %v3276 = vand.u32 %v3241, 15
      %v3277 = vand.u32 %v3242, 15
      %v3278 = vand.u32 %v3243, 15
      %v3279 = vand.u32 %v3244, 15
      %v3280 = vand.u32 %v3245, 15
      %v3281 = vand.u32 %v3246, 15
      %v3282 = vand.u32 %v3247, 15
      %v3283 = vand.u32 %v3248, 15
      %v3284 = vand.u32 %v3249, 15
      %v3285 = vand.u32 %v3250, 15
      %v3286 = vand.u32 %v3251, 15
      %v3287 = vand.u32 %v3252, 15
      %v3288 = vand.u32 %v3253, 15
      %v3289 = vand.u32 %v3254, 15
      %v3290 = vand.u32 %v3255, 15
      %v3291 = vand.u32 %v3257, 15
      %v3292 = vand.u32 %v3258, 15
      %vm3293 = vcmp.eq.s32.totalorder %v3259, %v3291
      %vm3294 = vcmp.eq.s32.totalorder %v3259, %v3292
      %vm3295 = vcmp.eq.s32.totalorder %v3260, %v3291
      %vm3296 = vcmp.eq.s32.totalorder %v3260, %v3292
      %vm3297 = vcmp.eq.s32.totalorder %v3261, %v3291
      %vm3298 = vcmp.eq.s32.totalorder %v3261, %v3292
      %vm3299 = vcmp.eq.s32.totalorder %v3262, %v3291
      %vm3300 = vcmp.eq.s32.totalorder %v3262, %v3292
      %vm3301 = vcmp.eq.s32.totalorder %v3263, %v3291
      %vm3302 = vcmp.eq.s32.totalorder %v3263, %v3292
      %vm3303 = vcmp.eq.s32.totalorder %v3264, %v3291
      %vm3304 = vcmp.eq.s32.totalorder %v3264, %v3292
      %vm3305 = vcmp.eq.s32.totalorder %v3265, %v3291
      %vm3306 = vcmp.eq.s32.totalorder %v3265, %v3292
      %vm3307 = vcmp.eq.s32.totalorder %v3266, %v3291
      %vm3308 = vcmp.eq.s32.totalorder %v3266, %v3292
      %vm3309 = vcmp.eq.s32.totalorder %v3267, %v3291
      %vm3310 = vcmp.eq.s32.totalorder %v3267, %v3292
      %vm3311 = vcmp.eq.s32.totalorder %v3268, %v3291
      %vm3312 = vcmp.eq.s32.totalorder %v3268, %v3292
      %vm3313 = vcmp.eq.s32.totalorder %v3269, %v3291
      %vm3314 = vcmp.eq.s32.totalorder %v3269, %v3292
      %vm3315 = vcmp.eq.s32.totalorder %v3270, %v3291
      %vm3316 = vcmp.eq.s32.totalorder %v3270, %v3292
      %vm3317 = vcmp.eq.s32.totalorder %v3271, %v3291
      %vm3318 = vcmp.eq.s32.totalorder %v3271, %v3292
      %vm3319 = vcmp.eq.s32.totalorder %v3272, %v3291
      %vm3320 = vcmp.eq.s32.totalorder %v3272, %v3292
      %vm3321 = vcmp.eq.s32.totalorder %v3273, %v3291
      %vm3322 = vcmp.eq.s32.totalorder %v3273, %v3292
      %vm3323 = vcmp.eq.s32.totalorder %v3274, %v3291
      %vm3324 = vcmp.eq.s32.totalorder %v3274, %v3292
      %vm3325 = vcmp.eq.s32.totalorder %v3275, %v3291
      %vm3326 = vcmp.eq.s32.totalorder %v3275, %v3292
      %vm3327 = vcmp.eq.s32.totalorder %v3276, %v3291
      %vm3328 = vcmp.eq.s32.totalorder %v3276, %v3292
      %vm3329 = vcmp.eq.s32.totalorder %v3277, %v3291
      %vm3330 = vcmp.eq.s32.totalorder %v3277, %v3292
      %vm3331 = vcmp.eq.s32.totalorder %v3278, %v3291
      %vm3332 = vcmp.eq.s32.totalorder %v3278, %v3292
      %vm3333 = vcmp.eq.s32.totalorder %v3279, %v3291
      %vm3334 = vcmp.eq.s32.totalorder %v3279, %v3292
      %vm3335 = vcmp.eq.s32.totalorder %v3280, %v3291
      %vm3336 = vcmp.eq.s32.totalorder %v3280, %v3292
      %vm3337 = vcmp.eq.s32.totalorder %v3281, %v3291
      %vm3338 = vcmp.eq.s32.totalorder %v3281, %v3292
      %vm3339 = vcmp.eq.s32.totalorder %v3282, %v3291
      %vm3340 = vcmp.eq.s32.totalorder %v3282, %v3292
      %vm3341 = vcmp.eq.s32.totalorder %v3283, %v3291
      %vm3342 = vcmp.eq.s32.totalorder %v3283, %v3292
      %vm3343 = vcmp.eq.s32.totalorder %v3284, %v3291
      %vm3344 = vcmp.eq.s32.totalorder %v3284, %v3292
      %vm3345 = vcmp.eq.s32.totalorder %v3285, %v3291
      %vm3346 = vcmp.eq.s32.totalorder %v3285, %v3292
      %vm3347 = vcmp.eq.s32.totalorder %v3286, %v3291
      %vm3348 = vcmp.eq.s32.totalorder %v3286, %v3292
      %vm3349 = vcmp.eq.s32.totalorder %v3287, %v3291
      %vm3350 = vcmp.eq.s32.totalorder %v3287, %v3292
      %vm3351 = vcmp.eq.s32.totalorder %v3288, %v3291
      %vm3352 = vcmp.eq.s32.totalorder %v3288, %v3292
      %vm3353 = vcmp.eq.s32.totalorder %v3289, %v3291
      %vm3354 = vcmp.eq.s32.totalorder %v3289, %v3292
      %vm3355 = vcmp.eq.s32.totalorder %v3290, %v3291
      %vm3356 = vcmp.eq.s32.totalorder %v3290, %v3292
      %v3357 = vsel %vm3293, 1, 0
      %v3358 = vsel %vm3294, 1, 0
      %v3359 = vsel %vm3295, 1, 0
      %v3360 = vsel %vm3296, 1, 0
      %v3361 = vsel %vm3297, 1, 0
      %v3362 = vsel %vm3298, 1, 0
      %v3363 = vsel %vm3299, 1, 0
      %v3364 = vsel %vm3300, 1, 0
      %v3365 = vsel %vm3301, 1, 0
      %v3366 = vsel %vm3302, 1, 0
      %v3367 = vsel %vm3303, 1, 0
      %v3368 = vsel %vm3304, 1, 0
      %v3369 = vsel %vm3305, 1, 0
      %v3370 = vsel %vm3306, 1, 0
      %v3371 = vsel %vm3307, 1, 0
      %v3372 = vsel %vm3308, 1, 0
      %v3373 = vsel %vm3309, 1, 0
      %v3374 = vsel %vm3310, 1, 0
      %v3375 = vsel %vm3311, 1, 0
      %v3376 = vsel %vm3312, 1, 0
      %v3377 = vsel %vm3313, 1, 0
      %v3378 = vsel %vm3314, 1, 0
      %v3379 = vsel %vm3315, 1, 0
      %v3380 = vsel %vm3316, 1, 0
      %v3381 = vsel %vm3317, 1, 0
      %v3382 = vsel %vm3318, 1, 0
      %v3383 = vsel %vm3319, 1, 0
      %v3384 = vsel %vm3320, 1, 0
      %v3385 = vsel %vm3321, 1, 0
      %v3386 = vsel %vm3322, 1, 0
      %v3387 = vsel %vm3323, 1, 0
      %v3388 = vsel %vm3324, 1, 0
      %v3389 = vsel %vm3325, 1, 0
      %v3390 = vsel %vm3326, 1, 0
      %v3391 = vsel %vm3327, 1, 0
      %v3392 = vsel %vm3328, 1, 0
      %v3393 = vsel %vm3329, 1, 0
      %v3394 = vsel %vm3330, 1, 0
      %v3395 = vsel %vm3331, 1, 0
      %v3396 = vsel %vm3332, 1, 0
      %v3397 = vsel %vm3333, 1, 0
      %v3398 = vsel %vm3334, 1, 0
      %v3399 = vsel %vm3335, 1, 0
      %v3400 = vsel %vm3336, 1, 0
      %v3401 = vsel %vm3337, 1, 0
      %v3402 = vsel %vm3338, 1, 0
      %v3403 = vsel %vm3339, 1, 0
      %v3404 = vsel %vm3340, 1, 0
      %v3405 = vsel %vm3341, 1, 0
      %v3406 = vsel %vm3342, 1, 0
      %v3407 = vsel %vm3343, 1, 0
      %v3408 = vsel %vm3344, 1, 0
      %v3409 = vsel %vm3345, 1, 0
      %v3410 = vsel %vm3346, 1, 0
      %v3411 = vsel %vm3347, 1, 0
      %v3412 = vsel %vm3348, 1, 0
      %v3413 = vsel %vm3349, 1, 0
      %v3414 = vsel %vm3350, 1, 0
      %v3415 = vsel %vm3351, 1, 0
      %v3416 = vsel %vm3352, 1, 0
      %v3417 = vsel %vm3353, 1, 0
      %v3418 = vsel %vm3354, 1, 0
      %v3419 = vsel %vm3355, 1, 0
      %v3420 = vsel %vm3356, 1, 0
      %v3421 = vcvt.s32.f32 %v3357
      %v3422 = vcvt.s32.f32 %v3358
      %v3423 = vcvt.s32.f32 %v3359
      %v3424 = vcvt.s32.f32 %v3360
      %v3425 = vcvt.s32.f32 %v3361
      %v3426 = vcvt.s32.f32 %v3362
      %v3427 = vcvt.s32.f32 %v3363
      %v3428 = vcvt.s32.f32 %v3364
      %v3429 = vcvt.s32.f32 %v3365
      %v3430 = vcvt.s32.f32 %v3366
      %v3431 = vcvt.s32.f32 %v3367
      %v3432 = vcvt.s32.f32 %v3368
      %v3433 = vcvt.s32.f32 %v3369
      %v3434 = vcvt.s32.f32 %v3370
      %v3435 = vcvt.s32.f32 %v3371
      %v3436 = vcvt.s32.f32 %v3372
      %v3437 = vcvt.s32.f32 %v3373
      %v3438 = vcvt.s32.f32 %v3374
      %v3439 = vcvt.s32.f32 %v3375
      %v3440 = vcvt.s32.f32 %v3376
      %v3441 = vcvt.s32.f32 %v3377
      %v3442 = vcvt.s32.f32 %v3378
      %v3443 = vcvt.s32.f32 %v3379
      %v3444 = vcvt.s32.f32 %v3380
      %v3445 = vcvt.s32.f32 %v3381
      %v3446 = vcvt.s32.f32 %v3382
      %v3447 = vcvt.s32.f32 %v3383
      %v3448 = vcvt.s32.f32 %v3384
      %v3449 = vcvt.s32.f32 %v3385
      %v3450 = vcvt.s32.f32 %v3386
      %v3451 = vcvt.s32.f32 %v3387
      %v3452 = vcvt.s32.f32 %v3388
      %v3453 = vcvt.s32.f32 %v3389
      %v3454 = vcvt.s32.f32 %v3390
      %v3455 = vcvt.s32.f32 %v3391
      %v3456 = vcvt.s32.f32 %v3392
      %v3457 = vcvt.s32.f32 %v3393
      %v3458 = vcvt.s32.f32 %v3394
      %v3459 = vcvt.s32.f32 %v3395
      %v3460 = vcvt.s32.f32 %v3396
      %v3461 = vcvt.s32.f32 %v3397
      %v3462 = vcvt.s32.f32 %v3398
      %v3463 = vcvt.s32.f32 %v3399
      %v3464 = vcvt.s32.f32 %v3400
      %v3465 = vcvt.s32.f32 %v3401
      %v3466 = vcvt.s32.f32 %v3402
      %v3467 = vcvt.s32.f32 %v3403
      %v3468 = vcvt.s32.f32 %v3404
      %v3469 = vcvt.s32.f32 %v3405
      %v3470 = vcvt.s32.f32 %v3406
      %v3471 = vcvt.s32.f32 %v3407
      %v3472 = vcvt.s32.f32 %v3408
      %v3473 = vcvt.s32.f32 %v3409
      %v3474 = vcvt.s32.f32 %v3410
      %v3475 = vcvt.s32.f32 %v3411
      %v3476 = vcvt.s32.f32 %v3412
      %v3477 = vcvt.s32.f32 %v3413
      %v3478 = vcvt.s32.f32 %v3414
      %v3479 = vcvt.s32.f32 %v3415
      %v3480 = vcvt.s32.f32 %v3416
      %v3481 = vcvt.s32.f32 %v3417
      %v3482 = vcvt.s32.f32 %v3418
      %v3483 = vcvt.s32.f32 %v3419
      %v3484 = vcvt.s32.f32 %v3420
      %v3485 = vadd.f32 %v3219, %v3221
      %v3486 = vrot.slane %v3485, 4
      %v3487 = vadd.f32 %v3485, %v3486
      %v3488 = vrot.slane %v3487, 2
      %v3489 = vadd.f32 %v3487, %v3488
      %v3490 = vrot.slane %v3489, 1
      %v3491 = vadd.f32 %v3489, %v3490
      %v3492 = vadd.f32 %v3220, %v3222
      %v3493 = vrot.slane %v3492, 4
      %v3494 = vadd.f32 %v3492, %v3493
      %v3495 = vrot.slane %v3494, 2
      %v3496 = vadd.f32 %v3494, %v3495
      %v3497 = vrot.slane %v3496, 1
      %v3498 = vadd.f32 %v3496, %v3497
      %3499 = vmatpush.msra.mxu0 %v3451
      %3500 = vmatpush.msra.mxu0 %v3449
      %3501 = vmatpush.msra.mxu0 %v3447
      %3502 = vmatpush.msra.mxu0 %v3445
      %3503 = vmatpush.msra.mxu0 %v3443
      %3504 = vmatpush.msra.mxu0 %v3441
      %3505 = vmatpush.msra.mxu0 %v3439
      %3506 = vmatpush.msra.mxu0 %v3437
      %3507 = vmatpush.msra.mxu0 %v3435
      %3508 = vmatpush.msra.mxu0 %v3433
      %3509 = vmatpush.msra.mxu0 %v3431
      %3510 = vmatpush.msra.mxu0 %v3429
      %3511 = vmatpush.msra.mxu0 %v3427
      %3512 = vmatpush.msra.mxu0 %v3425
      %3513 = vmatpush.msra.mxu0 %v3423
      %3514 = vmatpush.msra.mxu0 %v3421
      %3515 = vmatmul.f32.gmra.mxu0 %v3491
      %v3516 = vpop.f32.mrf.mxu0
      %v3517 = vadd.f32 0.0, %v3516
      %3518 = vdwg.mxu0
      %3519 = vmatpush.msra.mxu0 %v3483
      %3520 = vmatpush.msra.mxu0 %v3481
      %3521 = vmatpush.msra.mxu0 %v3479
      %3522 = vmatpush.msra.mxu0 %v3477
      %3523 = vmatpush.msra.mxu0 %v3475
      %3524 = vmatpush.msra.mxu0 %v3473
      %3525 = vmatpush.msra.mxu0 %v3471
      %3526 = vmatpush.msra.mxu0 %v3469
      %3527 = vmatpush.msra.mxu0 %v3467
      %3528 = vmatpush.msra.mxu0 %v3465
      %3529 = vmatpush.msra.mxu0 %v3463
      %3530 = vmatpush.msra.mxu0 %v3461
      %3531 = vmatpush.msra.mxu0 %v3459
      %3532 = vmatpush.msra.mxu0 %v3457
      %3533 = vmatpush.msra.mxu0 %v3455
      %3534 = vmatpush.msra.mxu0 %v3453
      %3535 = vmatmul.f32.gmra.mxu0 %v3498
      %v3536 = vpop.f32.mrf.mxu0
      %v3537 = vadd.f32 %v3517, %v3536
      %3538 = vdwg.mxu0
      %3539 = vmatpush.msra.mxu0 %v3452
      %3540 = vmatpush.msra.mxu0 %v3450
      %3541 = vmatpush.msra.mxu0 %v3448
      %3542 = vmatpush.msra.mxu0 %v3446
      %3543 = vmatpush.msra.mxu0 %v3444
      %3544 = vmatpush.msra.mxu0 %v3442
      %3545 = vmatpush.msra.mxu0 %v3440
      %3546 = vmatpush.msra.mxu0 %v3438
      %3547 = vmatpush.msra.mxu0 %v3436
      %3548 = vmatpush.msra.mxu0 %v3434
      %3549 = vmatpush.msra.mxu0 %v3432
      %3550 = vmatpush.msra.mxu0 %v3430
      %3551 = vmatpush.msra.mxu0 %v3428
      %3552 = vmatpush.msra.mxu0 %v3426
      %3553 = vmatpush.msra.mxu0 %v3424
      %3554 = vmatpush.msra.mxu0 %v3422
      %3555 = vmatmul.f32.gmra.mxu0 %v3491
      %v3556 = vpop.f32.mrf.mxu0
      %v3557 = vadd.f32 0.0, %v3556
      %3558 = vdwg.mxu0
      %3559 = vmatpush.msra.mxu0 %v3484
      %3560 = vmatpush.msra.mxu0 %v3482
      %3561 = vmatpush.msra.mxu0 %v3480
      %3562 = vmatpush.msra.mxu0 %v3478
      %3563 = vmatpush.msra.mxu0 %v3476
      %3564 = vmatpush.msra.mxu0 %v3474
      %3565 = vmatpush.msra.mxu0 %v3472
      %3566 = vmatpush.msra.mxu0 %v3470
      %3567 = vmatpush.msra.mxu0 %v3468
      %3568 = vmatpush.msra.mxu0 %v3466
      %3569 = vmatpush.msra.mxu0 %v3464
      %3570 = vmatpush.msra.mxu0 %v3462
      %3571 = vmatpush.msra.mxu0 %v3460
      %3572 = vmatpush.msra.mxu0 %v3458
      %3573 = vmatpush.msra.mxu0 %v3456
      %3574 = vmatpush.msra.mxu0 %v3454
      %3575 = vmatmul.f32.gmra.mxu0 %v3498
      %v3576 = vpop.f32.mrf.mxu0
      %v3577 = vadd.f32 %v3557, %v3576
      %3578 = vdwg.mxu0
      %v3579 = vmul.f32 %v3537, 0.00390625
      %v3580 = vmul.f32 %v3577, 0.00390625
      %v3581 = vperm.slane %v3579, 0
      %v3582 = vperm.slane %v3580, 0
      %v3583 = vsub.f32 %v3219, %v3581
      %v3584 = vsub.f32 %v3220, %v3582
      %v3585 = vsub.f32 %v3221, %v3581
      %v3586 = vsub.f32 %v3222, %v3582
      %v3587 = vmul.f32 %v3583, %v3583
      %v3588 = vmul.f32 %v3584, %v3584
      %v3589 = vmul.f32 %v3585, %v3585
      %v3590 = vmul.f32 %v3586, %v3586
      %v3591 = vadd.f32 %v3587, %v3589
      %v3592 = vrot.slane %v3591, 4
      %v3593 = vadd.f32 %v3591, %v3592
      %v3594 = vrot.slane %v3593, 2
      %v3595 = vadd.f32 %v3593, %v3594
      %v3596 = vrot.slane %v3595, 1
      %v3597 = vadd.f32 %v3595, %v3596
      %v3598 = vadd.f32 %v3588, %v3590
      %v3599 = vrot.slane %v3598, 4
      %v3600 = vadd.f32 %v3598, %v3599
      %v3601 = vrot.slane %v3600, 2
      %v3602 = vadd.f32 %v3600, %v3601
      %v3603 = vrot.slane %v3602, 1
      %v3604 = vadd.f32 %v3602, %v3603
      %3605 = vmatpush.msra.mxu0 %v3451
      %3606 = vmatpush.msra.mxu0 %v3449
      %3607 = vmatpush.msra.mxu0 %v3447
      %3608 = vmatpush.msra.mxu0 %v3445
      %3609 = vmatpush.msra.mxu0 %v3443
      %3610 = vmatpush.msra.mxu0 %v3441
      %3611 = vmatpush.msra.mxu0 %v3439
      %3612 = vmatpush.msra.mxu0 %v3437
      %3613 = vmatpush.msra.mxu0 %v3435
      %3614 = vmatpush.msra.mxu0 %v3433
      %3615 = vmatpush.msra.mxu0 %v3431
      %3616 = vmatpush.msra.mxu0 %v3429
      %3617 = vmatpush.msra.mxu0 %v3427
      %3618 = vmatpush.msra.mxu0 %v3425
      %3619 = vmatpush.msra.mxu0 %v3423
      %3620 = vmatpush.msra.mxu0 %v3421
      %3621 = vmatmul.f32.gmra.mxu0 %v3597
      %v3622 = vpop.f32.mrf.mxu0
      %v3623 = vadd.f32 0.0, %v3622
      %3624 = vdwg.mxu0
      %3625 = vmatpush.msra.mxu0 %v3483
      %3626 = vmatpush.msra.mxu0 %v3481
      %3627 = vmatpush.msra.mxu0 %v3479
      %3628 = vmatpush.msra.mxu0 %v3477
      %3629 = vmatpush.msra.mxu0 %v3475
      %3630 = vmatpush.msra.mxu0 %v3473
      %3631 = vmatpush.msra.mxu0 %v3471
      %3632 = vmatpush.msra.mxu0 %v3469
      %3633 = vmatpush.msra.mxu0 %v3467
      %3634 = vmatpush.msra.mxu0 %v3465
      %3635 = vmatpush.msra.mxu0 %v3463
      %3636 = vmatpush.msra.mxu0 %v3461
      %3637 = vmatpush.msra.mxu0 %v3459
      %3638 = vmatpush.msra.mxu0 %v3457
      %3639 = vmatpush.msra.mxu0 %v3455
      %3640 = vmatpush.msra.mxu0 %v3453
      %3641 = vmatmul.f32.gmra.mxu0 %v3604
      %v3642 = vpop.f32.mrf.mxu0
      %v3643 = vadd.f32 %v3623, %v3642
      %3644 = vdwg.mxu0
      %3645 = vmatpush.msra.mxu0 %v3452
      %3646 = vmatpush.msra.mxu0 %v3450
      %3647 = vmatpush.msra.mxu0 %v3448
      %3648 = vmatpush.msra.mxu0 %v3446
      %3649 = vmatpush.msra.mxu0 %v3444
      %3650 = vmatpush.msra.mxu0 %v3442
      %3651 = vmatpush.msra.mxu0 %v3440
      %3652 = vmatpush.msra.mxu0 %v3438
      %3653 = vmatpush.msra.mxu0 %v3436
      %3654 = vmatpush.msra.mxu0 %v3434
      %3655 = vmatpush.msra.mxu0 %v3432
      %3656 = vmatpush.msra.mxu0 %v3430
      %3657 = vmatpush.msra.mxu0 %v3428
      %3658 = vmatpush.msra.mxu0 %v3426
      %3659 = vmatpush.msra.mxu0 %v3424
      %3660 = vmatpush.msra.mxu0 %v3422
      %3661 = vmatmul.f32.gmra.mxu0 %v3597
      %v3662 = vpop.f32.mrf.mxu0
      %v3663 = vadd.f32 0.0, %v3662
      %3664 = vdwg.mxu0
      %3665 = vmatpush.msra.mxu0 %v3484
      %3666 = vmatpush.msra.mxu0 %v3482
      %3667 = vmatpush.msra.mxu0 %v3480
      %3668 = vmatpush.msra.mxu0 %v3478
      %3669 = vmatpush.msra.mxu0 %v3476
      %3670 = vmatpush.msra.mxu0 %v3474
      %3671 = vmatpush.msra.mxu0 %v3472
      %3672 = vmatpush.msra.mxu0 %v3470
      %3673 = vmatpush.msra.mxu0 %v3468
      %3674 = vmatpush.msra.mxu0 %v3466
      %3675 = vmatpush.msra.mxu0 %v3464
      %3676 = vmatpush.msra.mxu0 %v3462
      %3677 = vmatpush.msra.mxu0 %v3460
      %3678 = vmatpush.msra.mxu0 %v3458
      %3679 = vmatpush.msra.mxu0 %v3456
      %3680 = vmatpush.msra.mxu0 %v3454
      %3681 = vmatmul.f32.gmra.mxu0 %v3604
      %v3682 = vpop.f32.mrf.mxu0
      %v3683 = vadd.f32 %v3663, %v3682
      %3684 = vdwg.mxu0
      %v3685 = vmul.f32 %v3643, 0.00390625
      %v3686 = vmul.f32 %v3683, 0.00390625
      %v3687 = vadd.f32 %v3685, 1e-05
      %v3688 = vadd.f32 %v3686, 1e-05
      %v3689 = vrsqrt.pop %v3687
      %v3690 = vmul.f32 %v3689, %v3687
      %v3691 = vmul.f32 %v3690, %v3689
      %v3692 = vmul.f32 0.5, %v3691
      %v3693 = vsub.f32 1.5, %v3692
      %v3694 = vmul.f32 %v3689, %v3693
      %vm3695 = vweird.f32 %v3687
      %vm3696 = vweird.f32 %v3689
      %vm3697 = vmor %vm3695, %vm3696
      %v3698 = vsel %vm3697, %v3689, %v3694
      %v3699 = vrsqrt.pop %v3688
      %v3700 = vmul.f32 %v3699, %v3688
      %v3701 = vmul.f32 %v3700, %v3699
      %v3702 = vmul.f32 0.5, %v3701
      %v3703 = vsub.f32 1.5, %v3702
      %v3704 = vmul.f32 %v3699, %v3703
      %vm3705 = vweird.f32 %v3688
      %vm3706 = vweird.f32 %v3699
      %vm3707 = vmor %vm3705, %vm3706
      %v3708 = vsel %vm3707, %v3699, %v3704
      %v3709 = vperm.slane %v3698, 0
      %v3710 = vperm.slane %v3708, 0
      %v3711 = vmul.f32 %v3583, %v3709
      %v3712 = vmul.f32 %v3584, %v3710
      %v3713 = vmul.f32 %v3585, %v3709
      %v3714 = vmul.f32 %v3586, %v3710
      %v3715 = vld [vmem:[%s5] sm:$0x3]
      %v3717 = vperm.slane %v3715, 0
      %v3718 = vperm.slane %v3715, 1
      %v3721 = vmul.f32 %v3711, %v3717
      %v3722 = vmul.f32 %v3712, %v3718
      %v3723 = vmul.f32 %v3713, %v3717
      %v3724 = vmul.f32 %v3714, %v3718
      %v3725 = vld [vmem:[%s6] sm:$0x3]
      %v3727 = vperm.slane %v3725, 0
      %v3728 = vperm.slane %v3725, 1
      %v3731 = vadd.f32 %v3721, %v3727
      %v3732 = vadd.f32 %v3722, %v3728
      %v3733 = vadd.f32 %v3723, %v3727
      %v3734 = vadd.f32 %v3724, %v3728
      %vm3735 = vcmp.gt.f32.partialorder %v3731, 0.0
      %vm3736 = vcmp.gt.f32.partialorder %v3732, 0.0
      %vm3737 = vcmp.gt.f32.partialorder %v3733, 0.0
      %vm3738 = vcmp.gt.f32.partialorder %v3734, 0.0
      %v3739 = vmul.f32 %v3731, 0.2
      %v3740 = vmul.f32 %v3732, 0.2
      %v3741 = vmul.f32 %v3733, 0.2
      %v3742 = vmul.f32 %v3734, 0.2
      %v3743 = vsel %vm3735, %v3731, %v3739
      %v3744 = vsel %vm3736, %v3732, %v3740
      %v3745 = vsel %vm3737, %v3733, %v3741
      %v3746 = vsel %vm3738, %v3734, %v3742
      %3747 = vst [vmem:[#allocation3] sm:$0xff] 0
      %vm3748 = vcmask 257024
      %3749 = vst.msk [vmem:[#allocation3 + $0x8] sm:$0xf] %vm3748, 0
      %v3750 = vld [vmem:[#allocation3 + $0xc] sm:$0x11]
      %v3751 = vsel %vm1641, 0, %v3750
      %3752 = vst [vmem:[#allocation3 + $0xc] sm:$0x11] %v3751
      %vm3753 = vcmask 253952
      %vm3754 = vmand %vm3753, %vm1636
      %v3755 = vld [vmem:[#allocation3 + $0x14] sm:$0x1]
      %v3756 = vsel %vm3754, 0, %v3755
      %3757 = vst [vmem:[#allocation3 + $0x14] sm:$0x1] %v3756
      %3758 = vst [vmem:[#allocation3 + $0x18] sm:$0xff] 0
      %3759 = vst.msk [vmem:[#allocation3 + $0x20] sm:$0xf] %vm3748, 0
      %v3760 = vld [vmem:[#allocation3 + $0x24] sm:$0x11]
      %v3761 = vsel %vm1641, 0, %v3760
      %3762 = vst [vmem:[#allocation3 + $0x24] sm:$0x11] %v3761
      %v3763 = vld [vmem:[#allocation3 + $0x2c] sm:$0x1]
      %v3764 = vsel %vm3754, 0, %v3763
      %3765 = vst [vmem:[#allocation3 + $0x2c] sm:$0x1] %v3764
      %v3766 = vpack.c.bf16 %v3744, %v3743
      %s3767 = scalar_lea.vmem [#allocation3], 24
      %v3768 = vld [vmem:[%s3767] sm:$0x11]
      %v3769 = vsel %vm1641, %v3766, %v3768
      %3770 = vst [vmem:[%s3767] sm:$0x11] %v3769
      %v3771 = vld [vmem:[#allocation3] sm:$0x11]
      %v3772 = vsel %vm1669, %v3766, %v3771
      %3773 = vst [vmem:[#allocation3] sm:$0x11] %v3772
      %v3775 = vshll.u32 %v3766, 16
      %v3777 = vrot.slane %v3775, 5
      %v3778 = vrot.slane %v3777, 4
      %v3780 = vld [vmem:[%s3767] sm:$0x11]
      %v3781 = vsel %vm1669, %v3778, %v3780
      %3782 = vst [vmem:[%s3767] sm:$0x11] %v3781
      %v3783 = vshrl.u32 %v3766, 16
      %v3785 = vrot.slane %v3783, 4
      %v3786 = vrot.slane %v3785, 4
      %v3788 = vld [vmem:[#allocation3] sm:$0x22]
      %v3789 = vsel %vm1693, %v3786, %v3788
      %3790 = vst [vmem:[#allocation3] sm:$0x22] %v3789
      %v3792 = vrot.slane %v3766, 5
      %v3793 = vrot.slane %v3792, 4
      %v3795 = vld [vmem:[%s3767] sm:$0x22]
      %v3796 = vsel %vm1693, %v3793, %v3795
      %3797 = vst [vmem:[%s3767] sm:$0x22] %v3796
      %v3798 = vld [vmem:[#allocation3] sm:$0x22]
      %v3799 = vsel %vm1708, %v3793, %v3798
      %3800 = vst [vmem:[#allocation3] sm:$0x22] %v3799
      %v3801 = vrot.slane %v3775, 6
      %v3802 = vrot.slane %v3801, 4
      %v3804 = vld [vmem:[%s3767] sm:$0x22]
      %v3805 = vsel %vm1708, %v3802, %v3804
      %3806 = vst [vmem:[%s3767] sm:$0x22] %v3805
      %v3807 = vrot.slane %v3783, 5
      %v3808 = vrot.slane %v3807, 4
      %v3810 = vld [vmem:[#allocation3] sm:$0x44]
      %v3811 = vsel %vm1727, %v3808, %v3810
      %3812 = vst [vmem:[#allocation3] sm:$0x44] %v3811
      %v3813 = vpack.c.bf16 %v3746, %v3745
      %v3815 = vrot.slane %v3813, 6
      %v3817 = vld [vmem:[%s3767] sm:$0x44]
      %v3818 = vsel %vm1727, %v3815, %v3817
      %3819 = vst [vmem:[%s3767] sm:$0x44] %v3818
      %v3820 = vld [vmem:[#allocation3] sm:$0x44]
      %v3821 = vsel %vm1742, %v3815, %v3820
      %3822 = vst [vmem:[#allocation3] sm:$0x44] %v3821
      %v3824 = vshll.u32 %v3813, 16
      %v3826 = vrot.slane %v3824, 7
      %v3828 = vld [vmem:[%s3767] sm:$0x44]
      %v3829 = vsel %vm1742, %v3826, %v3828
      %3830 = vst [vmem:[%s3767] sm:$0x44] %v3829
      %v3831 = vshrl.u32 %v3813, 16
      %v3833 = vrot.slane %v3831, 6
      %v3835 = vld [vmem:[#allocation3] sm:$0x88]
      %v3836 = vsel %vm1763, %v3833, %v3835
      %3837 = vst [vmem:[#allocation3] sm:$0x88] %v3836
      %v3838 = vrot.slane %v3813, 7
      %v3840 = vld [vmem:[%s3767] sm:$0x88]
      %v3841 = vsel %vm1763, %v3838, %v3840
      %3842 = vst [vmem:[%s3767] sm:$0x88] %v3841
      %v3843 = vld [vmem:[#allocation3] sm:$0x88]
      %v3844 = vsel %vm1776, %v3838, %v3843
      %3845 = vst [vmem:[#allocation3] sm:$0x88] %v3844
      %v3847 = vld [vmem:[%s3767] sm:$0x88]
      %v3848 = vsel %vm1776, %v3824, %v3847
      %3849 = vst [vmem:[%s3767] sm:$0x88] %v3848
      %v3850 = vrot.slane %v3831, 7
      %v3851 = vrot.slane %v3850, 4
      %v3853 = vld [vmem:[#allocation3 + $0xc] sm:$0x11]
      %v3854 = vsel %vm1641, %v3851, %v3853
      %3855 = vst [vmem:[#allocation3 + $0xc] sm:$0x11] %v3854
      %v3856 = vld [vmem:[#allocation3] sm:$0xff]
      %v3857 = vld [vmem:[#allocation3 + $0x8] sm:$0xf]
      %v3858 = vld [vmem:[%s3] sm:$0xff]
      %v3859 = vld [vmem:[%s3 + $0x8] sm:$0xff]
      %v3860 = vld [vmem:[%s3 + $0x10] sm:$0xff]
      %v3861 = vld [vmem:[%s3 + $0x18] sm:$0xff]
      %v3862 = vld [vmem:[%s3 + $0x20] sm:$0xff]
      %v3863 = vld [vmem:[%s3 + $0x28] sm:$0xff]
      %v3864 = vld [vmem:[%s3 + $0x30] sm:$0xff]
      %v3865 = vld [vmem:[%s3 + $0x38] sm:$0xff]
      %v3866 = vld [vmem:[%s3 + $0x40] sm:$0xff]
      %v3867 = vld [vmem:[%s3 + $0x48] sm:$0xff]
      %v3868 = vld [vmem:[%s3 + $0x50] sm:$0xff]
      %v3869 = vld [vmem:[%s3 + $0x58] sm:$0xff]
      %v3870 = vld [vmem:[%s3 + $0x60] sm:$0xff]
      %v3871 = vld [vmem:[%s3 + $0x68] sm:$0xff]
      %v3872 = vld [vmem:[%s3 + $0x70] sm:$0xff]
      %v3873 = vld [vmem:[%s3 + $0x78] sm:$0xff]
      %v3874 = vld [vmem:[%s3 + $0x80] sm:$0xff]
      %v3875 = vld [vmem:[%s3 + $0x88] sm:$0xff]
      %v3876 = vld [vmem:[%s3 + $0x90] sm:$0xff]
      %v3877 = vld [vmem:[%s3 + $0x98] sm:$0xff]
      %v3878 = vld [vmem:[%s3 + $0xa0] sm:$0xff]
      %v3879 = vld [vmem:[%s3 + $0xa8] sm:$0xff]
      %v3880 = vld [vmem:[%s3 + $0xb0] sm:$0xff]
      %v3881 = vld [vmem:[%s3 + $0xb8] sm:$0xff]
      %v3882 = vld [vmem:[%s3 + $0xc0] sm:$0xff]
      %v3883 = vld [vmem:[%s3 + $0xc8] sm:$0xff]
      %v3884 = vld [vmem:[%s3 + $0xd0] sm:$0xff]
      %v3885 = vld [vmem:[%s3 + $0xd8] sm:$0xff]
      %v3886 = vld [vmem:[%s3 + $0xe0] sm:$0xff]
      %v3887 = vld [vmem:[%s3 + $0xe8] sm:$0xff]
      %v3888 = vld [vmem:[%s3 + $0xf0] sm:$0xff]
      %v3889 = vld [vmem:[%s3 + $0xf8] sm:$0xff]
      %v3890 = vld [vmem:[%s3 + $0x100] sm:$0xff]
      %v3891 = vld [vmem:[%s3 + $0x108] sm:$0xff]
      %v3892 = vld [vmem:[%s3 + $0x110] sm:$0xff]
      %v3893 = vld [vmem:[%s3 + $0x118] sm:$0xff]
      %v3894 = vld [vmem:[%s3767] sm:$0xff]
      %v3895 = vld [vmem:[%s3767 + $0x8] sm:$0xf]
      %s3896 = scalar_lea.vmem %s3, 288
      %v3897 = vld [vmem:[%s3896] sm:$0xff]
      %v3898 = vld [vmem:[%s3896 + $0x8] sm:$0xff]
      %v3899 = vld [vmem:[%s3896 + $0x10] sm:$0xff]
      %v3900 = vld [vmem:[%s3896 + $0x18] sm:$0xff]
      %v3901 = vld [vmem:[%s3896 + $0x20] sm:$0xff]
      %v3902 = vld [vmem:[%s3896 + $0x28] sm:$0xff]
      %v3903 = vld [vmem:[%s3896 + $0x30] sm:$0xff]
      %v3904 = vld [vmem:[%s3896 + $0x38] sm:$0xff]
      %v3905 = vld [vmem:[%s3896 + $0x40] sm:$0xff]
      %v3906 = vld [vmem:[%s3896 + $0x48] sm:$0xff]
      %v3907 = vld [vmem:[%s3896 + $0x50] sm:$0xff]
      %v3908 = vld [vmem:[%s3896 + $0x58] sm:$0xff]
      %v3909 = vld [vmem:[%s3896 + $0x60] sm:$0xff]
      %v3910 = vld [vmem:[%s3896 + $0x68] sm:$0xff]
      %v3911 = vld [vmem:[%s3896 + $0x70] sm:$0xff]
      %v3912 = vld [vmem:[%s3896 + $0x78] sm:$0xff]
      %v3913 = vld [vmem:[%s3896 + $0x80] sm:$0xff]
      %v3914 = vld [vmem:[%s3896 + $0x88] sm:$0xff]
      %v3915 = vld [vmem:[%s3896 + $0x90] sm:$0xff]
      %v3916 = vld [vmem:[%s3896 + $0x98] sm:$0xff]
      %v3917 = vld [vmem:[%s3896 + $0xa0] sm:$0xff]
      %v3918 = vld [vmem:[%s3896 + $0xa8] sm:$0xff]
      %v3919 = vld [vmem:[%s3896 + $0xb0] sm:$0xff]
      %v3920 = vld [vmem:[%s3896 + $0xb8] sm:$0xff]
      %v3921 = vld [vmem:[%s3896 + $0xc0] sm:$0xff]
      %v3922 = vld [vmem:[%s3896 + $0xc8] sm:$0xff]
      %v3923 = vld [vmem:[%s3896 + $0xd0] sm:$0xff]
      %v3924 = vld [vmem:[%s3896 + $0xd8] sm:$0xff]
      %v3925 = vld [vmem:[%s3896 + $0xe0] sm:$0xff]
      %v3926 = vld [vmem:[%s3896 + $0xe8] sm:$0xff]
      %v3927 = vld [vmem:[%s3896 + $0xf0] sm:$0xff]
      %v3928 = vld [vmem:[%s3896 + $0xf8] sm:$0xff]
      %v3929 = vld [vmem:[%s3896 + $0x100] sm:$0xff]
      %v3930 = vld [vmem:[%s3896 + $0x108] sm:$0xff]
      %v3931 = vld [vmem:[%s3896 + $0x110] sm:$0xff]
      %v3932 = vld [vmem:[%s3896 + $0x118] sm:$0xff]
      %v3935 = vunpack.c.l.b16 %v3894
      %v3936 = vunpack.c.h.b16 %v3894
      %v3937 = vunpack.c.l.b16 %v3895
      %v3938 = vpack.c.b16 %v3935, %v3935
      %v3939 = vpack.c.b16 %v3936, %v3936
      %v3940 = vpack.c.b16 %v3937, %v3937
      %v3979 = vunpack.c.l.b16 %v3897
      %v3980 = vunpack.c.h.b16 %v3897
      %v3981 = vunpack.c.l.b16 %v3898
      %v3982 = vunpack.c.h.b16 %v3898
      %v3983 = vunpack.c.l.b16 %v3899
      %v3984 = vunpack.c.h.b16 %v3899
      %v3985 = vunpack.c.l.b16 %v3900
      %v3986 = vunpack.c.h.b16 %v3900
      %v3987 = vunpack.c.l.b16 %v3901
      %v3988 = vunpack.c.h.b16 %v3901
      %v3989 = vunpack.c.l.b16 %v3902
      %v3990 = vunpack.c.h.b16 %v3902
      %v3991 = vunpack.c.l.b16 %v3903
      %v3992 = vunpack.c.h.b16 %v3903
      %v3993 = vunpack.c.l.b16 %v3904
      %v3994 = vunpack.c.h.b16 %v3904
      %v3995 = vunpack.c.l.b16 %v3905
      %v3996 = vunpack.c.h.b16 %v3905
      %v3997 = vunpack.c.l.b16 %v3906
      %v3998 = vunpack.c.h.b16 %v3906
      %v3999 = vunpack.c.l.b16 %v3907
      %v4000 = vunpack.c.h.b16 %v3907
      %v4001 = vunpack.c.l.b16 %v3908
      %v4002 = vunpack.c.h.b16 %v3908
      %v4003 = vunpack.c.l.b16 %v3909
      %v4004 = vunpack.c.h.b16 %v3909
      %v4005 = vunpack.c.l.b16 %v3910
      %v4006 = vunpack.c.h.b16 %v3910
      %v4007 = vunpack.c.l.b16 %v3911
      %v4008 = vunpack.c.h.b16 %v3911
      %v4009 = vunpack.c.l.b16 %v3912
      %v4010 = vunpack.c.h.b16 %v3912
      %v4011 = vunpack.c.l.b16 %v3913
      %v4012 = vunpack.c.h.b16 %v3913
      %v4013 = vunpack.c.l.b16 %v3914
      %v4014 = vunpack.c.h.b16 %v3914
      %v4015 = vunpack.c.l.b16 %v3915
      %v4016 = vunpack.c.h.b16 %v3915
      %v4017 = vunpack.c.l.b16 %v3916
      %v4018 = vunpack.c.h.b16 %v3916
      %v4019 = vunpack.c.l.b16 %v3917
      %v4020 = vunpack.c.h.b16 %v3917
      %v4021 = vunpack.c.l.b16 %v3918
      %v4022 = vunpack.c.h.b16 %v3918
      %v4023 = vunpack.c.l.b16 %v3919
      %v4024 = vunpack.c.h.b16 %v3919
      %v4025 = vunpack.c.l.b16 %v3920
      %v4026 = vunpack.c.h.b16 %v3920
      %v4027 = vunpack.c.l.b16 %v3921
      %v4028 = vunpack.c.h.b16 %v3921
      %v4029 = vunpack.c.l.b16 %v3922
      %v4030 = vunpack.c.h.b16 %v3922
      %v4031 = vunpack.c.l.b16 %v3923
      %v4032 = vunpack.c.h.b16 %v3923
      %v4033 = vunpack.c.l.b16 %v3924
      %v4034 = vunpack.c.h.b16 %v3924
      %v4035 = vunpack.c.l.b16 %v3925
      %v4036 = vunpack.c.h.b16 %v3925
      %v4037 = vunpack.c.l.b16 %v3926
      %v4038 = vunpack.c.h.b16 %v3926
      %v4039 = vunpack.c.l.b16 %v3927
      %v4040 = vunpack.c.h.b16 %v3927
      %v4041 = vunpack.c.l.b16 %v3928
      %v4042 = vunpack.c.h.b16 %v3928
      %v4043 = vunpack.c.l.b16 %v3929
      %v4044 = vunpack.c.h.b16 %v3929
      %v4045 = vunpack.c.l.b16 %v3930
      %v4046 = vunpack.c.h.b16 %v3930
      %v4047 = vunpack.c.l.b16 %v3931
      %v4048 = vunpack.c.h.b16 %v3931
      %v4049 = vunpack.c.l.b16 %v3932
      %v4050 = vunpack.c.h.b16 %v3932
      %v4051 = vpack.c.b16 %v3981, %v3979
      %v4052 = vpack.c.b16 %v3982, %v3980
      %v4053 = vpack.c.b16 %v3985, %v3983
      %v4054 = vpack.c.b16 %v3986, %v3984
      %v4055 = vpack.c.b16 %v3989, %v3987
      %v4056 = vpack.c.b16 %v3990, %v3988
      %v4057 = vpack.c.b16 %v3993, %v3991
      %v4058 = vpack.c.b16 %v3994, %v3992
      %v4059 = vpack.c.b16 %v3997, %v3995
      %v4060 = vpack.c.b16 %v3998, %v3996
      %v4061 = vpack.c.b16 %v4001, %v3999
      %v4062 = vpack.c.b16 %v4002, %v4000
      %v4063 = vpack.c.b16 %v4005, %v4003
      %v4064 = vpack.c.b16 %v4006, %v4004
      %v4065 = vpack.c.b16 %v4009, %v4007
      %v4066 = vpack.c.b16 %v4010, %v4008
      %v4067 = vpack.c.b16 %v4013, %v4011
      %v4068 = vpack.c.b16 %v4014, %v4012
      %v4069 = vpack.c.b16 %v4017, %v4015
      %v4070 = vpack.c.b16 %v4018, %v4016
      %v4071 = vpack.c.b16 %v4021, %v4019
      %v4072 = vpack.c.b16 %v4022, %v4020
      %v4073 = vpack.c.b16 %v4025, %v4023
      %v4074 = vpack.c.b16 %v4026, %v4024
      %v4075 = vpack.c.b16 %v4029, %v4027
      %v4076 = vpack.c.b16 %v4030, %v4028
      %v4077 = vpack.c.b16 %v4033, %v4031
      %v4078 = vpack.c.b16 %v4034, %v4032
      %v4079 = vpack.c.b16 %v4037, %v4035
      %v4080 = vpack.c.b16 %v4038, %v4036
      %v4081 = vpack.c.b16 %v4041, %v4039
      %v4082 = vpack.c.b16 %v4042, %v4040
      %v4083 = vpack.c.b16 %v4045, %v4043
      %v4084 = vpack.c.b16 %v4046, %v4044
      %v4085 = vpack.c.b16 %v4049, %v4047
      %v4086 = vpack.c.b16 %v4050, %v4048
      %vm4123 = vcmask 261120
      %v4125 = vsel %vm4123, %v3940, 0
      %4127 = vmatpush.bf16.msra.mxu0 %v4065
      %4128 = vmatpush.bf16.msra.mxu0 %v4063
      %4129 = vmatpush.bf16.msra.mxu0 %v4061
      %4130 = vmatpush.bf16.msra.mxu0 %v4059
      %4131 = vmatpush.bf16.msra.mxu0 %v4057
      %4132 = vmatpush.bf16.msra.mxu0 %v4055
      %4133 = vmatpush.bf16.msra.mxu0 %v4053
      %4134 = vmatpush.bf16.msra.mxu0 %v4051
      %4135 = vmatmul.bf16.gmra.mxu0 %v3938
      %v4136 = vpop.f32.mrf.mxu0
      %v4137 = vadd.f32 0.0, %v4136
      %v4138 = vpop.f32.mrf.mxu0
      %4139 = vdwg.mxu0
      %4140 = vmatpush.bf16.msra.mxu0 %v4081
      %4141 = vmatpush.bf16.msra.mxu0 %v4079
      %4142 = vmatpush.bf16.msra.mxu0 %v4077
      %4143 = vmatpush.bf16.msra.mxu0 %v4075
      %4144 = vmatpush.bf16.msra.mxu0 %v4073
      %4145 = vmatpush.bf16.msra.mxu0 %v4071
      %4146 = vmatpush.bf16.msra.mxu0 %v4069
      %4147 = vmatpush.bf16.msra.mxu0 %v4067
      %4148 = vmatmul.bf16.gmra.mxu0 %v3939
      %v4149 = vpop.f32.mrf.mxu0
      %v4150 = vadd.f32 %v4137, %v4149
      %v4151 = vpop.f32.mrf.mxu0
      %4152 = vdwg.mxu0
      %4153 = vmatpush.bf16.msra.mxu0 0
      %4154 = vmatpush.bf16.msra.mxu0 0
      %4155 = vmatpush.bf16.msra.mxu0 0
      %4156 = vmatpush.bf16.msra.mxu0 0
      %4157 = vmatpush.bf16.msra.mxu0 0
      %4158 = vmatpush.bf16.msra.mxu0 0
      %4159 = vmatpush.bf16.msra.mxu0 %v4085
      %4160 = vmatpush.bf16.msra.mxu0 %v4083
      %4161 = vmatmul.bf16.gmra.mxu0 %v4125
      %v4162 = vpop.f32.mrf.mxu0
      %v4163 = vadd.f32 %v4150, %v4162
      %v4164 = vpop.f32.mrf.mxu0
      %4165 = vdwg.mxu0
      %4166 = vmatpush.bf16.msra.mxu0 %v4066
      %4167 = vmatpush.bf16.msra.mxu0 %v4064
      %4168 = vmatpush.bf16.msra.mxu0 %v4062
      %4169 = vmatpush.bf16.msra.mxu0 %v4060
      %4170 = vmatpush.bf16.msra.mxu0 %v4058
      %4171 = vmatpush.bf16.msra.mxu0 %v4056
      %4172 = vmatpush.bf16.msra.mxu0 %v4054
      %4173 = vmatpush.bf16.msra.mxu0 %v4052
      %4174 = vmatmul.bf16.gmra.mxu0 %v3938
      %v4175 = vpop.f32.mrf.mxu0
      %v4176 = vadd.f32 0.0, %v4175
      %v4177 = vpop.f32.mrf.mxu0
      %4178 = vdwg.mxu0
      %4179 = vmatpush.bf16.msra.mxu0 %v4082
      %4180 = vmatpush.bf16.msra.mxu0 %v4080
      %4181 = vmatpush.bf16.msra.mxu0 %v4078
      %4182 = vmatpush.bf16.msra.mxu0 %v4076
      %4183 = vmatpush.bf16.msra.mxu0 %v4074
      %4184 = vmatpush.bf16.msra.mxu0 %v4072
      %4185 = vmatpush.bf16.msra.mxu0 %v4070
      %4186 = vmatpush.bf16.msra.mxu0 %v4068
      %4187 = vmatmul.bf16.gmra.mxu0 %v3939
      %v4188 = vpop.f32.mrf.mxu0
      %v4189 = vadd.f32 %v4176, %v4188
      %v4190 = vpop.f32.mrf.mxu0
      %4191 = vdwg.mxu0
      %4192 = vmatpush.bf16.msra.mxu0 0
      %4193 = vmatpush.bf16.msra.mxu0 0
      %4194 = vmatpush.bf16.msra.mxu0 0
      %4195 = vmatpush.bf16.msra.mxu0 0
      %4196 = vmatpush.bf16.msra.mxu0 0
      %4197 = vmatpush.bf16.msra.mxu0 0
      %4198 = vmatpush.bf16.msra.mxu0 %v4086
      %4199 = vmatpush.bf16.msra.mxu0 %v4084
      %4200 = vmatmul.bf16.gmra.mxu0 %v4125
      %v4201 = vpop.f32.mrf.mxu0
      %v4202 = vadd.f32 %v4189, %v4201
      %v4203 = vpop.f32.mrf.mxu0
      %4204 = vdwg.mxu0
      %v4207 = vunpack.c.l.b16 %v3856
      %v4208 = vunpack.c.h.b16 %v3856
      %v4209 = vunpack.c.l.b16 %v3857
      %v4210 = vpack.c.b16 %v4207, %v4207
      %v4211 = vpack.c.b16 %v4208, %v4208
      %v4212 = vpack.c.b16 %v4209, %v4209
      %v4251 = vunpack.c.l.b16 %v3858
      %v4252 = vunpack.c.h.b16 %v3858
      %v4253 = vunpack.c.l.b16 %v3859
      %v4254 = vunpack.c.h.b16 %v3859
      %v4255 = vunpack.c.l.b16 %v3860
      %v4256 = vunpack.c.h.b16 %v3860
      %v4257 = vunpack.c.l.b16 %v3861
      %v4258 = vunpack.c.h.b16 %v3861
      %v4259 = vunpack.c.l.b16 %v3862
      %v4260 = vunpack.c.h.b16 %v3862
      %v4261 = vunpack.c.l.b16 %v3863
      %v4262 = vunpack.c.h.b16 %v3863
      %v4263 = vunpack.c.l.b16 %v3864
      %v4264 = vunpack.c.h.b16 %v3864
      %v4265 = vunpack.c.l.b16 %v3865
      %v4266 = vunpack.c.h.b16 %v3865
      %v4267 = vunpack.c.l.b16 %v3866
      %v4268 = vunpack.c.h.b16 %v3866
      %v4269 = vunpack.c.l.b16 %v3867
      %v4270 = vunpack.c.h.b16 %v3867
      %v4271 = vunpack.c.l.b16 %v3868
      %v4272 = vunpack.c.h.b16 %v3868
      %v4273 = vunpack.c.l.b16 %v3869
      %v4274 = vunpack.c.h.b16 %v3869
      %v4275 = vunpack.c.l.b16 %v3870
      %v4276 = vunpack.c.h.b16 %v3870
      %v4277 = vunpack.c.l.b16 %v3871
      %v4278 = vunpack.c.h.b16 %v3871
      %v4279 = vunpack.c.l.b16 %v3872
      %v4280 = vunpack.c.h.b16 %v3872
      %v4281 = vunpack.c.l.b16 %v3873
      %v4282 = vunpack.c.h.b16 %v3873
      %v4283 = vunpack.c.l.b16 %v3874
      %v4284 = vunpack.c.h.b16 %v3874
      %v4285 = vunpack.c.l.b16 %v3875
      %v4286 = vunpack.c.h.b16 %v3875
      %v4287 = vunpack.c.l.b16 %v3876
      %v4288 = vunpack.c.h.b16 %v3876
      %v4289 = vunpack.c.l.b16 %v3877
      %v4290 = vunpack.c.h.b16 %v3877
      %v4291 = vunpack.c.l.b16 %v3878
      %v4292 = vunpack.c.h.b16 %v3878
      %v4293 = vunpack.c.l.b16 %v3879
      %v4294 = vunpack.c.h.b16 %v3879
      %v4295 = vunpack.c.l.b16 %v3880
      %v4296 = vunpack.c.h.b16 %v3880
      %v4297 = vunpack.c.l.b16 %v3881
      %v4298 = vunpack.c.h.b16 %v3881
      %v4299 = vunpack.c.l.b16 %v3882
      %v4300 = vunpack.c.h.b16 %v3882
      %v4301 = vunpack.c.l.b16 %v3883
      %v4302 = vunpack.c.h.b16 %v3883
      %v4303 = vunpack.c.l.b16 %v3884
      %v4304 = vunpack.c.h.b16 %v3884
      %v4305 = vunpack.c.l.b16 %v3885
      %v4306 = vunpack.c.h.b16 %v3885
      %v4307 = vunpack.c.l.b16 %v3886
      %v4308 = vunpack.c.h.b16 %v3886
      %v4309 = vunpack.c.l.b16 %v3887
      %v4310 = vunpack.c.h.b16 %v3887
      %v4311 = vunpack.c.l.b16 %v3888
      %v4312 = vunpack.c.h.b16 %v3888
      %v4313 = vunpack.c.l.b16 %v3889
      %v4314 = vunpack.c.h.b16 %v3889
      %v4315 = vunpack.c.l.b16 %v3890
      %v4316 = vunpack.c.h.b16 %v3890
      %v4317 = vunpack.c.l.b16 %v3891
      %v4318 = vunpack.c.h.b16 %v3891
      %v4319 = vunpack.c.l.b16 %v3892
      %v4320 = vunpack.c.h.b16 %v3892
      %v4321 = vunpack.c.l.b16 %v3893
      %v4322 = vunpack.c.h.b16 %v3893
      %v4323 = vpack.c.b16 %v4253, %v4251
      %v4324 = vpack.c.b16 %v4254, %v4252
      %v4325 = vpack.c.b16 %v4257, %v4255
      %v4326 = vpack.c.b16 %v4258, %v4256
      %v4327 = vpack.c.b16 %v4261, %v4259
      %v4328 = vpack.c.b16 %v4262, %v4260
      %v4329 = vpack.c.b16 %v4265, %v4263
      %v4330 = vpack.c.b16 %v4266, %v4264
      %v4331 = vpack.c.b16 %v4269, %v4267
      %v4332 = vpack.c.b16 %v4270, %v4268
      %v4333 = vpack.c.b16 %v4273, %v4271
      %v4334 = vpack.c.b16 %v4274, %v4272
      %v4335 = vpack.c.b16 %v4277, %v4275
      %v4336 = vpack.c.b16 %v4278, %v4276
      %v4337 = vpack.c.b16 %v4281, %v4279
      %v4338 = vpack.c.b16 %v4282, %v4280
      %v4339 = vpack.c.b16 %v4285, %v4283
      %v4340 = vpack.c.b16 %v4286, %v4284
      %v4341 = vpack.c.b16 %v4289, %v4287
      %v4342 = vpack.c.b16 %v4290, %v4288
      %v4343 = vpack.c.b16 %v4293, %v4291
      %v4344 = vpack.c.b16 %v4294, %v4292
      %v4345 = vpack.c.b16 %v4297, %v4295
      %v4346 = vpack.c.b16 %v4298, %v4296
      %v4347 = vpack.c.b16 %v4301, %v4299
      %v4348 = vpack.c.b16 %v4302, %v4300
      %v4349 = vpack.c.b16 %v4305, %v4303
      %v4350 = vpack.c.b16 %v4306, %v4304
      %v4351 = vpack.c.b16 %v4309, %v4307
      %v4352 = vpack.c.b16 %v4310, %v4308
      %v4353 = vpack.c.b16 %v4313, %v4311
      %v4354 = vpack.c.b16 %v4314, %v4312
      %v4355 = vpack.c.b16 %v4317, %v4315
      %v4356 = vpack.c.b16 %v4318, %v4316
      %v4357 = vpack.c.b16 %v4321, %v4319
      %v4358 = vpack.c.b16 %v4322, %v4320
      %v4396 = vsel %vm4123, %v4212, 0
      %4398 = vmatpush.bf16.msra.mxu0 %v4337
      %4399 = vmatpush.bf16.msra.mxu0 %v4335
      %4400 = vmatpush.bf16.msra.mxu0 %v4333
      %4401 = vmatpush.bf16.msra.mxu0 %v4331
      %4402 = vmatpush.bf16.msra.mxu0 %v4329
      %4403 = vmatpush.bf16.msra.mxu0 %v4327
      %4404 = vmatpush.bf16.msra.mxu0 %v4325
      %4405 = vmatpush.bf16.msra.mxu0 %v4323
      %4406 = vmatmul.bf16.gmra.mxu0 %v4210
      %v4407 = vpop.f32.mrf.mxu0
      %v4408 = vadd.f32 %v4163, %v4407
      %v4409 = vpop.f32.mrf.mxu0
      %4410 = vdwg.mxu0
      %4411 = vmatpush.bf16.msra.mxu0 %v4353
      %4412 = vmatpush.bf16.msra.mxu0 %v4351
      %4413 = vmatpush.bf16.msra.mxu0 %v4349
      %4414 = vmatpush.bf16.msra.mxu0 %v4347
      %4415 = vmatpush.bf16.msra.mxu0 %v4345
      %4416 = vmatpush.bf16.msra.mxu0 %v4343
      %4417 = vmatpush.bf16.msra.mxu0 %v4341
      %4418 = vmatpush.bf16.msra.mxu0 %v4339
      %4419 = vmatmul.bf16.gmra.mxu0 %v4211
      %v4420 = vpop.f32.mrf.mxu0
      %v4421 = vadd.f32 %v4408, %v4420
      %v4422 = vpop.f32.mrf.mxu0
      %4423 = vdwg.mxu0
      %4424 = vmatpush.bf16.msra.mxu0 0
      %4425 = vmatpush.bf16.msra.mxu0 0
      %4426 = vmatpush.bf16.msra.mxu0 0
      %4427 = vmatpush.bf16.msra.mxu0 0
      %4428 = vmatpush.bf16.msra.mxu0 0
      %4429 = vmatpush.bf16.msra.mxu0 0
      %4430 = vmatpush.bf16.msra.mxu0 %v4357
      %4431 = vmatpush.bf16.msra.mxu0 %v4355
      %4432 = vmatmul.bf16.gmra.mxu0 %v4396
      %v4433 = vpop.f32.mrf.mxu0
      %v4434 = vadd.f32 %v4421, %v4433
      %v4435 = vpop.f32.mrf.mxu0
      %4436 = vdwg.mxu0
      %4437 = vmatpush.bf16.msra.mxu0 %v4338
      %4438 = vmatpush.bf16.msra.mxu0 %v4336
      %4439 = vmatpush.bf16.msra.mxu0 %v4334
      %4440 = vmatpush.bf16.msra.mxu0 %v4332
      %4441 = vmatpush.bf16.msra.mxu0 %v4330
      %4442 = vmatpush.bf16.msra.mxu0 %v4328
      %4443 = vmatpush.bf16.msra.mxu0 %v4326
      %4444 = vmatpush.bf16.msra.mxu0 %v4324
      %4445 = vmatmul.bf16.gmra.mxu0 %v4210
      %v4446 = vpop.f32.mrf.mxu0
      %v4447 = vadd.f32 %v4202, %v4446
      %v4448 = vpop.f32.mrf.mxu0
      %4449 = vdwg.mxu0
      %4450 = vmatpush.bf16.msra.mxu0 %v4354
      %4451 = vmatpush.bf16.msra.mxu0 %v4352
      %4452 = vmatpush.bf16.msra.mxu0 %v4350
      %4453 = vmatpush.bf16.msra.mxu0 %v4348
      %4454 = vmatpush.bf16.msra.mxu0 %v4346
      %4455 = vmatpush.bf16.msra.mxu0 %v4344
      %4456 = vmatpush.bf16.msra.mxu0 %v4342
      %4457 = vmatpush.bf16.msra.mxu0 %v4340
      %4458 = vmatmul.bf16.gmra.mxu0 %v4211
      %v4459 = vpop.f32.mrf.mxu0
      %v4460 = vadd.f32 %v4447, %v4459
      %v4461 = vpop.f32.mrf.mxu0
      %4462 = vdwg.mxu0
      %4463 = vmatpush.bf16.msra.mxu0 0
      %4464 = vmatpush.bf16.msra.mxu0 0
      %4465 = vmatpush.bf16.msra.mxu0 0
      %4466 = vmatpush.bf16.msra.mxu0 0
      %4467 = vmatpush.bf16.msra.mxu0 0
      %4468 = vmatpush.bf16.msra.mxu0 0
      %4469 = vmatpush.bf16.msra.mxu0 %v4358
      %4470 = vmatpush.bf16.msra.mxu0 %v4356
      %4471 = vmatmul.bf16.gmra.mxu0 %v4396
      %v4472 = vpop.f32.mrf.mxu0
      %v4473 = vadd.f32 %v4460, %v4472
      %v4474 = vpop.f32.mrf.mxu0
      %4475 = vdwg.mxu0
      %v4476 = vld [vmem:[#allocation3] sm:$0xff]
      %v4477 = vld [vmem:[#allocation3 + $0x8] sm:$0xf]
      %v4478 = vld [vmem:[#allocation3 + $0xc] sm:$0x11]
      %v4479 = vld [vmem:[#allocation3 + $0x14] sm:$0x1]
      %s4480 = scalar_lea.vmem %s3, 576
      %v4481 = vld [vmem:[%s4480] sm:$0xff]
      %v4482 = vld [vmem:[%s4480 + $0x8] sm:$0xff]
      %v4483 = vld [vmem:[%s4480 + $0x10] sm:$0xff]
      %v4484 = vld [vmem:[%s4480 + $0x18] sm:$0xff]
      %v4485 = vld [vmem:[%s4480 + $0x20] sm:$0xff]
      %v4486 = vld [vmem:[%s4480 + $0x28] sm:$0xff]
      %v4487 = vld [vmem:[%s4480 + $0x30] sm:$0xff]
      %v4488 = vld [vmem:[%s4480 + $0x38] sm:$0xff]
      %v4489 = vld [vmem:[%s4480 + $0x40] sm:$0xff]
      %v4490 = vld [vmem:[%s4480 + $0x48] sm:$0xff]
      %v4491 = vld [vmem:[%s4480 + $0x50] sm:$0xff]
      %v4492 = vld [vmem:[%s4480 + $0x58] sm:$0xff]
      %v4493 = vld [vmem:[%s4480 + $0x60] sm:$0xff]
      %v4494 = vld [vmem:[%s4480 + $0x68] sm:$0xff]
      %v4495 = vld [vmem:[%s4480 + $0x70] sm:$0xff]
      %v4496 = vld [vmem:[%s4480 + $0x78] sm:$0xff]
      %v4497 = vld [vmem:[%s4480 + $0x80] sm:$0xff]
      %v4498 = vld [vmem:[%s4480 + $0x88] sm:$0xff]
      %v4499 = vld [vmem:[%s4480 + $0x90] sm:$0xff]
      %v4500 = vld [vmem:[%s4480 + $0x98] sm:$0xff]
      %v4501 = vld [vmem:[%s4480 + $0xa0] sm:$0xff]
      %v4502 = vld [vmem:[%s4480 + $0xa8] sm:$0xff]
      %v4503 = vld [vmem:[%s4480 + $0xb0] sm:$0xff]
      %v4504 = vld [vmem:[%s4480 + $0xb8] sm:$0xff]
      %v4505 = vld [vmem:[%s4480 + $0xc0] sm:$0xff]
      %v4506 = vld [vmem:[%s4480 + $0xc8] sm:$0xff]
      %v4507 = vld [vmem:[%s4480 + $0xd0] sm:$0xff]
      %v4508 = vld [vmem:[%s4480 + $0xd8] sm:$0xff]
      %v4509 = vld [vmem:[%s4480 + $0xe0] sm:$0xff]
      %v4510 = vld [vmem:[%s4480 + $0xe8] sm:$0xff]
      %v4511 = vld [vmem:[%s4480 + $0xf0] sm:$0xff]
      %v4512 = vld [vmem:[%s4480 + $0xf8] sm:$0xff]
      %v4513 = vld [vmem:[%s4480 + $0x100] sm:$0xff]
      %v4514 = vld [vmem:[%s4480 + $0x108] sm:$0xff]
      %v4515 = vld [vmem:[%s4480 + $0x110] sm:$0xff]
      %v4516 = vld [vmem:[%s4480 + $0x118] sm:$0xff]
      %v4521 = vunpack.c.l.b16 %v4476
      %v4522 = vunpack.c.h.b16 %v4476
      %v4523 = vunpack.c.l.b16 %v4477
      %v4524 = vunpack.c.l.b16 %v4478
      %v4525 = vunpack.c.h.b16 %v4478
      %v4526 = vunpack.c.l.b16 %v4479
      %v4527 = vpack.c.b16 %v4524, %v4521
      %v4528 = vpack.c.b16 %v4525, %v4522
      %v4529 = vpack.c.b16 %v4526, %v4523
      %v4531 = vshrl.u32 %v4527, 16
      %v4533 = vshll.u32 %v4527, 16
      %v4535 = vrot.slane %v4533, 1
      %v4536 = vor.u32 %v4531, %v4535
      %v4538 = vshrl.u32 %v4528, 16
      %v4540 = vshll.u32 %v4528, 16
      %v4542 = vrot.slane %v4540, 1
      %v4543 = vor.u32 %v4538, %v4542
      %v4545 = vshrl.u32 %v4529, 16
      %v4547 = vshll.u32 %v4529, 16
      %v4549 = vrot.slane %v4547, 1
      %v4550 = vor.u32 %v4545, %v4549
      %v4589 = vunpack.c.l.b16 %v4481
      %v4590 = vunpack.c.h.b16 %v4481
      %v4591 = vunpack.c.l.b16 %v4482
      %v4592 = vunpack.c.h.b16 %v4482
      %v4593 = vunpack.c.l.b16 %v4483
      %v4594 = vunpack.c.h.b16 %v4483
      %v4595 = vunpack.c.l.b16 %v4484
      %v4596 = vunpack.c.h.b16 %v4484
      %v4597 = vunpack.c.l.b16 %v4485
      %v4598 = vunpack.c.h.b16 %v4485
      %v4599 = vunpack.c.l.b16 %v4486
      %v4600 = vunpack.c.h.b16 %v4486
      %v4601 = vunpack.c.l.b16 %v4487
      %v4602 = vunpack.c.h.b16 %v4487
      %v4603 = vunpack.c.l.b16 %v4488
      %v4604 = vunpack.c.h.b16 %v4488
      %v4605 = vunpack.c.l.b16 %v4489
      %v4606 = vunpack.c.h.b16 %v4489
      %v4607 = vunpack.c.l.b16 %v4490
      %v4608 = vunpack.c.h.b16 %v4490
      %v4609 = vunpack.c.l.b16 %v4491
      %v4610 = vunpack.c.h.b16 %v4491
      %v4611 = vunpack.c.l.b16 %v4492
      %v4612 = vunpack.c.h.b16 %v4492
      %v4613 = vunpack.c.l.b16 %v4493
      %v4614 = vunpack.c.h.b16 %v4493
      %v4615 = vunpack.c.l.b16 %v4494
      %v4616 = vunpack.c.h.b16 %v4494
      %v4617 = vunpack.c.l.b16 %v4495
      %v4618 = vunpack.c.h.b16 %v4495
      %v4619 = vunpack.c.l.b16 %v4496
      %v4620 = vunpack.c.h.b16 %v4496
      %v4621 = vunpack.c.l.b16 %v4497
      %v4622 = vunpack.c.h.b16 %v4497
      %v4623 = vunpack.c.l.b16 %v4498
      %v4624 = vunpack.c.h.b16 %v4498
      %v4625 = vunpack.c.l.b16 %v4499
      %v4626 = vunpack.c.h.b16 %v4499
      %v4627 = vunpack.c.l.b16 %v4500
      %v4628 = vunpack.c.h.b16 %v4500
      %v4629 = vunpack.c.l.b16 %v4501
      %v4630 = vunpack.c.h.b16 %v4501
      %v4631 = vunpack.c.l.b16 %v4502
      %v4632 = vunpack.c.h.b16 %v4502
      %v4633 = vunpack.c.l.b16 %v4503
      %v4634 = vunpack.c.h.b16 %v4503
      %v4635 = vunpack.c.l.b16 %v4504
      %v4636 = vunpack.c.h.b16 %v4504
      %v4637 = vunpack.c.l.b16 %v4505
      %v4638 = vunpack.c.h.b16 %v4505
      %v4639 = vunpack.c.l.b16 %v4506
      %v4640 = vunpack.c.h.b16 %v4506
      %v4641 = vunpack.c.l.b16 %v4507
      %v4642 = vunpack.c.h.b16 %v4507
      %v4643 = vunpack.c.l.b16 %v4508
      %v4644 = vunpack.c.h.b16 %v4508
      %v4645 = vunpack.c.l.b16 %v4509
      %v4646 = vunpack.c.h.b16 %v4509
      %v4647 = vunpack.c.l.b16 %v4510
      %v4648 = vunpack.c.h.b16 %v4510
      %v4649 = vunpack.c.l.b16 %v4511
      %v4650 = vunpack.c.h.b16 %v4511
      %v4651 = vunpack.c.l.b16 %v4512
      %v4652 = vunpack.c.h.b16 %v4512
      %v4653 = vunpack.c.l.b16 %v4513
      %v4654 = vunpack.c.h.b16 %v4513
      %v4655 = vunpack.c.l.b16 %v4514
      %v4656 = vunpack.c.h.b16 %v4514
      %v4657 = vunpack.c.l.b16 %v4515
      %v4658 = vunpack.c.h.b16 %v4515
      %v4659 = vunpack.c.l.b16 %v4516
      %v4660 = vunpack.c.h.b16 %v4516
      %v4661 = vpack.c.b16 %v4591, %v4589
      %v4662 = vpack.c.b16 %v4592, %v4590
      %v4663 = vpack.c.b16 %v4595, %v4593
      %v4664 = vpack.c.b16 %v4596, %v4594
      %v4665 = vpack.c.b16 %v4599, %v4597
      %v4666 = vpack.c.b16 %v4600, %v4598
      %v4667 = vpack.c.b16 %v4603, %v4601
      %v4668 = vpack.c.b16 %v4604, %v4602
      %v4669 = vpack.c.b16 %v4607, %v4605
      %v4670 = vpack.c.b16 %v4608, %v4606
      %v4671 = vpack.c.b16 %v4611, %v4609
      %v4672 = vpack.c.b16 %v4612, %v4610
      %v4673 = vpack.c.b16 %v4615, %v4613
      %v4674 = vpack.c.b16 %v4616, %v4614
      %v4675 = vpack.c.b16 %v4619, %v4617
      %v4676 = vpack.c.b16 %v4620, %v4618
      %v4677 = vpack.c.b16 %v4623, %v4621
      %v4678 = vpack.c.b16 %v4624, %v4622
      %v4679 = vpack.c.b16 %v4627, %v4625
      %v4680 = vpack.c.b16 %v4628, %v4626
      %v4681 = vpack.c.b16 %v4631, %v4629
      %v4682 = vpack.c.b16 %v4632, %v4630
      %v4683 = vpack.c.b16 %v4635, %v4633
      %v4684 = vpack.c.b16 %v4636, %v4634
      %v4685 = vpack.c.b16 %v4639, %v4637
      %v4686 = vpack.c.b16 %v4640, %v4638
      %v4687 = vpack.c.b16 %v4643, %v4641
      %v4688 = vpack.c.b16 %v4644, %v4642
      %v4689 = vpack.c.b16 %v4647, %v4645
      %v4690 = vpack.c.b16 %v4648, %v4646
      %v4691 = vpack.c.b16 %v4651, %v4649
      %v4692 = vpack.c.b16 %v4652, %v4650
      %v4693 = vpack.c.b16 %v4655, %v4653
      %v4694 = vpack.c.b16 %v4656, %v4654
      %v4695 = vpack.c.b16 %v4659, %v4657
      %v4696 = vpack.c.b16 %v4660, %v4658
      %v4734 = vsel %vm4123, %v4550, 0
      %4736 = vmatpush.bf16.msra.mxu0 %v4675
      %4737 = vmatpush.bf16.msra.mxu0 %v4673
      %4738 = vmatpush.bf16.msra.mxu0 %v4671
      %4739 = vmatpush.bf16.msra.mxu0 %v4669
      %4740 = vmatpush.bf16.msra.mxu0 %v4667
      %4741 = vmatpush.bf16.msra.mxu0 %v4665
      %4742 = vmatpush.bf16.msra.mxu0 %v4663
      %4743 = vmatpush.bf16.msra.mxu0 %v4661
      %4744 = vmatmul.bf16.gmra.mxu0 %v4536
      %v4745 = vpop.f32.mrf.mxu0
      %v4746 = vadd.f32 0.0, %v4745
      %v4747 = vpop.f32.mrf.mxu0
      %4748 = vdwg.mxu0
      %4749 = vmatpush.bf16.msra.mxu0 %v4691
      %4750 = vmatpush.bf16.msra.mxu0 %v4689
      %4751 = vmatpush.bf16.msra.mxu0 %v4687
      %4752 = vmatpush.bf16.msra.mxu0 %v4685
      %4753 = vmatpush.bf16.msra.mxu0 %v4683
      %4754 = vmatpush.bf16.msra.mxu0 %v4681
      %4755 = vmatpush.bf16.msra.mxu0 %v4679
      %4756 = vmatpush.bf16.msra.mxu0 %v4677
      %4757 = vmatmul.bf16.gmra.mxu0 %v4543
      %v4758 = vpop.f32.mrf.mxu0
      %v4759 = vadd.f32 %v4746, %v4758
      %v4760 = vpop.f32.mrf.mxu0
      %4761 = vdwg.mxu0
      %4762 = vmatpush.bf16.msra.mxu0 0
      %4763 = vmatpush.bf16.msra.mxu0 0
      %4764 = vmatpush.bf16.msra.mxu0 0
      %4765 = vmatpush.bf16.msra.mxu0 0
      %4766 = vmatpush.bf16.msra.mxu0 0
      %4767 = vmatpush.bf16.msra.mxu0 0
      %4768 = vmatpush.bf16.msra.mxu0 %v4695
      %4769 = vmatpush.bf16.msra.mxu0 %v4693
      %4770 = vmatmul.bf16.gmra.mxu0 %v4734
      %v4771 = vpop.f32.mrf.mxu0
      %v4772 = vadd.f32 %v4759, %v4771
      %v4773 = vpop.f32.mrf.mxu0
      %4774 = vdwg.mxu0
      %4775 = vmatpush.bf16.msra.mxu0 %v4676
      %4776 = vmatpush.bf16.msra.mxu0 %v4674
      %4777 = vmatpush.bf16.msra.mxu0 %v4672
      %4778 = vmatpush.bf16.msra.mxu0 %v4670
      %4779 = vmatpush.bf16.msra.mxu0 %v4668
      %4780 = vmatpush.bf16.msra.mxu0 %v4666
      %4781 = vmatpush.bf16.msra.mxu0 %v4664
      %4782 = vmatpush.bf16.msra.mxu0 %v4662
      %4783 = vmatmul.bf16.gmra.mxu0 %v4536
      %v4784 = vpop.f32.mrf.mxu0
      %v4785 = vadd.f32 0.0, %v4784
      %v4786 = vpop.f32.mrf.mxu0
      %4787 = vdwg.mxu0
      %4788 = vmatpush.bf16.msra.mxu0 %v4692
      %4789 = vmatpush.bf16.msra.mxu0 %v4690
      %4790 = vmatpush.bf16.msra.mxu0 %v4688
      %4791 = vmatpush.bf16.msra.mxu0 %v4686
      %4792 = vmatpush.bf16.msra.mxu0 %v4684
      %4793 = vmatpush.bf16.msra.mxu0 %v4682
      %4794 = vmatpush.bf16.msra.mxu0 %v4680
      %4795 = vmatpush.bf16.msra.mxu0 %v4678
      %4796 = vmatmul.bf16.gmra.mxu0 %v4543
      %v4797 = vpop.f32.mrf.mxu0
      %v4798 = vadd.f32 %v4785, %v4797
      %v4799 = vpop.f32.mrf.mxu0
      %4800 = vdwg.mxu0
      %4801 = vmatpush.bf16.msra.mxu0 0
      %4802 = vmatpush.bf16.msra.mxu0 0
      %4803 = vmatpush.bf16.msra.mxu0 0
      %4804 = vmatpush.bf16.msra.mxu0 0
      %4805 = vmatpush.bf16.msra.mxu0 0
      %4806 = vmatpush.bf16.msra.mxu0 0
      %4807 = vmatpush.bf16.msra.mxu0 %v4696
      %4808 = vmatpush.bf16.msra.mxu0 %v4694
      %4809 = vmatmul.bf16.gmra.mxu0 %v4734
      %v4810 = vpop.f32.mrf.mxu0
      %v4811 = vadd.f32 %v4798, %v4810
      %v4812 = vpop.f32.mrf.mxu0
      %4813 = vdwg.mxu0
      %v4814 = vadd.f32 %v4434, %v4772
      %v4815 = vadd.f32 %v4473, %v4811
      %v4816 = vld [vmem:[%s3767] sm:$0xff]
      %v4817 = vld [vmem:[%s3767 + $0x8] sm:$0xf]
      %v4818 = vld [vmem:[%s3767 + $0xc] sm:$0x11]
      %v4819 = vld [vmem:[%s3767 + $0x14] sm:$0x1]
      %s4820 = scalar_lea.vmem %s3, 864
      %v4821 = vld [vmem:[%s4820] sm:$0xff]
      %v4822 = vld [vmem:[%s4820 + $0x8] sm:$0xff]
      %v4823 = vld [vmem:[%s4820 + $0x10] sm:$0xff]
      %v4824 = vld [vmem:[%s4820 + $0x18] sm:$0xff]
      %v4825 = vld [vmem:[%s4820 + $0x20] sm:$0xff]
      %v4826 = vld [vmem:[%s4820 + $0x28] sm:$0xff]
      %v4827 = vld [vmem:[%s4820 + $0x30] sm:$0xff]
      %v4828 = vld [vmem:[%s4820 + $0x38] sm:$0xff]
      %v4829 = vld [vmem:[%s4820 + $0x40] sm:$0xff]
      %v4830 = vld [vmem:[%s4820 + $0x48] sm:$0xff]
      %v4831 = vld [vmem:[%s4820 + $0x50] sm:$0xff]
      %v4832 = vld [vmem:[%s4820 + $0x58] sm:$0xff]
      %v4833 = vld [vmem:[%s4820 + $0x60] sm:$0xff]
      %v4834 = vld [vmem:[%s4820 + $0x68] sm:$0xff]
      %v4835 = vld [vmem:[%s4820 + $0x70] sm:$0xff]
      %v4836 = vld [vmem:[%s4820 + $0x78] sm:$0xff]
      %v4837 = vld [vmem:[%s4820 + $0x80] sm:$0xff]
      %v4838 = vld [vmem:[%s4820 + $0x88] sm:$0xff]
      %v4839 = vld [vmem:[%s4820 + $0x90] sm:$0xff]
      %v4840 = vld [vmem:[%s4820 + $0x98] sm:$0xff]
      %v4841 = vld [vmem:[%s4820 + $0xa0] sm:$0xff]
      %v4842 = vld [vmem:[%s4820 + $0xa8] sm:$0xff]
      %v4843 = vld [vmem:[%s4820 + $0xb0] sm:$0xff]
      %v4844 = vld [vmem:[%s4820 + $0xb8] sm:$0xff]
      %v4845 = vld [vmem:[%s4820 + $0xc0] sm:$0xff]
      %v4846 = vld [vmem:[%s4820 + $0xc8] sm:$0xff]
      %v4847 = vld [vmem:[%s4820 + $0xd0] sm:$0xff]
      %v4848 = vld [vmem:[%s4820 + $0xd8] sm:$0xff]
      %v4849 = vld [vmem:[%s4820 + $0xe0] sm:$0xff]
      %v4850 = vld [vmem:[%s4820 + $0xe8] sm:$0xff]
      %v4851 = vld [vmem:[%s4820 + $0xf0] sm:$0xff]
      %v4852 = vld [vmem:[%s4820 + $0xf8] sm:$0xff]
      %v4853 = vld [vmem:[%s4820 + $0x100] sm:$0xff]
      %v4854 = vld [vmem:[%s4820 + $0x108] sm:$0xff]
      %v4855 = vld [vmem:[%s4820 + $0x110] sm:$0xff]
      %v4856 = vld [vmem:[%s4820 + $0x118] sm:$0xff]
      %v4861 = vunpack.c.l.b16 %v4816
      %v4862 = vunpack.c.h.b16 %v4816
      %v4863 = vunpack.c.l.b16 %v4817
      %v4864 = vunpack.c.l.b16 %v4818
      %v4865 = vunpack.c.h.b16 %v4818
      %v4866 = vunpack.c.l.b16 %v4819
      %v4867 = vpack.c.b16 %v4864, %v4861
      %v4868 = vpack.c.b16 %v4865, %v4862
      %v4869 = vpack.c.b16 %v4866, %v4863
      %v4871 = vshrl.u32 %v4867, 16
      %v4873 = vshll.u32 %v4867, 16
      %v4875 = vrot.slane %v4873, 1
      %v4876 = vor.u32 %v4871, %v4875
      %v4878 = vshrl.u32 %v4868, 16
      %v4880 = vshll.u32 %v4868, 16
      %v4882 = vrot.slane %v4880, 1
      %v4883 = vor.u32 %v4878, %v4882
      %v4885 = vshrl.u32 %v4869, 16
      %v4887 = vshll.u32 %v4869, 16
      %v4889 = vrot.slane %v4887, 1
      %v4890 = vor.u32 %v4885, %v4889
      %v4929 = vunpack.c.l.b16 %v4821
      %v4930 = vunpack.c.h.b16 %v4821
      %v4931 = vunpack.c.l.b16 %v4822
      %v4932 = vunpack.c.h.b16 %v4822
      %v4933 = vunpack.c.l.b16 %v4823
      %v4934 = vunpack.c.h.b16 %v4823
      %v4935 = vunpack.c.l.b16 %v4824
      %v4936 = vunpack.c.h.b16 %v4824
      %v4937 = vunpack.c.l.b16 %v4825
      %v4938 = vunpack.c.h.b16 %v4825
      %v4939 = vunpack.c.l.b16 %v4826
      %v4940 = vunpack.c.h.b16 %v4826
      %v4941 = vunpack.c.l.b16 %v4827
      %v4942 = vunpack.c.h.b16 %v4827
      %v4943 = vunpack.c.l.b16 %v4828
      %v4944 = vunpack.c.h.b16 %v4828
      %v4945 = vunpack.c.l.b16 %v4829
      %v4946 = vunpack.c.h.b16 %v4829
      %v4947 = vunpack.c.l.b16 %v4830
      %v4948 = vunpack.c.h.b16 %v4830
      %v4949 = vunpack.c.l.b16 %v4831
      %v4950 = vunpack.c.h.b16 %v4831
      %v4951 = vunpack.c.l.b16 %v4832
      %v4952 = vunpack.c.h.b16 %v4832
      %v4953 = vunpack.c.l.b16 %v4833
      %v4954 = vunpack.c.h.b16 %v4833
      %v4955 = vunpack.c.l.b16 %v4834
      %v4956 = vunpack.c.h.b16 %v4834
      %v4957 = vunpack.c.l.b16 %v4835
      %v4958 = vunpack.c.h.b16 %v4835
      %v4959 = vunpack.c.l.b16 %v4836
      %v4960 = vunpack.c.h.b16 %v4836
      %v4961 = vunpack.c.l.b16 %v4837
      %v4962 = vunpack.c.h.b16 %v4837
      %v4963 = vunpack.c.l.b16 %v4838
      %v4964 = vunpack.c.h.b16 %v4838
      %v4965 = vunpack.c.l.b16 %v4839
      %v4966 = vunpack.c.h.b16 %v4839
      %v4967 = vunpack.c.l.b16 %v4840
      %v4968 = vunpack.c.h.b16 %v4840
      %v4969 = vunpack.c.l.b16 %v4841
      %v4970 = vunpack.c.h.b16 %v4841
      %v4971 = vunpack.c.l.b16 %v4842
      %v4972 = vunpack.c.h.b16 %v4842
      %v4973 = vunpack.c.l.b16 %v4843
      %v4974 = vunpack.c.h.b16 %v4843
      %v4975 = vunpack.c.l.b16 %v4844
      %v4976 = vunpack.c.h.b16 %v4844
      %v4977 = vunpack.c.l.b16 %v4845
      %v4978 = vunpack.c.h.b16 %v4845
      %v4979 = vunpack.c.l.b16 %v4846
      %v4980 = vunpack.c.h.b16 %v4846
      %v4981 = vunpack.c.l.b16 %v4847
      %v4982 = vunpack.c.h.b16 %v4847
      %v4983 = vunpack.c.l.b16 %v4848
      %v4984 = vunpack.c.h.b16 %v4848
      %v4985 = vunpack.c.l.b16 %v4849
      %v4986 = vunpack.c.h.b16 %v4849
      %v4987 = vunpack.c.l.b16 %v4850
      %v4988 = vunpack.c.h.b16 %v4850
      %v4989 = vunpack.c.l.b16 %v4851
      %v4990 = vunpack.c.h.b16 %v4851
      %v4991 = vunpack.c.l.b16 %v4852
      %v4992 = vunpack.c.h.b16 %v4852
      %v4993 = vunpack.c.l.b16 %v4853
      %v4994 = vunpack.c.h.b16 %v4853
      %v4995 = vunpack.c.l.b16 %v4854
      %v4996 = vunpack.c.h.b16 %v4854
      %v4997 = vunpack.c.l.b16 %v4855
      %v4998 = vunpack.c.h.b16 %v4855
      %v4999 = vunpack.c.l.b16 %v4856
      %v5000 = vunpack.c.h.b16 %v4856
      %v5001 = vpack.c.b16 %v4931, %v4929
      %v5002 = vpack.c.b16 %v4932, %v4930
      %v5003 = vpack.c.b16 %v4935, %v4933
      %v5004 = vpack.c.b16 %v4936, %v4934
      %v5005 = vpack.c.b16 %v4939, %v4937
      %v5006 = vpack.c.b16 %v4940, %v4938
      %v5007 = vpack.c.b16 %v4943, %v4941
      %v5008 = vpack.c.b16 %v4944, %v4942
      %v5009 = vpack.c.b16 %v4947, %v4945
      %v5010 = vpack.c.b16 %v4948, %v4946
      %v5011 = vpack.c.b16 %v4951, %v4949
      %v5012 = vpack.c.b16 %v4952, %v4950
      %v5013 = vpack.c.b16 %v4955, %v4953
      %v5014 = vpack.c.b16 %v4956, %v4954
      %v5015 = vpack.c.b16 %v4959, %v4957
      %v5016 = vpack.c.b16 %v4960, %v4958
      %v5017 = vpack.c.b16 %v4963, %v4961
      %v5018 = vpack.c.b16 %v4964, %v4962
      %v5019 = vpack.c.b16 %v4967, %v4965
      %v5020 = vpack.c.b16 %v4968, %v4966
      %v5021 = vpack.c.b16 %v4971, %v4969
      %v5022 = vpack.c.b16 %v4972, %v4970
      %v5023 = vpack.c.b16 %v4975, %v4973
      %v5024 = vpack.c.b16 %v4976, %v4974
      %v5025 = vpack.c.b16 %v4979, %v4977
      %v5026 = vpack.c.b16 %v4980, %v4978
      %v5027 = vpack.c.b16 %v4983, %v4981
      %v5028 = vpack.c.b16 %v4984, %v4982
      %v5029 = vpack.c.b16 %v4987, %v4985
      %v5030 = vpack.c.b16 %v4988, %v4986
      %v5031 = vpack.c.b16 %v4991, %v4989
      %v5032 = vpack.c.b16 %v4992, %v4990
      %v5033 = vpack.c.b16 %v4995, %v4993
      %v5034 = vpack.c.b16 %v4996, %v4994
      %v5035 = vpack.c.b16 %v4999, %v4997
      %v5036 = vpack.c.b16 %v5000, %v4998
      %v5074 = vsel %vm4123, %v4890, 0
      %5076 = vmatpush.bf16.msra.mxu0 %v5015
      %5077 = vmatpush.bf16.msra.mxu0 %v5013
      %5078 = vmatpush.bf16.msra.mxu0 %v5011
      %5079 = vmatpush.bf16.msra.mxu0 %v5009
      %5080 = vmatpush.bf16.msra.mxu0 %v5007
      %5081 = vmatpush.bf16.msra.mxu0 %v5005
      %5082 = vmatpush.bf16.msra.mxu0 %v5003
      %5083 = vmatpush.bf16.msra.mxu0 %v5001
      %5084 = vmatmul.bf16.gmra.mxu0 %v4876
      %v5085 = vpop.f32.mrf.mxu0
      %v5086 = vadd.f32 0.0, %v5085
      %v5087 = vpop.f32.mrf.mxu0
      %5088 = vdwg.mxu0
      %5089 = vmatpush.bf16.msra.mxu0 %v5031
      %5090 = vmatpush.bf16.msra.mxu0 %v5029
      %5091 = vmatpush.bf16.msra.mxu0 %v5027
      %5092 = vmatpush.bf16.msra.mxu0 %v5025
      %5093 = vmatpush.bf16.msra.mxu0 %v5023
      %5094 = vmatpush.bf16.msra.mxu0 %v5021
      %5095 = vmatpush.bf16.msra.mxu0 %v5019
      %5096 = vmatpush.bf16.msra.mxu0 %v5017
      %5097 = vmatmul.bf16.gmra.mxu0 %v4883
      %v5098 = vpop.f32.mrf.mxu0
      %v5099 = vadd.f32 %v5086, %v5098
      %v5100 = vpop.f32.mrf.mxu0
      %5101 = vdwg.mxu0
      %5102 = vmatpush.bf16.msra.mxu0 0
      %5103 = vmatpush.bf16.msra.mxu0 0
      %5104 = vmatpush.bf16.msra.mxu0 0
      %5105 = vmatpush.bf16.msra.mxu0 0
      %5106 = vmatpush.bf16.msra.mxu0 0
      %5107 = vmatpush.bf16.msra.mxu0 0
      %5108 = vmatpush.bf16.msra.mxu0 %v5035
      %5109 = vmatpush.bf16.msra.mxu0 %v5033
      %5110 = vmatmul.bf16.gmra.mxu0 %v5074
      %v5111 = vpop.f32.mrf.mxu0
      %v5112 = vadd.f32 %v5099, %v5111
      %v5113 = vpop.f32.mrf.mxu0
      %5114 = vdwg.mxu0
      %5115 = vmatpush.bf16.msra.mxu0 %v5016
      %5116 = vmatpush.bf16.msra.mxu0 %v5014
      %5117 = vmatpush.bf16.msra.mxu0 %v5012
      %5118 = vmatpush.bf16.msra.mxu0 %v5010
      %5119 = vmatpush.bf16.msra.mxu0 %v5008
      %5120 = vmatpush.bf16.msra.mxu0 %v5006
      %5121 = vmatpush.bf16.msra.mxu0 %v5004
      %5122 = vmatpush.bf16.msra.mxu0 %v5002
      %5123 = vmatmul.bf16.gmra.mxu0 %v4876
      %v5124 = vpop.f32.mrf.mxu0
      %v5125 = vadd.f32 0.0, %v5124
      %v5126 = vpop.f32.mrf.mxu0
      %5127 = vdwg.mxu0
      %5128 = vmatpush.bf16.msra.mxu0 %v5032
      %5129 = vmatpush.bf16.msra.mxu0 %v5030
      %5130 = vmatpush.bf16.msra.mxu0 %v5028
      %5131 = vmatpush.bf16.msra.mxu0 %v5026
      %5132 = vmatpush.bf16.msra.mxu0 %v5024
      %5133 = vmatpush.bf16.msra.mxu0 %v5022
      %5134 = vmatpush.bf16.msra.mxu0 %v5020
      %5135 = vmatpush.bf16.msra.mxu0 %v5018
      %5136 = vmatmul.bf16.gmra.mxu0 %v4883
      %v5137 = vpop.f32.mrf.mxu0
      %v5138 = vadd.f32 %v5125, %v5137
      %v5139 = vpop.f32.mrf.mxu0
      %5140 = vdwg.mxu0
      %5141 = vmatpush.bf16.msra.mxu0 0
      %5142 = vmatpush.bf16.msra.mxu0 0
      %5143 = vmatpush.bf16.msra.mxu0 0
      %5144 = vmatpush.bf16.msra.mxu0 0
      %5145 = vmatpush.bf16.msra.mxu0 0
      %5146 = vmatpush.bf16.msra.mxu0 0
      %5147 = vmatpush.bf16.msra.mxu0 %v5036
      %5148 = vmatpush.bf16.msra.mxu0 %v5034
      %5149 = vmatmul.bf16.gmra.mxu0 %v5074
      %v5150 = vpop.f32.mrf.mxu0
      %v5151 = vadd.f32 %v5138, %v5150
      %v5152 = vpop.f32.mrf.mxu0
      %5153 = vdwg.mxu0
      %v5154 = vadd.f32 %v4814, %v5112
      %v5155 = vadd.f32 %v4815, %v5151
      %v5156 = vand.u32 %v3224, 31
      %v5157 = vand.u32 %v3225, 31
      %v5158 = vand.u32 %v3226, 31
      %v5159 = vand.u32 %v3227, 31
      %v5160 = vand.u32 %v3228, 31
      %v5161 = vand.u32 %v3229, 31
      %v5162 = vand.u32 %v3230, 31
      %v5163 = vand.u32 %v3231, 31
      %v5164 = vand.u32 %v3232, 31
      %v5165 = vand.u32 %v3233, 31
      %v5166 = vand.u32 %v3234, 31
      %v5167 = vand.u32 %v3235, 31
      %v5168 = vand.u32 %v3236, 31
      %v5169 = vand.u32 %v3237, 31
      %v5170 = vand.u32 %v3238, 31
      %v5171 = vand.u32 %v3239, 31
      %v5172 = vand.u32 %v3240, 31
      %v5173 = vand.u32 %v3241, 31
      %v5174 = vand.u32 %v3242, 31
      %v5175 = vand.u32 %v3243, 31
      %v5176 = vand.u32 %v3244, 31
      %v5177 = vand.u32 %v3245, 31
      %v5178 = vand.u32 %v3246, 31
      %v5179 = vand.u32 %v3247, 31
      %v5180 = vand.u32 %v3248, 31
      %v5181 = vand.u32 %v3249, 31
      %v5182 = vand.u32 %v3250, 31
      %v5183 = vand.u32 %v3251, 31
      %v5184 = vand.u32 %v3252, 31
      %v5185 = vand.u32 %v3253, 31
      %v5186 = vand.u32 %v3254, 31
      %v5187 = vand.u32 %v3255, 31
      %v5188 = vand.u32 %v3257, 31
      %v5189 = vand.u32 %v3258, 31
      %vm5190 = vcmp.eq.s32.totalorder %v5156, %v5188
      %vm5191 = vcmp.eq.s32.totalorder %v5156, %v5189
      %vm5192 = vcmp.eq.s32.totalorder %v5157, %v5188
      %vm5193 = vcmp.eq.s32.totalorder %v5157, %v5189
      %vm5194 = vcmp.eq.s32.totalorder %v5158, %v5188
      %vm5195 = vcmp.eq.s32.totalorder %v5158, %v5189
      %vm5196 = vcmp.eq.s32.totalorder %v5159, %v5188
      %vm5197 = vcmp.eq.s32.totalorder %v5159, %v5189
      %vm5198 = vcmp.eq.s32.totalorder %v5160, %v5188
      %vm5199 = vcmp.eq.s32.totalorder %v5160, %v5189
      %vm5200 = vcmp.eq.s32.totalorder %v5161, %v5188
      %vm5201 = vcmp.eq.s32.totalorder %v5161, %v5189
      %vm5202 = vcmp.eq.s32.totalorder %v5162, %v5188
      %vm5203 = vcmp.eq.s32.totalorder %v5162, %v5189
      %vm5204 = vcmp.eq.s32.totalorder %v5163, %v5188
      %vm5205 = vcmp.eq.s32.totalorder %v5163, %v5189
      %vm5206 = vcmp.eq.s32.totalorder %v5164, %v5188
      %vm5207 = vcmp.eq.s32.totalorder %v5164, %v5189
      %vm5208 = vcmp.eq.s32.totalorder %v5165, %v5188
      %vm5209 = vcmp.eq.s32.totalorder %v5165, %v5189
      %vm5210 = vcmp.eq.s32.totalorder %v5166, %v5188
      %vm5211 = vcmp.eq.s32.totalorder %v5166, %v5189
      %vm5212 = vcmp.eq.s32.totalorder %v5167, %v5188
      %vm5213 = vcmp.eq.s32.totalorder %v5167, %v5189
      %vm5214 = vcmp.eq.s32.totalorder %v5168, %v5188
      %vm5215 = vcmp.eq.s32.totalorder %v5168, %v5189
      %vm5216 = vcmp.eq.s32.totalorder %v5169, %v5188
      %vm5217 = vcmp.eq.s32.totalorder %v5169, %v5189
      %vm5218 = vcmp.eq.s32.totalorder %v5170, %v5188
      %vm5219 = vcmp.eq.s32.totalorder %v5170, %v5189
      %vm5220 = vcmp.eq.s32.totalorder %v5171, %v5188
      %vm5221 = vcmp.eq.s32.totalorder %v5171, %v5189
      %vm5222 = vcmp.eq.s32.totalorder %v5172, %v5188
      %vm5223 = vcmp.eq.s32.totalorder %v5172, %v5189
      %vm5224 = vcmp.eq.s32.totalorder %v5173, %v5188
      %vm5225 = vcmp.eq.s32.totalorder %v5173, %v5189
      %vm5226 = vcmp.eq.s32.totalorder %v5174, %v5188
      %vm5227 = vcmp.eq.s32.totalorder %v5174, %v5189
      %vm5228 = vcmp.eq.s32.totalorder %v5175, %v5188
      %vm5229 = vcmp.eq.s32.totalorder %v5175, %v5189
      %vm5230 = vcmp.eq.s32.totalorder %v5176, %v5188
      %vm5231 = vcmp.eq.s32.totalorder %v5176, %v5189
      %vm5232 = vcmp.eq.s32.totalorder %v5177, %v5188
      %vm5233 = vcmp.eq.s32.totalorder %v5177, %v5189
      %vm5234 = vcmp.eq.s32.totalorder %v5178, %v5188
      %vm5235 = vcmp.eq.s32.totalorder %v5178, %v5189
      %vm5236 = vcmp.eq.s32.totalorder %v5179, %v5188
      %vm5237 = vcmp.eq.s32.totalorder %v5179, %v5189
      %vm5238 = vcmp.eq.s32.totalorder %v5180, %v5188
      %vm5239 = vcmp.eq.s32.totalorder %v5180, %v5189
      %vm5240 = vcmp.eq.s32.totalorder %v5181, %v5188
      %vm5241 = vcmp.eq.s32.totalorder %v5181, %v5189
      %vm5242 = vcmp.eq.s32.totalorder %v5182, %v5188
      %vm5243 = vcmp.eq.s32.totalorder %v5182, %v5189
      %vm5244 = vcmp.eq.s32.totalorder %v5183, %v5188
      %vm5245 = vcmp.eq.s32.totalorder %v5183, %v5189
      %vm5246 = vcmp.eq.s32.totalorder %v5184, %v5188
      %vm5247 = vcmp.eq.s32.totalorder %v5184, %v5189
      %vm5248 = vcmp.eq.s32.totalorder %v5185, %v5188
      %vm5249 = vcmp.eq.s32.totalorder %v5185, %v5189
      %vm5250 = vcmp.eq.s32.totalorder %v5186, %v5188
      %vm5251 = vcmp.eq.s32.totalorder %v5186, %v5189
      %vm5252 = vcmp.eq.s32.totalorder %v5187, %v5188
      %vm5253 = vcmp.eq.s32.totalorder %v5187, %v5189
      %v5254 = vsel %vm5190, 1, 0
      %v5255 = vsel %vm5191, 1, 0
      %v5256 = vsel %vm5192, 1, 0
      %v5257 = vsel %vm5193, 1, 0
      %v5258 = vsel %vm5194, 1, 0
      %v5259 = vsel %vm5195, 1, 0
      %v5260 = vsel %vm5196, 1, 0
      %v5261 = vsel %vm5197, 1, 0
      %v5262 = vsel %vm5198, 1, 0
      %v5263 = vsel %vm5199, 1, 0
      %v5264 = vsel %vm5200, 1, 0
      %v5265 = vsel %vm5201, 1, 0
      %v5266 = vsel %vm5202, 1, 0
      %v5267 = vsel %vm5203, 1, 0
      %v5268 = vsel %vm5204, 1, 0
      %v5269 = vsel %vm5205, 1, 0
      %v5270 = vsel %vm5206, 1, 0
      %v5271 = vsel %vm5207, 1, 0
      %v5272 = vsel %vm5208, 1, 0
      %v5273 = vsel %vm5209, 1, 0
      %v5274 = vsel %vm5210, 1, 0
      %v5275 = vsel %vm5211, 1, 0
      %v5276 = vsel %vm5212, 1, 0
      %v5277 = vsel %vm5213, 1, 0
      %v5278 = vsel %vm5214, 1, 0
      %v5279 = vsel %vm5215, 1, 0
      %v5280 = vsel %vm5216, 1, 0
      %v5281 = vsel %vm5217, 1, 0
      %v5282 = vsel %vm5218, 1, 0
      %v5283 = vsel %vm5219, 1, 0
      %v5284 = vsel %vm5220, 1, 0
      %v5285 = vsel %vm5221, 1, 0
      %v5286 = vsel %vm5222, 1, 0
      %v5287 = vsel %vm5223, 1, 0
      %v5288 = vsel %vm5224, 1, 0
      %v5289 = vsel %vm5225, 1, 0
      %v5290 = vsel %vm5226, 1, 0
      %v5291 = vsel %vm5227, 1, 0
      %v5292 = vsel %vm5228, 1, 0
      %v5293 = vsel %vm5229, 1, 0
      %v5294 = vsel %vm5230, 1, 0
      %v5295 = vsel %vm5231, 1, 0
      %v5296 = vsel %vm5232, 1, 0
      %v5297 = vsel %vm5233, 1, 0
      %v5298 = vsel %vm5234, 1, 0
      %v5299 = vsel %vm5235, 1, 0
      %v5300 = vsel %vm5236, 1, 0
      %v5301 = vsel %vm5237, 1, 0
      %v5302 = vsel %vm5238, 1, 0
      %v5303 = vsel %vm5239, 1, 0
      %v5304 = vsel %vm5240, 1, 0
      %v5305 = vsel %vm5241, 1, 0
      %v5306 = vsel %vm5242, 1, 0
      %v5307 = vsel %vm5243, 1, 0
      %v5308 = vsel %vm5244, 1, 0
      %v5309 = vsel %vm5245, 1, 0
      %v5310 = vsel %vm5246, 1, 0
      %v5311 = vsel %vm5247, 1, 0
      %v5312 = vsel %vm5248, 1, 0
      %v5313 = vsel %vm5249, 1, 0
      %v5314 = vsel %vm5250, 1, 0
      %v5315 = vsel %vm5251, 1, 0
      %v5316 = vsel %vm5252, 1, 0
      %v5317 = vsel %vm5253, 1, 0
      %v5318 = vcvt.s32.f32 %v5254
      %v5319 = vcvt.s32.f32 %v5255
      %v5320 = vcvt.s32.f32 %v5256
      %v5321 = vcvt.s32.f32 %v5257
      %v5322 = vcvt.s32.f32 %v5258
      %v5323 = vcvt.s32.f32 %v5259
      %v5324 = vcvt.s32.f32 %v5260
      %v5325 = vcvt.s32.f32 %v5261
      %v5326 = vcvt.s32.f32 %v5262
      %v5327 = vcvt.s32.f32 %v5263
      %v5328 = vcvt.s32.f32 %v5264
      %v5329 = vcvt.s32.f32 %v5265
      %v5330 = vcvt.s32.f32 %v5266
      %v5331 = vcvt.s32.f32 %v5267
      %v5332 = vcvt.s32.f32 %v5268
      %v5333 = vcvt.s32.f32 %v5269
      %v5334 = vcvt.s32.f32 %v5270
      %v5335 = vcvt.s32.f32 %v5271
      %v5336 = vcvt.s32.f32 %v5272
      %v5337 = vcvt.s32.f32 %v5273
      %v5338 = vcvt.s32.f32 %v5274
      %v5339 = vcvt.s32.f32 %v5275
      %v5340 = vcvt.s32.f32 %v5276
      %v5341 = vcvt.s32.f32 %v5277
      %v5342 = vcvt.s32.f32 %v5278
      %v5343 = vcvt.s32.f32 %v5279
      %v5344 = vcvt.s32.f32 %v5280
      %v5345 = vcvt.s32.f32 %v5281
      %v5346 = vcvt.s32.f32 %v5282
      %v5347 = vcvt.s32.f32 %v5283
      %v5348 = vcvt.s32.f32 %v5284
      %v5349 = vcvt.s32.f32 %v5285
      %v5350 = vcvt.s32.f32 %v5286
      %v5351 = vcvt.s32.f32 %v5287
      %v5352 = vcvt.s32.f32 %v5288
      %v5353 = vcvt.s32.f32 %v5289
      %v5354 = vcvt.s32.f32 %v5290
      %v5355 = vcvt.s32.f32 %v5291
      %v5356 = vcvt.s32.f32 %v5292
      %v5357 = vcvt.s32.f32 %v5293
      %v5358 = vcvt.s32.f32 %v5294
      %v5359 = vcvt.s32.f32 %v5295
      %v5360 = vcvt.s32.f32 %v5296
      %v5361 = vcvt.s32.f32 %v5297
      %v5362 = vcvt.s32.f32 %v5298
      %v5363 = vcvt.s32.f32 %v5299
      %v5364 = vcvt.s32.f32 %v5300
      %v5365 = vcvt.s32.f32 %v5301
      %v5366 = vcvt.s32.f32 %v5302
      %v5367 = vcvt.s32.f32 %v5303
      %v5368 = vcvt.s32.f32 %v5304
      %v5369 = vcvt.s32.f32 %v5305
      %v5370 = vcvt.s32.f32 %v5306
      %v5371 = vcvt.s32.f32 %v5307
      %v5372 = vcvt.s32.f32 %v5308
      %v5373 = vcvt.s32.f32 %v5309
      %v5374 = vcvt.s32.f32 %v5310
      %v5375 = vcvt.s32.f32 %v5311
      %v5376 = vcvt.s32.f32 %v5312
      %v5377 = vcvt.s32.f32 %v5313
      %v5378 = vcvt.s32.f32 %v5314
      %v5379 = vcvt.s32.f32 %v5315
      %v5380 = vcvt.s32.f32 %v5316
      %v5381 = vcvt.s32.f32 %v5317
      %v5382 = vrot.slane %v5154, 4
      %v5383 = vadd.f32 %v5154, %v5382
      %v5384 = vrot.slane %v5383, 2
      %v5385 = vadd.f32 %v5383, %v5384
      %v5386 = vrot.slane %v5385, 1
      %v5387 = vadd.f32 %v5385, %v5386
      %v5388 = vrot.slane %v5155, 4
      %v5389 = vadd.f32 %v5155, %v5388
      %v5390 = vrot.slane %v5389, 2
      %v5391 = vadd.f32 %v5389, %v5390
      %v5392 = vrot.slane %v5391, 1
      %v5393 = vadd.f32 %v5391, %v5392
      %5394 = vmatpush.msra.mxu0 %v5348
      %5395 = vmatpush.msra.mxu0 %v5346
      %5396 = vmatpush.msra.mxu0 %v5344
      %5397 = vmatpush.msra.mxu0 %v5342
      %5398 = vmatpush.msra.mxu0 %v5340
      %5399 = vmatpush.msra.mxu0 %v5338
      %5400 = vmatpush.msra.mxu0 %v5336
      %5401 = vmatpush.msra.mxu0 %v5334
      %5402 = vmatpush.msra.mxu0 %v5332
      %5403 = vmatpush.msra.mxu0 %v5330
      %5404 = vmatpush.msra.mxu0 %v5328
      %5405 = vmatpush.msra.mxu0 %v5326
      %5406 = vmatpush.msra.mxu0 %v5324
      %5407 = vmatpush.msra.mxu0 %v5322
      %5408 = vmatpush.msra.mxu0 %v5320
      %5409 = vmatpush.msra.mxu0 %v5318
      %5410 = vmatmul.f32.gmra.mxu0 %v5387
      %v5411 = vpop.f32.mrf.mxu0
      %v5412 = vadd.f32 0.0, %v5411
      %5413 = vdwg.mxu0
      %5414 = vmatpush.msra.mxu0 %v5380
      %5415 = vmatpush.msra.mxu0 %v5378
      %5416 = vmatpush.msra.mxu0 %v5376
      %5417 = vmatpush.msra.mxu0 %v5374
      %5418 = vmatpush.msra.mxu0 %v5372
      %5419 = vmatpush.msra.mxu0 %v5370
      %5420 = vmatpush.msra.mxu0 %v5368
      %5421 = vmatpush.msra.mxu0 %v5366
      %5422 = vmatpush.msra.mxu0 %v5364
      %5423 = vmatpush.msra.mxu0 %v5362
      %5424 = vmatpush.msra.mxu0 %v5360
      %5425 = vmatpush.msra.mxu0 %v5358
      %5426 = vmatpush.msra.mxu0 %v5356
      %5427 = vmatpush.msra.mxu0 %v5354
      %5428 = vmatpush.msra.mxu0 %v5352
      %5429 = vmatpush.msra.mxu0 %v5350
      %5430 = vmatmul.f32.gmra.mxu0 %v5393
      %v5431 = vpop.f32.mrf.mxu0
      %v5432 = vadd.f32 %v5412, %v5431
      %5433 = vdwg.mxu0
      %5434 = vmatpush.msra.mxu0 %v5349
      %5435 = vmatpush.msra.mxu0 %v5347
      %5436 = vmatpush.msra.mxu0 %v5345
      %5437 = vmatpush.msra.mxu0 %v5343
      %5438 = vmatpush.msra.mxu0 %v5341
      %5439 = vmatpush.msra.mxu0 %v5339
      %5440 = vmatpush.msra.mxu0 %v5337
      %5441 = vmatpush.msra.mxu0 %v5335
      %5442 = vmatpush.msra.mxu0 %v5333
      %5443 = vmatpush.msra.mxu0 %v5331
      %5444 = vmatpush.msra.mxu0 %v5329
      %5445 = vmatpush.msra.mxu0 %v5327
      %5446 = vmatpush.msra.mxu0 %v5325
      %5447 = vmatpush.msra.mxu0 %v5323
      %5448 = vmatpush.msra.mxu0 %v5321
      %5449 = vmatpush.msra.mxu0 %v5319
      %5450 = vmatmul.f32.gmra.mxu0 %v5387
      %v5451 = vpop.f32.mrf.mxu0
      %v5452 = vadd.f32 0.0, %v5451
      %5453 = vdwg.mxu0
      %5454 = vmatpush.msra.mxu0 %v5381
      %5455 = vmatpush.msra.mxu0 %v5379
      %5456 = vmatpush.msra.mxu0 %v5377
      %5457 = vmatpush.msra.mxu0 %v5375
      %5458 = vmatpush.msra.mxu0 %v5373
      %5459 = vmatpush.msra.mxu0 %v5371
      %5460 = vmatpush.msra.mxu0 %v5369
      %5461 = vmatpush.msra.mxu0 %v5367
      %5462 = vmatpush.msra.mxu0 %v5365
      %5463 = vmatpush.msra.mxu0 %v5363
      %5464 = vmatpush.msra.mxu0 %v5361
      %5465 = vmatpush.msra.mxu0 %v5359
      %5466 = vmatpush.msra.mxu0 %v5357
      %5467 = vmatpush.msra.mxu0 %v5355
      %5468 = vmatpush.msra.mxu0 %v5353
      %5469 = vmatpush.msra.mxu0 %v5351
      %5470 = vmatmul.f32.gmra.mxu0 %v5393
      %v5471 = vpop.f32.mrf.mxu0
      %v5472 = vadd.f32 %v5452, %v5471
      %5473 = vdwg.mxu0
      %v5474 = vmul.f32 %v5432, 0.015625
      %v5475 = vmul.f32 %v5472, 0.015625
      %v5476 = vperm.slane %v5474, 0
      %v5477 = vperm.slane %v5475, 0
      %v5478 = vsub.f32 %v5154, %v5476
      %v5479 = vsub.f32 %v5155, %v5477
      %v5480 = vmul.f32 %v5478, %v5478
      %v5481 = vmul.f32 %v5479, %v5479
      %v5482 = vrot.slane %v5480, 4
      %v5483 = vadd.f32 %v5480, %v5482
      %v5484 = vrot.slane %v5483, 2
      %v5485 = vadd.f32 %v5483, %v5484
      %v5486 = vrot.slane %v5485, 1
      %v5487 = vadd.f32 %v5485, %v5486
      %v5488 = vrot.slane %v5481, 4
      %v5489 = vadd.f32 %v5481, %v5488
      %v5490 = vrot.slane %v5489, 2
      %v5491 = vadd.f32 %v5489, %v5490
      %v5492 = vrot.slane %v5491, 1
      %v5493 = vadd.f32 %v5491, %v5492
      %5494 = vmatpush.msra.mxu0 %v5348
      %5495 = vmatpush.msra.mxu0 %v5346
      %5496 = vmatpush.msra.mxu0 %v5344
      %5497 = vmatpush.msra.mxu0 %v5342
      %5498 = vmatpush.msra.mxu0 %v5340
      %5499 = vmatpush.msra.mxu0 %v5338
      %5500 = vmatpush.msra.mxu0 %v5336
      %5501 = vmatpush.msra.mxu0 %v5334
      %5502 = vmatpush.msra.mxu0 %v5332
      %5503 = vmatpush.msra.mxu0 %v5330
      %5504 = vmatpush.msra.mxu0 %v5328
      %5505 = vmatpush.msra.mxu0 %v5326
      %5506 = vmatpush.msra.mxu0 %v5324
      %5507 = vmatpush.msra.mxu0 %v5322
      %5508 = vmatpush.msra.mxu0 %v5320
      %5509 = vmatpush.msra.mxu0 %v5318
      %5510 = vmatmul.f32.gmra.mxu0 %v5487
      %v5511 = vpop.f32.mrf.mxu0
      %v5512 = vadd.f32 0.0, %v5511
      %5513 = vdwg.mxu0
      %5514 = vmatpush.msra.mxu0 %v5380
      %5515 = vmatpush.msra.mxu0 %v5378
      %5516 = vmatpush.msra.mxu0 %v5376
      %5517 = vmatpush.msra.mxu0 %v5374
      %5518 = vmatpush.msra.mxu0 %v5372
      %5519 = vmatpush.msra.mxu0 %v5370
      %5520 = vmatpush.msra.mxu0 %v5368
      %5521 = vmatpush.msra.mxu0 %v5366
      %5522 = vmatpush.msra.mxu0 %v5364
      %5523 = vmatpush.msra.mxu0 %v5362
      %5524 = vmatpush.msra.mxu0 %v5360
      %5525 = vmatpush.msra.mxu0 %v5358
      %5526 = vmatpush.msra.mxu0 %v5356
      %5527 = vmatpush.msra.mxu0 %v5354
      %5528 = vmatpush.msra.mxu0 %v5352
      %5529 = vmatpush.msra.mxu0 %v5350
      %5530 = vmatmul.f32.gmra.mxu0 %v5493
      %v5531 = vpop.f32.mrf.mxu0
      %v5532 = vadd.f32 %v5512, %v5531
      %5533 = vdwg.mxu0
      %5534 = vmatpush.msra.mxu0 %v5349
      %5535 = vmatpush.msra.mxu0 %v5347
      %5536 = vmatpush.msra.mxu0 %v5345
      %5537 = vmatpush.msra.mxu0 %v5343
      %5538 = vmatpush.msra.mxu0 %v5341
      %5539 = vmatpush.msra.mxu0 %v5339
      %5540 = vmatpush.msra.mxu0 %v5337
      %5541 = vmatpush.msra.mxu0 %v5335
      %5542 = vmatpush.msra.mxu0 %v5333
      %5543 = vmatpush.msra.mxu0 %v5331
      %5544 = vmatpush.msra.mxu0 %v5329
      %5545 = vmatpush.msra.mxu0 %v5327
      %5546 = vmatpush.msra.mxu0 %v5325
      %5547 = vmatpush.msra.mxu0 %v5323
      %5548 = vmatpush.msra.mxu0 %v5321
      %5549 = vmatpush.msra.mxu0 %v5319
      %5550 = vmatmul.f32.gmra.mxu0 %v5487
      %v5551 = vpop.f32.mrf.mxu0
      %v5552 = vadd.f32 0.0, %v5551
      %5553 = vdwg.mxu0
      %5554 = vmatpush.msra.mxu0 %v5381
      %5555 = vmatpush.msra.mxu0 %v5379
      %5556 = vmatpush.msra.mxu0 %v5377
      %5557 = vmatpush.msra.mxu0 %v5375
      %5558 = vmatpush.msra.mxu0 %v5373
      %5559 = vmatpush.msra.mxu0 %v5371
      %5560 = vmatpush.msra.mxu0 %v5369
      %5561 = vmatpush.msra.mxu0 %v5367
      %5562 = vmatpush.msra.mxu0 %v5365
      %5563 = vmatpush.msra.mxu0 %v5363
      %5564 = vmatpush.msra.mxu0 %v5361
      %5565 = vmatpush.msra.mxu0 %v5359
      %5566 = vmatpush.msra.mxu0 %v5357
      %5567 = vmatpush.msra.mxu0 %v5355
      %5568 = vmatpush.msra.mxu0 %v5353
      %5569 = vmatpush.msra.mxu0 %v5351
      %5570 = vmatmul.f32.gmra.mxu0 %v5493
      %v5571 = vpop.f32.mrf.mxu0
      %v5572 = vadd.f32 %v5552, %v5571
      %5573 = vdwg.mxu0
      %v5574 = vmul.f32 %v5532, 0.015625
      %v5575 = vmul.f32 %v5572, 0.015625
      %v5576 = vadd.f32 %v5574, 1e-05
      %v5577 = vadd.f32 %v5575, 1e-05
      %v5578 = vrsqrt.pop %v5576
      %v5579 = vmul.f32 %v5578, %v5576
      %v5580 = vmul.f32 %v5579, %v5578
      %v5581 = vmul.f32 0.5, %v5580
      %v5582 = vsub.f32 1.5, %v5581
      %v5583 = vmul.f32 %v5578, %v5582
      %vm5584 = vweird.f32 %v5576
      %vm5585 = vweird.f32 %v5578
      %vm5586 = vmor %vm5584, %vm5585
      %v5587 = vsel %vm5586, %v5578, %v5583
      %v5588 = vrsqrt.pop %v5577
      %v5589 = vmul.f32 %v5588, %v5577
      %v5590 = vmul.f32 %v5589, %v5588
      %v5591 = vmul.f32 0.5, %v5590
      %v5592 = vsub.f32 1.5, %v5591
      %v5593 = vmul.f32 %v5588, %v5592
      %vm5594 = vweird.f32 %v5577
      %vm5595 = vweird.f32 %v5588
      %vm5596 = vmor %vm5594, %vm5595
      %v5597 = vsel %vm5596, %v5588, %v5593
      %v5598 = vperm.slane %v5587, 0
      %v5599 = vperm.slane %v5597, 0
      %v5600 = vmul.f32 %v5478, %v5598
      %v5601 = vmul.f32 %v5479, %v5599
      %v5602 = vld [vmem:[%s7] sm:$0x3]
      %v5604 = vperm.slane %v5602, 0
      %v5605 = vperm.slane %v5602, 1
      %v5608 = vmul.f32 %v5600, %v5604
      %v5609 = vmul.f32 %v5601, %v5605
      %v5610 = vld [vmem:[%s8] sm:$0x3]
      %v5612 = vperm.slane %v5610, 0
      %v5613 = vperm.slane %v5610, 1
      %v5616 = vadd.f32 %v5608, %v5612
      %v5617 = vadd.f32 %v5609, %v5613
      %vm5618 = vcmp.gt.f32.partialorder %v5616, 0.0
      %vm5619 = vcmp.gt.f32.partialorder %v5617, 0.0
      %v5620 = vmul.f32 %v5616, 0.2
      %v5621 = vmul.f32 %v5617, 0.2
      %v5622 = vsel %vm5618, %v5616, %v5620
      %v5623 = vsel %vm5619, %v5617, %v5621
      %vm5624 = vcmask 1042432
      %vm5625 = vmand %vm5624, %vm1722
      %vm5626 = vcmask 1046532
      %vm5627 = vmand %vm5626, %vm1725
      %vm5628 = vmor %vm5627, %vm5625
      %v5629 = vld [vmem:[#allocation4] sm:$0x77]
      %v5630 = vsel %vm5628, 0, %v5629
      %5631 = vst [vmem:[#allocation4] sm:$0x77] %v5630
      %vm5632 = vcmask 518144
      %vm5633 = vmand %vm5632, %vm1722
      %v5634 = vld [vmem:[#allocation4 + $0x8] sm:$0x7]
      %v5635 = vsel %vm5633, 0, %v5634
      %5636 = vst [vmem:[#allocation4 + $0x8] sm:$0x7] %v5635
      %v5637 = vld [vmem:[#allocation4 + $0xc] sm:$0x77]
      %v5638 = vsel %vm5628, 0, %v5637
      %5639 = vst [vmem:[#allocation4 + $0xc] sm:$0x77] %v5638
      %v5640 = vld [vmem:[#allocation4 + $0x14] sm:$0x7]
      %v5641 = vsel %vm5633, 0, %v5640
      %5642 = vst [vmem:[#allocation4 + $0x14] sm:$0x7] %v5641
      %v5643 = vpack.c.bf16 %v5623, %v5622
      %s5644 = scalar_lea.vmem [#allocation4], 12
      %v5645 = vld [vmem:[%s5644] sm:$0x11]
      %v5646 = vsel %vm1641, %v5643, %v5645
      %5647 = vst [vmem:[%s5644] sm:$0x11] %v5646
      %v5648 = vld [vmem:[#allocation4] sm:$0x11]
      %v5649 = vsel %vm1669, %v5643, %v5648
      %5650 = vst [vmem:[#allocation4] sm:$0x11] %v5649
      %v5652 = vshll.u32 %v5643, 16
      %v5654 = vrot.slane %v5652, 5
      %v5655 = vrot.slane %v5654, 4
      %v5657 = vld [vmem:[%s5644] sm:$0x11]
      %v5658 = vsel %vm1669, %v5655, %v5657
      %5659 = vst [vmem:[%s5644] sm:$0x11] %v5658
      %v5660 = vshrl.u32 %v5643, 16
      %v5662 = vrot.slane %v5660, 4
      %v5663 = vrot.slane %v5662, 4
      %v5665 = vld [vmem:[#allocation4] sm:$0x22]
      %v5666 = vsel %vm1693, %v5663, %v5665
      %5667 = vst [vmem:[#allocation4] sm:$0x22] %v5666
      %v5669 = vrot.slane %v5643, 5
      %v5670 = vrot.slane %v5669, 4
      %v5672 = vld [vmem:[%s5644] sm:$0x22]
      %v5673 = vsel %vm1693, %v5670, %v5672
      %5674 = vst [vmem:[%s5644] sm:$0x22] %v5673
      %v5675 = vld [vmem:[#allocation4] sm:$0x22]
      %v5676 = vsel %vm1708, %v5670, %v5675
      %5677 = vst [vmem:[#allocation4] sm:$0x22] %v5676
      %v5678 = vrot.slane %v5652, 6
      %v5679 = vrot.slane %v5678, 4
      %v5681 = vld [vmem:[%s5644] sm:$0x22]
      %v5682 = vsel %vm1708, %v5679, %v5681
      %5683 = vst [vmem:[%s5644] sm:$0x22] %v5682
      %v5684 = vrot.slane %v5660, 5
      %v5685 = vrot.slane %v5684, 4
      %v5687 = vld [vmem:[#allocation4] sm:$0x44]
      %v5688 = vsel %vm1727, %v5685, %v5687
      %5689 = vst [vmem:[#allocation4] sm:$0x44] %v5688
      %v5690 = vld [vmem:[#allocation4] sm:$0x33]
      %v5691 = vld [vmem:[#allocation4 + $0x8] sm:$0x3]
      %v5692 = vld [vmem:[%s4] sm:$0xff]
      %v5693 = vld [vmem:[%s4 + $0x8] sm:$0xff]
      %v5694 = vld [vmem:[%s4 + $0x10] sm:$0xff]
      %v5695 = vld [vmem:[%s4 + $0x18] sm:$0xff]
      %v5696 = vld [vmem:[%s4 + $0x20] sm:$0xff]
      %v5697 = vld [vmem:[%s4 + $0x28] sm:$0xff]
      %v5698 = vld [vmem:[%s4 + $0x30] sm:$0xff]
      %v5699 = vld [vmem:[%s4 + $0x38] sm:$0xff]
      %v5700 = vld [vmem:[%s4 + $0x40] sm:$0xff]
      %v5701 = vld [vmem:[%s4 + $0x48] sm:$0xff]
      %v5702 = vld [vmem:[%s4 + $0x50] sm:$0xff]
      %v5703 = vld [vmem:[%s4 + $0x58] sm:$0xff]
      %v5704 = vld [vmem:[%s4 + $0x60] sm:$0xff]
      %v5705 = vld [vmem:[%s4 + $0x68] sm:$0xff]
      %v5706 = vld [vmem:[%s4 + $0x70] sm:$0xff]
      %v5707 = vld [vmem:[%s4 + $0x78] sm:$0xff]
      %v5708 = vld [vmem:[%s4 + $0x80] sm:$0xff]
      %v5709 = vld [vmem:[%s4 + $0x88] sm:$0xff]
      %v5710 = vld [vmem:[%s4 + $0x90] sm:$0xff]
      %v5711 = vld [vmem:[%s4 + $0x98] sm:$0xff]
      %v5712 = vld [vmem:[%s4 + $0xa0] sm:$0xff]
      %v5713 = vld [vmem:[%s4 + $0xa8] sm:$0xff]
      %v5714 = vld [vmem:[%s4 + $0xb0] sm:$0xff]
      %v5715 = vld [vmem:[%s4 + $0xb8] sm:$0xff]
      %v5716 = vld [vmem:[%s4 + $0xc0] sm:$0xff]
      %v5717 = vld [vmem:[%s4 + $0xc8] sm:$0xff]
      %v5718 = vld [vmem:[%s4 + $0xd0] sm:$0xff]
      %v5719 = vld [vmem:[%s4 + $0xd8] sm:$0xff]
      %v5720 = vld [vmem:[%s4 + $0xe0] sm:$0xff]
      %v5721 = vld [vmem:[%s4 + $0xe8] sm:$0xff]
      %v5722 = vld [vmem:[%s4 + $0xf0] sm:$0xff]
      %v5723 = vld [vmem:[%s4 + $0xf8] sm:$0xff]
      %v5724 = vld [vmem:[%s4 + $0x100] sm:$0xff]
      %v5725 = vld [vmem:[%s4 + $0x108] sm:$0xff]
      %v5726 = vld [vmem:[%s4 + $0x110] sm:$0xff]
      %v5727 = vld [vmem:[%s4 + $0x118] sm:$0xff]
      %v5728 = vld [vmem:[%s4 + $0x120] sm:$0xff]
      %v5729 = vld [vmem:[%s4 + $0x128] sm:$0xff]
      %v5730 = vld [vmem:[%s4 + $0x130] sm:$0xff]
      %v5731 = vld [vmem:[%s4 + $0x138] sm:$0xff]
      %v5732 = vld [vmem:[%s5644] sm:$0x33]
      %v5733 = vld [vmem:[%s5644 + $0x8] sm:$0x3]
      %s5734 = scalar_lea.vmem %s4, 320
      %v5735 = vld [vmem:[%s5734] sm:$0xff]
      %v5736 = vld [vmem:[%s5734 + $0x8] sm:$0xff]
      %v5737 = vld [vmem:[%s5734 + $0x10] sm:$0xff]
      %v5738 = vld [vmem:[%s5734 + $0x18] sm:$0xff]
      %v5739 = vld [vmem:[%s5734 + $0x20] sm:$0xff]
      %v5740 = vld [vmem:[%s5734 + $0x28] sm:$0xff]
      %v5741 = vld [vmem:[%s5734 + $0x30] sm:$0xff]
      %v5742 = vld [vmem:[%s5734 + $0x38] sm:$0xff]
      %v5743 = vld [vmem:[%s5734 + $0x40] sm:$0xff]
      %v5744 = vld [vmem:[%s5734 + $0x48] sm:$0xff]
      %v5745 = vld [vmem:[%s5734 + $0x50] sm:$0xff]
      %v5746 = vld [vmem:[%s5734 + $0x58] sm:$0xff]
      %v5747 = vld [vmem:[%s5734 + $0x60] sm:$0xff]
      %v5748 = vld [vmem:[%s5734 + $0x68] sm:$0xff]
      %v5749 = vld [vmem:[%s5734 + $0x70] sm:$0xff]
      %v5750 = vld [vmem:[%s5734 + $0x78] sm:$0xff]
      %v5751 = vld [vmem:[%s5734 + $0x80] sm:$0xff]
      %v5752 = vld [vmem:[%s5734 + $0x88] sm:$0xff]
      %v5753 = vld [vmem:[%s5734 + $0x90] sm:$0xff]
      %v5754 = vld [vmem:[%s5734 + $0x98] sm:$0xff]
      %v5755 = vld [vmem:[%s5734 + $0xa0] sm:$0xff]
      %v5756 = vld [vmem:[%s5734 + $0xa8] sm:$0xff]
      %v5757 = vld [vmem:[%s5734 + $0xb0] sm:$0xff]
      %v5758 = vld [vmem:[%s5734 + $0xb8] sm:$0xff]
      %v5759 = vld [vmem:[%s5734 + $0xc0] sm:$0xff]
      %v5760 = vld [vmem:[%s5734 + $0xc8] sm:$0xff]
      %v5761 = vld [vmem:[%s5734 + $0xd0] sm:$0xff]
      %v5762 = vld [vmem:[%s5734 + $0xd8] sm:$0xff]
      %v5763 = vld [vmem:[%s5734 + $0xe0] sm:$0xff]
      %v5764 = vld [vmem:[%s5734 + $0xe8] sm:$0xff]
      %v5765 = vld [vmem:[%s5734 + $0xf0] sm:$0xff]
      %v5766 = vld [vmem:[%s5734 + $0xf8] sm:$0xff]
      %v5767 = vld [vmem:[%s5734 + $0x100] sm:$0xff]
      %v5768 = vld [vmem:[%s5734 + $0x108] sm:$0xff]
      %v5769 = vld [vmem:[%s5734 + $0x110] sm:$0xff]
      %v5770 = vld [vmem:[%s5734 + $0x118] sm:$0xff]
      %v5771 = vld [vmem:[%s5734 + $0x120] sm:$0xff]
      %v5772 = vld [vmem:[%s5734 + $0x128] sm:$0xff]
      %v5773 = vld [vmem:[%s5734 + $0x130] sm:$0xff]
      %v5774 = vld [vmem:[%s5734 + $0x138] sm:$0xff]
      %v5777 = vunpack.c.l.b16 %v5732
      %v5778 = vunpack.c.h.b16 %v5732
      %v5779 = vunpack.c.l.b16 %v5733
      %v5780 = vpack.c.b16 %v5777, %v5777
      %v5781 = vpack.c.b16 %v5778, %v5778
      %v5782 = vpack.c.b16 %v5779, %v5779
      %v5825 = vunpack.c.l.b16 %v5735
      %v5826 = vunpack.c.h.b16 %v5735
      %v5827 = vunpack.c.l.b16 %v5736
      %v5828 = vunpack.c.h.b16 %v5736
      %v5829 = vunpack.c.l.b16 %v5737
      %v5830 = vunpack.c.h.b16 %v5737
      %v5831 = vunpack.c.l.b16 %v5738
      %v5832 = vunpack.c.h.b16 %v5738
      %v5833 = vunpack.c.l.b16 %v5739
      %v5834 = vunpack.c.h.b16 %v5739
      %v5835 = vunpack.c.l.b16 %v5740
      %v5836 = vunpack.c.h.b16 %v5740
      %v5837 = vunpack.c.l.b16 %v5741
      %v5838 = vunpack.c.h.b16 %v5741
      %v5839 = vunpack.c.l.b16 %v5742
      %v5840 = vunpack.c.h.b16 %v5742
      %v5841 = vunpack.c.l.b16 %v5743
      %v5842 = vunpack.c.h.b16 %v5743
      %v5843 = vunpack.c.l.b16 %v5744
      %v5844 = vunpack.c.h.b16 %v5744
      %v5845 = vunpack.c.l.b16 %v5745
      %v5846 = vunpack.c.h.b16 %v5745
      %v5847 = vunpack.c.l.b16 %v5746
      %v5848 = vunpack.c.h.b16 %v5746
      %v5849 = vunpack.c.l.b16 %v5747
      %v5850 = vunpack.c.h.b16 %v5747
      %v5851 = vunpack.c.l.b16 %v5748
      %v5852 = vunpack.c.h.b16 %v5748
      %v5853 = vunpack.c.l.b16 %v5749
      %v5854 = vunpack.c.h.b16 %v5749
      %v5855 = vunpack.c.l.b16 %v5750
      %v5856 = vunpack.c.h.b16 %v5750
      %v5857 = vunpack.c.l.b16 %v5751
      %v5858 = vunpack.c.h.b16 %v5751
      %v5859 = vunpack.c.l.b16 %v5752
      %v5860 = vunpack.c.h.b16 %v5752
      %v5861 = vunpack.c.l.b16 %v5753
      %v5862 = vunpack.c.h.b16 %v5753
      %v5863 = vunpack.c.l.b16 %v5754
      %v5864 = vunpack.c.h.b16 %v5754
      %v5865 = vunpack.c.l.b16 %v5755
      %v5866 = vunpack.c.h.b16 %v5755
      %v5867 = vunpack.c.l.b16 %v5756
      %v5868 = vunpack.c.h.b16 %v5756
      %v5869 = vunpack.c.l.b16 %v5757
      %v5870 = vunpack.c.h.b16 %v5757
      %v5871 = vunpack.c.l.b16 %v5758
      %v5872 = vunpack.c.h.b16 %v5758
      %v5873 = vunpack.c.l.b16 %v5759
      %v5874 = vunpack.c.h.b16 %v5759
      %v5875 = vunpack.c.l.b16 %v5760
      %v5876 = vunpack.c.h.b16 %v5760
      %v5877 = vunpack.c.l.b16 %v5761
      %v5878 = vunpack.c.h.b16 %v5761
      %v5879 = vunpack.c.l.b16 %v5762
      %v5880 = vunpack.c.h.b16 %v5762
      %v5881 = vunpack.c.l.b16 %v5763
      %v5882 = vunpack.c.h.b16 %v5763
      %v5883 = vunpack.c.l.b16 %v5764
      %v5884 = vunpack.c.h.b16 %v5764
      %v5885 = vunpack.c.l.b16 %v5765
      %v5886 = vunpack.c.h.b16 %v5765
      %v5887 = vunpack.c.l.b16 %v5766
      %v5888 = vunpack.c.h.b16 %v5766
      %v5889 = vunpack.c.l.b16 %v5767
      %v5890 = vunpack.c.h.b16 %v5767
      %v5891 = vunpack.c.l.b16 %v5768
      %v5892 = vunpack.c.h.b16 %v5768
      %v5893 = vunpack.c.l.b16 %v5769
      %v5894 = vunpack.c.h.b16 %v5769
      %v5895 = vunpack.c.l.b16 %v5770
      %v5896 = vunpack.c.h.b16 %v5770
      %v5897 = vunpack.c.l.b16 %v5771
      %v5898 = vunpack.c.h.b16 %v5771
      %v5899 = vunpack.c.l.b16 %v5772
      %v5900 = vunpack.c.h.b16 %v5772
      %v5901 = vunpack.c.l.b16 %v5773
      %v5902 = vunpack.c.h.b16 %v5773
      %v5903 = vunpack.c.l.b16 %v5774
      %v5904 = vunpack.c.h.b16 %v5774
      %v5905 = vpack.c.b16 %v5827, %v5825
      %v5906 = vpack.c.b16 %v5828, %v5826
      %v5907 = vpack.c.b16 %v5831, %v5829
      %v5908 = vpack.c.b16 %v5832, %v5830
      %v5909 = vpack.c.b16 %v5835, %v5833
      %v5910 = vpack.c.b16 %v5836, %v5834
      %v5911 = vpack.c.b16 %v5839, %v5837
      %v5912 = vpack.c.b16 %v5840, %v5838
      %v5913 = vpack.c.b16 %v5843, %v5841
      %v5914 = vpack.c.b16 %v5844, %v5842
      %v5915 = vpack.c.b16 %v5847, %v5845
      %v5916 = vpack.c.b16 %v5848, %v5846
      %v5917 = vpack.c.b16 %v5851, %v5849
      %v5918 = vpack.c.b16 %v5852, %v5850
      %v5919 = vpack.c.b16 %v5855, %v5853
      %v5920 = vpack.c.b16 %v5856, %v5854
      %v5921 = vpack.c.b16 %v5859, %v5857
      %v5922 = vpack.c.b16 %v5860, %v5858
      %v5923 = vpack.c.b16 %v5863, %v5861
      %v5924 = vpack.c.b16 %v5864, %v5862
      %v5925 = vpack.c.b16 %v5867, %v5865
      %v5926 = vpack.c.b16 %v5868, %v5866
      %v5927 = vpack.c.b16 %v5871, %v5869
      %v5928 = vpack.c.b16 %v5872, %v5870
      %v5929 = vpack.c.b16 %v5875, %v5873
      %v5930 = vpack.c.b16 %v5876, %v5874
      %v5931 = vpack.c.b16 %v5879, %v5877
      %v5932 = vpack.c.b16 %v5880, %v5878
      %v5933 = vpack.c.b16 %v5883, %v5881
      %v5934 = vpack.c.b16 %v5884, %v5882
      %v5935 = vpack.c.b16 %v5887, %v5885
      %v5936 = vpack.c.b16 %v5888, %v5886
      %v5937 = vpack.c.b16 %v5891, %v5889
      %v5938 = vpack.c.b16 %v5892, %v5890
      %v5939 = vpack.c.b16 %v5895, %v5893
      %v5940 = vpack.c.b16 %v5896, %v5894
      %v5941 = vpack.c.b16 %v5899, %v5897
      %v5942 = vpack.c.b16 %v5900, %v5898
      %v5943 = vpack.c.b16 %v5903, %v5901
      %v5944 = vpack.c.b16 %v5904, %v5902
      %vm5985 = vcmask 523264
      %v5987 = vsel %vm5985, %v5782, 0
      %5989 = vmatpush.bf16.msra.mxu0 %v5919
      %5990 = vmatpush.bf16.msra.mxu0 %v5917
      %5991 = vmatpush.bf16.msra.mxu0 %v5915
      %5992 = vmatpush.bf16.msra.mxu0 %v5913
      %5993 = vmatpush.bf16.msra.mxu0 %v5911
      %5994 = vmatpush.bf16.msra.mxu0 %v5909
      %5995 = vmatpush.bf16.msra.mxu0 %v5907
      %5996 = vmatpush.bf16.msra.mxu0 %v5905
      %5997 = vmatmul.bf16.gmra.mxu0 %v5780
      %v5998 = vpop.f32.mrf.mxu0
      %v5999 = vadd.f32 0.0, %v5998
      %v6000 = vpop.f32.mrf.mxu0
      %6001 = vdwg.mxu0
      %6002 = vmatpush.bf16.msra.mxu0 %v5935
      %6003 = vmatpush.bf16.msra.mxu0 %v5933
      %6004 = vmatpush.bf16.msra.mxu0 %v5931
      %6005 = vmatpush.bf16.msra.mxu0 %v5929
      %6006 = vmatpush.bf16.msra.mxu0 %v5927
      %6007 = vmatpush.bf16.msra.mxu0 %v5925
      %6008 = vmatpush.bf16.msra.mxu0 %v5923
      %6009 = vmatpush.bf16.msra.mxu0 %v5921
      %6010 = vmatmul.bf16.gmra.mxu0 %v5781
      %v6011 = vpop.f32.mrf.mxu0
      %v6012 = vadd.f32 %v5999, %v6011
      %v6013 = vpop.f32.mrf.mxu0
      %6014 = vdwg.mxu0
      %6015 = vmatpush.bf16.msra.mxu0 0
      %6016 = vmatpush.bf16.msra.mxu0 0
      %6017 = vmatpush.bf16.msra.mxu0 0
      %6018 = vmatpush.bf16.msra.mxu0 0
      %6019 = vmatpush.bf16.msra.mxu0 %v5943
      %6020 = vmatpush.bf16.msra.mxu0 %v5941
      %6021 = vmatpush.bf16.msra.mxu0 %v5939
      %6022 = vmatpush.bf16.msra.mxu0 %v5937
      %6023 = vmatmul.bf16.gmra.mxu0 %v5987
      %v6024 = vpop.f32.mrf.mxu0
      %v6025 = vadd.f32 %v6012, %v6024
      %v6026 = vpop.f32.mrf.mxu0
      %6027 = vdwg.mxu0
      %6028 = vmatpush.bf16.msra.mxu0 %v5920
      %6029 = vmatpush.bf16.msra.mxu0 %v5918
      %6030 = vmatpush.bf16.msra.mxu0 %v5916
      %6031 = vmatpush.bf16.msra.mxu0 %v5914
      %6032 = vmatpush.bf16.msra.mxu0 %v5912
      %6033 = vmatpush.bf16.msra.mxu0 %v5910
      %6034 = vmatpush.bf16.msra.mxu0 %v5908
      %6035 = vmatpush.bf16.msra.mxu0 %v5906
      %6036 = vmatmul.bf16.gmra.mxu0 %v5780
      %v6037 = vpop.f32.mrf.mxu0
      %v6038 = vadd.f32 0.0, %v6037
      %v6039 = vpop.f32.mrf.mxu0
      %6040 = vdwg.mxu0
      %6041 = vmatpush.bf16.msra.mxu0 %v5936
      %6042 = vmatpush.bf16.msra.mxu0 %v5934
      %6043 = vmatpush.bf16.msra.mxu0 %v5932
      %6044 = vmatpush.bf16.msra.mxu0 %v5930
      %6045 = vmatpush.bf16.msra.mxu0 %v5928
      %6046 = vmatpush.bf16.msra.mxu0 %v5926
      %6047 = vmatpush.bf16.msra.mxu0 %v5924
      %6048 = vmatpush.bf16.msra.mxu0 %v5922
      %6049 = vmatmul.bf16.gmra.mxu0 %v5781
      %v6050 = vpop.f32.mrf.mxu0
      %v6051 = vadd.f32 %v6038, %v6050
      %v6052 = vpop.f32.mrf.mxu0
      %6053 = vdwg.mxu0
      %6054 = vmatpush.bf16.msra.mxu0 0
      %6055 = vmatpush.bf16.msra.mxu0 0
      %6056 = vmatpush.bf16.msra.mxu0 0
      %6057 = vmatpush.bf16.msra.mxu0 0
      %6058 = vmatpush.bf16.msra.mxu0 %v5944
      %6059 = vmatpush.bf16.msra.mxu0 %v5942
      %6060 = vmatpush.bf16.msra.mxu0 %v5940
      %6061 = vmatpush.bf16.msra.mxu0 %v5938
      %6062 = vmatmul.bf16.gmra.mxu0 %v5987
      %v6063 = vpop.f32.mrf.mxu0
      %v6064 = vadd.f32 %v6051, %v6063
      %v6065 = vpop.f32.mrf.mxu0
      %6066 = vdwg.mxu0
      %v6069 = vunpack.c.l.b16 %v5690
      %v6070 = vunpack.c.h.b16 %v5690
      %v6071 = vunpack.c.l.b16 %v5691
      %v6072 = vpack.c.b16 %v6069, %v6069
      %v6073 = vpack.c.b16 %v6070, %v6070
      %v6074 = vpack.c.b16 %v6071, %v6071
      %v6117 = vunpack.c.l.b16 %v5692
      %v6118 = vunpack.c.h.b16 %v5692
      %v6119 = vunpack.c.l.b16 %v5693
      %v6120 = vunpack.c.h.b16 %v5693
      %v6121 = vunpack.c.l.b16 %v5694
      %v6122 = vunpack.c.h.b16 %v5694
      %v6123 = vunpack.c.l.b16 %v5695
      %v6124 = vunpack.c.h.b16 %v5695
      %v6125 = vunpack.c.l.b16 %v5696
      %v6126 = vunpack.c.h.b16 %v5696
      %v6127 = vunpack.c.l.b16 %v5697
      %v6128 = vunpack.c.h.b16 %v5697
      %v6129 = vunpack.c.l.b16 %v5698
      %v6130 = vunpack.c.h.b16 %v5698
      %v6131 = vunpack.c.l.b16 %v5699
      %v6132 = vunpack.c.h.b16 %v5699
      %v6133 = vunpack.c.l.b16 %v5700
      %v6134 = vunpack.c.h.b16 %v5700
      %v6135 = vunpack.c.l.b16 %v5701
      %v6136 = vunpack.c.h.b16 %v5701
      %v6137 = vunpack.c.l.b16 %v5702
      %v6138 = vunpack.c.h.b16 %v5702
      %v6139 = vunpack.c.l.b16 %v5703
      %v6140 = vunpack.c.h.b16 %v5703
      %v6141 = vunpack.c.l.b16 %v5704
      %v6142 = vunpack.c.h.b16 %v5704
      %v6143 = vunpack.c.l.b16 %v5705
      %v6144 = vunpack.c.h.b16 %v5705
      %v6145 = vunpack.c.l.b16 %v5706
      %v6146 = vunpack.c.h.b16 %v5706
      %v6147 = vunpack.c.l.b16 %v5707
      %v6148 = vunpack.c.h.b16 %v5707
      %v6149 = vunpack.c.l.b16 %v5708
      %v6150 = vunpack.c.h.b16 %v5708
      %v6151 = vunpack.c.l.b16 %v5709
      %v6152 = vunpack.c.h.b16 %v5709
      %v6153 = vunpack.c.l.b16 %v5710
      %v6154 = vunpack.c.h.b16 %v5710
      %v6155 = vunpack.c.l.b16 %v5711
      %v6156 = vunpack.c.h.b16 %v5711
      %v6157 = vunpack.c.l.b16 %v5712
      %v6158 = vunpack.c.h.b16 %v5712
      %v6159 = vunpack.c.l.b16 %v5713
      %v6160 = vunpack.c.h.b16 %v5713
      %v6161 = vunpack.c.l.b16 %v5714
      %v6162 = vunpack.c.h.b16 %v5714
      %v6163 = vunpack.c.l.b16 %v5715
      %v6164 = vunpack.c.h.b16 %v5715
      %v6165 = vunpack.c.l.b16 %v5716
      %v6166 = vunpack.c.h.b16 %v5716
      %v6167 = vunpack.c.l.b16 %v5717
      %v6168 = vunpack.c.h.b16 %v5717
      %v6169 = vunpack.c.l.b16 %v5718
      %v6170 = vunpack.c.h.b16 %v5718
      %v6171 = vunpack.c.l.b16 %v5719
      %v6172 = vunpack.c.h.b16 %v5719
      %v6173 = vunpack.c.l.b16 %v5720
      %v6174 = vunpack.c.h.b16 %v5720
      %v6175 = vunpack.c.l.b16 %v5721
      %v6176 = vunpack.c.h.b16 %v5721
      %v6177 = vunpack.c.l.b16 %v5722
      %v6178 = vunpack.c.h.b16 %v5722
      %v6179 = vunpack.c.l.b16 %v5723
      %v6180 = vunpack.c.h.b16 %v5723
      %v6181 = vunpack.c.l.b16 %v5724
      %v6182 = vunpack.c.h.b16 %v5724
      %v6183 = vunpack.c.l.b16 %v5725
      %v6184 = vunpack.c.h.b16 %v5725
      %v6185 = vunpack.c.l.b16 %v5726
      %v6186 = vunpack.c.h.b16 %v5726
      %v6187 = vunpack.c.l.b16 %v5727
      %v6188 = vunpack.c.h.b16 %v5727
      %v6189 = vunpack.c.l.b16 %v5728
      %v6190 = vunpack.c.h.b16 %v5728
      %v6191 = vunpack.c.l.b16 %v5729
      %v6192 = vunpack.c.h.b16 %v5729
      %v6193 = vunpack.c.l.b16 %v5730
      %v6194 = vunpack.c.h.b16 %v5730
      %v6195 = vunpack.c.l.b16 %v5731
      %v6196 = vunpack.c.h.b16 %v5731
      %v6197 = vpack.c.b16 %v6119, %v6117
      %v6198 = vpack.c.b16 %v6120, %v6118
      %v6199 = vpack.c.b16 %v6123, %v6121
      %v6200 = vpack.c.b16 %v6124, %v6122
      %v6201 = vpack.c.b16 %v6127, %v6125
      %v6202 = vpack.c.b16 %v6128, %v6126
      %v6203 = vpack.c.b16 %v6131, %v6129
      %v6204 = vpack.c.b16 %v6132, %v6130
      %v6205 = vpack.c.b16 %v6135, %v6133
      %v6206 = vpack.c.b16 %v6136, %v6134
      %v6207 = vpack.c.b16 %v6139, %v6137
      %v6208 = vpack.c.b16 %v6140, %v6138
      %v6209 = vpack.c.b16 %v6143, %v6141
      %v6210 = vpack.c.b16 %v6144, %v6142
      %v6211 = vpack.c.b16 %v6147, %v6145
      %v6212 = vpack.c.b16 %v6148, %v6146
      %v6213 = vpack.c.b16 %v6151, %v6149
      %v6214 = vpack.c.b16 %v6152, %v6150
      %v6215 = vpack.c.b16 %v6155, %v6153
      %v6216 = vpack.c.b16 %v6156, %v6154
      %v6217 = vpack.c.b16 %v6159, %v6157
      %v6218 = vpack.c.b16 %v6160, %v6158
      %v6219 = vpack.c.b16 %v6163, %v6161
      %v6220 = vpack.c.b16 %v6164, %v6162
      %v6221 = vpack.c.b16 %v6167, %v6165
      %v6222 = vpack.c.b16 %v6168, %v6166
      %v6223 = vpack.c.b16 %v6171, %v6169
      %v6224 = vpack.c.b16 %v6172, %v6170
      %v6225 = vpack.c.b16 %v6175, %v6173
      %v6226 = vpack.c.b16 %v6176, %v6174
      %v6227 = vpack.c.b16 %v6179, %v6177
      %v6228 = vpack.c.b16 %v6180, %v6178
      %v6229 = vpack.c.b16 %v6183, %v6181
      %v6230 = vpack.c.b16 %v6184, %v6182
      %v6231 = vpack.c.b16 %v6187, %v6185
      %v6232 = vpack.c.b16 %v6188, %v6186
      %v6233 = vpack.c.b16 %v6191, %v6189
      %v6234 = vpack.c.b16 %v6192, %v6190
      %v6235 = vpack.c.b16 %v6195, %v6193
      %v6236 = vpack.c.b16 %v6196, %v6194
      %v6278 = vsel %vm5985, %v6074, 0
      %6280 = vmatpush.bf16.msra.mxu0 %v6211
      %6281 = vmatpush.bf16.msra.mxu0 %v6209
      %6282 = vmatpush.bf16.msra.mxu0 %v6207
      %6283 = vmatpush.bf16.msra.mxu0 %v6205
      %6284 = vmatpush.bf16.msra.mxu0 %v6203
      %6285 = vmatpush.bf16.msra.mxu0 %v6201
      %6286 = vmatpush.bf16.msra.mxu0 %v6199
      %6287 = vmatpush.bf16.msra.mxu0 %v6197
      %6288 = vmatmul.bf16.gmra.mxu0 %v6072
      %v6289 = vpop.f32.mrf.mxu0
      %v6290 = vadd.f32 %v6025, %v6289
      %v6291 = vpop.f32.mrf.mxu0
      %6292 = vdwg.mxu0
      %6293 = vmatpush.bf16.msra.mxu0 %v6227
      %6294 = vmatpush.bf16.msra.mxu0 %v6225
      %6295 = vmatpush.bf16.msra.mxu0 %v6223
      %6296 = vmatpush.bf16.msra.mxu0 %v6221
      %6297 = vmatpush.bf16.msra.mxu0 %v6219
      %6298 = vmatpush.bf16.msra.mxu0 %v6217
      %6299 = vmatpush.bf16.msra.mxu0 %v6215
      %6300 = vmatpush.bf16.msra.mxu0 %v6213
      %6301 = vmatmul.bf16.gmra.mxu0 %v6073
      %v6302 = vpop.f32.mrf.mxu0
      %v6303 = vadd.f32 %v6290, %v6302
      %v6304 = vpop.f32.mrf.mxu0
      %6305 = vdwg.mxu0
      %6306 = vmatpush.bf16.msra.mxu0 0
      %6307 = vmatpush.bf16.msra.mxu0 0
      %6308 = vmatpush.bf16.msra.mxu0 0
      %6309 = vmatpush.bf16.msra.mxu0 0
      %6310 = vmatpush.bf16.msra.mxu0 %v6235
      %6311 = vmatpush.bf16.msra.mxu0 %v6233
      %6312 = vmatpush.bf16.msra.mxu0 %v6231
      %6313 = vmatpush.bf16.msra.mxu0 %v6229
      %6314 = vmatmul.bf16.gmra.mxu0 %v6278
      %v6315 = vpop.f32.mrf.mxu0
      %v6316 = vadd.f32 %v6303, %v6315
      %v6317 = vpop.f32.mrf.mxu0
      %6318 = vdwg.mxu0
      %6319 = vmatpush.bf16.msra.mxu0 %v6212
      %6320 = vmatpush.bf16.msra.mxu0 %v6210
      %6321 = vmatpush.bf16.msra.mxu0 %v6208
      %6322 = vmatpush.bf16.msra.mxu0 %v6206
      %6323 = vmatpush.bf16.msra.mxu0 %v6204
      %6324 = vmatpush.bf16.msra.mxu0 %v6202
      %6325 = vmatpush.bf16.msra.mxu0 %v6200
      %6326 = vmatpush.bf16.msra.mxu0 %v6198
      %6327 = vmatmul.bf16.gmra.mxu0 %v6072
      %v6328 = vpop.f32.mrf.mxu0
      %v6329 = vadd.f32 %v6064, %v6328
      %v6330 = vpop.f32.mrf.mxu0
      %6331 = vdwg.mxu0
      %6332 = vmatpush.bf16.msra.mxu0 %v6228
      %6333 = vmatpush.bf16.msra.mxu0 %v6226
      %6334 = vmatpush.bf16.msra.mxu0 %v6224
      %6335 = vmatpush.bf16.msra.mxu0 %v6222
      %6336 = vmatpush.bf16.msra.mxu0 %v6220
      %6337 = vmatpush.bf16.msra.mxu0 %v6218
      %6338 = vmatpush.bf16.msra.mxu0 %v6216
      %6339 = vmatpush.bf16.msra.mxu0 %v6214
      %6340 = vmatmul.bf16.gmra.mxu0 %v6073
      %v6341 = vpop.f32.mrf.mxu0
      %v6342 = vadd.f32 %v6329, %v6341
      %v6343 = vpop.f32.mrf.mxu0
      %6344 = vdwg.mxu0
      %6345 = vmatpush.bf16.msra.mxu0 0
      %6346 = vmatpush.bf16.msra.mxu0 0
      %6347 = vmatpush.bf16.msra.mxu0 0
      %6348 = vmatpush.bf16.msra.mxu0 0
      %6349 = vmatpush.bf16.msra.mxu0 %v6236
      %6350 = vmatpush.bf16.msra.mxu0 %v6234
      %6351 = vmatpush.bf16.msra.mxu0 %v6232
      %6352 = vmatpush.bf16.msra.mxu0 %v6230
      %6353 = vmatmul.bf16.gmra.mxu0 %v6278
      %v6354 = vpop.f32.mrf.mxu0
      %v6355 = vadd.f32 %v6342, %v6354
      %v6356 = vpop.f32.mrf.mxu0
      %6357 = vdwg.mxu0
      %v6358 = vld [vmem:[#allocation4] sm:$0x77]
      %v6359 = vld [vmem:[#allocation4 + $0x8] sm:$0x7]
      %s6360 = scalar_lea.vmem %s4, 640
      %v6361 = vld [vmem:[%s6360] sm:$0xff]
      %v6362 = vld [vmem:[%s6360 + $0x8] sm:$0xff]
      %v6363 = vld [vmem:[%s6360 + $0x10] sm:$0xff]
      %v6364 = vld [vmem:[%s6360 + $0x18] sm:$0xff]
      %v6365 = vld [vmem:[%s6360 + $0x20] sm:$0xff]
      %v6366 = vld [vmem:[%s6360 + $0x28] sm:$0xff]
      %v6367 = vld [vmem:[%s6360 + $0x30] sm:$0xff]
      %v6368 = vld [vmem:[%s6360 + $0x38] sm:$0xff]
      %v6369 = vld [vmem:[%s6360 + $0x40] sm:$0xff]
      %v6370 = vld [vmem:[%s6360 + $0x48] sm:$0xff]
      %v6371 = vld [vmem:[%s6360 + $0x50] sm:$0xff]
      %v6372 = vld [vmem:[%s6360 + $0x58] sm:$0xff]
      %v6373 = vld [vmem:[%s6360 + $0x60] sm:$0xff]
      %v6374 = vld [vmem:[%s6360 + $0x68] sm:$0xff]
      %v6375 = vld [vmem:[%s6360 + $0x70] sm:$0xff]
      %v6376 = vld [vmem:[%s6360 + $0x78] sm:$0xff]
      %v6377 = vld [vmem:[%s6360 + $0x80] sm:$0xff]
      %v6378 = vld [vmem:[%s6360 + $0x88] sm:$0xff]
      %v6379 = vld [vmem:[%s6360 + $0x90] sm:$0xff]
      %v6380 = vld [vmem:[%s6360 + $0x98] sm:$0xff]
      %v6381 = vld [vmem:[%s6360 + $0xa0] sm:$0xff]
      %v6382 = vld [vmem:[%s6360 + $0xa8] sm:$0xff]
      %v6383 = vld [vmem:[%s6360 + $0xb0] sm:$0xff]
      %v6384 = vld [vmem:[%s6360 + $0xb8] sm:$0xff]
      %v6385 = vld [vmem:[%s6360 + $0xc0] sm:$0xff]
      %v6386 = vld [vmem:[%s6360 + $0xc8] sm:$0xff]
      %v6387 = vld [vmem:[%s6360 + $0xd0] sm:$0xff]
      %v6388 = vld [vmem:[%s6360 + $0xd8] sm:$0xff]
      %v6389 = vld [vmem:[%s6360 + $0xe0] sm:$0xff]
      %v6390 = vld [vmem:[%s6360 + $0xe8] sm:$0xff]
      %v6391 = vld [vmem:[%s6360 + $0xf0] sm:$0xff]
      %v6392 = vld [vmem:[%s6360 + $0xf8] sm:$0xff]
      %v6393 = vld [vmem:[%s6360 + $0x100] sm:$0xff]
      %v6394 = vld [vmem:[%s6360 + $0x108] sm:$0xff]
      %v6395 = vld [vmem:[%s6360 + $0x110] sm:$0xff]
      %v6396 = vld [vmem:[%s6360 + $0x118] sm:$0xff]
      %v6397 = vld [vmem:[%s6360 + $0x120] sm:$0xff]
      %v6398 = vld [vmem:[%s6360 + $0x128] sm:$0xff]
      %v6399 = vld [vmem:[%s6360 + $0x130] sm:$0xff]
      %v6400 = vld [vmem:[%s6360 + $0x138] sm:$0xff]
      %v6403 = vunpack.c.l.b16 %v6358
      %v6404 = vunpack.c.h.b16 %v6358
      %v6405 = vunpack.c.l.b16 %v6359
      %v6406 = vpack.c.b16 %v6403, %v6403
      %v6407 = vpack.c.b16 %v6404, %v6404
      %v6408 = vpack.c.b16 %v6405, %v6405
      %v6410 = vshrl.u32 %v6406, 16
      %v6412 = vshll.u32 %v6406, 16
      %v6414 = vrot.slane %v6412, 1
      %v6415 = vor.u32 %v6410, %v6414
      %v6417 = vshrl.u32 %v6407, 16
      %v6419 = vshll.u32 %v6407, 16
      %v6421 = vrot.slane %v6419, 1
      %v6422 = vor.u32 %v6417, %v6421
      %v6424 = vshrl.u32 %v6408, 16
      %v6426 = vshll.u32 %v6408, 16
      %v6428 = vrot.slane %v6426, 1
      %v6429 = vor.u32 %v6424, %v6428
      %v6472 = vunpack.c.l.b16 %v6361
      %v6473 = vunpack.c.h.b16 %v6361
      %v6474 = vunpack.c.l.b16 %v6362
      %v6475 = vunpack.c.h.b16 %v6362
      %v6476 = vunpack.c.l.b16 %v6363
      %v6477 = vunpack.c.h.b16 %v6363
      %v6478 = vunpack.c.l.b16 %v6364
      %v6479 = vunpack.c.h.b16 %v6364
      %v6480 = vunpack.c.l.b16 %v6365
      %v6481 = vunpack.c.h.b16 %v6365
      %v6482 = vunpack.c.l.b16 %v6366
      %v6483 = vunpack.c.h.b16 %v6366
      %v6484 = vunpack.c.l.b16 %v6367
      %v6485 = vunpack.c.h.b16 %v6367
      %v6486 = vunpack.c.l.b16 %v6368
      %v6487 = vunpack.c.h.b16 %v6368
      %v6488 = vunpack.c.l.b16 %v6369
      %v6489 = vunpack.c.h.b16 %v6369
      %v6490 = vunpack.c.l.b16 %v6370
      %v6491 = vunpack.c.h.b16 %v6370
      %v6492 = vunpack.c.l.b16 %v6371
      %v6493 = vunpack.c.h.b16 %v6371
      %v6494 = vunpack.c.l.b16 %v6372
      %v6495 = vunpack.c.h.b16 %v6372
      %v6496 = vunpack.c.l.b16 %v6373
      %v6497 = vunpack.c.h.b16 %v6373
      %v6498 = vunpack.c.l.b16 %v6374
      %v6499 = vunpack.c.h.b16 %v6374
      %v6500 = vunpack.c.l.b16 %v6375
      %v6501 = vunpack.c.h.b16 %v6375
      %v6502 = vunpack.c.l.b16 %v6376
      %v6503 = vunpack.c.h.b16 %v6376
      %v6504 = vunpack.c.l.b16 %v6377
      %v6505 = vunpack.c.h.b16 %v6377
      %v6506 = vunpack.c.l.b16 %v6378
      %v6507 = vunpack.c.h.b16 %v6378
      %v6508 = vunpack.c.l.b16 %v6379
      %v6509 = vunpack.c.h.b16 %v6379
      %v6510 = vunpack.c.l.b16 %v6380
      %v6511 = vunpack.c.h.b16 %v6380
      %v6512 = vunpack.c.l.b16 %v6381
      %v6513 = vunpack.c.h.b16 %v6381
      %v6514 = vunpack.c.l.b16 %v6382
      %v6515 = vunpack.c.h.b16 %v6382
      %v6516 = vunpack.c.l.b16 %v6383
      %v6517 = vunpack.c.h.b16 %v6383
      %v6518 = vunpack.c.l.b16 %v6384
      %v6519 = vunpack.c.h.b16 %v6384
      %v6520 = vunpack.c.l.b16 %v6385
      %v6521 = vunpack.c.h.b16 %v6385
      %v6522 = vunpack.c.l.b16 %v6386
      %v6523 = vunpack.c.h.b16 %v6386
      %v6524 = vunpack.c.l.b16 %v6387
      %v6525 = vunpack.c.h.b16 %v6387
      %v6526 = vunpack.c.l.b16 %v6388
      %v6527 = vunpack.c.h.b16 %v6388
      %v6528 = vunpack.c.l.b16 %v6389
      %v6529 = vunpack.c.h.b16 %v6389
      %v6530 = vunpack.c.l.b16 %v6390
      %v6531 = vunpack.c.h.b16 %v6390
      %v6532 = vunpack.c.l.b16 %v6391
      %v6533 = vunpack.c.h.b16 %v6391
      %v6534 = vunpack.c.l.b16 %v6392
      %v6535 = vunpack.c.h.b16 %v6392
      %v6536 = vunpack.c.l.b16 %v6393
      %v6537 = vunpack.c.h.b16 %v6393
      %v6538 = vunpack.c.l.b16 %v6394
      %v6539 = vunpack.c.h.b16 %v6394
      %v6540 = vunpack.c.l.b16 %v6395
      %v6541 = vunpack.c.h.b16 %v6395
      %v6542 = vunpack.c.l.b16 %v6396
      %v6543 = vunpack.c.h.b16 %v6396
      %v6544 = vunpack.c.l.b16 %v6397
      %v6545 = vunpack.c.h.b16 %v6397
      %v6546 = vunpack.c.l.b16 %v6398
      %v6547 = vunpack.c.h.b16 %v6398
      %v6548 = vunpack.c.l.b16 %v6399
      %v6549 = vunpack.c.h.b16 %v6399
      %v6550 = vunpack.c.l.b16 %v6400
      %v6551 = vunpack.c.h.b16 %v6400
      %v6552 = vpack.c.b16 %v6474, %v6472
      %v6553 = vpack.c.b16 %v6475, %v6473
      %v6554 = vpack.c.b16 %v6478, %v6476
      %v6555 = vpack.c.b16 %v6479, %v6477
      %v6556 = vpack.c.b16 %v6482, %v6480
      %v6557 = vpack.c.b16 %v6483, %v6481
      %v6558 = vpack.c.b16 %v6486, %v6484
      %v6559 = vpack.c.b16 %v6487, %v6485
      %v6560 = vpack.c.b16 %v6490, %v6488
      %v6561 = vpack.c.b16 %v6491, %v6489
      %v6562 = vpack.c.b16 %v6494, %v6492
      %v6563 = vpack.c.b16 %v6495, %v6493
      %v6564 = vpack.c.b16 %v6498, %v6496
      %v6565 = vpack.c.b16 %v6499, %v6497
      %v6566 = vpack.c.b16 %v6502, %v6500
      %v6567 = vpack.c.b16 %v6503, %v6501
      %v6568 = vpack.c.b16 %v6506, %v6504
      %v6569 = vpack.c.b16 %v6507, %v6505
      %v6570 = vpack.c.b16 %v6510, %v6508
      %v6571 = vpack.c.b16 %v6511, %v6509
      %v6572 = vpack.c.b16 %v6514, %v6512
      %v6573 = vpack.c.b16 %v6515, %v6513
      %v6574 = vpack.c.b16 %v6518, %v6516
      %v6575 = vpack.c.b16 %v6519, %v6517
      %v6576 = vpack.c.b16 %v6522, %v6520
      %v6577 = vpack.c.b16 %v6523, %v6521
      %v6578 = vpack.c.b16 %v6526, %v6524
      %v6579 = vpack.c.b16 %v6527, %v6525
      %v6580 = vpack.c.b16 %v6530, %v6528
      %v6581 = vpack.c.b16 %v6531, %v6529
      %v6582 = vpack.c.b16 %v6534, %v6532
      %v6583 = vpack.c.b16 %v6535, %v6533
      %v6584 = vpack.c.b16 %v6538, %v6536
      %v6585 = vpack.c.b16 %v6539, %v6537
      %v6586 = vpack.c.b16 %v6542, %v6540
      %v6587 = vpack.c.b16 %v6543, %v6541
      %v6588 = vpack.c.b16 %v6546, %v6544
      %v6589 = vpack.c.b16 %v6547, %v6545
      %v6590 = vpack.c.b16 %v6550, %v6548
      %v6591 = vpack.c.b16 %v6551, %v6549
      %v6633 = vsel %vm5985, %v6429, 0
      %6635 = vmatpush.bf16.msra.mxu0 %v6566
      %6636 = vmatpush.bf16.msra.mxu0 %v6564
      %6637 = vmatpush.bf16.msra.mxu0 %v6562
      %6638 = vmatpush.bf16.msra.mxu0 %v6560
      %6639 = vmatpush.bf16.msra.mxu0 %v6558
      %6640 = vmatpush.bf16.msra.mxu0 %v6556
      %6641 = vmatpush.bf16.msra.mxu0 %v6554
      %6642 = vmatpush.bf16.msra.mxu0 %v6552
      %6643 = vmatmul.bf16.gmra.mxu0 %v6415
      %v6644 = vpop.f32.mrf.mxu0
      %v6645 = vadd.f32 0.0, %v6644
      %v6646 = vpop.f32.mrf.mxu0
      %6647 = vdwg.mxu0
      %6648 = vmatpush.bf16.msra.mxu0 %v6582
      %6649 = vmatpush.bf16.msra.mxu0 %v6580
      %6650 = vmatpush.bf16.msra.mxu0 %v6578
      %6651 = vmatpush.bf16.msra.mxu0 %v6576
      %6652 = vmatpush.bf16.msra.mxu0 %v6574
      %6653 = vmatpush.bf16.msra.mxu0 %v6572
      %6654 = vmatpush.bf16.msra.mxu0 %v6570
      %6655 = vmatpush.bf16.msra.mxu0 %v6568
      %6656 = vmatmul.bf16.gmra.mxu0 %v6422
      %v6657 = vpop.f32.mrf.mxu0
      %v6658 = vadd.f32 %v6645, %v6657
      %v6659 = vpop.f32.mrf.mxu0
      %6660 = vdwg.mxu0
      %6661 = vmatpush.bf16.msra.mxu0 0
      %6662 = vmatpush.bf16.msra.mxu0 0
      %6663 = vmatpush.bf16.msra.mxu0 0
      %6664 = vmatpush.bf16.msra.mxu0 0
      %6665 = vmatpush.bf16.msra.mxu0 %v6590
      %6666 = vmatpush.bf16.msra.mxu0 %v6588
      %6667 = vmatpush.bf16.msra.mxu0 %v6586
      %6668 = vmatpush.bf16.msra.mxu0 %v6584
      %6669 = vmatmul.bf16.gmra.mxu0 %v6633
      %v6670 = vpop.f32.mrf.mxu0
      %v6671 = vadd.f32 %v6658, %v6670
      %v6672 = vpop.f32.mrf.mxu0
      %6673 = vdwg.mxu0
      %6674 = vmatpush.bf16.msra.mxu0 %v6567
      %6675 = vmatpush.bf16.msra.mxu0 %v6565
      %6676 = vmatpush.bf16.msra.mxu0 %v6563
      %6677 = vmatpush.bf16.msra.mxu0 %v6561
      %6678 = vmatpush.bf16.msra.mxu0 %v6559
      %6679 = vmatpush.bf16.msra.mxu0 %v6557
      %6680 = vmatpush.bf16.msra.mxu0 %v6555
      %6681 = vmatpush.bf16.msra.mxu0 %v6553
      %6682 = vmatmul.bf16.gmra.mxu0 %v6415
      %v6683 = vpop.f32.mrf.mxu0
      %v6684 = vadd.f32 0.0, %v6683
      %v6685 = vpop.f32.mrf.mxu0
      %6686 = vdwg.mxu0
      %6687 = vmatpush.bf16.msra.mxu0 %v6583
      %6688 = vmatpush.bf16.msra.mxu0 %v6581
      %6689 = vmatpush.bf16.msra.mxu0 %v6579
      %6690 = vmatpush.bf16.msra.mxu0 %v6577
      %6691 = vmatpush.bf16.msra.mxu0 %v6575
      %6692 = vmatpush.bf16.msra.mxu0 %v6573
      %6693 = vmatpush.bf16.msra.mxu0 %v6571
      %6694 = vmatpush.bf16.msra.mxu0 %v6569
      %6695 = vmatmul.bf16.gmra.mxu0 %v6422
      %v6696 = vpop.f32.mrf.mxu0
      %v6697 = vadd.f32 %v6684, %v6696
      %v6698 = vpop.f32.mrf.mxu0
      %6699 = vdwg.mxu0
      %6700 = vmatpush.bf16.msra.mxu0 0
      %6701 = vmatpush.bf16.msra.mxu0 0
      %6702 = vmatpush.bf16.msra.mxu0 0
      %6703 = vmatpush.bf16.msra.mxu0 0
      %6704 = vmatpush.bf16.msra.mxu0 %v6591
      %6705 = vmatpush.bf16.msra.mxu0 %v6589
      %6706 = vmatpush.bf16.msra.mxu0 %v6587
      %6707 = vmatpush.bf16.msra.mxu0 %v6585
      %6708 = vmatmul.bf16.gmra.mxu0 %v6633
      %v6709 = vpop.f32.mrf.mxu0
      %v6710 = vadd.f32 %v6697, %v6709
      %v6711 = vpop.f32.mrf.mxu0
      %6712 = vdwg.mxu0
      %v6713 = vadd.f32 %v6316, %v6671
      %v6714 = vadd.f32 %v6355, %v6710
      %v6715 = vld [vmem:[%s5644] sm:$0x77]
      %v6716 = vld [vmem:[%s5644 + $0x8] sm:$0x7]
      %s6717 = scalar_lea.vmem %s4, 960
      %v6718 = vld [vmem:[%s6717] sm:$0xff]
      %v6719 = vld [vmem:[%s6717 + $0x8] sm:$0xff]
      %v6720 = vld [vmem:[%s6717 + $0x10] sm:$0xff]
      %v6721 = vld [vmem:[%s6717 + $0x18] sm:$0xff]
      %v6722 = vld [vmem:[%s6717 + $0x20] sm:$0xff]
      %v6723 = vld [vmem:[%s6717 + $0x28] sm:$0xff]
      %v6724 = vld [vmem:[%s6717 + $0x30] sm:$0xff]
      %v6725 = vld [vmem:[%s6717 + $0x38] sm:$0xff]
      %v6726 = vld [vmem:[%s6717 + $0x40] sm:$0xff]
      %v6727 = vld [vmem:[%s6717 + $0x48] sm:$0xff]
      %v6728 = vld [vmem:[%s6717 + $0x50] sm:$0xff]
      %v6729 = vld [vmem:[%s6717 + $0x58] sm:$0xff]
      %v6730 = vld [vmem:[%s6717 + $0x60] sm:$0xff]
      %v6731 = vld [vmem:[%s6717 + $0x68] sm:$0xff]
      %v6732 = vld [vmem:[%s6717 + $0x70] sm:$0xff]
      %v6733 = vld [vmem:[%s6717 + $0x78] sm:$0xff]
      %v6734 = vld [vmem:[%s6717 + $0x80] sm:$0xff]
      %v6735 = vld [vmem:[%s6717 + $0x88] sm:$0xff]
      %v6736 = vld [vmem:[%s6717 + $0x90] sm:$0xff]
      %v6737 = vld [vmem:[%s6717 + $0x98] sm:$0xff]
      %v6738 = vld [vmem:[%s6717 + $0xa0] sm:$0xff]
      %v6739 = vld [vmem:[%s6717 + $0xa8] sm:$0xff]
      %v6740 = vld [vmem:[%s6717 + $0xb0] sm:$0xff]
      %v6741 = vld [vmem:[%s6717 + $0xb8] sm:$0xff]
      %v6742 = vld [vmem:[%s6717 + $0xc0] sm:$0xff]
      %v6743 = vld [vmem:[%s6717 + $0xc8] sm:$0xff]
      %v6744 = vld [vmem:[%s6717 + $0xd0] sm:$0xff]
      %v6745 = vld [vmem:[%s6717 + $0xd8] sm:$0xff]
      %v6746 = vld [vmem:[%s6717 + $0xe0] sm:$0xff]
      %v6747 = vld [vmem:[%s6717 + $0xe8] sm:$0xff]
      %v6748 = vld [vmem:[%s6717 + $0xf0] sm:$0xff]
      %v6749 = vld [vmem:[%s6717 + $0xf8] sm:$0xff]
      %v6750 = vld [vmem:[%s6717 + $0x100] sm:$0xff]
      %v6751 = vld [vmem:[%s6717 + $0x108] sm:$0xff]
      %v6752 = vld [vmem:[%s6717 + $0x110] sm:$0xff]
      %v6753 = vld [vmem:[%s6717 + $0x118] sm:$0xff]
      %v6754 = vld [vmem:[%s6717 + $0x120] sm:$0xff]
      %v6755 = vld [vmem:[%s6717 + $0x128] sm:$0xff]
      %v6756 = vld [vmem:[%s6717 + $0x130] sm:$0xff]
      %v6757 = vld [vmem:[%s6717 + $0x138] sm:$0xff]
      %v6760 = vunpack.c.l.b16 %v6715
      %v6761 = vunpack.c.h.b16 %v6715
      %v6762 = vunpack.c.l.b16 %v6716
      %v6763 = vpack.c.b16 %v6760, %v6760
      %v6764 = vpack.c.b16 %v6761, %v6761
      %v6765 = vpack.c.b16 %v6762, %v6762
      %v6767 = vshrl.u32 %v6763, 16
      %v6769 = vshll.u32 %v6763, 16
      %v6771 = vrot.slane %v6769, 1
      %v6772 = vor.u32 %v6767, %v6771
      %v6774 = vshrl.u32 %v6764, 16
      %v6776 = vshll.u32 %v6764, 16
      %v6778 = vrot.slane %v6776, 1
      %v6779 = vor.u32 %v6774, %v6778
      %v6781 = vshrl.u32 %v6765, 16
      %v6783 = vshll.u32 %v6765, 16
      %v6785 = vrot.slane %v6783, 1
      %v6786 = vor.u32 %v6781, %v6785
      %v6829 = vunpack.c.l.b16 %v6718
      %v6830 = vunpack.c.h.b16 %v6718
      %v6831 = vunpack.c.l.b16 %v6719
      %v6832 = vunpack.c.h.b16 %v6719
      %v6833 = vunpack.c.l.b16 %v6720
      %v6834 = vunpack.c.h.b16 %v6720
      %v6835 = vunpack.c.l.b16 %v6721
      %v6836 = vunpack.c.h.b16 %v6721
      %v6837 = vunpack.c.l.b16 %v6722
      %v6838 = vunpack.c.h.b16 %v6722
      %v6839 = vunpack.c.l.b16 %v6723
      %v6840 = vunpack.c.h.b16 %v6723
      %v6841 = vunpack.c.l.b16 %v6724
      %v6842 = vunpack.c.h.b16 %v6724
      %v6843 = vunpack.c.l.b16 %v6725
      %v6844 = vunpack.c.h.b16 %v6725
      %v6845 = vunpack.c.l.b16 %v6726
      %v6846 = vunpack.c.h.b16 %v6726
      %v6847 = vunpack.c.l.b16 %v6727
      %v6848 = vunpack.c.h.b16 %v6727
      %v6849 = vunpack.c.l.b16 %v6728
      %v6850 = vunpack.c.h.b16 %v6728
      %v6851 = vunpack.c.l.b16 %v6729
      %v6852 = vunpack.c.h.b16 %v6729
      %v6853 = vunpack.c.l.b16 %v6730
      %v6854 = vunpack.c.h.b16 %v6730
      %v6855 = vunpack.c.l.b16 %v6731
      %v6856 = vunpack.c.h.b16 %v6731
      %v6857 = vunpack.c.l.b16 %v6732
      %v6858 = vunpack.c.h.b16 %v6732
      %v6859 = vunpack.c.l.b16 %v6733
      %v6860 = vunpack.c.h.b16 %v6733
      %v6861 = vunpack.c.l.b16 %v6734
      %v6862 = vunpack.c.h.b16 %v6734
      %v6863 = vunpack.c.l.b16 %v6735
      %v6864 = vunpack.c.h.b16 %v6735
      %v6865 = vunpack.c.l.b16 %v6736
      %v6866 = vunpack.c.h.b16 %v6736
      %v6867 = vunpack.c.l.b16 %v6737
      %v6868 = vunpack.c.h.b16 %v6737
      %v6869 = vunpack.c.l.b16 %v6738
      %v6870 = vunpack.c.h.b16 %v6738
      %v6871 = vunpack.c.l.b16 %v6739
      %v6872 = vunpack.c.h.b16 %v6739
      %v6873 = vunpack.c.l.b16 %v6740
      %v6874 = vunpack.c.h.b16 %v6740
      %v6875 = vunpack.c.l.b16 %v6741
      %v6876 = vunpack.c.h.b16 %v6741
      %v6877 = vunpack.c.l.b16 %v6742
      %v6878 = vunpack.c.h.b16 %v6742
      %v6879 = vunpack.c.l.b16 %v6743
      %v6880 = vunpack.c.h.b16 %v6743
      %v6881 = vunpack.c.l.b16 %v6744
      %v6882 = vunpack.c.h.b16 %v6744
      %v6883 = vunpack.c.l.b16 %v6745
      %v6884 = vunpack.c.h.b16 %v6745
      %v6885 = vunpack.c.l.b16 %v6746
      %v6886 = vunpack.c.h.b16 %v6746
      %v6887 = vunpack.c.l.b16 %v6747
      %v6888 = vunpack.c.h.b16 %v6747
      %v6889 = vunpack.c.l.b16 %v6748
      %v6890 = vunpack.c.h.b16 %v6748
      %v6891 = vunpack.c.l.b16 %v6749
      %v6892 = vunpack.c.h.b16 %v6749
      %v6893 = vunpack.c.l.b16 %v6750
      %v6894 = vunpack.c.h.b16 %v6750
      %v6895 = vunpack.c.l.b16 %v6751
      %v6896 = vunpack.c.h.b16 %v6751
      %v6897 = vunpack.c.l.b16 %v6752
      %v6898 = vunpack.c.h.b16 %v6752
      %v6899 = vunpack.c.l.b16 %v6753
      %v6900 = vunpack.c.h.b16 %v6753
      %v6901 = vunpack.c.l.b16 %v6754
      %v6902 = vunpack.c.h.b16 %v6754
      %v6903 = vunpack.c.l.b16 %v6755
      %v6904 = vunpack.c.h.b16 %v6755
      %v6905 = vunpack.c.l.b16 %v6756
      %v6906 = vunpack.c.h.b16 %v6756
      %v6907 = vunpack.c.l.b16 %v6757
      %v6908 = vunpack.c.h.b16 %v6757
      %v6909 = vpack.c.b16 %v6831, %v6829
      %v6910 = vpack.c.b16 %v6832, %v6830
      %v6911 = vpack.c.b16 %v6835, %v6833
      %v6912 = vpack.c.b16 %v6836, %v6834
      %v6913 = vpack.c.b16 %v6839, %v6837
      %v6914 = vpack.c.b16 %v6840, %v6838
      %v6915 = vpack.c.b16 %v6843, %v6841
      %v6916 = vpack.c.b16 %v6844, %v6842
      %v6917 = vpack.c.b16 %v6847, %v6845
      %v6918 = vpack.c.b16 %v6848, %v6846
      %v6919 = vpack.c.b16 %v6851, %v6849
      %v6920 = vpack.c.b16 %v6852, %v6850
      %v6921 = vpack.c.b16 %v6855, %v6853
      %v6922 = vpack.c.b16 %v6856, %v6854
      %v6923 = vpack.c.b16 %v6859, %v6857
      %v6924 = vpack.c.b16 %v6860, %v6858
      %v6925 = vpack.c.b16 %v6863, %v6861
      %v6926 = vpack.c.b16 %v6864, %v6862
      %v6927 = vpack.c.b16 %v6867, %v6865
      %v6928 = vpack.c.b16 %v6868, %v6866
      %v6929 = vpack.c.b16 %v6871, %v6869
      %v6930 = vpack.c.b16 %v6872, %v6870
      %v6931 = vpack.c.b16 %v6875, %v6873
      %v6932 = vpack.c.b16 %v6876, %v6874
      %v6933 = vpack.c.b16 %v6879, %v6877
      %v6934 = vpack.c.b16 %v6880, %v6878
      %v6935 = vpack.c.b16 %v6883, %v6881
      %v6936 = vpack.c.b16 %v6884, %v6882
      %v6937 = vpack.c.b16 %v6887, %v6885
      %v6938 = vpack.c.b16 %v6888, %v6886
      %v6939 = vpack.c.b16 %v6891, %v6889
      %v6940 = vpack.c.b16 %v6892, %v6890
      %v6941 = vpack.c.b16 %v6895, %v6893
      %v6942 = vpack.c.b16 %v6896, %v6894
      %v6943 = vpack.c.b16 %v6899, %v6897
      %v6944 = vpack.c.b16 %v6900, %v6898
      %v6945 = vpack.c.b16 %v6903, %v6901
      %v6946 = vpack.c.b16 %v6904, %v6902
      %v6947 = vpack.c.b16 %v6907, %v6905
      %v6948 = vpack.c.b16 %v6908, %v6906
      %v6990 = vsel %vm5985, %v6786, 0
      %6992 = vmatpush.bf16.msra.mxu0 %v6923
      %6993 = vmatpush.bf16.msra.mxu0 %v6921
      %6994 = vmatpush.bf16.msra.mxu0 %v6919
      %6995 = vmatpush.bf16.msra.mxu0 %v6917
      %6996 = vmatpush.bf16.msra.mxu0 %v6915
      %6997 = vmatpush.bf16.msra.mxu0 %v6913
      %6998 = vmatpush.bf16.msra.mxu0 %v6911
      %6999 = vmatpush.bf16.msra.mxu0 %v6909
      %7000 = vmatmul.bf16.gmra.mxu0 %v6772
      %v7001 = vpop.f32.mrf.mxu0
      %v7002 = vadd.f32 0.0, %v7001
      %v7003 = vpop.f32.mrf.mxu0
      %7004 = vdwg.mxu0
      %7005 = vmatpush.bf16.msra.mxu0 %v6939
      %7006 = vmatpush.bf16.msra.mxu0 %v6937
      %7007 = vmatpush.bf16.msra.mxu0 %v6935
      %7008 = vmatpush.bf16.msra.mxu0 %v6933
      %7009 = vmatpush.bf16.msra.mxu0 %v6931
      %7010 = vmatpush.bf16.msra.mxu0 %v6929
      %7011 = vmatpush.bf16.msra.mxu0 %v6927
      %7012 = vmatpush.bf16.msra.mxu0 %v6925
      %7013 = vmatmul.bf16.gmra.mxu0 %v6779
      %v7014 = vpop.f32.mrf.mxu0
      %v7015 = vadd.f32 %v7002, %v7014
      %v7016 = vpop.f32.mrf.mxu0
      %7017 = vdwg.mxu0
      %7018 = vmatpush.bf16.msra.mxu0 0
      %7019 = vmatpush.bf16.msra.mxu0 0
      %7020 = vmatpush.bf16.msra.mxu0 0
      %7021 = vmatpush.bf16.msra.mxu0 0
      %7022 = vmatpush.bf16.msra.mxu0 %v6947
      %7023 = vmatpush.bf16.msra.mxu0 %v6945
      %7024 = vmatpush.bf16.msra.mxu0 %v6943
      %7025 = vmatpush.bf16.msra.mxu0 %v6941
      %7026 = vmatmul.bf16.gmra.mxu0 %v6990
      %v7027 = vpop.f32.mrf.mxu0
      %v7028 = vadd.f32 %v7015, %v7027
      %v7029 = vpop.f32.mrf.mxu0
      %7030 = vdwg.mxu0
      %7031 = vmatpush.bf16.msra.mxu0 %v6924
      %7032 = vmatpush.bf16.msra.mxu0 %v6922
      %7033 = vmatpush.bf16.msra.mxu0 %v6920
      %7034 = vmatpush.bf16.msra.mxu0 %v6918
      %7035 = vmatpush.bf16.msra.mxu0 %v6916
      %7036 = vmatpush.bf16.msra.mxu0 %v6914
      %7037 = vmatpush.bf16.msra.mxu0 %v6912
      %7038 = vmatpush.bf16.msra.mxu0 %v6910
      %7039 = vmatmul.bf16.gmra.mxu0 %v6772
      %v7040 = vpop.f32.mrf.mxu0
      %v7041 = vadd.f32 0.0, %v7040
      %v7042 = vpop.f32.mrf.mxu0
      %7043 = vdwg.mxu0
      %7044 = vmatpush.bf16.msra.mxu0 %v6940
      %7045 = vmatpush.bf16.msra.mxu0 %v6938
      %7046 = vmatpush.bf16.msra.mxu0 %v6936
      %7047 = vmatpush.bf16.msra.mxu0 %v6934
      %7048 = vmatpush.bf16.msra.mxu0 %v6932
      %7049 = vmatpush.bf16.msra.mxu0 %v6930
      %7050 = vmatpush.bf16.msra.mxu0 %v6928
      %7051 = vmatpush.bf16.msra.mxu0 %v6926
      %7052 = vmatmul.bf16.gmra.mxu0 %v6779
      %v7053 = vpop.f32.mrf.mxu0
      %v7054 = vadd.f32 %v7041, %v7053
      %v7055 = vpop.f32.mrf.mxu0
      %7056 = vdwg.mxu0
      %7057 = vmatpush.bf16.msra.mxu0 0
      %7058 = vmatpush.bf16.msra.mxu0 0
      %7059 = vmatpush.bf16.msra.mxu0 0
      %7060 = vmatpush.bf16.msra.mxu0 0
      %7061 = vmatpush.bf16.msra.mxu0 %v6948
      %7062 = vmatpush.bf16.msra.mxu0 %v6946
      %7063 = vmatpush.bf16.msra.mxu0 %v6944
      %7064 = vmatpush.bf16.msra.mxu0 %v6942
      %7065 = vmatmul.bf16.gmra.mxu0 %v6990
      %v7066 = vpop.f32.mrf.mxu0
      %v7067 = vadd.f32 %v7054, %v7066
      %v7068 = vpop.f32.mrf.mxu0
      %7069 = vdwg.mxu0
      %v7070 = vadd.f32 %v6713, %v7028
      %v7071 = vadd.f32 %v6714, %v7067
      %v7072 = vand.u32 %v3224, 63
      %v7073 = vand.u32 %v3225, 63
      %v7074 = vand.u32 %v3226, 63
      %v7075 = vand.u32 %v3227, 63
      %v7076 = vand.u32 %v3228, 63
      %v7077 = vand.u32 %v3229, 63
      %v7078 = vand.u32 %v3230, 63
      %v7079 = vand.u32 %v3231, 63
      %v7080 = vand.u32 %v3232, 63
      %v7081 = vand.u32 %v3233, 63
      %v7082 = vand.u32 %v3234, 63
      %v7083 = vand.u32 %v3235, 63
      %v7084 = vand.u32 %v3236, 63
      %v7085 = vand.u32 %v3237, 63
      %v7086 = vand.u32 %v3238, 63
      %v7087 = vand.u32 %v3239, 63
      %v7088 = vand.u32 %v3240, 63
      %v7089 = vand.u32 %v3241, 63
      %v7090 = vand.u32 %v3242, 63
      %v7091 = vand.u32 %v3243, 63
      %v7092 = vand.u32 %v3244, 63
      %v7093 = vand.u32 %v3245, 63
      %v7094 = vand.u32 %v3246, 63
      %v7095 = vand.u32 %v3247, 63
      %v7096 = vand.u32 %v3248, 63
      %v7097 = vand.u32 %v3249, 63
      %v7098 = vand.u32 %v3250, 63
      %v7099 = vand.u32 %v3251, 63
      %v7100 = vand.u32 %v3252, 63
      %v7101 = vand.u32 %v3253, 63
      %v7102 = vand.u32 %v3254, 63
      %v7103 = vand.u32 %v3255, 63
      %v7104 = vand.u32 %v3257, 63
      %v7105 = vand.u32 %v3258, 63
      %vm7106 = vcmp.eq.s32.totalorder %v7072, %v7104
      %vm7107 = vcmp.eq.s32.totalorder %v7072, %v7105
      %vm7108 = vcmp.eq.s32.totalorder %v7073, %v7104
      %vm7109 = vcmp.eq.s32.totalorder %v7073, %v7105
      %vm7110 = vcmp.eq.s32.totalorder %v7074, %v7104
      %vm7111 = vcmp.eq.s32.totalorder %v7074, %v7105
      %vm7112 = vcmp.eq.s32.totalorder %v7075, %v7104
      %vm7113 = vcmp.eq.s32.totalorder %v7075, %v7105
      %vm7114 = vcmp.eq.s32.totalorder %v7076, %v7104
      %vm7115 = vcmp.eq.s32.totalorder %v7076, %v7105
      %vm7116 = vcmp.eq.s32.totalorder %v7077, %v7104
      %vm7117 = vcmp.eq.s32.totalorder %v7077, %v7105
      %vm7118 = vcmp.eq.s32.totalorder %v7078, %v7104
      %vm7119 = vcmp.eq.s32.totalorder %v7078, %v7105
      %vm7120 = vcmp.eq.s32.totalorder %v7079, %v7104
      %vm7121 = vcmp.eq.s32.totalorder %v7079, %v7105
      %vm7122 = vcmp.eq.s32.totalorder %v7080, %v7104
      %vm7123 = vcmp.eq.s32.totalorder %v7080, %v7105
      %vm7124 = vcmp.eq.s32.totalorder %v7081, %v7104
      %vm7125 = vcmp.eq.s32.totalorder %v7081, %v7105
      %vm7126 = vcmp.eq.s32.totalorder %v7082, %v7104
      %vm7127 = vcmp.eq.s32.totalorder %v7082, %v7105
      %vm7128 = vcmp.eq.s32.totalorder %v7083, %v7104
      %vm7129 = vcmp.eq.s32.totalorder %v7083, %v7105
      %vm7130 = vcmp.eq.s32.totalorder %v7084, %v7104
      %vm7131 = vcmp.eq.s32.totalorder %v7084, %v7105
      %vm7132 = vcmp.eq.s32.totalorder %v7085, %v7104
      %vm7133 = vcmp.eq.s32.totalorder %v7085, %v7105
      %vm7134 = vcmp.eq.s32.totalorder %v7086, %v7104
      %vm7135 = vcmp.eq.s32.totalorder %v7086, %v7105
      %vm7136 = vcmp.eq.s32.totalorder %v7087, %v7104
      %vm7137 = vcmp.eq.s32.totalorder %v7087, %v7105
      %vm7138 = vcmp.eq.s32.totalorder %v7088, %v7104
      %vm7139 = vcmp.eq.s32.totalorder %v7088, %v7105
      %vm7140 = vcmp.eq.s32.totalorder %v7089, %v7104
      %vm7141 = vcmp.eq.s32.totalorder %v7089, %v7105
      %vm7142 = vcmp.eq.s32.totalorder %v7090, %v7104
      %vm7143 = vcmp.eq.s32.totalorder %v7090, %v7105
      %vm7144 = vcmp.eq.s32.totalorder %v7091, %v7104
      %vm7145 = vcmp.eq.s32.totalorder %v7091, %v7105
      %vm7146 = vcmp.eq.s32.totalorder %v7092, %v7104
      %vm7147 = vcmp.eq.s32.totalorder %v7092, %v7105
      %vm7148 = vcmp.eq.s32.totalorder %v7093, %v7104
      %vm7149 = vcmp.eq.s32.totalorder %v7093, %v7105
      %vm7150 = vcmp.eq.s32.totalorder %v7094, %v7104
      %vm7151 = vcmp.eq.s32.totalorder %v7094, %v7105
      %vm7152 = vcmp.eq.s32.totalorder %v7095, %v7104
      %vm7153 = vcmp.eq.s32.totalorder %v7095, %v7105
      %vm7154 = vcmp.eq.s32.totalorder %v7096, %v7104
      %vm7155 = vcmp.eq.s32.totalorder %v7096, %v7105
      %vm7156 = vcmp.eq.s32.totalorder %v7097, %v7104
      %vm7157 = vcmp.eq.s32.totalorder %v7097, %v7105
      %vm7158 = vcmp.eq.s32.totalorder %v7098, %v7104
      %vm7159 = vcmp.eq.s32.totalorder %v7098, %v7105
      %vm7160 = vcmp.eq.s32.totalorder %v7099, %v7104
      %vm7161 = vcmp.eq.s32.totalorder %v7099, %v7105
      %vm7162 = vcmp.eq.s32.totalorder %v7100, %v7104
      %vm7163 = vcmp.eq.s32.totalorder %v7100, %v7105
      %vm7164 = vcmp.eq.s32.totalorder %v7101, %v7104
      %vm7165 = vcmp.eq.s32.totalorder %v7101, %v7105
      %vm7166 = vcmp.eq.s32.totalorder %v7102, %v7104
      %vm7167 = vcmp.eq.s32.totalorder %v7102, %v7105
      %vm7168 = vcmp.eq.s32.totalorder %v7103, %v7104
      %vm7169 = vcmp.eq.s32.totalorder %v7103, %v7105
      %v7170 = vsel %vm7106, 1, 0
      %v7171 = vsel %vm7107, 1, 0
      %v7172 = vsel %vm7108, 1, 0
      %v7173 = vsel %vm7109, 1, 0
      %v7174 = vsel %vm7110, 1, 0
      %v7175 = vsel %vm7111, 1, 0
      %v7176 = vsel %vm7112, 1, 0
      %v7177 = vsel %vm7113, 1, 0
      %v7178 = vsel %vm7114, 1, 0
      %v7179 = vsel %vm7115, 1, 0
      %v7180 = vsel %vm7116, 1, 0
      %v7181 = vsel %vm7117, 1, 0
      %v7182 = vsel %vm7118, 1, 0
      %v7183 = vsel %vm7119, 1, 0
      %v7184 = vsel %vm7120, 1, 0
      %v7185 = vsel %vm7121, 1, 0
      %v7186 = vsel %vm7122, 1, 0
      %v7187 = vsel %vm7123, 1, 0
      %v7188 = vsel %vm7124, 1, 0
      %v7189 = vsel %vm7125, 1, 0
      %v7190 = vsel %vm7126, 1, 0
      %v7191 = vsel %vm7127, 1, 0
      %v7192 = vsel %vm7128, 1, 0
      %v7193 = vsel %vm7129, 1, 0
      %v7194 = vsel %vm7130, 1, 0
      %v7195 = vsel %vm7131, 1, 0
      %v7196 = vsel %vm7132, 1, 0
      %v7197 = vsel %vm7133, 1, 0
      %v7198 = vsel %vm7134, 1, 0
      %v7199 = vsel %vm7135, 1, 0
      %v7200 = vsel %vm7136, 1, 0
      %v7201 = vsel %vm7137, 1, 0
      %v7202 = vsel %vm7138, 1, 0
      %v7203 = vsel %vm7139, 1, 0
      %v7204 = vsel %vm7140, 1, 0
      %v7205 = vsel %vm7141, 1, 0
      %v7206 = vsel %vm7142, 1, 0
      %v7207 = vsel %vm7143, 1, 0
      %v7208 = vsel %vm7144, 1, 0
      %v7209 = vsel %vm7145, 1, 0
      %v7210 = vsel %vm7146, 1, 0
      %v7211 = vsel %vm7147, 1, 0
      %v7212 = vsel %vm7148, 1, 0
      %v7213 = vsel %vm7149, 1, 0
      %v7214 = vsel %vm7150, 1, 0
      %v7215 = vsel %vm7151, 1, 0
      %v7216 = vsel %vm7152, 1, 0
      %v7217 = vsel %vm7153, 1, 0
      %v7218 = vsel %vm7154, 1, 0
      %v7219 = vsel %vm7155, 1, 0
      %v7220 = vsel %vm7156, 1, 0
      %v7221 = vsel %vm7157, 1, 0
      %v7222 = vsel %vm7158, 1, 0
      %v7223 = vsel %vm7159, 1, 0
      %v7224 = vsel %vm7160, 1, 0
      %v7225 = vsel %vm7161, 1, 0
      %v7226 = vsel %vm7162, 1, 0
      %v7227 = vsel %vm7163, 1, 0
      %v7228 = vsel %vm7164, 1, 0
      %v7229 = vsel %vm7165, 1, 0
      %v7230 = vsel %vm7166, 1, 0
      %v7231 = vsel %vm7167, 1, 0
      %v7232 = vsel %vm7168, 1, 0
      %v7233 = vsel %vm7169, 1, 0
      %v7234 = vcvt.s32.f32 %v7170
      %v7235 = vcvt.s32.f32 %v7171
      %v7236 = vcvt.s32.f32 %v7172
      %v7237 = vcvt.s32.f32 %v7173
      %v7238 = vcvt.s32.f32 %v7174
      %v7239 = vcvt.s32.f32 %v7175
      %v7240 = vcvt.s32.f32 %v7176
      %v7241 = vcvt.s32.f32 %v7177
      %v7242 = vcvt.s32.f32 %v7178
      %v7243 = vcvt.s32.f32 %v7179
      %v7244 = vcvt.s32.f32 %v7180
      %v7245 = vcvt.s32.f32 %v7181
      %v7246 = vcvt.s32.f32 %v7182
      %v7247 = vcvt.s32.f32 %v7183
      %v7248 = vcvt.s32.f32 %v7184
      %v7249 = vcvt.s32.f32 %v7185
      %v7250 = vcvt.s32.f32 %v7186
      %v7251 = vcvt.s32.f32 %v7187
      %v7252 = vcvt.s32.f32 %v7188
      %v7253 = vcvt.s32.f32 %v7189
      %v7254 = vcvt.s32.f32 %v7190
      %v7255 = vcvt.s32.f32 %v7191
      %v7256 = vcvt.s32.f32 %v7192
      %v7257 = vcvt.s32.f32 %v7193
      %v7258 = vcvt.s32.f32 %v7194
      %v7259 = vcvt.s32.f32 %v7195
      %v7260 = vcvt.s32.f32 %v7196
      %v7261 = vcvt.s32.f32 %v7197
      %v7262 = vcvt.s32.f32 %v7198
      %v7263 = vcvt.s32.f32 %v7199
      %v7264 = vcvt.s32.f32 %v7200
      %v7265 = vcvt.s32.f32 %v7201
      %v7266 = vcvt.s32.f32 %v7202
      %v7267 = vcvt.s32.f32 %v7203
      %v7268 = vcvt.s32.f32 %v7204
      %v7269 = vcvt.s32.f32 %v7205
      %v7270 = vcvt.s32.f32 %v7206
      %v7271 = vcvt.s32.f32 %v7207
      %v7272 = vcvt.s32.f32 %v7208
      %v7273 = vcvt.s32.f32 %v7209
      %v7274 = vcvt.s32.f32 %v7210
      %v7275 = vcvt.s32.f32 %v7211
      %v7276 = vcvt.s32.f32 %v7212
      %v7277 = vcvt.s32.f32 %v7213
      %v7278 = vcvt.s32.f32 %v7214
      %v7279 = vcvt.s32.f32 %v7215
      %v7280 = vcvt.s32.f32 %v7216
      %v7281 = vcvt.s32.f32 %v7217
      %v7282 = vcvt.s32.f32 %v7218
      %v7283 = vcvt.s32.f32 %v7219
      %v7284 = vcvt.s32.f32 %v7220
      %v7285 = vcvt.s32.f32 %v7221
      %v7286 = vcvt.s32.f32 %v7222
      %v7287 = vcvt.s32.f32 %v7223
      %v7288 = vcvt.s32.f32 %v7224
      %v7289 = vcvt.s32.f32 %v7225
      %v7290 = vcvt.s32.f32 %v7226
      %v7291 = vcvt.s32.f32 %v7227
      %v7292 = vcvt.s32.f32 %v7228
      %v7293 = vcvt.s32.f32 %v7229
      %v7294 = vcvt.s32.f32 %v7230
      %v7295 = vcvt.s32.f32 %v7231
      %v7296 = vcvt.s32.f32 %v7232
      %v7297 = vcvt.s32.f32 %v7233
      %vm7298 = vcmask 1043456
      %v7299 = vsel %vm7298, %v7070, 0.0
      %v7300 = vrot.slane %v7299, 4
      %v7301 = vadd.f32 %v7299, %v7300
      %v7302 = vrot.slane %v7301, 2
      %v7303 = vadd.f32 %v7301, %v7302
      %v7304 = vrot.slane %v7303, 1
      %v7305 = vadd.f32 %v7303, %v7304
      %v7306 = vsel %vm7298, %v7071, 0.0
      %v7307 = vrot.slane %v7306, 4
      %v7308 = vadd.f32 %v7306, %v7307
      %v7309 = vrot.slane %v7308, 2
      %v7310 = vadd.f32 %v7308, %v7309
      %v7311 = vrot.slane %v7310, 1
      %v7312 = vadd.f32 %v7310, %v7311
      %7313 = vmatpush.msra.mxu0 %v7264
      %7314 = vmatpush.msra.mxu0 %v7262
      %7315 = vmatpush.msra.mxu0 %v7260
      %7316 = vmatpush.msra.mxu0 %v7258
      %7317 = vmatpush.msra.mxu0 %v7256
      %7318 = vmatpush.msra.mxu0 %v7254
      %7319 = vmatpush.msra.mxu0 %v7252
      %7320 = vmatpush.msra.mxu0 %v7250
      %7321 = vmatpush.msra.mxu0 %v7248
      %7322 = vmatpush.msra.mxu0 %v7246
      %7323 = vmatpush.msra.mxu0 %v7244
      %7324 = vmatpush.msra.mxu0 %v7242
      %7325 = vmatpush.msra.mxu0 %v7240
      %7326 = vmatpush.msra.mxu0 %v7238
      %7327 = vmatpush.msra.mxu0 %v7236
      %7328 = vmatpush.msra.mxu0 %v7234
      %7329 = vmatmul.f32.gmra.mxu0 %v7305
      %v7330 = vpop.f32.mrf.mxu0
      %v7331 = vadd.f32 0.0, %v7330
      %7332 = vdwg.mxu0
      %7333 = vmatpush.msra.mxu0 %v7296
      %7334 = vmatpush.msra.mxu0 %v7294
      %7335 = vmatpush.msra.mxu0 %v7292
      %7336 = vmatpush.msra.mxu0 %v7290
      %7337 = vmatpush.msra.mxu0 %v7288
      %7338 = vmatpush.msra.mxu0 %v7286
      %7339 = vmatpush.msra.mxu0 %v7284
      %7340 = vmatpush.msra.mxu0 %v7282
      %7341 = vmatpush.msra.mxu0 %v7280
      %7342 = vmatpush.msra.mxu0 %v7278
      %7343 = vmatpush.msra.mxu0 %v7276
      %7344 = vmatpush.msra.mxu0 %v7274
      %7345 = vmatpush.msra.mxu0 %v7272
      %7346 = vmatpush.msra.mxu0 %v7270
      %7347 = vmatpush.msra.mxu0 %v7268
      %7348 = vmatpush.msra.mxu0 %v7266
      %7349 = vmatmul.f32.gmra.mxu0 %v7312
      %v7350 = vpop.f32.mrf.mxu0
      %v7351 = vadd.f32 %v7331, %v7350
      %7352 = vdwg.mxu0
      %7353 = vmatpush.msra.mxu0 %v7265
      %7354 = vmatpush.msra.mxu0 %v7263
      %7355 = vmatpush.msra.mxu0 %v7261
      %7356 = vmatpush.msra.mxu0 %v7259
      %7357 = vmatpush.msra.mxu0 %v7257
      %7358 = vmatpush.msra.mxu0 %v7255
      %7359 = vmatpush.msra.mxu0 %v7253
      %7360 = vmatpush.msra.mxu0 %v7251
      %7361 = vmatpush.msra.mxu0 %v7249
      %7362 = vmatpush.msra.mxu0 %v7247
      %7363 = vmatpush.msra.mxu0 %v7245
      %7364 = vmatpush.msra.mxu0 %v7243
      %7365 = vmatpush.msra.mxu0 %v7241
      %7366 = vmatpush.msra.mxu0 %v7239
      %7367 = vmatpush.msra.mxu0 %v7237
      %7368 = vmatpush.msra.mxu0 %v7235
      %7369 = vmatmul.f32.gmra.mxu0 %v7305
      %v7370 = vpop.f32.mrf.mxu0
      %v7371 = vadd.f32 0.0, %v7370
      %7372 = vdwg.mxu0
      %7373 = vmatpush.msra.mxu0 %v7297
      %7374 = vmatpush.msra.mxu0 %v7295
      %7375 = vmatpush.msra.mxu0 %v7293
      %7376 = vmatpush.msra.mxu0 %v7291
      %7377 = vmatpush.msra.mxu0 %v7289
      %7378 = vmatpush.msra.mxu0 %v7287
      %7379 = vmatpush.msra.mxu0 %v7285
      %7380 = vmatpush.msra.mxu0 %v7283
      %7381 = vmatpush.msra.mxu0 %v7281
      %7382 = vmatpush.msra.mxu0 %v7279
      %7383 = vmatpush.msra.mxu0 %v7277
      %7384 = vmatpush.msra.mxu0 %v7275
      %7385 = vmatpush.msra.mxu0 %v7273
      %7386 = vmatpush.msra.mxu0 %v7271
      %7387 = vmatpush.msra.mxu0 %v7269
      %7388 = vmatpush.msra.mxu0 %v7267
      %7389 = vmatmul.f32.gmra.mxu0 %v7312
      %v7390 = vpop.f32.mrf.mxu0
      %v7391 = vadd.f32 %v7371, %v7390
      %7392 = vdwg.mxu0
      %v7393 = vmul.f32 %v7351, 0.0625
      %v7394 = vmul.f32 %v7391, 0.0625
      %v7395 = vperm.slane %v7393, 0
      %v7396 = vperm.slane %v7394, 0
      %v7397 = vsub.f32 %v7070, %v7395
      %v7398 = vsub.f32 %v7071, %v7396
      %v7399 = vmul.f32 %v7397, %v7397
      %v7400 = vmul.f32 %v7398, %v7398
      %v7401 = vsel %vm7298, %v7399, 0.0
      %v7402 = vrot.slane %v7401, 4
      %v7403 = vadd.f32 %v7401, %v7402
      %v7404 = vrot.slane %v7403, 2
      %v7405 = vadd.f32 %v7403, %v7404
      %v7406 = vrot.slane %v7405, 1
      %v7407 = vadd.f32 %v7405, %v7406
      %v7408 = vsel %vm7298, %v7400, 0.0
      %v7409 = vrot.slane %v7408, 4
      %v7410 = vadd.f32 %v7408, %v7409
      %v7411 = vrot.slane %v7410, 2
      %v7412 = vadd.f32 %v7410, %v7411
      %v7413 = vrot.slane %v7412, 1
      %v7414 = vadd.f32 %v7412, %v7413
      %7415 = vmatpush.msra.mxu0 %v7264
      %7416 = vmatpush.msra.mxu0 %v7262
      %7417 = vmatpush.msra.mxu0 %v7260
      %7418 = vmatpush.msra.mxu0 %v7258
      %7419 = vmatpush.msra.mxu0 %v7256
      %7420 = vmatpush.msra.mxu0 %v7254
      %7421 = vmatpush.msra.mxu0 %v7252
      %7422 = vmatpush.msra.mxu0 %v7250
      %7423 = vmatpush.msra.mxu0 %v7248
      %7424 = vmatpush.msra.mxu0 %v7246
      %7425 = vmatpush.msra.mxu0 %v7244
      %7426 = vmatpush.msra.mxu0 %v7242
      %7427 = vmatpush.msra.mxu0 %v7240
      %7428 = vmatpush.msra.mxu0 %v7238
      %7429 = vmatpush.msra.mxu0 %v7236
      %7430 = vmatpush.msra.mxu0 %v7234
      %7431 = vmatmul.f32.gmra.mxu0 %v7407
      %v7432 = vpop.f32.mrf.mxu0
      %v7433 = vadd.f32 0.0, %v7432
      %7434 = vdwg.mxu0
      %7435 = vmatpush.msra.mxu0 %v7296
      %7436 = vmatpush.msra.mxu0 %v7294
      %7437 = vmatpush.msra.mxu0 %v7292
      %7438 = vmatpush.msra.mxu0 %v7290
      %7439 = vmatpush.msra.mxu0 %v7288
      %7440 = vmatpush.msra.mxu0 %v7286
      %7441 = vmatpush.msra.mxu0 %v7284
      %7442 = vmatpush.msra.mxu0 %v7282
      %7443 = vmatpush.msra.mxu0 %v7280
      %7444 = vmatpush.msra.mxu0 %v7278
      %7445 = vmatpush.msra.mxu0 %v7276
      %7446 = vmatpush.msra.mxu0 %v7274
      %7447 = vmatpush.msra.mxu0 %v7272
      %7448 = vmatpush.msra.mxu0 %v7270
      %7449 = vmatpush.msra.mxu0 %v7268
      %7450 = vmatpush.msra.mxu0 %v7266
      %7451 = vmatmul.f32.gmra.mxu0 %v7414
      %v7452 = vpop.f32.mrf.mxu0
      %v7453 = vadd.f32 %v7433, %v7452
      %7454 = vdwg.mxu0
      %7455 = vmatpush.msra.mxu0 %v7265
      %7456 = vmatpush.msra.mxu0 %v7263
      %7457 = vmatpush.msra.mxu0 %v7261
      %7458 = vmatpush.msra.mxu0 %v7259
      %7459 = vmatpush.msra.mxu0 %v7257
      %7460 = vmatpush.msra.mxu0 %v7255
      %7461 = vmatpush.msra.mxu0 %v7253
      %7462 = vmatpush.msra.mxu0 %v7251
      %7463 = vmatpush.msra.mxu0 %v7249
      %7464 = vmatpush.msra.mxu0 %v7247
      %7465 = vmatpush.msra.mxu0 %v7245
      %7466 = vmatpush.msra.mxu0 %v7243
      %7467 = vmatpush.msra.mxu0 %v7241
      %7468 = vmatpush.msra.mxu0 %v7239
      %7469 = vmatpush.msra.mxu0 %v7237
      %7470 = vmatpush.msra.mxu0 %v7235
      %7471 = vmatmul.f32.gmra.mxu0 %v7407
      %v7472 = vpop.f32.mrf.mxu0
      %v7473 = vadd.f32 0.0, %v7472
      %7474 = vdwg.mxu0
      %7475 = vmatpush.msra.mxu0 %v7297
      %7476 = vmatpush.msra.mxu0 %v7295
      %7477 = vmatpush.msra.mxu0 %v7293
      %7478 = vmatpush.msra.mxu0 %v7291
      %7479 = vmatpush.msra.mxu0 %v7289
      %7480 = vmatpush.msra.mxu0 %v7287
      %7481 = vmatpush.msra.mxu0 %v7285
      %7482 = vmatpush.msra.mxu0 %v7283
      %7483 = vmatpush.msra.mxu0 %v7281
      %7484 = vmatpush.msra.mxu0 %v7279
      %7485 = vmatpush.msra.mxu0 %v7277
      %7486 = vmatpush.msra.mxu0 %v7275
      %7487 = vmatpush.msra.mxu0 %v7273
      %7488 = vmatpush.msra.mxu0 %v7271
      %7489 = vmatpush.msra.mxu0 %v7269
      %7490 = vmatpush.msra.mxu0 %v7267
      %7491 = vmatmul.f32.gmra.mxu0 %v7414
      %v7492 = vpop.f32.mrf.mxu0
      %v7493 = vadd.f32 %v7473, %v7492
      %7494 = vdwg.mxu0
      %v7495 = vmul.f32 %v7453, 0.0625
      %v7496 = vmul.f32 %v7493, 0.0625
      %v7497 = vadd.f32 %v7495, 1e-05
      %v7498 = vadd.f32 %v7496, 1e-05
      %v7499 = vrsqrt.pop %v7497
      %v7500 = vmul.f32 %v7499, %v7497
      %v7501 = vmul.f32 %v7500, %v7499
      %v7502 = vmul.f32 0.5, %v7501
      %v7503 = vsub.f32 1.5, %v7502
      %v7504 = vmul.f32 %v7499, %v7503
      %vm7505 = vweird.f32 %v7497
      %vm7506 = vweird.f32 %v7499
      %vm7507 = vmor %vm7505, %vm7506
      %v7508 = vsel %vm7507, %v7499, %v7504
      %v7509 = vrsqrt.pop %v7498
      %v7510 = vmul.f32 %v7509, %v7498
      %v7511 = vmul.f32 %v7510, %v7509
      %v7512 = vmul.f32 0.5, %v7511
      %v7513 = vsub.f32 1.5, %v7512
      %v7514 = vmul.f32 %v7509, %v7513
      %vm7515 = vweird.f32 %v7498
      %vm7516 = vweird.f32 %v7509
      %vm7517 = vmor %vm7515, %vm7516
      %v7518 = vsel %vm7517, %v7509, %v7514
      %v7519 = vperm.slane %v7508, 0
      %v7520 = vperm.slane %v7518, 0
      %v7521 = vmul.f32 %v7397, %v7519
      %v7522 = vmul.f32 %v7398, %v7520
      %v7523 = vld [vmem:[%s9] sm:$0x3]
      %v7525 = vperm.slane %v7523, 0
      %v7526 = vperm.slane %v7523, 1
      %v7529 = vmul.f32 %v7521, %v7525
      %v7530 = vmul.f32 %v7522, %v7526
      %v7531 = vld [vmem:[%s10] sm:$0x3]
      %v7533 = vperm.slane %v7531, 0
      %v7534 = vperm.slane %v7531, 1
      %v7537 = vadd.f32 %v7529, %v7533
      %v7538 = vadd.f32 %v7530, %v7534
      %vm7539 = vcmp.gt.f32.partialorder %v7537, 0.0
      %vm7540 = vcmp.gt.f32.partialorder %v7538, 0.0
      %v7541 = vmul.f32 %v7537, 0.2
      %v7542 = vmul.f32 %v7538, 0.2
      %v7543 = vsel %vm7539, %v7537, %v7541
      %v7544 = vsel %vm7540, %v7538, %v7542
      %v7547 = vrot.slane %v7544, 4
      %v7548 = vsel %vm7298, %v7543, %v7547
      %7550 = vst [vmem:[%s446] sm:$0xff] %v7548
      %v7551 = vld [vmem:[%s11] sm:$0xff]
      %7553 = vst [vmem:[#allocation1] ss:$2 sm:$0xff] %v7551
      %v7554 = vld.sshfl [vmem:[#allocation1] sm:$0xff pattern:$0x75316420]
      %v7555 = vld.sshfl [vmem:[#allocation1 + $0x8] sm:$0xff pattern:$0x75316420]
      %v7558 = vmul.f32 %v7543, %v7554
      %v7559 = vmul.f32 %v7544, %v7555
      %v7560 = vsel %vm7298, %v7558, 0.0
      %v7561 = vsel %vm7298, %v7559, 0.0
      %v7562 = vadd.f32 %v7560, %v7561
      %7563 = vadd.xlane.f32.xlu0 %v7562
      %v7564 = vpop.xlane.xlu0 %7563
      %v7565 = vsel %vm7298, %v7564, 0.0
      %v7566 = vrot.slane %v7565, 4
      %v7567 = vadd.f32 %v7565, %v7566
      %v7568 = vrot.slane %v7567, 2
      %v7569 = vadd.f32 %v7567, %v7568
      %v7570 = vrot.slane %v7569, 1
      %v7571 = vadd.f32 %v7569, %v7570
      %vm7572 = vcmask 0
      %7573 = vst.msk [vmem:[%s449] sm:$0x1] %vm7572, %v7571
      %p7574 = scmp.lt.s32.totalorder %s25, 1
      %s7575 = scalar_select %p7574, %s25, 1
      %s7576 = smul.addr %s7575, 2
      %s7577 = smul.addr %s7576, 4
      %s7578 = scalar_lea.vmem %s12, %s7577
      %p7579 = scmp.lt.s32.totalorder %s25, 1
      %s7580 = scalar_select %p7579, %s25, 1
      %s7581 = scalar_lea.vmem %s13, %s7580
      // Predicated region
      $region69: #{forward.1} parent=67 // pred_check
        %p7582 = pneg %p300
      $region70: #{forward.1} parent=67 // pred_check_branch
        %7584 = sbr.rel (%p7582) target = $region72
      $region71: #{forward.1} parent=67 // pred_region
        _
      $region72: #{forward.1} parent=67 // pred_fallthru
        _
      // Predicated region
      $region73: #{forward.1} parent=67 // pred_check
        %p7585 = pneg %p326
      $region74: #{forward.1} parent=67 // pred_check_branch
        %7587 = sbr.rel (%p7585) target = $region76
      $region75: #{forward.1} parent=67 // pred_region
        _
      $region76: #{forward.1} parent=67 // pred_fallthru
        _
    $region68: #{forward.1} parent=5 // pred_fallthru
      _
    %p7588 = scmp.le.s32.totalorder 2, %s20
    // Predicated region
    $region77: #{forward.1} parent=5 // pred_check
      %p7589 = pneg %p7588
    $region78: #{forward.1} parent=5 // pred_check_branch
      %7591 = sbr.rel (%p7589) target = $region80
    $region79: #{forward.1} parent=5 // pred_region
      %s7592 = ssub.s32 %s20, 2
      // Predicated region
      $region81: #{forward.1} parent=79 // pred_check
        %p7593 = pneg %p306
      $region82: #{forward.1} parent=79 // pred_check_branch
        %7595 = sbr.rel (%p7593) target = $region84
      $region83: #{forward.1} parent=79 // pred_region
        %p7596 = scmp.lt.s32.totalorder %s26, 1
        %s7597 = scalar_select %p7596, %s26, 1
        %s7598 = smul.addr %s7597, 2
        %s7599 = smul.addr %s7598, 4
        %s7600 = scalar_lea.vmem %s12, %s7599
      $region84: #{forward.1} parent=79 // pred_fallthru
        _
      // Predicated region
      $region85: #{forward.1} parent=79 // pred_check
        %p7601 = pneg %p332
      $region86: #{forward.1} parent=79 // pred_check_branch
        %7603 = sbr.rel (%p7601) target = $region88
      $region87: #{forward.1} parent=79 // pred_region
        %p7604 = scmp.lt.s32.totalorder %s26, 1
        %s7605 = scalar_select %p7604, %s26, 1
        %s7606 = scalar_lea.vmem %s13, %s7605
      $region88: #{forward.1} parent=79 // pred_fallthru
        _
    $region80: #{forward.1} parent=5 // pred_fallthru
      _
  $region6: #{forward.1} parent=0 // loop_footer
    %s24 = sadd.s32 1, %s20
  $region7: #{forward.1} parent=0 // loop_footer_branch
    %19 = sbr.rel target = $region3
  $region8: #{forward.1} parent=0 // loop_exit
    _

</llo_original>
